<compile_context>
chip_gen: v7x
topology: tpu7x:2x2x1
jax: 0.10.0
libtpu: 0.0.40
codegen_flags: <defaults>
</compile_context>

<pallas_src>
import jax
import jax.numpy as jnp
from jax import lax
from jax.experimental import pallas as pl
from jax.experimental.pallas import tpu as pltpu  # noqa: F401  (TPU backend)

DP = 128  # lane-padded biaffine / classifier hidden width


def _bf16_dot(a, b):
    """MXU matmul: bf16 inputs, f32 accumulation."""
    return jnp.dot(a.astype(jnp.bfloat16), b.astype(jnp.bfloat16),
                   preferred_element_type=jnp.float32)


def _make_fused_kernel(B, T, Pe, Td, H, L, n_upos, n_deprel):
    BT = B * T
    H2, H3, H4, H8 = 2 * H, 3 * H, 4 * H, 8 * H
    in_sizes = [Td] + [H2] * (L - 1)
    pad_w = 128 - (2 * T + 1)

    def kernel(emb_ref, transw_ref, wx_ref, bx_ref, whh_ref, hc_ref,
               headw_ref, headb_ref, clfU_ref, out_ref):
        # ------------------- trans_pretrained -------------------
        x = _bf16_dot(emb_ref[...].reshape(BT, Pe), transw_ref[...])          # (BT, Td)

        # ------------------- HighwayLSTM (L bidirectional layers) -------------------
        hc = hc_ref[...]                                                      # (2*L*2B, H)
        bx_all = bx_ref[...]                                                  # (L, 12H)
        row = 0
        for l in range(L):
            n_in = in_sizes[l]
            # hoisted full-size input projection: [fwd gates | bwd gates | hw gate | hw trans]
            gx = _bf16_dot(x, wx_ref[row:row + n_in, :]) + bx_all[l:l + 1, :]  # (BT, 12H)
            row += n_in
            hw = jax.nn.sigmoid(gx[:, H8:H8 + H2]) * jnp.tanh(gx[:, H8 + H2:])  # (BT, 2H)
            gx3 = gx[:, :H8].reshape(B, T, H8)                                 # free reshape
            whh = whh_ref[l * H:(l + 1) * H, :]                                # (H, 8H) bf16

            h_all = hc[l * 2 * B:(l + 1) * 2 * B, :]          # (2B, H): rows 0:B fwd, B:2B bwd
            c_all = hc[(L + l) * 2 * B:(L + l + 1) * 2 * B, :]
            hf = [None] * T
            hb = [None] * T
            for s in range(T):                                 # static unroll (T small)
                a_f = gx3[:, s, 0:H4]                          # (B, 4H) fwd input at pos s
                a_b = gx3[:, T - 1 - s, H4:H8]                 # (B, 4H) bwd input at pos T-1-s
                prod = _bf16_dot(h_all, whh)                   # (2B, 8H) single recurrent matmul
                g = jnp.concatenate([prod[0:B, 0:H4] + a_f,
                                     prod[B:2 * B, H4:H8] + a_b], axis=0)     # (2B, 4H)
                # gate order [i | f | o | g]: one sigmoid + one tanh per step
                sg = jax.nn.sigmoid(g[:, 0:H3])
                gg = jnp.tanh(g[:, H3:H4])
                c_all = sg[:, H:2 * H] * c_all + sg[:, 0:H] * gg
                h_all = sg[:, 2 * H:H3] * jnp.tanh(c_all)
                hf[s] = h_all[0:B, :]
                hb[T - 1 - s] = h_all[B:2 * B, :]

            yf = jnp.stack(hf, axis=1)                                         # (B, T, H)
            yb = jnp.stack(hb, axis=1)                                         # (B, T, H)
            x = jnp.concatenate([yf, yb], axis=-1).reshape(BT, H2) + hw        # (BT, 2H)

        # ------------------- fused heads -------------------
        # single wide projection: [upos_hid | arc_h1 | arc_h2 | rel_h1 | rel_h2], each padded
        # to 128 lanes with a constant-1 column at index Dh (folds classifier/bilinear biases).
        proj = jnp.maximum(_bf16_dot(x, headw_ref[...]) + headb_ref[...], 0.0)  # (BT, 5*DP)
        th = proj[:, 0:DP]
        h1u, h2u = proj[:, DP:2 * DP], proj[:, 2 * DP:3 * DP]
        h1d, h2d = proj[:, 3 * DP:4 * DP], proj[:, 4 * DP:5 * DP]

        # tagger: argmax(upos_clf(relu(upos_hid(x)))) (clf bias folded into row Dh)
        logits = _bf16_dot(th, clfU_ref[:, 0:DP])                              # (BT, 128)
        col = lax.broadcasted_iota(jnp.int32, (BT, DP), 1)
        logits = jnp.where(col < n_upos, logits, -jnp.inf)
        mx = jnp.max(logits, axis=-1, keepdims=True)
        upos_f = jnp.min(jnp.where(logits == mx, col, DP), axis=-1,
                         keepdims=True).astype(jnp.float32)                    # first-max argmax

        # first (lane-dense) stage of both biaffine scorers
        Mu = _bf16_dot(h1u, clfU_ref[:, DP:2 * DP])                            # (BT, DP)
        Md = _bf16_dot(h1d, clfU_ref[:, 2 * DP:(2 + n_deprel) * DP])           # (BT, n_deprel*DP)

        diag = (lax.broadcasted_iota(jnp.int32, (T, T), 0) ==
                lax.broadcasted_iota(jnp.int32, (T, T), 1))

        out_rows = []
        for b in range(B):                                                     # B tiny & static
            sl = slice(b * T, (b + 1) * T)
            # hoisted transposes (reused across all deprel classes)
            h2uT = h2u[sl, :].T.astype(jnp.bfloat16)                           # (DP, T)
            h2dT = h2d[sl, :].T.astype(jnp.bfloat16)                           # (DP, T)
            # unlabeled (arc) scores: rows = dependents, cols = head candidates;
            # diagonal -> -inf, log-softmax over heads (last axis).  T >= 2 assumed.
            su = jnp.where(diag, -jnp.inf, _bf16_dot(Mu[sl, :], h2uT))         # (T, T)
            m = jnp.max(su, axis=-1, keepdims=True)
            logsm = su - (jnp.log(jnp.sum(jnp.exp(su - m), axis=-1, keepdims=True)) + m)
            # deprel scores: running first-max argmax over classes
            Md_b = Md[sl, :]
            best = _bf16_dot(Md_b[:, 0:DP], h2dT)
            best_idx = jnp.zeros((T, T), jnp.float32)
            for o in range(1, n_deprel):                                       # static loop
                cur = _bf16_dot(Md_b[:, o * DP:(o + 1) * DP], h2dT)
                upd = cur > best
                best_idx = jnp.where(upd, jnp.float32(o), best_idx)
                best = jnp.where(upd, cur, best)
            out_rows.append(jnp.concatenate(
                [logsm, best_idx, upos_f[sl, :],
                 jnp.zeros((T, pad_w), jnp.float32)], axis=1))                 # (T, 128)

        # one lane-dense store: [logsm (T cols) | deprel argmax (T cols) | upos argmax | pad]
        out_ref[...] = jnp.concatenate(out_rows, axis=0).reshape(B, T, 128)

    return kernel


# ----------------------------------------------------------------------------
# Parameter init (deterministic; layouts pre-packed host-side for the kernel)
# ----------------------------------------------------------------------------
def init_params(key, V, Pe, Td, H, L, Dh, n_upos, n_deprel, B):
    keys = iter(jax.random.split(key, 64))

    def rnd(shape, scale=0.1):
        return jax.random.normal(next(keys), shape, jnp.float32) * scale

    params = {}
    params['pretrained_emb'] = rnd((V, Pe), 1.0)                     # frozen nn.Embedding
    params['trans_w'] = rnd((Pe, Td)).astype(jnp.bfloat16)           # Linear(Pe, Td, bias=False)

    # ---- HighwayLSTM weights packed into 3 slabs ----
    in_sizes = [Td] + [2 * H] * (L - 1)
    wx_rows, bx_rows, whh_rows = [], [], []
    for l in range(L):
        n_in = in_sizes[l]
        # input-projection columns: [fwd i|f|o|g (4H)] [bwd i|f|o|g (4H)] [hw gate (2H)] [hw trans (2H)]
        wx_rows.append(rnd((n_in, 12 * H)))
        bx_rows.append(rnd((1, 12 * H)))
        # recurrent weights: [Whh_f | Whh_b], same [i|f|o|g] column order
        whh_rows.append(rnd((H, 8 * H)))
    params['wx'] = jnp.concatenate(wx_rows, axis=0).astype(jnp.bfloat16)    # (Td+(L-1)*2H, 12H)
    params['bx'] = jnp.concatenate(bx_rows, axis=0)                          # (L, 12H)
    params['whh'] = jnp.concatenate(whh_rows, axis=0).astype(jnp.bfloat16)   # (L*H, 8H)
    # lstm_h_init / lstm_c_init (zero nn.Parameters), pre-expanded over batch:
    # rows = [h: layer0 (B fwd, B bwd), layer1, ...] then [c: ...]
    params['hc_init'] = jnp.zeros((2 * L * 2 * B, H), jnp.float32)

    # ---- heads: one (2H, 5*128) projection slab, one (128, (2+n_deprel)*128) weight slab ----
    def padded_proj():
        w, b = rnd((2 * H, Dh)), rnd((1, Dh))
        wp = jnp.zeros((2 * H, DP), jnp.float32).at[:, :Dh].set(w)
        # column Dh carries the constant 1 after relu (bias folding); columns > Dh stay 0
        bp = jnp.zeros((1, DP), jnp.float32).at[:, :Dh].set(b).at[:, Dh].set(1.0)
        return wp, bp

    ws, bs = zip(*[padded_proj() for _ in range(5)])   # upos_hid, arc_h1, arc_h2, rel_h1, rel_h2
    params['head_w'] = jnp.concatenate(ws, axis=1).astype(jnp.bfloat16)      # (2H, 640)
    params['head_b'] = jnp.concatenate(bs, axis=1)                           # (1, 640)

    # upos classifier (bias folded at row Dh).  NOTE: original zero-inits upos_clf; random here.
    clf = jnp.zeros((DP, DP), jnp.float32)
    clf = clf.at[:Dh, :n_upos].set(rnd((Dh, n_upos)))
    clf = clf.at[Dh, :n_upos].set(rnd((n_upos,)))

    def bilinear(O):
        u = rnd((O, Dh + 1, Dh + 1))                    # PairwiseBilinear weight (incl. bias row/col)
        up = jnp.zeros((O, DP, DP), jnp.float32).at[:, :Dh + 1, :Dh + 1].set(u)
        # stacked lane-dense layout: cols [o*DP:(o+1)*DP] == U_o
        return jnp.transpose(up, (1, 0, 2)).reshape(DP, O * DP)

    params['clfU'] = jnp.concatenate([clf, bilinear(1), bilinear(n_deprel)],
                                     axis=1).astype(jnp.bfloat16)            # (128, (2+n_deprel)*128)
    return params


# ----------------------------------------------------------------------------
# Forward (eval mode)
# ----------------------------------------------------------------------------
def mt_tagger_parser_forward(params, word, word_mask, pretrained, *, n_upos):
    # word/word_mask unused with char_type='deactivated'; dropout/word-dropout identity in eval.
    # TODO(synk): training-mode branches (word dropout, CE losses) not implemented.
    del word, word_mask

    B, T = pretrained.shape
    Pe = params['pretrained_emb'].shape[1]
    Td = params['trans_w'].shape[1]
    L, H12 = params['bx'].shape
    H = H12 // 12
    n_deprel = params['clfU'].shape[1] // DP - 2
    assert 2 * T + 1 <= 128 and T >= 2

    # pretrained embedding lookup: data-dependent gather left to XLA
    emb = jnp.take(params['pretrained_emb'], pretrained, axis=0)             # (B, T, Pe)

    out = pl.pallas_call(
        _make_fused_kernel(B, T, Pe, Td, H, L, n_upos, n_deprel),
        out_shape=jax.ShapeDtypeStruct((B, T, 128), jnp.float32),
    )(emb, params['trans_w'], params['wx'], params['bx'], params['whh'],
      params['hc_init'], params['head_w'], params['head_b'], params['clfU'])

    logsm = out[:, :, 0:T]                              # log_softmax(unlabeled_scores, dim=2)
    dep_idx = out[:, :, T:2 * T].astype(jnp.int32)      # deprel_scores.max(3)[1]
    upos_idx = out[:, :, 2 * T].astype(jnp.int32)       # upos_pred.max(2)[1]

    tagging_loss = jnp.float32(0.0)                     # eval mode
    parsing_loss = jnp.float32(0.0)
    tagging_preds = [upos_idx]                          # (B, T)
    parsing_preds = [logsm, dep_idx]                    # (B, T, T), (B, T, T)
    return tagging_loss + parsing_loss, tagging_preds, parsing_preds


if __name__ == "__main__":
    key = jax.random.PRNGKey(0)
    B, T = 2, 9                       # batch, sequence length (incl. ROOT position)
    V, Pe, Td, H, L, Dh = 50, 24, 32, 32, 2, 32
    n_upos, n_deprel = 16, 8

    pkey, ikey = jax.random.split(key)
    params = init_params(pkey, V, Pe, Td, H, L, Dh, n_upos, n_deprel, B)

    k1, k2 = jax.random.split(ikey)
    word = jax.random.randint(k1, (B, T), 1, V, dtype=jnp.int32)
    pretrained = jax.random.randint(k2, (B, T), 1, V, dtype=jnp.int32)
    word_mask = jnp.zeros((B, T), jnp.bool_)

    fwd = jax.jit(mt_tagger_parser_forward, static_argnames=("n_upos",))
    out = fwd(params, word, word_mask, pretrained, n_upos=n_upos)
    jax.block_until_ready(out)
    print("KERNEL_OK")
</pallas_src>

<mosaic_0001>
module attributes {stable_mosaic.version = 11 : i64} {
  func.func @kernel(%arg0: memref<2x9x24xf32, #tpu.memory_space<vmem>>, %arg1: memref<24x32xbf16, #tpu.memory_space<vmem>>, %arg2: memref<96x384xbf16, #tpu.memory_space<vmem>>, %arg3: memref<2x384xf32, #tpu.memory_space<vmem>>, %arg4: memref<64x256xbf16, #tpu.memory_space<vmem>>, %arg5: memref<16x32xf32, #tpu.memory_space<vmem>>, %arg6: memref<64x640xbf16, #tpu.memory_space<vmem>>, %arg7: memref<1x640xf32, #tpu.memory_space<vmem>>, %arg8: memref<128x1280xbf16, #tpu.memory_space<vmem>>, %arg9: memref<2x9x128xf32, #tpu.memory_space<vmem>>) attributes {dimension_semantics = [], scalar_prefetch = 0 : i64, scratch_operands = 0 : i64, tpu.core_type = #tpu.core_type<tc>} {
    %c0 = arith.constant 0 : index
    %c0_0 = arith.constant 0 : index
    %c0_1 = arith.constant 0 : index
    %0 = vector.load %arg0[%c0, %c0_0, %c0_1] : memref<2x9x24xf32, #tpu.memory_space<vmem>>, vector<2x9x24xf32>
    %1 = vector.shape_cast %0 : vector<2x9x24xf32> to vector<18x24xf32>
    %c0_2 = arith.constant 0 : index
    %c0_3 = arith.constant 0 : index
    %2 = vector.load %arg1[%c0_2, %c0_3] : memref<24x32xbf16, #tpu.memory_space<vmem>>, vector<24x32xbf16>
    %3 = arith.truncf %1 : vector<18x24xf32> to vector<18x24xbf16>
    %cst = arith.constant dense<0.000000e+00> : vector<18x32xf32>
    %4 = tpu.matmul %3, %2, %cst {dimension_numbers = #tpu.dot_dimension_numbers<[1], [0], [0], [1], [0, 0, 1, 1], [], []>} : vector<18x24xbf16>, vector<24x32xbf16>, vector<18x32xf32> -> vector<18x32xf32>
    %c0_4 = arith.constant 0 : index
    %c0_5 = arith.constant 0 : index
    %5 = vector.load %arg5[%c0_4, %c0_5] : memref<16x32xf32, #tpu.memory_space<vmem>>, vector<16x32xf32>
    %c0_6 = arith.constant 0 : index
    %c0_7 = arith.constant 0 : index
    %6 = vector.load %arg3[%c0_6, %c0_7] : memref<2x384xf32, #tpu.memory_space<vmem>>, vector<2x384xf32>
    %c0_8 = arith.constant 0 : index
    %c0_9 = arith.constant 0 : index
    %7 = vector.load %arg2[%c0_8, %c0_9] : memref<96x384xbf16, #tpu.memory_space<vmem>>, vector<32x384xbf16>
    %8 = arith.truncf %4 : vector<18x32xf32> to vector<18x32xbf16>
    %cst_10 = arith.constant dense<0.000000e+00> : vector<18x384xf32>
    %9 = tpu.matmul %8, %7, %cst_10 {dimension_numbers = #tpu.dot_dimension_numbers<[1], [0], [0], [1], [0, 0, 1, 1], [], []>} : vector<18x32xbf16>, vector<32x384xbf16>, vector<18x384xf32> -> vector<18x384xf32>
    %10 = vector.extract_strided_slice %6 {offsets = [0, 0], sizes = [1, 384], strides = [1, 1]} : vector<2x384xf32> to vector<1x384xf32>
    %11 = vector.broadcast %10 : vector<1x384xf32> to vector<18x384xf32>
    %12 = arith.addf %9, %11 : vector<18x384xf32>
    %13 = vector.extract_strided_slice %12 {offsets = [0, 256], sizes = [18, 64], strides = [1, 1]} : vector<18x384xf32> to vector<18x64xf32>
    %14 = arith.negf %13 : vector<18x64xf32>
    %15 = math.exp %14 : vector<18x64xf32>
    %cst_11 = arith.constant 1.000000e+00 : f32
    %16 = vector.broadcast %cst_11 : f32 to vector<18x64xf32>
    %17 = arith.addf %16, %15 : vector<18x64xf32>
    %18 = arith.divf %16, %17 : vector<18x64xf32>
    %19 = vector.extract_strided_slice %12 {offsets = [0, 320], sizes = [18, 64], strides = [1, 1]} : vector<18x384xf32> to vector<18x64xf32>
    %20 = math.tanh %19 : vector<18x64xf32>
    %21 = arith.mulf %18, %20 : vector<18x64xf32>
    %22 = vector.extract_strided_slice %12 {offsets = [0, 0], sizes = [18, 256], strides = [1, 1]} : vector<18x384xf32> to vector<18x256xf32>
    %23 = vector.shape_cast %22 : vector<18x256xf32> to vector<2x9x256xf32>
    %c0_12 = arith.constant 0 : index
    %c0_13 = arith.constant 0 : index
    %24 = vector.load %arg4[%c0_12, %c0_13] : memref<64x256xbf16, #tpu.memory_space<vmem>>, vector<32x256xbf16>
    %25 = vector.extract_strided_slice %5 {offsets = [0, 0], sizes = [4, 32], strides = [1, 1]} : vector<16x32xf32> to vector<4x32xf32>
    %26 = vector.extract_strided_slice %5 {offsets = [8, 0], sizes = [4, 32], strides = [1, 1]} : vector<16x32xf32> to vector<4x32xf32>
    %27 = vector.extract_strided_slice %23 {offsets = [0, 0, 0], sizes = [2, 1, 128], strides = [1, 1, 1]} : vector<2x9x256xf32> to vector<2x1x128xf32>
    %28 = vector.shape_cast %27 : vector<2x1x128xf32> to vector<2x128xf32>
    %29 = vector.extract_strided_slice %23 {offsets = [0, 8, 128], sizes = [2, 1, 128], strides = [1, 1, 1]} : vector<2x9x256xf32> to vector<2x1x128xf32>
    %30 = vector.shape_cast %29 : vector<2x1x128xf32> to vector<2x128xf32>
    %31 = arith.truncf %25 : vector<4x32xf32> to vector<4x32xbf16>
    %cst_14 = arith.constant dense<0.000000e+00> : vector<4x256xf32>
    %32 = tpu.matmul %31, %24, %cst_14 {dimension_numbers = #tpu.dot_dimension_numbers<[1], [0], [0], [1], [0, 0, 1, 1], [], []>} : vector<4x32xbf16>, vector<32x256xbf16>, vector<4x256xf32> -> vector<4x256xf32>
    %33 = vector.extract_strided_slice %32 {offsets = [0, 0], sizes = [2, 128], strides = [1, 1]} : vector<4x256xf32> to vector<2x128xf32>
    %34 = arith.addf %33, %28 : vector<2x128xf32>
    %35 = vector.extract_strided_slice %32 {offsets = [2, 128], sizes = [2, 128], strides = [1, 1]} : vector<4x256xf32> to vector<2x128xf32>
    %36 = arith.addf %35, %30 : vector<2x128xf32>
    %37 = tpu.concatenate %34, %36 in 0 : vector<2x128xf32>, vector<2x128xf32> -> vector<4x128xf32>
    %38 = vector.extract_strided_slice %37 {offsets = [0, 0], sizes = [4, 96], strides = [1, 1]} : vector<4x128xf32> to vector<4x96xf32>
    %39 = arith.negf %38 : vector<4x96xf32>
    %40 = math.exp %39 : vector<4x96xf32>
    %cst_15 = arith.constant 1.000000e+00 : f32
    %41 = vector.broadcast %cst_15 : f32 to vector<4x96xf32>
    %42 = arith.addf %41, %40 : vector<4x96xf32>
    %43 = arith.divf %41, %42 : vector<4x96xf32>
    %44 = vector.extract_strided_slice %37 {offsets = [0, 96], sizes = [4, 32], strides = [1, 1]} : vector<4x128xf32> to vector<4x32xf32>
    %45 = math.tanh %44 : vector<4x32xf32>
    %46 = vector.extract_strided_slice %43 {offsets = [0, 32], sizes = [4, 32], strides = [1, 1]} : vector<4x96xf32> to vector<4x32xf32>
    %47 = arith.mulf %46, %26 : vector<4x32xf32>
    %48 = vector.extract_strided_slice %43 {offsets = [0, 0], sizes = [4, 32], strides = [1, 1]} : vector<4x96xf32> to vector<4x32xf32>
    %49 = arith.mulf %48, %45 : vector<4x32xf32>
    %50 = arith.addf %47, %49 : vector<4x32xf32>
    %51 = vector.extract_strided_slice %43 {offsets = [0, 64], sizes = [4, 32], strides = [1, 1]} : vector<4x96xf32> to vector<4x32xf32>
    %52 = math.tanh %50 : vector<4x32xf32>
    %53 = arith.mulf %51, %52 : vector<4x32xf32>
    %54 = vector.extract_strided_slice %53 {offsets = [0, 0], sizes = [2, 32], strides = [1, 1]} : vector<4x32xf32> to vector<2x32xf32>
    %55 = vector.extract_strided_slice %53 {offsets = [2, 0], sizes = [2, 32], strides = [1, 1]} : vector<4x32xf32> to vector<2x32xf32>
    %56 = vector.extract_strided_slice %23 {offsets = [0, 1, 0], sizes = [2, 1, 128], strides = [1, 1, 1]} : vector<2x9x256xf32> to vector<2x1x128xf32>
    %57 = vector.shape_cast %56 : vector<2x1x128xf32> to vector<2x128xf32>
    %58 = vector.extract_strided_slice %23 {offsets = [0, 7, 128], sizes = [2, 1, 128], strides = [1, 1, 1]} : vector<2x9x256xf32> to vector<2x1x128xf32>
    %59 = vector.shape_cast %58 : vector<2x1x128xf32> to vector<2x128xf32>
    %60 = arith.truncf %53 : vector<4x32xf32> to vector<4x32xbf16>
    %cst_16 = arith.constant dense<0.000000e+00> : vector<4x256xf32>
    %61 = tpu.matmul %60, %24, %cst_16 {dimension_numbers = #tpu.dot_dimension_numbers<[1], [0], [0], [1], [0, 0, 1, 1], [], []>} : vector<4x32xbf16>, vector<32x256xbf16>, vector<4x256xf32> -> vector<4x256xf32>
    %62 = vector.extract_strided_slice %61 {offsets = [0, 0], sizes = [2, 128], strides = [1, 1]} : vector<4x256xf32> to vector<2x128xf32>
    %63 = arith.addf %62, %57 : vector<2x128xf32>
    %64 = vector.extract_strided_slice %61 {offsets = [2, 128], sizes = [2, 128], strides = [1, 1]} : vector<4x256xf32> to vector<2x128xf32>
    %65 = arith.addf %64, %59 : vector<2x128xf32>
    %66 = tpu.concatenate %63, %65 in 0 : vector<2x128xf32>, vector<2x128xf32> -> vector<4x128xf32>
    %67 = vector.extract_strided_slice %66 {offsets = [0, 0], sizes = [4, 96], strides = [1, 1]} : vector<4x128xf32> to vector<4x96xf32>
    %68 = arith.negf %67 : vector<4x96xf32>
    %69 = math.exp %68 : vector<4x96xf32>
    %cst_17 = arith.constant 1.000000e+00 : f32
    %70 = vector.broadcast %cst_17 : f32 to vector<4x96xf32>
    %71 = arith.addf %70, %69 : vector<4x96xf32>
    %72 = arith.divf %70, %71 : vector<4x96xf32>
    %73 = vector.extract_strided_slice %66 {offsets = [0, 96], sizes = [4, 32], strides = [1, 1]} : vector<4x128xf32> to vector<4x32xf32>
    %74 = math.tanh %73 : vector<4x32xf32>
    %75 = vector.extract_strided_slice %72 {offsets = [0, 32], sizes = [4, 32], strides = [1, 1]} : vector<4x96xf32> to vector<4x32xf32>
    %76 = arith.mulf %75, %50 : vector<4x32xf32>
    %77 = vector.extract_strided_slice %72 {offsets = [0, 0], sizes = [4, 32], strides = [1, 1]} : vector<4x96xf32> to vector<4x32xf32>
    %78 = arith.mulf %77, %74 : vector<4x32xf32>
    %79 = arith.addf %76, %78 : vector<4x32xf32>
    %80 = vector.extract_strided_slice %72 {offsets = [0, 64], sizes = [4, 32], strides = [1, 1]} : vector<4x96xf32> to vector<4x32xf32>
    %81 = math.tanh %79 : vector<4x32xf32>
    %82 = arith.mulf %80, %81 : vector<4x32xf32>
    %83 = vector.extract_strided_slice %82 {offsets = [0, 0], sizes = [2, 32], strides = [1, 1]} : vector<4x32xf32> to vector<2x32xf32>
    %84 = vector.extract_strided_slice %82 {offsets = [2, 0], sizes = [2, 32], strides = [1, 1]} : vector<4x32xf32> to vector<2x32xf32>
    %85 = vector.extract_strided_slice %23 {offsets = [0, 2, 0], sizes = [2, 1, 128], strides = [1, 1, 1]} : vector<2x9x256xf32> to vector<2x1x128xf32>
    %86 = vector.shape_cast %85 : vector<2x1x128xf32> to vector<2x128xf32>
    %87 = vector.extract_strided_slice %23 {offsets = [0, 6, 128], sizes = [2, 1, 128], strides = [1, 1, 1]} : vector<2x9x256xf32> to vector<2x1x128xf32>
    %88 = vector.shape_cast %87 : vector<2x1x128xf32> to vector<2x128xf32>
    %89 = arith.truncf %82 : vector<4x32xf32> to vector<4x32xbf16>
    %cst_18 = arith.constant dense<0.000000e+00> : vector<4x256xf32>
    %90 = tpu.matmul %89, %24, %cst_18 {dimension_numbers = #tpu.dot_dimension_numbers<[1], [0], [0], [1], [0, 0, 1, 1], [], []>} : vector<4x32xbf16>, vector<32x256xbf16>, vector<4x256xf32> -> vector<4x256xf32>
    %91 = vector.extract_strided_slice %90 {offsets = [0, 0], sizes = [2, 128], strides = [1, 1]} : vector<4x256xf32> to vector<2x128xf32>
    %92 = arith.addf %91, %86 : vector<2x128xf32>
    %93 = vector.extract_strided_slice %90 {offsets = [2, 128], sizes = [2, 128], strides = [1, 1]} : vector<4x256xf32> to vector<2x128xf32>
    %94 = arith.addf %93, %88 : vector<2x128xf32>
    %95 = tpu.concatenate %92, %94 in 0 : vector<2x128xf32>, vector<2x128xf32> -> vector<4x128xf32>
    %96 = vector.extract_strided_slice %95 {offsets = [0, 0], sizes = [4, 96], strides = [1, 1]} : vector<4x128xf32> to vector<4x96xf32>
    %97 = arith.negf %96 : vector<4x96xf32>
    %98 = math.exp %97 : vector<4x96xf32>
    %cst_19 = arith.constant 1.000000e+00 : f32
    %99 = vector.broadcast %cst_19 : f32 to vector<4x96xf32>
    %100 = arith.addf %99, %98 : vector<4x96xf32>
    %101 = arith.divf %99, %100 : vector<4x96xf32>
    %102 = vector.extract_strided_slice %95 {offsets = [0, 96], sizes = [4, 32], strides = [1, 1]} : vector<4x128xf32> to vector<4x32xf32>
    %103 = math.tanh %102 : vector<4x32xf32>
    %104 = vector.extract_strided_slice %101 {offsets = [0, 32], sizes = [4, 32], strides = [1, 1]} : vector<4x96xf32> to vector<4x32xf32>
    %105 = arith.mulf %104, %79 : vector<4x32xf32>
    %106 = vector.extract_strided_slice %101 {offsets = [0, 0], sizes = [4, 32], strides = [1, 1]} : vector<4x96xf32> to vector<4x32xf32>
    %107 = arith.mulf %106, %103 : vector<4x32xf32>
    %108 = arith.addf %105, %107 : vector<4x32xf32>
    %109 = vector.extract_strided_slice %101 {offsets = [0, 64], sizes = [4, 32], strides = [1, 1]} : vector<4x96xf32> to vector<4x32xf32>
    %110 = math.tanh %108 : vector<4x32xf32>
    %111 = arith.mulf %109, %110 : vector<4x32xf32>
    %112 = vector.extract_strided_slice %111 {offsets = [0, 0], sizes = [2, 32], strides = [1, 1]} : vector<4x32xf32> to vector<2x32xf32>
    %113 = vector.extract_strided_slice %111 {offsets = [2, 0], sizes = [2, 32], strides = [1, 1]} : vector<4x32xf32> to vector<2x32xf32>
    %114 = vector.extract_strided_slice %23 {offsets = [0, 3, 0], sizes = [2, 1, 128], strides = [1, 1, 1]} : vector<2x9x256xf32> to vector<2x1x128xf32>
    %115 = vector.shape_cast %114 : vector<2x1x128xf32> to vector<2x128xf32>
    %116 = vector.extract_strided_slice %23 {offsets = [0, 5, 128], sizes = [2, 1, 128], strides = [1, 1, 1]} : vector<2x9x256xf32> to vector<2x1x128xf32>
    %117 = vector.shape_cast %116 : vector<2x1x128xf32> to vector<2x128xf32>
    %118 = arith.truncf %111 : vector<4x32xf32> to vector<4x32xbf16>
    %cst_20 = arith.constant dense<0.000000e+00> : vector<4x256xf32>
    %119 = tpu.matmul %118, %24, %cst_20 {dimension_numbers = #tpu.dot_dimension_numbers<[1], [0], [0], [1], [0, 0, 1, 1], [], []>} : vector<4x32xbf16>, vector<32x256xbf16>, vector<4x256xf32> -> vector<4x256xf32>
    %120 = vector.extract_strided_slice %119 {offsets = [0, 0], sizes = [2, 128], strides = [1, 1]} : vector<4x256xf32> to vector<2x128xf32>
    %121 = arith.addf %120, %115 : vector<2x128xf32>
    %122 = vector.extract_strided_slice %119 {offsets = [2, 128], sizes = [2, 128], strides = [1, 1]} : vector<4x256xf32> to vector<2x128xf32>
    %123 = arith.addf %122, %117 : vector<2x128xf32>
    %124 = tpu.concatenate %121, %123 in 0 : vector<2x128xf32>, vector<2x128xf32> -> vector<4x128xf32>
    %125 = vector.extract_strided_slice %124 {offsets = [0, 0], sizes = [4, 96], strides = [1, 1]} : vector<4x128xf32> to vector<4x96xf32>
    %126 = arith.negf %125 : vector<4x96xf32>
    %127 = math.exp %126 : vector<4x96xf32>
    %cst_21 = arith.constant 1.000000e+00 : f32
    %128 = vector.broadcast %cst_21 : f32 to vector<4x96xf32>
    %129 = arith.addf %128, %127 : vector<4x96xf32>
    %130 = arith.divf %128, %129 : vector<4x96xf32>
    %131 = vector.extract_strided_slice %124 {offsets = [0, 96], sizes = [4, 32], strides = [1, 1]} : vector<4x128xf32> to vector<4x32xf32>
    %132 = math.tanh %131 : vector<4x32xf32>
    %133 = vector.extract_strided_slice %130 {offsets = [0, 32], sizes = [4, 32], strides = [1, 1]} : vector<4x96xf32> to vector<4x32xf32>
    %134 = arith.mulf %133, %108 : vector<4x32xf32>
    %135 = vector.extract_strided_slice %130 {offsets = [0, 0], sizes = [4, 32], strides = [1, 1]} : vector<4x96xf32> to vector<4x32xf32>
    %136 = arith.mulf %135, %132 : vector<4x32xf32>
    %137 = arith.addf %134, %136 : vector<4x32xf32>
    %138 = vector.extract_strided_slice %130 {offsets = [0, 64], sizes = [4, 32], strides = [1, 1]} : vector<4x96xf32> to vector<4x32xf32>
    %139 = math.tanh %137 : vector<4x32xf32>
    %140 = arith.mulf %138, %139 : vector<4x32xf32>
    %141 = vector.extract_strided_slice %140 {offsets = [0, 0], sizes = [2, 32], strides = [1, 1]} : vector<4x32xf32> to vector<2x32xf32>
    %142 = vector.extract_strided_slice %140 {offsets = [2, 0], sizes = [2, 32], strides = [1, 1]} : vector<4x32xf32> to vector<2x32xf32>
    %143 = vector.extract_strided_slice %23 {offsets = [0, 4, 0], sizes = [2, 1, 128], strides = [1, 1, 1]} : vector<2x9x256xf32> to vector<2x1x128xf32>
    %144 = vector.shape_cast %143 : vector<2x1x128xf32> to vector<2x128xf32>
    %145 = vector.extract_strided_slice %23 {offsets = [0, 4, 128], sizes = [2, 1, 128], strides = [1, 1, 1]} : vector<2x9x256xf32> to vector<2x1x128xf32>
    %146 = vector.shape_cast %145 : vector<2x1x128xf32> to vector<2x128xf32>
    %147 = arith.truncf %140 : vector<4x32xf32> to vector<4x32xbf16>
    %cst_22 = arith.constant dense<0.000000e+00> : vector<4x256xf32>
    %148 = tpu.matmul %147, %24, %cst_22 {dimension_numbers = #tpu.dot_dimension_numbers<[1], [0], [0], [1], [0, 0, 1, 1], [], []>} : vector<4x32xbf16>, vector<32x256xbf16>, vector<4x256xf32> -> vector<4x256xf32>
    %149 = vector.extract_strided_slice %148 {offsets = [0, 0], sizes = [2, 128], strides = [1, 1]} : vector<4x256xf32> to vector<2x128xf32>
    %150 = arith.addf %149, %144 : vector<2x128xf32>
    %151 = vector.extract_strided_slice %148 {offsets = [2, 128], sizes = [2, 128], strides = [1, 1]} : vector<4x256xf32> to vector<2x128xf32>
    %152 = arith.addf %151, %146 : vector<2x128xf32>
    %153 = tpu.concatenate %150, %152 in 0 : vector<2x128xf32>, vector<2x128xf32> -> vector<4x128xf32>
    %154 = vector.extract_strided_slice %153 {offsets = [0, 0], sizes = [4, 96], strides = [1, 1]} : vector<4x128xf32> to vector<4x96xf32>
    %155 = arith.negf %154 : vector<4x96xf32>
    %156 = math.exp %155 : vector<4x96xf32>
    %cst_23 = arith.constant 1.000000e+00 : f32
    %157 = vector.broadcast %cst_23 : f32 to vector<4x96xf32>
    %158 = arith.addf %157, %156 : vector<4x96xf32>
    %159 = arith.divf %157, %158 : vector<4x96xf32>
    %160 = vector.extract_strided_slice %153 {offsets = [0, 96], sizes = [4, 32], strides = [1, 1]} : vector<4x128xf32> to vector<4x32xf32>
    %161 = math.tanh %160 : vector<4x32xf32>
    %162 = vector.extract_strided_slice %159 {offsets = [0, 32], sizes = [4, 32], strides = [1, 1]} : vector<4x96xf32> to vector<4x32xf32>
    %163 = arith.mulf %162, %137 : vector<4x32xf32>
    %164 = vector.extract_strided_slice %159 {offsets = [0, 0], sizes = [4, 32], strides = [1, 1]} : vector<4x96xf32> to vector<4x32xf32>
    %165 = arith.mulf %164, %161 : vector<4x32xf32>
    %166 = arith.addf %163, %165 : vector<4x32xf32>
    %167 = vector.extract_strided_slice %159 {offsets = [0, 64], sizes = [4, 32], strides = [1, 1]} : vector<4x96xf32> to vector<4x32xf32>
    %168 = math.tanh %166 : vector<4x32xf32>
    %169 = arith.mulf %167, %168 : vector<4x32xf32>
    %170 = vector.extract_strided_slice %169 {offsets = [0, 0], sizes = [2, 32], strides = [1, 1]} : vector<4x32xf32> to vector<2x32xf32>
    %171 = vector.extract_strided_slice %169 {offsets = [2, 0], sizes = [2, 32], strides = [1, 1]} : vector<4x32xf32> to vector<2x32xf32>
    %172 = vector.extract_strided_slice %23 {offsets = [0, 5, 0], sizes = [2, 1, 128], strides = [1, 1, 1]} : vector<2x9x256xf32> to vector<2x1x128xf32>
    %173 = vector.shape_cast %172 : vector<2x1x128xf32> to vector<2x128xf32>
    %174 = vector.extract_strided_slice %23 {offsets = [0, 3, 128], sizes = [2, 1, 128], strides = [1, 1, 1]} : vector<2x9x256xf32> to vector<2x1x128xf32>
    %175 = vector.shape_cast %174 : vector<2x1x128xf32> to vector<2x128xf32>
    %176 = arith.truncf %169 : vector<4x32xf32> to vector<4x32xbf16>
    %cst_24 = arith.constant dense<0.000000e+00> : vector<4x256xf32>
    %177 = tpu.matmul %176, %24, %cst_24 {dimension_numbers = #tpu.dot_dimension_numbers<[1], [0], [0], [1], [0, 0, 1, 1], [], []>} : vector<4x32xbf16>, vector<32x256xbf16>, vector<4x256xf32> -> vector<4x256xf32>
    %178 = vector.extract_strided_slice %177 {offsets = [0, 0], sizes = [2, 128], strides = [1, 1]} : vector<4x256xf32> to vector<2x128xf32>
    %179 = arith.addf %178, %173 : vector<2x128xf32>
    %180 = vector.extract_strided_slice %177 {offsets = [2, 128], sizes = [2, 128], strides = [1, 1]} : vector<4x256xf32> to vector<2x128xf32>
    %181 = arith.addf %180, %175 : vector<2x128xf32>
    %182 = tpu.concatenate %179, %181 in 0 : vector<2x128xf32>, vector<2x128xf32> -> vector<4x128xf32>
    %183 = vector.extract_strided_slice %182 {offsets = [0, 0], sizes = [4, 96], strides = [1, 1]} : vector<4x128xf32> to vector<4x96xf32>
    %184 = arith.negf %183 : vector<4x96xf32>
    %185 = math.exp %184 : vector<4x96xf32>
    %cst_25 = arith.constant 1.000000e+00 : f32
    %186 = vector.broadcast %cst_25 : f32 to vector<4x96xf32>
    %187 = arith.addf %186, %185 : vector<4x96xf32>
    %188 = arith.divf %186, %187 : vector<4x96xf32>
    %189 = vector.extract_strided_slice %182 {offsets = [0, 96], sizes = [4, 32], strides = [1, 1]} : vector<4x128xf32> to vector<4x32xf32>
    %190 = math.tanh %189 : vector<4x32xf32>
    %191 = vector.extract_strided_slice %188 {offsets = [0, 32], sizes = [4, 32], strides = [1, 1]} : vector<4x96xf32> to vector<4x32xf32>
    %192 = arith.mulf %191, %166 : vector<4x32xf32>
    %193 = vector.extract_strided_slice %188 {offsets = [0, 0], sizes = [4, 32], strides = [1, 1]} : vector<4x96xf32> to vector<4x32xf32>
    %194 = arith.mulf %193, %190 : vector<4x32xf32>
    %195 = arith.addf %192, %194 : vector<4x32xf32>
    %196 = vector.extract_strided_slice %188 {offsets = [0, 64], sizes = [4, 32], strides = [1, 1]} : vector<4x96xf32> to vector<4x32xf32>
    %197 = math.tanh %195 : vector<4x32xf32>
    %198 = arith.mulf %196, %197 : vector<4x32xf32>
    %199 = vector.extract_strided_slice %198 {offsets = [0, 0], sizes = [2, 32], strides = [1, 1]} : vector<4x32xf32> to vector<2x32xf32>
    %200 = vector.extract_strided_slice %198 {offsets = [2, 0], sizes = [2, 32], strides = [1, 1]} : vector<4x32xf32> to vector<2x32xf32>
    %201 = vector.extract_strided_slice %23 {offsets = [0, 6, 0], sizes = [2, 1, 128], strides = [1, 1, 1]} : vector<2x9x256xf32> to vector<2x1x128xf32>
    %202 = vector.shape_cast %201 : vector<2x1x128xf32> to vector<2x128xf32>
    %203 = vector.extract_strided_slice %23 {offsets = [0, 2, 128], sizes = [2, 1, 128], strides = [1, 1, 1]} : vector<2x9x256xf32> to vector<2x1x128xf32>
    %204 = vector.shape_cast %203 : vector<2x1x128xf32> to vector<2x128xf32>
    %205 = arith.truncf %198 : vector<4x32xf32> to vector<4x32xbf16>
    %cst_26 = arith.constant dense<0.000000e+00> : vector<4x256xf32>
    %206 = tpu.matmul %205, %24, %cst_26 {dimension_numbers = #tpu.dot_dimension_numbers<[1], [0], [0], [1], [0, 0, 1, 1], [], []>} : vector<4x32xbf16>, vector<32x256xbf16>, vector<4x256xf32> -> vector<4x256xf32>
    %207 = vector.extract_strided_slice %206 {offsets = [0, 0], sizes = [2, 128], strides = [1, 1]} : vector<4x256xf32> to vector<2x128xf32>
    %208 = arith.addf %207, %202 : vector<2x128xf32>
    %209 = vector.extract_strided_slice %206 {offsets = [2, 128], sizes = [2, 128], strides = [1, 1]} : vector<4x256xf32> to vector<2x128xf32>
    %210 = arith.addf %209, %204 : vector<2x128xf32>
    %211 = tpu.concatenate %208, %210 in 0 : vector<2x128xf32>, vector<2x128xf32> -> vector<4x128xf32>
    %212 = vector.extract_strided_slice %211 {offsets = [0, 0], sizes = [4, 96], strides = [1, 1]} : vector<4x128xf32> to vector<4x96xf32>
    %213 = arith.negf %212 : vector<4x96xf32>
    %214 = math.exp %213 : vector<4x96xf32>
    %cst_27 = arith.constant 1.000000e+00 : f32
    %215 = vector.broadcast %cst_27 : f32 to vector<4x96xf32>
    %216 = arith.addf %215, %214 : vector<4x96xf32>
    %217 = arith.divf %215, %216 : vector<4x96xf32>
    %218 = vector.extract_strided_slice %211 {offsets = [0, 96], sizes = [4, 32], strides = [1, 1]} : vector<4x128xf32> to vector<4x32xf32>
    %219 = math.tanh %218 : vector<4x32xf32>
    %220 = vector.extract_strided_slice %217 {offsets = [0, 32], sizes = [4, 32], strides = [1, 1]} : vector<4x96xf32> to vector<4x32xf32>
    %221 = arith.mulf %220, %195 : vector<4x32xf32>
    %222 = vector.extract_strided_slice %217 {offsets = [0, 0], sizes = [4, 32], strides = [1, 1]} : vector<4x96xf32> to vector<4x32xf32>
    %223 = arith.mulf %222, %219 : vector<4x32xf32>
    %224 = arith.addf %221, %223 : vector<4x32xf32>
    %225 = vector.extract_strided_slice %217 {offsets = [0, 64], sizes = [4, 32], strides = [1, 1]} : vector<4x96xf32> to vector<4x32xf32>
    %226 = math.tanh %224 : vector<4x32xf32>
    %227 = arith.mulf %225, %226 : vector<4x32xf32>
    %228 = vector.extract_strided_slice %227 {offsets = [0, 0], sizes = [2, 32], strides = [1, 1]} : vector<4x32xf32> to vector<2x32xf32>
    %229 = vector.extract_strided_slice %227 {offsets = [2, 0], sizes = [2, 32], strides = [1, 1]} : vector<4x32xf32> to vector<2x32xf32>
    %230 = vector.extract_strided_slice %23 {offsets = [0, 7, 0], sizes = [2, 1, 128], strides = [1, 1, 1]} : vector<2x9x256xf32> to vector<2x1x128xf32>
    %231 = vector.shape_cast %230 : vector<2x1x128xf32> to vector<2x128xf32>
    %232 = vector.extract_strided_slice %23 {offsets = [0, 1, 128], sizes = [2, 1, 128], strides = [1, 1, 1]} : vector<2x9x256xf32> to vector<2x1x128xf32>
    %233 = vector.shape_cast %232 : vector<2x1x128xf32> to vector<2x128xf32>
    %234 = arith.truncf %227 : vector<4x32xf32> to vector<4x32xbf16>
    %cst_28 = arith.constant dense<0.000000e+00> : vector<4x256xf32>
    %235 = tpu.matmul %234, %24, %cst_28 {dimension_numbers = #tpu.dot_dimension_numbers<[1], [0], [0], [1], [0, 0, 1, 1], [], []>} : vector<4x32xbf16>, vector<32x256xbf16>, vector<4x256xf32> -> vector<4x256xf32>
    %236 = vector.extract_strided_slice %235 {offsets = [0, 0], sizes = [2, 128], strides = [1, 1]} : vector<4x256xf32> to vector<2x128xf32>
    %237 = arith.addf %236, %231 : vector<2x128xf32>
    %238 = vector.extract_strided_slice %235 {offsets = [2, 128], sizes = [2, 128], strides = [1, 1]} : vector<4x256xf32> to vector<2x128xf32>
    %239 = arith.addf %238, %233 : vector<2x128xf32>
    %240 = tpu.concatenate %237, %239 in 0 : vector<2x128xf32>, vector<2x128xf32> -> vector<4x128xf32>
    %241 = vector.extract_strided_slice %240 {offsets = [0, 0], sizes = [4, 96], strides = [1, 1]} : vector<4x128xf32> to vector<4x96xf32>
    %242 = arith.negf %241 : vector<4x96xf32>
    %243 = math.exp %242 : vector<4x96xf32>
    %cst_29 = arith.constant 1.000000e+00 : f32
    %244 = vector.broadcast %cst_29 : f32 to vector<4x96xf32>
    %245 = arith.addf %244, %243 : vector<4x96xf32>
    %246 = arith.divf %244, %245 : vector<4x96xf32>
    %247 = vector.extract_strided_slice %240 {offsets = [0, 96], sizes = [4, 32], strides = [1, 1]} : vector<4x128xf32> to vector<4x32xf32>
    %248 = math.tanh %247 : vector<4x32xf32>
    %249 = vector.extract_strided_slice %246 {offsets = [0, 32], sizes = [4, 32], strides = [1, 1]} : vector<4x96xf32> to vector<4x32xf32>
    %250 = arith.mulf %249, %224 : vector<4x32xf32>
    %251 = vector.extract_strided_slice %246 {offsets = [0, 0], sizes = [4, 32], strides = [1, 1]} : vector<4x96xf32> to vector<4x32xf32>
    %252 = arith.mulf %251, %248 : vector<4x32xf32>
    %253 = arith.addf %250, %252 : vector<4x32xf32>
    %254 = vector.extract_strided_slice %246 {offsets = [0, 64], sizes = [4, 32], strides = [1, 1]} : vector<4x96xf32> to vector<4x32xf32>
    %255 = math.tanh %253 : vector<4x32xf32>
    %256 = arith.mulf %254, %255 : vector<4x32xf32>
    %257 = vector.extract_strided_slice %256 {offsets = [0, 0], sizes = [2, 32], strides = [1, 1]} : vector<4x32xf32> to vector<2x32xf32>
    %258 = vector.extract_strided_slice %256 {offsets = [2, 0], sizes = [2, 32], strides = [1, 1]} : vector<4x32xf32> to vector<2x32xf32>
    %259 = vector.extract_strided_slice %23 {offsets = [0, 8, 0], sizes = [2, 1, 128], strides = [1, 1, 1]} : vector<2x9x256xf32> to vector<2x1x128xf32>
    %260 = vector.shape_cast %259 : vector<2x1x128xf32> to vector<2x128xf32>
    %261 = vector.extract_strided_slice %23 {offsets = [0, 0, 128], sizes = [2, 1, 128], strides = [1, 1, 1]} : vector<2x9x256xf32> to vector<2x1x128xf32>
    %262 = vector.shape_cast %261 : vector<2x1x128xf32> to vector<2x128xf32>
    %263 = arith.truncf %256 : vector<4x32xf32> to vector<4x32xbf16>
    %cst_30 = arith.constant dense<0.000000e+00> : vector<4x256xf32>
    %264 = tpu.matmul %263, %24, %cst_30 {dimension_numbers = #tpu.dot_dimension_numbers<[1], [0], [0], [1], [0, 0, 1, 1], [], []>} : vector<4x32xbf16>, vector<32x256xbf16>, vector<4x256xf32> -> vector<4x256xf32>
    %265 = vector.extract_strided_slice %264 {offsets = [0, 0], sizes = [2, 128], strides = [1, 1]} : vector<4x256xf32> to vector<2x128xf32>
    %266 = arith.addf %265, %260 : vector<2x128xf32>
    %267 = vector.extract_strided_slice %264 {offsets = [2, 128], sizes = [2, 128], strides = [1, 1]} : vector<4x256xf32> to vector<2x128xf32>
    %268 = arith.addf %267, %262 : vector<2x128xf32>
    %269 = tpu.concatenate %266, %268 in 0 : vector<2x128xf32>, vector<2x128xf32> -> vector<4x128xf32>
    %270 = vector.extract_strided_slice %269 {offsets = [0, 0], sizes = [4, 96], strides = [1, 1]} : vector<4x128xf32> to vector<4x96xf32>
    %271 = arith.negf %270 : vector<4x96xf32>
    %272 = math.exp %271 : vector<4x96xf32>
    %cst_31 = arith.constant 1.000000e+00 : f32
    %273 = vector.broadcast %cst_31 : f32 to vector<4x96xf32>
    %274 = arith.addf %273, %272 : vector<4x96xf32>
    %275 = arith.divf %273, %274 : vector<4x96xf32>
    %276 = vector.extract_strided_slice %269 {offsets = [0, 96], sizes = [4, 32], strides = [1, 1]} : vector<4x128xf32> to vector<4x32xf32>
    %277 = math.tanh %276 : vector<4x32xf32>
    %278 = vector.extract_strided_slice %275 {offsets = [0, 32], sizes = [4, 32], strides = [1, 1]} : vector<4x96xf32> to vector<4x32xf32>
    %279 = arith.mulf %278, %253 : vector<4x32xf32>
    %280 = vector.extract_strided_slice %275 {offsets = [0, 0], sizes = [4, 32], strides = [1, 1]} : vector<4x96xf32> to vector<4x32xf32>
    %281 = arith.mulf %280, %277 : vector<4x32xf32>
    %282 = arith.addf %279, %281 : vector<4x32xf32>
    %283 = vector.extract_strided_slice %275 {offsets = [0, 64], sizes = [4, 32], strides = [1, 1]} : vector<4x96xf32> to vector<4x32xf32>
    %284 = math.tanh %282 : vector<4x32xf32>
    %285 = arith.mulf %283, %284 : vector<4x32xf32>
    %286 = vector.extract_strided_slice %285 {offsets = [0, 0], sizes = [2, 32], strides = [1, 1]} : vector<4x32xf32> to vector<2x32xf32>
    %287 = vector.extract_strided_slice %285 {offsets = [2, 0], sizes = [2, 32], strides = [1, 1]} : vector<4x32xf32> to vector<2x32xf32>
    %288 = vector.shape_cast %54 : vector<2x32xf32> to vector<2x1x32xf32>
    %289 = vector.shape_cast %83 : vector<2x32xf32> to vector<2x1x32xf32>
    %290 = vector.shape_cast %112 : vector<2x32xf32> to vector<2x1x32xf32>
    %291 = vector.shape_cast %141 : vector<2x32xf32> to vector<2x1x32xf32>
    %292 = vector.shape_cast %170 : vector<2x32xf32> to vector<2x1x32xf32>
    %293 = vector.shape_cast %199 : vector<2x32xf32> to vector<2x1x32xf32>
    %294 = vector.shape_cast %228 : vector<2x32xf32> to vector<2x1x32xf32>
    %295 = vector.shape_cast %257 : vector<2x32xf32> to vector<2x1x32xf32>
    %296 = vector.shape_cast %286 : vector<2x32xf32> to vector<2x1x32xf32>
    %297 = tpu.concatenate %288, %289, %290, %291, %292, %293, %294, %295, %296 in 1 : vector<2x1x32xf32>, vector<2x1x32xf32>, vector<2x1x32xf32>, vector<2x1x32xf32>, vector<2x1x32xf32>, vector<2x1x32xf32>, vector<2x1x32xf32>, vector<2x1x32xf32>, vector<2x1x32xf32> -> vector<2x9x32xf32>
    %298 = vector.shape_cast %287 : vector<2x32xf32> to vector<2x1x32xf32>
    %299 = vector.shape_cast %258 : vector<2x32xf32> to vector<2x1x32xf32>
    %300 = vector.shape_cast %229 : vector<2x32xf32> to vector<2x1x32xf32>
    %301 = vector.shape_cast %200 : vector<2x32xf32> to vector<2x1x32xf32>
    %302 = vector.shape_cast %171 : vector<2x32xf32> to vector<2x1x32xf32>
    %303 = vector.shape_cast %142 : vector<2x32xf32> to vector<2x1x32xf32>
    %304 = vector.shape_cast %113 : vector<2x32xf32> to vector<2x1x32xf32>
    %305 = vector.shape_cast %84 : vector<2x32xf32> to vector<2x1x32xf32>
    %306 = vector.shape_cast %55 : vector<2x32xf32> to vector<2x1x32xf32>
    %307 = tpu.concatenate %298, %299, %300, %301, %302, %303, %304, %305, %306 in 1 : vector<2x1x32xf32>, vector<2x1x32xf32>, vector<2x1x32xf32>, vector<2x1x32xf32>, vector<2x1x32xf32>, vector<2x1x32xf32>, vector<2x1x32xf32>, vector<2x1x32xf32>, vector<2x1x32xf32> -> vector<2x9x32xf32>
    %308 = tpu.concatenate %297, %307 in 2 : vector<2x9x32xf32>, vector<2x9x32xf32> -> vector<2x9x64xf32>
    %309 = vector.shape_cast %308 : vector<2x9x64xf32> to vector<18x64xf32>
    %310 = arith.addf %309, %21 : vector<18x64xf32>
    %c32 = arith.constant 32 : index
    %c0_32 = arith.constant 0 : index
    %311 = vector.load %arg2[%c32, %c0_32] : memref<96x384xbf16, #tpu.memory_space<vmem>>, vector<64x384xbf16>
    %312 = arith.truncf %310 : vector<18x64xf32> to vector<18x64xbf16>
    %cst_33 = arith.constant dense<0.000000e+00> : vector<18x384xf32>
    %313 = tpu.matmul %312, %311, %cst_33 {dimension_numbers = #tpu.dot_dimension_numbers<[1], [0], [0], [1], [0, 0, 1, 1], [], []>} : vector<18x64xbf16>, vector<64x384xbf16>, vector<18x384xf32> -> vector<18x384xf32>
    %314 = vector.extract_strided_slice %6 {offsets = [1, 0], sizes = [1, 384], strides = [1, 1]} : vector<2x384xf32> to vector<1x384xf32>
    %315 = vector.broadcast %314 : vector<1x384xf32> to vector<18x384xf32>
    %316 = arith.addf %313, %315 : vector<18x384xf32>
    %317 = vector.extract_strided_slice %316 {offsets = [0, 256], sizes = [18, 64], strides = [1, 1]} : vector<18x384xf32> to vector<18x64xf32>
    %318 = arith.negf %317 : vector<18x64xf32>
    %319 = math.exp %318 : vector<18x64xf32>
    %cst_34 = arith.constant 1.000000e+00 : f32
    %320 = vector.broadcast %cst_34 : f32 to vector<18x64xf32>
    %321 = arith.addf %320, %319 : vector<18x64xf32>
    %322 = arith.divf %320, %321 : vector<18x64xf32>
    %323 = vector.extract_strided_slice %316 {offsets = [0, 320], sizes = [18, 64], strides = [1, 1]} : vector<18x384xf32> to vector<18x64xf32>
    %324 = math.tanh %323 : vector<18x64xf32>
    %325 = arith.mulf %322, %324 : vector<18x64xf32>
    %326 = vector.extract_strided_slice %316 {offsets = [0, 0], sizes = [18, 256], strides = [1, 1]} : vector<18x384xf32> to vector<18x256xf32>
    %327 = vector.shape_cast %326 : vector<18x256xf32> to vector<2x9x256xf32>
    %c32_35 = arith.constant 32 : index
    %c0_36 = arith.constant 0 : index
    %328 = vector.load %arg4[%c32_35, %c0_36] : memref<64x256xbf16, #tpu.memory_space<vmem>>, vector<32x256xbf16>
    %329 = vector.extract_strided_slice %5 {offsets = [4, 0], sizes = [4, 32], strides = [1, 1]} : vector<16x32xf32> to vector<4x32xf32>
    %330 = vector.extract_strided_slice %5 {offsets = [12, 0], sizes = [4, 32], strides = [1, 1]} : vector<16x32xf32> to vector<4x32xf32>
    %331 = vector.extract_strided_slice %327 {offsets = [0, 0, 0], sizes = [2, 1, 128], strides = [1, 1, 1]} : vector<2x9x256xf32> to vector<2x1x128xf32>
    %332 = vector.shape_cast %331 : vector<2x1x128xf32> to vector<2x128xf32>
    %333 = vector.extract_strided_slice %327 {offsets = [0, 8, 128], sizes = [2, 1, 128], strides = [1, 1, 1]} : vector<2x9x256xf32> to vector<2x1x128xf32>
    %334 = vector.shape_cast %333 : vector<2x1x128xf32> to vector<2x128xf32>
    %335 = arith.truncf %329 : vector<4x32xf32> to vector<4x32xbf16>
    %cst_37 = arith.constant dense<0.000000e+00> : vector<4x256xf32>
    %336 = tpu.matmul %335, %328, %cst_37 {dimension_numbers = #tpu.dot_dimension_numbers<[1], [0], [0], [1], [0, 0, 1, 1], [], []>} : vector<4x32xbf16>, vector<32x256xbf16>, vector<4x256xf32> -> vector<4x256xf32>
    %337 = vector.extract_strided_slice %336 {offsets = [0, 0], sizes = [2, 128], strides = [1, 1]} : vector<4x256xf32> to vector<2x128xf32>
    %338 = arith.addf %337, %332 : vector<2x128xf32>
    %339 = vector.extract_strided_slice %336 {offsets = [2, 128], sizes = [2, 128], strides = [1, 1]} : vector<4x256xf32> to vector<2x128xf32>
    %340 = arith.addf %339, %334 : vector<2x128xf32>
    %341 = tpu.concatenate %338, %340 in 0 : vector<2x128xf32>, vector<2x128xf32> -> vector<4x128xf32>
    %342 = vector.extract_strided_slice %341 {offsets = [0, 0], sizes = [4, 96], strides = [1, 1]} : vector<4x128xf32> to vector<4x96xf32>
    %343 = arith.negf %342 : vector<4x96xf32>
    %344 = math.exp %343 : vector<4x96xf32>
    %cst_38 = arith.constant 1.000000e+00 : f32
    %345 = vector.broadcast %cst_38 : f32 to vector<4x96xf32>
    %346 = arith.addf %345, %344 : vector<4x96xf32>
    %347 = arith.divf %345, %346 : vector<4x96xf32>
    %348 = vector.extract_strided_slice %341 {offsets = [0, 96], sizes = [4, 32], strides = [1, 1]} : vector<4x128xf32> to vector<4x32xf32>
    %349 = math.tanh %348 : vector<4x32xf32>
    %350 = vector.extract_strided_slice %347 {offsets = [0, 32], sizes = [4, 32], strides = [1, 1]} : vector<4x96xf32> to vector<4x32xf32>
    %351 = arith.mulf %350, %330 : vector<4x32xf32>
    %352 = vector.extract_strided_slice %347 {offsets = [0, 0], sizes = [4, 32], strides = [1, 1]} : vector<4x96xf32> to vector<4x32xf32>
    %353 = arith.mulf %352, %349 : vector<4x32xf32>
    %354 = arith.addf %351, %353 : vector<4x32xf32>
    %355 = vector.extract_strided_slice %347 {offsets = [0, 64], sizes = [4, 32], strides = [1, 1]} : vector<4x96xf32> to vector<4x32xf32>
    %356 = math.tanh %354 : vector<4x32xf32>
    %357 = arith.mulf %355, %356 : vector<4x32xf32>
    %358 = vector.extract_strided_slice %357 {offsets = [0, 0], sizes = [2, 32], strides = [1, 1]} : vector<4x32xf32> to vector<2x32xf32>
    %359 = vector.extract_strided_slice %357 {offsets = [2, 0], sizes = [2, 32], strides = [1, 1]} : vector<4x32xf32> to vector<2x32xf32>
    %360 = vector.extract_strided_slice %327 {offsets = [0, 1, 0], sizes = [2, 1, 128], strides = [1, 1, 1]} : vector<2x9x256xf32> to vector<2x1x128xf32>
    %361 = vector.shape_cast %360 : vector<2x1x128xf32> to vector<2x128xf32>
    %362 = vector.extract_strided_slice %327 {offsets = [0, 7, 128], sizes = [2, 1, 128], strides = [1, 1, 1]} : vector<2x9x256xf32> to vector<2x1x128xf32>
    %363 = vector.shape_cast %362 : vector<2x1x128xf32> to vector<2x128xf32>
    %364 = arith.truncf %357 : vector<4x32xf32> to vector<4x32xbf16>
    %cst_39 = arith.constant dense<0.000000e+00> : vector<4x256xf32>
    %365 = tpu.matmul %364, %328, %cst_39 {dimension_numbers = #tpu.dot_dimension_numbers<[1], [0], [0], [1], [0, 0, 1, 1], [], []>} : vector<4x32xbf16>, vector<32x256xbf16>, vector<4x256xf32> -> vector<4x256xf32>
    %366 = vector.extract_strided_slice %365 {offsets = [0, 0], sizes = [2, 128], strides = [1, 1]} : vector<4x256xf32> to vector<2x128xf32>
    %367 = arith.addf %366, %361 : vector<2x128xf32>
    %368 = vector.extract_strided_slice %365 {offsets = [2, 128], sizes = [2, 128], strides = [1, 1]} : vector<4x256xf32> to vector<2x128xf32>
    %369 = arith.addf %368, %363 : vector<2x128xf32>
    %370 = tpu.concatenate %367, %369 in 0 : vector<2x128xf32>, vector<2x128xf32> -> vector<4x128xf32>
    %371 = vector.extract_strided_slice %370 {offsets = [0, 0], sizes = [4, 96], strides = [1, 1]} : vector<4x128xf32> to vector<4x96xf32>
    %372 = arith.negf %371 : vector<4x96xf32>
    %373 = math.exp %372 : vector<4x96xf32>
    %cst_40 = arith.constant 1.000000e+00 : f32
    %374 = vector.broadcast %cst_40 : f32 to vector<4x96xf32>
    %375 = arith.addf %374, %373 : vector<4x96xf32>
    %376 = arith.divf %374, %375 : vector<4x96xf32>
    %377 = vector.extract_strided_slice %370 {offsets = [0, 96], sizes = [4, 32], strides = [1, 1]} : vector<4x128xf32> to vector<4x32xf32>
    %378 = math.tanh %377 : vector<4x32xf32>
    %379 = vector.extract_strided_slice %376 {offsets = [0, 32], sizes = [4, 32], strides = [1, 1]} : vector<4x96xf32> to vector<4x32xf32>
    %380 = arith.mulf %379, %354 : vector<4x32xf32>
    %381 = vector.extract_strided_slice %376 {offsets = [0, 0], sizes = [4, 32], strides = [1, 1]} : vector<4x96xf32> to vector<4x32xf32>
    %382 = arith.mulf %381, %378 : vector<4x32xf32>
    %383 = arith.addf %380, %382 : vector<4x32xf32>
    %384 = vector.extract_strided_slice %376 {offsets = [0, 64], sizes = [4, 32], strides = [1, 1]} : vector<4x96xf32> to vector<4x32xf32>
    %385 = math.tanh %383 : vector<4x32xf32>
    %386 = arith.mulf %384, %385 : vector<4x32xf32>
    %387 = vector.extract_strided_slice %386 {offsets = [0, 0], sizes = [2, 32], strides = [1, 1]} : vector<4x32xf32> to vector<2x32xf32>
    %388 = vector.extract_strided_slice %386 {offsets = [2, 0], sizes = [2, 32], strides = [1, 1]} : vector<4x32xf32> to vector<2x32xf32>
    %389 = vector.extract_strided_slice %327 {offsets = [0, 2, 0], sizes = [2, 1, 128], strides = [1, 1, 1]} : vector<2x9x256xf32> to vector<2x1x128xf32>
    %390 = vector.shape_cast %389 : vector<2x1x128xf32> to vector<2x128xf32>
    %391 = vector.extract_strided_slice %327 {offsets = [0, 6, 128], sizes = [2, 1, 128], strides = [1, 1, 1]} : vector<2x9x256xf32> to vector<2x1x128xf32>
    %392 = vector.shape_cast %391 : vector<2x1x128xf32> to vector<2x128xf32>
    %393 = arith.truncf %386 : vector<4x32xf32> to vector<4x32xbf16>
    %cst_41 = arith.constant dense<0.000000e+00> : vector<4x256xf32>
    %394 = tpu.matmul %393, %328, %cst_41 {dimension_numbers = #tpu.dot_dimension_numbers<[1], [0], [0], [1], [0, 0, 1, 1], [], []>} : vector<4x32xbf16>, vector<32x256xbf16>, vector<4x256xf32> -> vector<4x256xf32>
    %395 = vector.extract_strided_slice %394 {offsets = [0, 0], sizes = [2, 128], strides = [1, 1]} : vector<4x256xf32> to vector<2x128xf32>
    %396 = arith.addf %395, %390 : vector<2x128xf32>
    %397 = vector.extract_strided_slice %394 {offsets = [2, 128], sizes = [2, 128], strides = [1, 1]} : vector<4x256xf32> to vector<2x128xf32>
    %398 = arith.addf %397, %392 : vector<2x128xf32>
    %399 = tpu.concatenate %396, %398 in 0 : vector<2x128xf32>, vector<2x128xf32> -> vector<4x128xf32>
    %400 = vector.extract_strided_slice %399 {offsets = [0, 0], sizes = [4, 96], strides = [1, 1]} : vector<4x128xf32> to vector<4x96xf32>
    %401 = arith.negf %400 : vector<4x96xf32>
    %402 = math.exp %401 : vector<4x96xf32>
    %cst_42 = arith.constant 1.000000e+00 : f32
    %403 = vector.broadcast %cst_42 : f32 to vector<4x96xf32>
    %404 = arith.addf %403, %402 : vector<4x96xf32>
    %405 = arith.divf %403, %404 : vector<4x96xf32>
    %406 = vector.extract_strided_slice %399 {offsets = [0, 96], sizes = [4, 32], strides = [1, 1]} : vector<4x128xf32> to vector<4x32xf32>
    %407 = math.tanh %406 : vector<4x32xf32>
    %408 = vector.extract_strided_slice %405 {offsets = [0, 32], sizes = [4, 32], strides = [1, 1]} : vector<4x96xf32> to vector<4x32xf32>
    %409 = arith.mulf %408, %383 : vector<4x32xf32>
    %410 = vector.extract_strided_slice %405 {offsets = [0, 0], sizes = [4, 32], strides = [1, 1]} : vector<4x96xf32> to vector<4x32xf32>
    %411 = arith.mulf %410, %407 : vector<4x32xf32>
    %412 = arith.addf %409, %411 : vector<4x32xf32>
    %413 = vector.extract_strided_slice %405 {offsets = [0, 64], sizes = [4, 32], strides = [1, 1]} : vector<4x96xf32> to vector<4x32xf32>
    %414 = math.tanh %412 : vector<4x32xf32>
    %415 = arith.mulf %413, %414 : vector<4x32xf32>
    %416 = vector.extract_strided_slice %415 {offsets = [0, 0], sizes = [2, 32], strides = [1, 1]} : vector<4x32xf32> to vector<2x32xf32>
    %417 = vector.extract_strided_slice %415 {offsets = [2, 0], sizes = [2, 32], strides = [1, 1]} : vector<4x32xf32> to vector<2x32xf32>
    %418 = vector.extract_strided_slice %327 {offsets = [0, 3, 0], sizes = [2, 1, 128], strides = [1, 1, 1]} : vector<2x9x256xf32> to vector<2x1x128xf32>
    %419 = vector.shape_cast %418 : vector<2x1x128xf32> to vector<2x128xf32>
    %420 = vector.extract_strided_slice %327 {offsets = [0, 5, 128], sizes = [2, 1, 128], strides = [1, 1, 1]} : vector<2x9x256xf32> to vector<2x1x128xf32>
    %421 = vector.shape_cast %420 : vector<2x1x128xf32> to vector<2x128xf32>
    %422 = arith.truncf %415 : vector<4x32xf32> to vector<4x32xbf16>
    %cst_43 = arith.constant dense<0.000000e+00> : vector<4x256xf32>
    %423 = tpu.matmul %422, %328, %cst_43 {dimension_numbers = #tpu.dot_dimension_numbers<[1], [0], [0], [1], [0, 0, 1, 1], [], []>} : vector<4x32xbf16>, vector<32x256xbf16>, vector<4x256xf32> -> vector<4x256xf32>
    %424 = vector.extract_strided_slice %423 {offsets = [0, 0], sizes = [2, 128], strides = [1, 1]} : vector<4x256xf32> to vector<2x128xf32>
    %425 = arith.addf %424, %419 : vector<2x128xf32>
    %426 = vector.extract_strided_slice %423 {offsets = [2, 128], sizes = [2, 128], strides = [1, 1]} : vector<4x256xf32> to vector<2x128xf32>
    %427 = arith.addf %426, %421 : vector<2x128xf32>
    %428 = tpu.concatenate %425, %427 in 0 : vector<2x128xf32>, vector<2x128xf32> -> vector<4x128xf32>
    %429 = vector.extract_strided_slice %428 {offsets = [0, 0], sizes = [4, 96], strides = [1, 1]} : vector<4x128xf32> to vector<4x96xf32>
    %430 = arith.negf %429 : vector<4x96xf32>
    %431 = math.exp %430 : vector<4x96xf32>
    %cst_44 = arith.constant 1.000000e+00 : f32
    %432 = vector.broadcast %cst_44 : f32 to vector<4x96xf32>
    %433 = arith.addf %432, %431 : vector<4x96xf32>
    %434 = arith.divf %432, %433 : vector<4x96xf32>
    %435 = vector.extract_strided_slice %428 {offsets = [0, 96], sizes = [4, 32], strides = [1, 1]} : vector<4x128xf32> to vector<4x32xf32>
    %436 = math.tanh %435 : vector<4x32xf32>
    %437 = vector.extract_strided_slice %434 {offsets = [0, 32], sizes = [4, 32], strides = [1, 1]} : vector<4x96xf32> to vector<4x32xf32>
    %438 = arith.mulf %437, %412 : vector<4x32xf32>
    %439 = vector.extract_strided_slice %434 {offsets = [0, 0], sizes = [4, 32], strides = [1, 1]} : vector<4x96xf32> to vector<4x32xf32>
    %440 = arith.mulf %439, %436 : vector<4x32xf32>
    %441 = arith.addf %438, %440 : vector<4x32xf32>
    %442 = vector.extract_strided_slice %434 {offsets = [0, 64], sizes = [4, 32], strides = [1, 1]} : vector<4x96xf32> to vector<4x32xf32>
    %443 = math.tanh %441 : vector<4x32xf32>
    %444 = arith.mulf %442, %443 : vector<4x32xf32>
    %445 = vector.extract_strided_slice %444 {offsets = [0, 0], sizes = [2, 32], strides = [1, 1]} : vector<4x32xf32> to vector<2x32xf32>
    %446 = vector.extract_strided_slice %444 {offsets = [2, 0], sizes = [2, 32], strides = [1, 1]} : vector<4x32xf32> to vector<2x32xf32>
    %447 = vector.extract_strided_slice %327 {offsets = [0, 4, 0], sizes = [2, 1, 128], strides = [1, 1, 1]} : vector<2x9x256xf32> to vector<2x1x128xf32>
    %448 = vector.shape_cast %447 : vector<2x1x128xf32> to vector<2x128xf32>
    %449 = vector.extract_strided_slice %327 {offsets = [0, 4, 128], sizes = [2, 1, 128], strides = [1, 1, 1]} : vector<2x9x256xf32> to vector<2x1x128xf32>
    %450 = vector.shape_cast %449 : vector<2x1x128xf32> to vector<2x128xf32>
    %451 = arith.truncf %444 : vector<4x32xf32> to vector<4x32xbf16>
    %cst_45 = arith.constant dense<0.000000e+00> : vector<4x256xf32>
    %452 = tpu.matmul %451, %328, %cst_45 {dimension_numbers = #tpu.dot_dimension_numbers<[1], [0], [0], [1], [0, 0, 1, 1], [], []>} : vector<4x32xbf16>, vector<32x256xbf16>, vector<4x256xf32> -> vector<4x256xf32>
    %453 = vector.extract_strided_slice %452 {offsets = [0, 0], sizes = [2, 128], strides = [1, 1]} : vector<4x256xf32> to vector<2x128xf32>
    %454 = arith.addf %453, %448 : vector<2x128xf32>
    %455 = vector.extract_strided_slice %452 {offsets = [2, 128], sizes = [2, 128], strides = [1, 1]} : vector<4x256xf32> to vector<2x128xf32>
    %456 = arith.addf %455, %450 : vector<2x128xf32>
    %457 = tpu.concatenate %454, %456 in 0 : vector<2x128xf32>, vector<2x128xf32> -> vector<4x128xf32>
    %458 = vector.extract_strided_slice %457 {offsets = [0, 0], sizes = [4, 96], strides = [1, 1]} : vector<4x128xf32> to vector<4x96xf32>
    %459 = arith.negf %458 : vector<4x96xf32>
    %460 = math.exp %459 : vector<4x96xf32>
    %cst_46 = arith.constant 1.000000e+00 : f32
    %461 = vector.broadcast %cst_46 : f32 to vector<4x96xf32>
    %462 = arith.addf %461, %460 : vector<4x96xf32>
    %463 = arith.divf %461, %462 : vector<4x96xf32>
    %464 = vector.extract_strided_slice %457 {offsets = [0, 96], sizes = [4, 32], strides = [1, 1]} : vector<4x128xf32> to vector<4x32xf32>
    %465 = math.tanh %464 : vector<4x32xf32>
    %466 = vector.extract_strided_slice %463 {offsets = [0, 32], sizes = [4, 32], strides = [1, 1]} : vector<4x96xf32> to vector<4x32xf32>
    %467 = arith.mulf %466, %441 : vector<4x32xf32>
    %468 = vector.extract_strided_slice %463 {offsets = [0, 0], sizes = [4, 32], strides = [1, 1]} : vector<4x96xf32> to vector<4x32xf32>
    %469 = arith.mulf %468, %465 : vector<4x32xf32>
    %470 = arith.addf %467, %469 : vector<4x32xf32>
    %471 = vector.extract_strided_slice %463 {offsets = [0, 64], sizes = [4, 32], strides = [1, 1]} : vector<4x96xf32> to vector<4x32xf32>
    %472 = math.tanh %470 : vector<4x32xf32>
    %473 = arith.mulf %471, %472 : vector<4x32xf32>
    %474 = vector.extract_strided_slice %473 {offsets = [0, 0], sizes = [2, 32], strides = [1, 1]} : vector<4x32xf32> to vector<2x32xf32>
    %475 = vector.extract_strided_slice %473 {offsets = [2, 0], sizes = [2, 32], strides = [1, 1]} : vector<4x32xf32> to vector<2x32xf32>
    %476 = vector.extract_strided_slice %327 {offsets = [0, 5, 0], sizes = [2, 1, 128], strides = [1, 1, 1]} : vector<2x9x256xf32> to vector<2x1x128xf32>
    %477 = vector.shape_cast %476 : vector<2x1x128xf32> to vector<2x128xf32>
    %478 = vector.extract_strided_slice %327 {offsets = [0, 3, 128], sizes = [2, 1, 128], strides = [1, 1, 1]} : vector<2x9x256xf32> to vector<2x1x128xf32>
    %479 = vector.shape_cast %478 : vector<2x1x128xf32> to vector<2x128xf32>
    %480 = arith.truncf %473 : vector<4x32xf32> to vector<4x32xbf16>
    %cst_47 = arith.constant dense<0.000000e+00> : vector<4x256xf32>
    %481 = tpu.matmul %480, %328, %cst_47 {dimension_numbers = #tpu.dot_dimension_numbers<[1], [0], [0], [1], [0, 0, 1, 1], [], []>} : vector<4x32xbf16>, vector<32x256xbf16>, vector<4x256xf32> -> vector<4x256xf32>
    %482 = vector.extract_strided_slice %481 {offsets = [0, 0], sizes = [2, 128], strides = [1, 1]} : vector<4x256xf32> to vector<2x128xf32>
    %483 = arith.addf %482, %477 : vector<2x128xf32>
    %484 = vector.extract_strided_slice %481 {offsets = [2, 128], sizes = [2, 128], strides = [1, 1]} : vector<4x256xf32> to vector<2x128xf32>
    %485 = arith.addf %484, %479 : vector<2x128xf32>
    %486 = tpu.concatenate %483, %485 in 0 : vector<2x128xf32>, vector<2x128xf32> -> vector<4x128xf32>
    %487 = vector.extract_strided_slice %486 {offsets = [0, 0], sizes = [4, 96], strides = [1, 1]} : vector<4x128xf32> to vector<4x96xf32>
    %488 = arith.negf %487 : vector<4x96xf32>
    %489 = math.exp %488 : vector<4x96xf32>
    %cst_48 = arith.constant 1.000000e+00 : f32
    %490 = vector.broadcast %cst_48 : f32 to vector<4x96xf32>
    %491 = arith.addf %490, %489 : vector<4x96xf32>
    %492 = arith.divf %490, %491 : vector<4x96xf32>
    %493 = vector.extract_strided_slice %486 {offsets = [0, 96], sizes = [4, 32], strides = [1, 1]} : vector<4x128xf32> to vector<4x32xf32>
    %494 = math.tanh %493 : vector<4x32xf32>
    %495 = vector.extract_strided_slice %492 {offsets = [0, 32], sizes = [4, 32], strides = [1, 1]} : vector<4x96xf32> to vector<4x32xf32>
    %496 = arith.mulf %495, %470 : vector<4x32xf32>
    %497 = vector.extract_strided_slice %492 {offsets = [0, 0], sizes = [4, 32], strides = [1, 1]} : vector<4x96xf32> to vector<4x32xf32>
    %498 = arith.mulf %497, %494 : vector<4x32xf32>
    %499 = arith.addf %496, %498 : vector<4x32xf32>
    %500 = vector.extract_strided_slice %492 {offsets = [0, 64], sizes = [4, 32], strides = [1, 1]} : vector<4x96xf32> to vector<4x32xf32>
    %501 = math.tanh %499 : vector<4x32xf32>
    %502 = arith.mulf %500, %501 : vector<4x32xf32>
    %503 = vector.extract_strided_slice %502 {offsets = [0, 0], sizes = [2, 32], strides = [1, 1]} : vector<4x32xf32> to vector<2x32xf32>
    %504 = vector.extract_strided_slice %502 {offsets = [2, 0], sizes = [2, 32], strides = [1, 1]} : vector<4x32xf32> to vector<2x32xf32>
    %505 = vector.extract_strided_slice %327 {offsets = [0, 6, 0], sizes = [2, 1, 128], strides = [1, 1, 1]} : vector<2x9x256xf32> to vector<2x1x128xf32>
    %506 = vector.shape_cast %505 : vector<2x1x128xf32> to vector<2x128xf32>
    %507 = vector.extract_strided_slice %327 {offsets = [0, 2, 128], sizes = [2, 1, 128], strides = [1, 1, 1]} : vector<2x9x256xf32> to vector<2x1x128xf32>
    %508 = vector.shape_cast %507 : vector<2x1x128xf32> to vector<2x128xf32>
    %509 = arith.truncf %502 : vector<4x32xf32> to vector<4x32xbf16>
    %cst_49 = arith.constant dense<0.000000e+00> : vector<4x256xf32>
    %510 = tpu.matmul %509, %328, %cst_49 {dimension_numbers = #tpu.dot_dimension_numbers<[1], [0], [0], [1], [0, 0, 1, 1], [], []>} : vector<4x32xbf16>, vector<32x256xbf16>, vector<4x256xf32> -> vector<4x256xf32>
    %511 = vector.extract_strided_slice %510 {offsets = [0, 0], sizes = [2, 128], strides = [1, 1]} : vector<4x256xf32> to vector<2x128xf32>
    %512 = arith.addf %511, %506 : vector<2x128xf32>
    %513 = vector.extract_strided_slice %510 {offsets = [2, 128], sizes = [2, 128], strides = [1, 1]} : vector<4x256xf32> to vector<2x128xf32>
    %514 = arith.addf %513, %508 : vector<2x128xf32>
    %515 = tpu.concatenate %512, %514 in 0 : vector<2x128xf32>, vector<2x128xf32> -> vector<4x128xf32>
    %516 = vector.extract_strided_slice %515 {offsets = [0, 0], sizes = [4, 96], strides = [1, 1]} : vector<4x128xf32> to vector<4x96xf32>
    %517 = arith.negf %516 : vector<4x96xf32>
    %518 = math.exp %517 : vector<4x96xf32>
    %cst_50 = arith.constant 1.000000e+00 : f32
    %519 = vector.broadcast %cst_50 : f32 to vector<4x96xf32>
    %520 = arith.addf %519, %518 : vector<4x96xf32>
    %521 = arith.divf %519, %520 : vector<4x96xf32>
    %522 = vector.extract_strided_slice %515 {offsets = [0, 96], sizes = [4, 32], strides = [1, 1]} : vector<4x128xf32> to vector<4x32xf32>
    %523 = math.tanh %522 : vector<4x32xf32>
    %524 = vector.extract_strided_slice %521 {offsets = [0, 32], sizes = [4, 32], strides = [1, 1]} : vector<4x96xf32> to vector<4x32xf32>
    %525 = arith.mulf %524, %499 : vector<4x32xf32>
    %526 = vector.extract_strided_slice %521 {offsets = [0, 0], sizes = [4, 32], strides = [1, 1]} : vector<4x96xf32> to vector<4x32xf32>
    %527 = arith.mulf %526, %523 : vector<4x32xf32>
    %528 = arith.addf %525, %527 : vector<4x32xf32>
    %529 = vector.extract_strided_slice %521 {offsets = [0, 64], sizes = [4, 32], strides = [1, 1]} : vector<4x96xf32> to vector<4x32xf32>
    %530 = math.tanh %528 : vector<4x32xf32>
    %531 = arith.mulf %529, %530 : vector<4x32xf32>
    %532 = vector.extract_strided_slice %531 {offsets = [0, 0], sizes = [2, 32], strides = [1, 1]} : vector<4x32xf32> to vector<2x32xf32>
    %533 = vector.extract_strided_slice %531 {offsets = [2, 0], sizes = [2, 32], strides = [1, 1]} : vector<4x32xf32> to vector<2x32xf32>
    %534 = vector.extract_strided_slice %327 {offsets = [0, 7, 0], sizes = [2, 1, 128], strides = [1, 1, 1]} : vector<2x9x256xf32> to vector<2x1x128xf32>
    %535 = vector.shape_cast %534 : vector<2x1x128xf32> to vector<2x128xf32>
    %536 = vector.extract_strided_slice %327 {offsets = [0, 1, 128], sizes = [2, 1, 128], strides = [1, 1, 1]} : vector<2x9x256xf32> to vector<2x1x128xf32>
    %537 = vector.shape_cast %536 : vector<2x1x128xf32> to vector<2x128xf32>
    %538 = arith.truncf %531 : vector<4x32xf32> to vector<4x32xbf16>
    %cst_51 = arith.constant dense<0.000000e+00> : vector<4x256xf32>
    %539 = tpu.matmul %538, %328, %cst_51 {dimension_numbers = #tpu.dot_dimension_numbers<[1], [0], [0], [1], [0, 0, 1, 1], [], []>} : vector<4x32xbf16>, vector<32x256xbf16>, vector<4x256xf32> -> vector<4x256xf32>
    %540 = vector.extract_strided_slice %539 {offsets = [0, 0], sizes = [2, 128], strides = [1, 1]} : vector<4x256xf32> to vector<2x128xf32>
    %541 = arith.addf %540, %535 : vector<2x128xf32>
    %542 = vector.extract_strided_slice %539 {offsets = [2, 128], sizes = [2, 128], strides = [1, 1]} : vector<4x256xf32> to vector<2x128xf32>
    %543 = arith.addf %542, %537 : vector<2x128xf32>
    %544 = tpu.concatenate %541, %543 in 0 : vector<2x128xf32>, vector<2x128xf32> -> vector<4x128xf32>
    %545 = vector.extract_strided_slice %544 {offsets = [0, 0], sizes = [4, 96], strides = [1, 1]} : vector<4x128xf32> to vector<4x96xf32>
    %546 = arith.negf %545 : vector<4x96xf32>
    %547 = math.exp %546 : vector<4x96xf32>
    %cst_52 = arith.constant 1.000000e+00 : f32
    %548 = vector.broadcast %cst_52 : f32 to vector<4x96xf32>
    %549 = arith.addf %548, %547 : vector<4x96xf32>
    %550 = arith.divf %548, %549 : vector<4x96xf32>
    %551 = vector.extract_strided_slice %544 {offsets = [0, 96], sizes = [4, 32], strides = [1, 1]} : vector<4x128xf32> to vector<4x32xf32>
    %552 = math.tanh %551 : vector<4x32xf32>
    %553 = vector.extract_strided_slice %550 {offsets = [0, 32], sizes = [4, 32], strides = [1, 1]} : vector<4x96xf32> to vector<4x32xf32>
    %554 = arith.mulf %553, %528 : vector<4x32xf32>
    %555 = vector.extract_strided_slice %550 {offsets = [0, 0], sizes = [4, 32], strides = [1, 1]} : vector<4x96xf32> to vector<4x32xf32>
    %556 = arith.mulf %555, %552 : vector<4x32xf32>
    %557 = arith.addf %554, %556 : vector<4x32xf32>
    %558 = vector.extract_strided_slice %550 {offsets = [0, 64], sizes = [4, 32], strides = [1, 1]} : vector<4x96xf32> to vector<4x32xf32>
    %559 = math.tanh %557 : vector<4x32xf32>
    %560 = arith.mulf %558, %559 : vector<4x32xf32>
    %561 = vector.extract_strided_slice %560 {offsets = [0, 0], sizes = [2, 32], strides = [1, 1]} : vector<4x32xf32> to vector<2x32xf32>
    %562 = vector.extract_strided_slice %560 {offsets = [2, 0], sizes = [2, 32], strides = [1, 1]} : vector<4x32xf32> to vector<2x32xf32>
    %563 = vector.extract_strided_slice %327 {offsets = [0, 8, 0], sizes = [2, 1, 128], strides = [1, 1, 1]} : vector<2x9x256xf32> to vector<2x1x128xf32>
    %564 = vector.shape_cast %563 : vector<2x1x128xf32> to vector<2x128xf32>
    %565 = vector.extract_strided_slice %327 {offsets = [0, 0, 128], sizes = [2, 1, 128], strides = [1, 1, 1]} : vector<2x9x256xf32> to vector<2x1x128xf32>
    %566 = vector.shape_cast %565 : vector<2x1x128xf32> to vector<2x128xf32>
    %567 = arith.truncf %560 : vector<4x32xf32> to vector<4x32xbf16>
    %cst_53 = arith.constant dense<0.000000e+00> : vector<4x256xf32>
    %568 = tpu.matmul %567, %328, %cst_53 {dimension_numbers = #tpu.dot_dimension_numbers<[1], [0], [0], [1], [0, 0, 1, 1], [], []>} : vector<4x32xbf16>, vector<32x256xbf16>, vector<4x256xf32> -> vector<4x256xf32>
    %569 = vector.extract_strided_slice %568 {offsets = [0, 0], sizes = [2, 128], strides = [1, 1]} : vector<4x256xf32> to vector<2x128xf32>
    %570 = arith.addf %569, %564 : vector<2x128xf32>
    %571 = vector.extract_strided_slice %568 {offsets = [2, 128], sizes = [2, 128], strides = [1, 1]} : vector<4x256xf32> to vector<2x128xf32>
    %572 = arith.addf %571, %566 : vector<2x128xf32>
    %573 = tpu.concatenate %570, %572 in 0 : vector<2x128xf32>, vector<2x128xf32> -> vector<4x128xf32>
    %574 = vector.extract_strided_slice %573 {offsets = [0, 0], sizes = [4, 96], strides = [1, 1]} : vector<4x128xf32> to vector<4x96xf32>
    %575 = arith.negf %574 : vector<4x96xf32>
    %576 = math.exp %575 : vector<4x96xf32>
    %cst_54 = arith.constant 1.000000e+00 : f32
    %577 = vector.broadcast %cst_54 : f32 to vector<4x96xf32>
    %578 = arith.addf %577, %576 : vector<4x96xf32>
    %579 = arith.divf %577, %578 : vector<4x96xf32>
    %580 = vector.extract_strided_slice %573 {offsets = [0, 96], sizes = [4, 32], strides = [1, 1]} : vector<4x128xf32> to vector<4x32xf32>
    %581 = math.tanh %580 : vector<4x32xf32>
    %582 = vector.extract_strided_slice %579 {offsets = [0, 32], sizes = [4, 32], strides = [1, 1]} : vector<4x96xf32> to vector<4x32xf32>
    %583 = arith.mulf %582, %557 : vector<4x32xf32>
    %584 = vector.extract_strided_slice %579 {offsets = [0, 0], sizes = [4, 32], strides = [1, 1]} : vector<4x96xf32> to vector<4x32xf32>
    %585 = arith.mulf %584, %581 : vector<4x32xf32>
    %586 = arith.addf %583, %585 : vector<4x32xf32>
    %587 = vector.extract_strided_slice %579 {offsets = [0, 64], sizes = [4, 32], strides = [1, 1]} : vector<4x96xf32> to vector<4x32xf32>
    %588 = math.tanh %586 : vector<4x32xf32>
    %589 = arith.mulf %587, %588 : vector<4x32xf32>
    %590 = vector.extract_strided_slice %589 {offsets = [0, 0], sizes = [2, 32], strides = [1, 1]} : vector<4x32xf32> to vector<2x32xf32>
    %591 = vector.extract_strided_slice %589 {offsets = [2, 0], sizes = [2, 32], strides = [1, 1]} : vector<4x32xf32> to vector<2x32xf32>
    %592 = vector.shape_cast %358 : vector<2x32xf32> to vector<2x1x32xf32>
    %593 = vector.shape_cast %387 : vector<2x32xf32> to vector<2x1x32xf32>
    %594 = vector.shape_cast %416 : vector<2x32xf32> to vector<2x1x32xf32>
    %595 = vector.shape_cast %445 : vector<2x32xf32> to vector<2x1x32xf32>
    %596 = vector.shape_cast %474 : vector<2x32xf32> to vector<2x1x32xf32>
    %597 = vector.shape_cast %503 : vector<2x32xf32> to vector<2x1x32xf32>
    %598 = vector.shape_cast %532 : vector<2x32xf32> to vector<2x1x32xf32>
    %599 = vector.shape_cast %561 : vector<2x32xf32> to vector<2x1x32xf32>
    %600 = vector.shape_cast %590 : vector<2x32xf32> to vector<2x1x32xf32>
    %601 = tpu.concatenate %592, %593, %594, %595, %596, %597, %598, %599, %600 in 1 : vector<2x1x32xf32>, vector<2x1x32xf32>, vector<2x1x32xf32>, vector<2x1x32xf32>, vector<2x1x32xf32>, vector<2x1x32xf32>, vector<2x1x32xf32>, vector<2x1x32xf32>, vector<2x1x32xf32> -> vector<2x9x32xf32>
    %602 = vector.shape_cast %591 : vector<2x32xf32> to vector<2x1x32xf32>
    %603 = vector.shape_cast %562 : vector<2x32xf32> to vector<2x1x32xf32>
    %604 = vector.shape_cast %533 : vector<2x32xf32> to vector<2x1x32xf32>
    %605 = vector.shape_cast %504 : vector<2x32xf32> to vector<2x1x32xf32>
    %606 = vector.shape_cast %475 : vector<2x32xf32> to vector<2x1x32xf32>
    %607 = vector.shape_cast %446 : vector<2x32xf32> to vector<2x1x32xf32>
    %608 = vector.shape_cast %417 : vector<2x32xf32> to vector<2x1x32xf32>
    %609 = vector.shape_cast %388 : vector<2x32xf32> to vector<2x1x32xf32>
    %610 = vector.shape_cast %359 : vector<2x32xf32> to vector<2x1x32xf32>
    %611 = tpu.concatenate %602, %603, %604, %605, %606, %607, %608, %609, %610 in 1 : vector<2x1x32xf32>, vector<2x1x32xf32>, vector<2x1x32xf32>, vector<2x1x32xf32>, vector<2x1x32xf32>, vector<2x1x32xf32>, vector<2x1x32xf32>, vector<2x1x32xf32>, vector<2x1x32xf32> -> vector<2x9x32xf32>
    %612 = tpu.concatenate %601, %611 in 2 : vector<2x9x32xf32>, vector<2x9x32xf32> -> vector<2x9x64xf32>
    %613 = vector.shape_cast %612 : vector<2x9x64xf32> to vector<18x64xf32>
    %614 = arith.addf %613, %325 : vector<18x64xf32>
    %c0_55 = arith.constant 0 : index
    %c0_56 = arith.constant 0 : index
    %615 = vector.load %arg6[%c0_55, %c0_56] : memref<64x640xbf16, #tpu.memory_space<vmem>>, vector<64x640xbf16>
    %616 = arith.truncf %614 : vector<18x64xf32> to vector<18x64xbf16>
    %cst_57 = arith.constant dense<0.000000e+00> : vector<18x640xf32>
    %617 = tpu.matmul %616, %615, %cst_57 {dimension_numbers = #tpu.dot_dimension_numbers<[1], [0], [0], [1], [0, 0, 1, 1], [], []>} : vector<18x64xbf16>, vector<64x640xbf16>, vector<18x640xf32> -> vector<18x640xf32>
    %c0_58 = arith.constant 0 : index
    %c0_59 = arith.constant 0 : index
    %618 = vector.load %arg7[%c0_58, %c0_59] : memref<1x640xf32, #tpu.memory_space<vmem>>, vector<1x640xf32>
    %619 = vector.broadcast %618 : vector<1x640xf32> to vector<18x640xf32>
    %620 = arith.addf %617, %619 : vector<18x640xf32>
    %cst_60 = arith.constant 0.000000e+00 : f32
    %621 = vector.broadcast %cst_60 : f32 to vector<18x640xf32>
    %622 = arith.maximumf %620, %621 : vector<18x640xf32>
    %623 = vector.extract_strided_slice %622 {offsets = [0, 0], sizes = [18, 128], strides = [1, 1]} : vector<18x640xf32> to vector<18x128xf32>
    %624 = vector.extract_strided_slice %622 {offsets = [0, 128], sizes = [18, 128], strides = [1, 1]} : vector<18x640xf32> to vector<18x128xf32>
    %625 = vector.extract_strided_slice %622 {offsets = [0, 256], sizes = [18, 128], strides = [1, 1]} : vector<18x640xf32> to vector<18x128xf32>
    %626 = vector.extract_strided_slice %622 {offsets = [0, 384], sizes = [18, 128], strides = [1, 1]} : vector<18x640xf32> to vector<18x128xf32>
    %627 = vector.extract_strided_slice %622 {offsets = [0, 512], sizes = [18, 128], strides = [1, 1]} : vector<18x640xf32> to vector<18x128xf32>
    %c0_61 = arith.constant 0 : index
    %c0_62 = arith.constant 0 : index
    %628 = vector.load %arg8[%c0_61, %c0_62] : memref<128x1280xbf16, #tpu.memory_space<vmem>>, vector<128x128xbf16>
    %629 = arith.truncf %623 : vector<18x128xf32> to vector<18x128xbf16>
    %cst_63 = arith.constant dense<0.000000e+00> : vector<18x128xf32>
    %630 = tpu.matmul %629, %628, %cst_63 {dimension_numbers = #tpu.dot_dimension_numbers<[1], [0], [0], [1], [0, 0, 1, 1], [], []>} : vector<18x128xbf16>, vector<128x128xbf16>, vector<18x128xf32> -> vector<18x128xf32>
    %631 = tpu.iota {dimensions = array<i32: 1>} : vector<18x128xi32>
    %c16_i32 = arith.constant 16 : i32
    %632 = vector.broadcast %c16_i32 : i32 to vector<18x128xi32>
    %633 = arith.cmpi slt, %631, %632 : vector<18x128xi32>
    %cst_64 = arith.constant 0xFF800000 : f32
    %634 = vector.broadcast %cst_64 : f32 to vector<18x128xf32>
    %635 = arith.select %633, %630, %634 : vector<18x128xi1>, vector<18x128xf32>
    %cst_65 = arith.constant dense<0xFF800000> : vector<18xf32>
    %636 = vector.multi_reduction <maximumf>, %635, %cst_65 [1] : vector<18x128xf32> to vector<18xf32>
    %637 = vector.shape_cast %636 : vector<18xf32> to vector<18x1xf32>
    %638 = vector.broadcast %637 : vector<18x1xf32> to vector<18x128xf32>
    %639 = arith.cmpf oeq, %635, %638 : vector<18x128xf32>
    %c128_i32 = arith.constant 128 : i32
    %640 = vector.broadcast %c128_i32 : i32 to vector<18x128xi32>
    %641 = arith.select %639, %631, %640 : vector<18x128xi1>, vector<18x128xi32>
    %cst_66 = arith.constant dense<2147483647> : vector<18xi32>
    %642 = vector.multi_reduction <minsi>, %641, %cst_66 [1] : vector<18x128xi32> to vector<18xi32>
    %643 = vector.shape_cast %642 : vector<18xi32> to vector<18x1xi32>
    %644 = arith.sitofp %643 : vector<18x1xi32> to vector<18x1xf32>
    %c0_67 = arith.constant 0 : index
    %c128 = arith.constant 128 : index
    %645 = vector.load %arg8[%c0_67, %c128] : memref<128x1280xbf16, #tpu.memory_space<vmem>>, vector<128x128xbf16>
    %646 = arith.truncf %624 : vector<18x128xf32> to vector<18x128xbf16>
    %cst_68 = arith.constant dense<0.000000e+00> : vector<18x128xf32>
    %647 = tpu.matmul %646, %645, %cst_68 {dimension_numbers = #tpu.dot_dimension_numbers<[1], [0], [0], [1], [0, 0, 1, 1], [], []>} : vector<18x128xbf16>, vector<128x128xbf16>, vector<18x128xf32> -> vector<18x128xf32>
    %c0_69 = arith.constant 0 : index
    %c256 = arith.constant 256 : index
    %648 = vector.load %arg8[%c0_69, %c256] : memref<128x1280xbf16, #tpu.memory_space<vmem>>, vector<128x1024xbf16>
    %649 = arith.truncf %626 : vector<18x128xf32> to vector<18x128xbf16>
    %cst_70 = arith.constant dense<0.000000e+00> : vector<18x1024xf32>
    %650 = tpu.matmul %649, %648, %cst_70 {dimension_numbers = #tpu.dot_dimension_numbers<[1], [0], [0], [1], [0, 0, 1, 1], [], []>} : vector<18x128xbf16>, vector<128x1024xbf16>, vector<18x1024xf32> -> vector<18x1024xf32>
    %651 = tpu.iota {dimensions = array<i32: 0>} : vector<9x9xi32>
    %652 = tpu.iota {dimensions = array<i32: 1>} : vector<9x9xi32>
    %653 = arith.cmpi eq, %651, %652 : vector<9x9xi32>
    %654 = vector.extract_strided_slice %625 {offsets = [0, 0], sizes = [9, 128], strides = [1, 1]} : vector<18x128xf32> to vector<9x128xf32>
    %655 = tpu.transpose %654, [1, 0] : vector<9x128xf32> -> vector<128x9xf32>
    %656 = arith.truncf %655 : vector<128x9xf32> to vector<128x9xbf16>
    %657 = vector.extract_strided_slice %627 {offsets = [0, 0], sizes = [9, 128], strides = [1, 1]} : vector<18x128xf32> to vector<9x128xf32>
    %658 = tpu.transpose %657, [1, 0] : vector<9x128xf32> -> vector<128x9xf32>
    %659 = arith.truncf %658 : vector<128x9xf32> to vector<128x9xbf16>
    %660 = vector.extract_strided_slice %647 {offsets = [0, 0], sizes = [9, 128], strides = [1, 1]} : vector<18x128xf32> to vector<9x128xf32>
    %661 = arith.truncf %660 : vector<9x128xf32> to vector<9x128xbf16>
    %cst_71 = arith.constant dense<0.000000e+00> : vector<9x9xf32>
    %662 = tpu.matmul %661, %656, %cst_71 {dimension_numbers = #tpu.dot_dimension_numbers<[1], [0], [0], [1], [0, 0, 1, 1], [], []>} : vector<9x128xbf16>, vector<128x9xbf16>, vector<9x9xf32> -> vector<9x9xf32>
    %cst_72 = arith.constant 0xFF800000 : f32
    %663 = vector.broadcast %cst_72 : f32 to vector<9x9xf32>
    %664 = arith.select %653, %663, %662 : vector<9x9xi1>, vector<9x9xf32>
    %cst_73 = arith.constant dense<0xFF800000> : vector<9xf32>
    %665 = vector.multi_reduction <maximumf>, %664, %cst_73 [1] : vector<9x9xf32> to vector<9xf32>
    %666 = vector.shape_cast %665 : vector<9xf32> to vector<9x1xf32>
    %667 = vector.broadcast %666 : vector<9x1xf32> to vector<9x9xf32>
    %668 = arith.subf %664, %667 : vector<9x9xf32>
    %669 = math.exp %668 : vector<9x9xf32>
    %cst_74 = arith.constant dense<0.000000e+00> : vector<9xf32>
    %670 = vector.multi_reduction <add>, %669, %cst_74 [1] : vector<9x9xf32> to vector<9xf32>
    %671 = vector.shape_cast %670 : vector<9xf32> to vector<9x1xf32>
    %672 = math.log %671 : vector<9x1xf32>
    %673 = arith.addf %672, %666 : vector<9x1xf32>
    %674 = vector.broadcast %673 : vector<9x1xf32> to vector<9x9xf32>
    %675 = arith.subf %664, %674 : vector<9x9xf32>
    %676 = vector.extract_strided_slice %650 {offsets = [0, 0], sizes = [9, 1024], strides = [1, 1]} : vector<18x1024xf32> to vector<9x1024xf32>
    %677 = vector.extract_strided_slice %676 {offsets = [0, 0], sizes = [9, 128], strides = [1, 1]} : vector<9x1024xf32> to vector<9x128xf32>
    %678 = arith.truncf %677 : vector<9x128xf32> to vector<9x128xbf16>
    %cst_75 = arith.constant dense<0.000000e+00> : vector<9x9xf32>
    %679 = tpu.matmul %678, %659, %cst_75 {dimension_numbers = #tpu.dot_dimension_numbers<[1], [0], [0], [1], [0, 0, 1, 1], [], []>} : vector<9x128xbf16>, vector<128x9xbf16>, vector<9x9xf32> -> vector<9x9xf32>
    %cst_76 = arith.constant 0.000000e+00 : f32
    %680 = vector.broadcast %cst_76 : f32 to vector<9x9xf32>
    %681 = vector.extract_strided_slice %676 {offsets = [0, 128], sizes = [9, 128], strides = [1, 1]} : vector<9x1024xf32> to vector<9x128xf32>
    %682 = arith.truncf %681 : vector<9x128xf32> to vector<9x128xbf16>
    %cst_77 = arith.constant dense<0.000000e+00> : vector<9x9xf32>
    %683 = tpu.matmul %682, %659, %cst_77 {dimension_numbers = #tpu.dot_dimension_numbers<[1], [0], [0], [1], [0, 0, 1, 1], [], []>} : vector<9x128xbf16>, vector<128x9xbf16>, vector<9x9xf32> -> vector<9x9xf32>
    %684 = arith.cmpf ogt, %683, %679 : vector<9x9xf32>
    %cst_78 = arith.constant 1.000000e+00 : f32
    %685 = vector.broadcast %cst_78 : f32 to vector<9x9xf32>
    %686 = arith.select %684, %685, %680 : vector<9x9xi1>, vector<9x9xf32>
    %687 = arith.select %684, %683, %679 : vector<9x9xi1>, vector<9x9xf32>
    %688 = vector.extract_strided_slice %676 {offsets = [0, 256], sizes = [9, 128], strides = [1, 1]} : vector<9x1024xf32> to vector<9x128xf32>
    %689 = arith.truncf %688 : vector<9x128xf32> to vector<9x128xbf16>
    %cst_79 = arith.constant dense<0.000000e+00> : vector<9x9xf32>
    %690 = tpu.matmul %689, %659, %cst_79 {dimension_numbers = #tpu.dot_dimension_numbers<[1], [0], [0], [1], [0, 0, 1, 1], [], []>} : vector<9x128xbf16>, vector<128x9xbf16>, vector<9x9xf32> -> vector<9x9xf32>
    %691 = arith.cmpf ogt, %690, %687 : vector<9x9xf32>
    %cst_80 = arith.constant 2.000000e+00 : f32
    %692 = vector.broadcast %cst_80 : f32 to vector<9x9xf32>
    %693 = arith.select %691, %692, %686 : vector<9x9xi1>, vector<9x9xf32>
    %694 = arith.select %691, %690, %687 : vector<9x9xi1>, vector<9x9xf32>
    %695 = vector.extract_strided_slice %676 {offsets = [0, 384], sizes = [9, 128], strides = [1, 1]} : vector<9x1024xf32> to vector<9x128xf32>
    %696 = arith.truncf %695 : vector<9x128xf32> to vector<9x128xbf16>
    %cst_81 = arith.constant dense<0.000000e+00> : vector<9x9xf32>
    %697 = tpu.matmul %696, %659, %cst_81 {dimension_numbers = #tpu.dot_dimension_numbers<[1], [0], [0], [1], [0, 0, 1, 1], [], []>} : vector<9x128xbf16>, vector<128x9xbf16>, vector<9x9xf32> -> vector<9x9xf32>
    %698 = arith.cmpf ogt, %697, %694 : vector<9x9xf32>
    %cst_82 = arith.constant 3.000000e+00 : f32
    %699 = vector.broadcast %cst_82 : f32 to vector<9x9xf32>
    %700 = arith.select %698, %699, %693 : vector<9x9xi1>, vector<9x9xf32>
    %701 = arith.select %698, %697, %694 : vector<9x9xi1>, vector<9x9xf32>
    %702 = vector.extract_strided_slice %676 {offsets = [0, 512], sizes = [9, 128], strides = [1, 1]} : vector<9x1024xf32> to vector<9x128xf32>
    %703 = arith.truncf %702 : vector<9x128xf32> to vector<9x128xbf16>
    %cst_83 = arith.constant dense<0.000000e+00> : vector<9x9xf32>
    %704 = tpu.matmul %703, %659, %cst_83 {dimension_numbers = #tpu.dot_dimension_numbers<[1], [0], [0], [1], [0, 0, 1, 1], [], []>} : vector<9x128xbf16>, vector<128x9xbf16>, vector<9x9xf32> -> vector<9x9xf32>
    %705 = arith.cmpf ogt, %704, %701 : vector<9x9xf32>
    %cst_84 = arith.constant 4.000000e+00 : f32
    %706 = vector.broadcast %cst_84 : f32 to vector<9x9xf32>
    %707 = arith.select %705, %706, %700 : vector<9x9xi1>, vector<9x9xf32>
    %708 = arith.select %705, %704, %701 : vector<9x9xi1>, vector<9x9xf32>
    %709 = vector.extract_strided_slice %676 {offsets = [0, 640], sizes = [9, 128], strides = [1, 1]} : vector<9x1024xf32> to vector<9x128xf32>
    %710 = arith.truncf %709 : vector<9x128xf32> to vector<9x128xbf16>
    %cst_85 = arith.constant dense<0.000000e+00> : vector<9x9xf32>
    %711 = tpu.matmul %710, %659, %cst_85 {dimension_numbers = #tpu.dot_dimension_numbers<[1], [0], [0], [1], [0, 0, 1, 1], [], []>} : vector<9x128xbf16>, vector<128x9xbf16>, vector<9x9xf32> -> vector<9x9xf32>
    %712 = arith.cmpf ogt, %711, %708 : vector<9x9xf32>
    %cst_86 = arith.constant 5.000000e+00 : f32
    %713 = vector.broadcast %cst_86 : f32 to vector<9x9xf32>
    %714 = arith.select %712, %713, %707 : vector<9x9xi1>, vector<9x9xf32>
    %715 = arith.select %712, %711, %708 : vector<9x9xi1>, vector<9x9xf32>
    %716 = vector.extract_strided_slice %676 {offsets = [0, 768], sizes = [9, 128], strides = [1, 1]} : vector<9x1024xf32> to vector<9x128xf32>
    %717 = arith.truncf %716 : vector<9x128xf32> to vector<9x128xbf16>
    %cst_87 = arith.constant dense<0.000000e+00> : vector<9x9xf32>
    %718 = tpu.matmul %717, %659, %cst_87 {dimension_numbers = #tpu.dot_dimension_numbers<[1], [0], [0], [1], [0, 0, 1, 1], [], []>} : vector<9x128xbf16>, vector<128x9xbf16>, vector<9x9xf32> -> vector<9x9xf32>
    %719 = arith.cmpf ogt, %718, %715 : vector<9x9xf32>
    %cst_88 = arith.constant 6.000000e+00 : f32
    %720 = vector.broadcast %cst_88 : f32 to vector<9x9xf32>
    %721 = arith.select %719, %720, %714 : vector<9x9xi1>, vector<9x9xf32>
    %722 = arith.select %719, %718, %715 : vector<9x9xi1>, vector<9x9xf32>
    %723 = vector.extract_strided_slice %676 {offsets = [0, 896], sizes = [9, 128], strides = [1, 1]} : vector<9x1024xf32> to vector<9x128xf32>
    %724 = arith.truncf %723 : vector<9x128xf32> to vector<9x128xbf16>
    %cst_89 = arith.constant dense<0.000000e+00> : vector<9x9xf32>
    %725 = tpu.matmul %724, %659, %cst_89 {dimension_numbers = #tpu.dot_dimension_numbers<[1], [0], [0], [1], [0, 0, 1, 1], [], []>} : vector<9x128xbf16>, vector<128x9xbf16>, vector<9x9xf32> -> vector<9x9xf32>
    %726 = arith.cmpf ogt, %725, %722 : vector<9x9xf32>
    %cst_90 = arith.constant 7.000000e+00 : f32
    %727 = vector.broadcast %cst_90 : f32 to vector<9x9xf32>
    %728 = arith.select %726, %727, %721 : vector<9x9xi1>, vector<9x9xf32>
    %729 = vector.extract_strided_slice %644 {offsets = [0, 0], sizes = [9, 1], strides = [1, 1]} : vector<18x1xf32> to vector<9x1xf32>
    %cst_91 = arith.constant 0.000000e+00 : f32
    %730 = vector.broadcast %cst_91 : f32 to vector<9x109xf32>
    %731 = tpu.concatenate %675, %728, %729, %730 in 1 : vector<9x9xf32>, vector<9x9xf32>, vector<9x1xf32>, vector<9x109xf32> -> vector<9x128xf32>
    %732 = vector.extract_strided_slice %625 {offsets = [9, 0], sizes = [9, 128], strides = [1, 1]} : vector<18x128xf32> to vector<9x128xf32>
    %733 = tpu.transpose %732, [1, 0] : vector<9x128xf32> -> vector<128x9xf32>
    %734 = arith.truncf %733 : vector<128x9xf32> to vector<128x9xbf16>
    %735 = vector.extract_strided_slice %627 {offsets = [9, 0], sizes = [9, 128], strides = [1, 1]} : vector<18x128xf32> to vector<9x128xf32>
    %736 = tpu.transpose %735, [1, 0] : vector<9x128xf32> -> vector<128x9xf32>
    %737 = arith.truncf %736 : vector<128x9xf32> to vector<128x9xbf16>
    %738 = vector.extract_strided_slice %647 {offsets = [9, 0], sizes = [9, 128], strides = [1, 1]} : vector<18x128xf32> to vector<9x128xf32>
    %739 = arith.truncf %738 : vector<9x128xf32> to vector<9x128xbf16>
    %cst_92 = arith.constant dense<0.000000e+00> : vector<9x9xf32>
    %740 = tpu.matmul %739, %734, %cst_92 {dimension_numbers = #tpu.dot_dimension_numbers<[1], [0], [0], [1], [0, 0, 1, 1], [], []>} : vector<9x128xbf16>, vector<128x9xbf16>, vector<9x9xf32> -> vector<9x9xf32>
    %cst_93 = arith.constant 0xFF800000 : f32
    %741 = vector.broadcast %cst_93 : f32 to vector<9x9xf32>
    %742 = arith.select %653, %741, %740 : vector<9x9xi1>, vector<9x9xf32>
    %cst_94 = arith.constant dense<0xFF800000> : vector<9xf32>
    %743 = vector.multi_reduction <maximumf>, %742, %cst_94 [1] : vector<9x9xf32> to vector<9xf32>
    %744 = vector.shape_cast %743 : vector<9xf32> to vector<9x1xf32>
    %745 = vector.broadcast %744 : vector<9x1xf32> to vector<9x9xf32>
    %746 = arith.subf %742, %745 : vector<9x9xf32>
    %747 = math.exp %746 : vector<9x9xf32>
    %cst_95 = arith.constant dense<0.000000e+00> : vector<9xf32>
    %748 = vector.multi_reduction <add>, %747, %cst_95 [1] : vector<9x9xf32> to vector<9xf32>
    %749 = vector.shape_cast %748 : vector<9xf32> to vector<9x1xf32>
    %750 = math.log %749 : vector<9x1xf32>
    %751 = arith.addf %750, %744 : vector<9x1xf32>
    %752 = vector.broadcast %751 : vector<9x1xf32> to vector<9x9xf32>
    %753 = arith.subf %742, %752 : vector<9x9xf32>
    %754 = vector.extract_strided_slice %650 {offsets = [9, 0], sizes = [9, 1024], strides = [1, 1]} : vector<18x1024xf32> to vector<9x1024xf32>
    %755 = vector.extract_strided_slice %754 {offsets = [0, 0], sizes = [9, 128], strides = [1, 1]} : vector<9x1024xf32> to vector<9x128xf32>
    %756 = arith.truncf %755 : vector<9x128xf32> to vector<9x128xbf16>
    %cst_96 = arith.constant dense<0.000000e+00> : vector<9x9xf32>
    %757 = tpu.matmul %756, %737, %cst_96 {dimension_numbers = #tpu.dot_dimension_numbers<[1], [0], [0], [1], [0, 0, 1, 1], [], []>} : vector<9x128xbf16>, vector<128x9xbf16>, vector<9x9xf32> -> vector<9x9xf32>
    %cst_97 = arith.constant 0.000000e+00 : f32
    %758 = vector.broadcast %cst_97 : f32 to vector<9x9xf32>
    %759 = vector.extract_strided_slice %754 {offsets = [0, 128], sizes = [9, 128], strides = [1, 1]} : vector<9x1024xf32> to vector<9x128xf32>
    %760 = arith.truncf %759 : vector<9x128xf32> to vector<9x128xbf16>
    %cst_98 = arith.constant dense<0.000000e+00> : vector<9x9xf32>
    %761 = tpu.matmul %760, %737, %cst_98 {dimension_numbers = #tpu.dot_dimension_numbers<[1], [0], [0], [1], [0, 0, 1, 1], [], []>} : vector<9x128xbf16>, vector<128x9xbf16>, vector<9x9xf32> -> vector<9x9xf32>
    %762 = arith.cmpf ogt, %761, %757 : vector<9x9xf32>
    %cst_99 = arith.constant 1.000000e+00 : f32
    %763 = vector.broadcast %cst_99 : f32 to vector<9x9xf32>
    %764 = arith.select %762, %763, %758 : vector<9x9xi1>, vector<9x9xf32>
    %765 = arith.select %762, %761, %757 : vector<9x9xi1>, vector<9x9xf32>
    %766 = vector.extract_strided_slice %754 {offsets = [0, 256], sizes = [9, 128], strides = [1, 1]} : vector<9x1024xf32> to vector<9x128xf32>
    %767 = arith.truncf %766 : vector<9x128xf32> to vector<9x128xbf16>
    %cst_100 = arith.constant dense<0.000000e+00> : vector<9x9xf32>
    %768 = tpu.matmul %767, %737, %cst_100 {dimension_numbers = #tpu.dot_dimension_numbers<[1], [0], [0], [1], [0, 0, 1, 1], [], []>} : vector<9x128xbf16>, vector<128x9xbf16>, vector<9x9xf32> -> vector<9x9xf32>
    %769 = arith.cmpf ogt, %768, %765 : vector<9x9xf32>
    %cst_101 = arith.constant 2.000000e+00 : f32
    %770 = vector.broadcast %cst_101 : f32 to vector<9x9xf32>
    %771 = arith.select %769, %770, %764 : vector<9x9xi1>, vector<9x9xf32>
    %772 = arith.select %769, %768, %765 : vector<9x9xi1>, vector<9x9xf32>
    %773 = vector.extract_strided_slice %754 {offsets = [0, 384], sizes = [9, 128], strides = [1, 1]} : vector<9x1024xf32> to vector<9x128xf32>
    %774 = arith.truncf %773 : vector<9x128xf32> to vector<9x128xbf16>
    %cst_102 = arith.constant dense<0.000000e+00> : vector<9x9xf32>
    %775 = tpu.matmul %774, %737, %cst_102 {dimension_numbers = #tpu.dot_dimension_numbers<[1], [0], [0], [1], [0, 0, 1, 1], [], []>} : vector<9x128xbf16>, vector<128x9xbf16>, vector<9x9xf32> -> vector<9x9xf32>
    %776 = arith.cmpf ogt, %775, %772 : vector<9x9xf32>
    %cst_103 = arith.constant 3.000000e+00 : f32
    %777 = vector.broadcast %cst_103 : f32 to vector<9x9xf32>
    %778 = arith.select %776, %777, %771 : vector<9x9xi1>, vector<9x9xf32>
    %779 = arith.select %776, %775, %772 : vector<9x9xi1>, vector<9x9xf32>
    %780 = vector.extract_strided_slice %754 {offsets = [0, 512], sizes = [9, 128], strides = [1, 1]} : vector<9x1024xf32> to vector<9x128xf32>
    %781 = arith.truncf %780 : vector<9x128xf32> to vector<9x128xbf16>
    %cst_104 = arith.constant dense<0.000000e+00> : vector<9x9xf32>
    %782 = tpu.matmul %781, %737, %cst_104 {dimension_numbers = #tpu.dot_dimension_numbers<[1], [0], [0], [1], [0, 0, 1, 1], [], []>} : vector<9x128xbf16>, vector<128x9xbf16>, vector<9x9xf32> -> vector<9x9xf32>
    %783 = arith.cmpf ogt, %782, %779 : vector<9x9xf32>
    %cst_105 = arith.constant 4.000000e+00 : f32
    %784 = vector.broadcast %cst_105 : f32 to vector<9x9xf32>
    %785 = arith.select %783, %784, %778 : vector<9x9xi1>, vector<9x9xf32>
    %786 = arith.select %783, %782, %779 : vector<9x9xi1>, vector<9x9xf32>
    %787 = vector.extract_strided_slice %754 {offsets = [0, 640], sizes = [9, 128], strides = [1, 1]} : vector<9x1024xf32> to vector<9x128xf32>
    %788 = arith.truncf %787 : vector<9x128xf32> to vector<9x128xbf16>
    %cst_106 = arith.constant dense<0.000000e+00> : vector<9x9xf32>
    %789 = tpu.matmul %788, %737, %cst_106 {dimension_numbers = #tpu.dot_dimension_numbers<[1], [0], [0], [1], [0, 0, 1, 1], [], []>} : vector<9x128xbf16>, vector<128x9xbf16>, vector<9x9xf32> -> vector<9x9xf32>
    %790 = arith.cmpf ogt, %789, %786 : vector<9x9xf32>
    %cst_107 = arith.constant 5.000000e+00 : f32
    %791 = vector.broadcast %cst_107 : f32 to vector<9x9xf32>
    %792 = arith.select %790, %791, %785 : vector<9x9xi1>, vector<9x9xf32>
    %793 = arith.select %790, %789, %786 : vector<9x9xi1>, vector<9x9xf32>
    %794 = vector.extract_strided_slice %754 {offsets = [0, 768], sizes = [9, 128], strides = [1, 1]} : vector<9x1024xf32> to vector<9x128xf32>
    %795 = arith.truncf %794 : vector<9x128xf32> to vector<9x128xbf16>
    %cst_108 = arith.constant dense<0.000000e+00> : vector<9x9xf32>
    %796 = tpu.matmul %795, %737, %cst_108 {dimension_numbers = #tpu.dot_dimension_numbers<[1], [0], [0], [1], [0, 0, 1, 1], [], []>} : vector<9x128xbf16>, vector<128x9xbf16>, vector<9x9xf32> -> vector<9x9xf32>
    %797 = arith.cmpf ogt, %796, %793 : vector<9x9xf32>
    %cst_109 = arith.constant 6.000000e+00 : f32
    %798 = vector.broadcast %cst_109 : f32 to vector<9x9xf32>
    %799 = arith.select %797, %798, %792 : vector<9x9xi1>, vector<9x9xf32>
    %800 = arith.select %797, %796, %793 : vector<9x9xi1>, vector<9x9xf32>
    %801 = vector.extract_strided_slice %754 {offsets = [0, 896], sizes = [9, 128], strides = [1, 1]} : vector<9x1024xf32> to vector<9x128xf32>
    %802 = arith.truncf %801 : vector<9x128xf32> to vector<9x128xbf16>
    %cst_110 = arith.constant dense<0.000000e+00> : vector<9x9xf32>
    %803 = tpu.matmul %802, %737, %cst_110 {dimension_numbers = #tpu.dot_dimension_numbers<[1], [0], [0], [1], [0, 0, 1, 1], [], []>} : vector<9x128xbf16>, vector<128x9xbf16>, vector<9x9xf32> -> vector<9x9xf32>
    %804 = arith.cmpf ogt, %803, %800 : vector<9x9xf32>
    %cst_111 = arith.constant 7.000000e+00 : f32
    %805 = vector.broadcast %cst_111 : f32 to vector<9x9xf32>
    %806 = arith.select %804, %805, %799 : vector<9x9xi1>, vector<9x9xf32>
    %807 = vector.extract_strided_slice %644 {offsets = [9, 0], sizes = [9, 1], strides = [1, 1]} : vector<18x1xf32> to vector<9x1xf32>
    %cst_112 = arith.constant 0.000000e+00 : f32
    %808 = vector.broadcast %cst_112 : f32 to vector<9x109xf32>
    %809 = tpu.concatenate %753, %806, %807, %808 in 1 : vector<9x9xf32>, vector<9x9xf32>, vector<9x1xf32>, vector<9x109xf32> -> vector<9x128xf32>
    %810 = tpu.concatenate %731, %809 in 0 : vector<9x128xf32>, vector<9x128xf32> -> vector<18x128xf32>
    %811 = vector.shape_cast %810 : vector<18x128xf32> to vector<2x9x128xf32>
    %c0_113 = arith.constant 0 : index
    %c0_114 = arith.constant 0 : index
    %c0_115 = arith.constant 0 : index
    %812 = vector.load %arg9[%c0_113, %c0_114, %c0_115] : memref<2x9x128xf32, #tpu.memory_space<vmem>>, vector<2x9x128xf32>
    tpu.vector_store %arg9[%c0_113, %c0_114, %c0_115], %811 {strides = array<i32>} : memref<2x9x128xf32, #tpu.memory_space<vmem>>, vector<2x9x128xf32>,
    return
  }
}

</mosaic_0001>

<llo_original>
// kernel: mt_tagger_parser_forward.1
$region0: #{mt_tagger_parser_forward.1}
  #allocation0 [shape = 'u32[]', space=smem, size = 0x4, offset = 0x4, fixed_abs, tag = 'smem constant byte address 0x4 - core index']
  #allocation1 [shape = 'u32[144,128]{1,0:T(1,128)}', space=vmem, size = 0x12000, scoped, tag = 'internal scratch']
  %s0 = inlined_call_operand.vmem [shape: f32[2,9,24], index: 0, kind: input, shape index: {}]
  %s1 = inlined_call_operand.vmem [shape: bf16[24,32], index: 1, kind: input, shape index: {}]
  %s2 = inlined_call_operand.vmem [shape: bf16[96,384], index: 2, kind: input, shape index: {}]
  %s3 = inlined_call_operand.vmem [shape: f32[2,384], index: 3, kind: input, shape index: {}]
  %s4 = inlined_call_operand.vmem [shape: bf16[64,256], index: 4, kind: input, shape index: {}]
  %s5 = inlined_call_operand.vmem [shape: f32[16,32], index: 5, kind: input, shape index: {}]
  %s6 = inlined_call_operand.vmem [shape: bf16[64,640], index: 6, kind: input, shape index: {}]
  %s7 = inlined_call_operand.vmem [shape: f32[1,640], index: 7, kind: input, shape index: {}]
  %s8 = inlined_call_operand.hbm [shape: bf16[128,1280], index: 8, kind: input, shape index: {}]
  %s9 = inlined_call_operand.vmem [shape: f32[2,9,128], index: 9, kind: output, shape index: {}]
  %s10 = sld [smem:[#allocation0]]
  $region50: #{mt_tagger_parser_forward.1} parent=0
    _
  %s12 = ssub.s32 1, %s10
  %s13 = scalar_select 0, %s12, %s10
  $region1: #{mt_tagger_parser_forward.1} parent=0
    #allocation2 [shape = 'u8[327680]{0}', space=vmem, size = 0x50000, scoped, tag = 'input window, operand 8, single buffered']
    #allocation3 [shape = 's32[1]{0}', space=sflag, size = 0x4, scoped, tag = 'scoped memory for mt_tagger_parser_forward.1']
    %14 = vsyncpa [#allocation3], 0
    // Predicated region
    $region2: #{mt_tagger_parser_forward.1} parent=1 // pred_check
      _
    $region3: #{mt_tagger_parser_forward.1} parent=1 // pred_check_branch
      %16 = sbr.rel (0) target = $region5
    $region4: #{mt_tagger_parser_forward.1} parent=1 // pred_region
      _
    $region5: #{mt_tagger_parser_forward.1} parent=1 // pred_fallthru
      _
    // Predicated region
    $region6: #{mt_tagger_parser_forward.1} parent=1 // pred_check
      _
    $region7: #{mt_tagger_parser_forward.1} parent=1 // pred_check_branch
      %18 = sbr.rel (0) target = $region9
    $region8: #{mt_tagger_parser_forward.1} parent=1 // pred_region
      _
    $region9: #{mt_tagger_parser_forward.1} parent=1 // pred_fallthru
      _
    // Predicated region
    $region10: #{mt_tagger_parser_forward.1} parent=1 // pred_check
      _
    $region11: #{mt_tagger_parser_forward.1} parent=1 // pred_check_branch
      %20 = sbr.rel (0) target = $region13
    $region12: #{mt_tagger_parser_forward.1} parent=1 // pred_region
      _
    $region13: #{mt_tagger_parser_forward.1} parent=1 // pred_fallthru
      _
    // Predicated region
    $region14: #{mt_tagger_parser_forward.1} parent=1 // pred_check
      _
    $region15: #{mt_tagger_parser_forward.1} parent=1 // pred_check_branch
      %22 = sbr.rel (0) target = $region17
    $region16: #{mt_tagger_parser_forward.1} parent=1 // pred_region
      _
    $region17: #{mt_tagger_parser_forward.1} parent=1 // pred_fallthru
      _
    // Predicated region
    $region18: #{mt_tagger_parser_forward.1} parent=1 // pred_check
      _
    $region19: #{mt_tagger_parser_forward.1} parent=1 // pred_check_branch
      %24 = sbr.rel (0) target = $region21
    $region20: #{mt_tagger_parser_forward.1} parent=1 // pred_region
      _
    $region21: #{mt_tagger_parser_forward.1} parent=1 // pred_fallthru
      _
    // Predicated region
    $region22: #{mt_tagger_parser_forward.1} parent=1 // pred_check
      _
    $region23: #{mt_tagger_parser_forward.1} parent=1 // pred_check_branch
      %26 = sbr.rel (0) target = $region25
    $region24: #{mt_tagger_parser_forward.1} parent=1 // pred_region
      _
    $region25: #{mt_tagger_parser_forward.1} parent=1 // pred_fallthru
      _
    // Predicated region
    $region26: #{mt_tagger_parser_forward.1} parent=1 // pred_check
      _
    $region27: #{mt_tagger_parser_forward.1} parent=1 // pred_check_branch
      %28 = sbr.rel (0) target = $region29
    $region28: #{mt_tagger_parser_forward.1} parent=1 // pred_region
      _
    $region29: #{mt_tagger_parser_forward.1} parent=1 // pred_fallthru
      _
    // Predicated region
    $region30: #{mt_tagger_parser_forward.1} parent=1 // pred_check
      _
    $region31: #{mt_tagger_parser_forward.1} parent=1 // pred_check_branch
      %30 = sbr.rel (0) target = $region33
    $region32: #{mt_tagger_parser_forward.1} parent=1 // pred_region
      _
    $region33: #{mt_tagger_parser_forward.1} parent=1 // pred_fallthru
      _
    // Predicated region
    $region34: #{mt_tagger_parser_forward.1} parent=1 // pred_check
      _
    $region35: #{mt_tagger_parser_forward.1} parent=1 // pred_check_branch
      %32 = sbr.rel (0) target = $region37
    $region36: #{mt_tagger_parser_forward.1} parent=1 // pred_region
      %s34 = ssub.s32 10240, 10240
      %35 = vsyncadd [#allocation3], %s34
      %s36 = sshll.u32 [#allocation2], 4
      %s37 = int_to_ptr.vmem [resolvable:$true] %s36
      %42 = dma.hbm_to_vmem [thread:$0]  %s8, 10240, %s37, [#allocation3], 640, 640, 40
    $region37: #{mt_tagger_parser_forward.1} parent=1 // pred_fallthru
      _
    // Predicated region
    $region38: #{mt_tagger_parser_forward.1} parent=1 // pred_check
      _
    $region39: #{mt_tagger_parser_forward.1} parent=1 // pred_check_branch
      %44 = sbr.rel (0) target = $region41
    $region40: #{mt_tagger_parser_forward.1} parent=1 // pred_region
      %45 = dma.done [#allocation3], 10240
    $region41: #{mt_tagger_parser_forward.1} parent=1 // pred_fallthru
      _
    %v47 = vld [vmem:[%s0] sm:$0xff]
    %v48 = vld [vmem:[%s0 + $0x8] sm:$0x1]
    %v49 = vld [vmem:[%s0 + $0x10] sm:$0xff]
    %v50 = vld [vmem:[%s0 + $0x18] sm:$0x1]
    %v55 = vcombine.high %v47, %v47
    %v57 = vunpack.c.l.s4 1966171168
    %v58 = vunpack.c.0.s8 %v57
    %v59 = vlaneseq
    %v60 = vshrl.u32 %v59, 7
    %v61 = vsub.s32 %v58, %v60
    %v62 = vrot.slane %v47, %v61
    %v64 = vunpack.c.l.s4 1966171168
    %v65 = vunpack.c.0.s8 %v64
    %v66 = vlaneseq
    %v67 = vshrl.u32 %v66, 7
    %v68 = vsub.s32 %v65, %v67
    %v69 = vrot.slane %v55, %v68
    %v70 = vcombine.high %v62, %v62
    %v71 = vcombine.high %v69, %v69
    %v73 = vunpack.c.l.s4 1966171168
    %v74 = vunpack.c.0.s8 %v73
    %v75 = vlaneseq
    %v76 = vshrl.u32 %v75, 7
    %v77 = vsub.s32 %v74, %v76
    %v78 = vrot.slane %v62, %v77
    %v80 = vunpack.c.l.s4 1966171168
    %v81 = vunpack.c.0.s8 %v80
    %v82 = vlaneseq
    %v83 = vshrl.u32 %v82, 7
    %v84 = vsub.s32 %v81, %v83
    %v85 = vrot.slane %v69, %v84
    %v87 = vunpack.c.l.s4 1966171168
    %v88 = vunpack.c.0.s8 %v87
    %v89 = vlaneseq
    %v90 = vshrl.u32 %v89, 7
    %v91 = vsub.s32 %v88, %v90
    %v92 = vrot.slane %v70, %v91
    %v94 = vunpack.c.l.s4 1966171168
    %v95 = vunpack.c.0.s8 %v94
    %v96 = vlaneseq
    %v97 = vshrl.u32 %v96, 7
    %v98 = vsub.s32 %v95, %v97
    %v99 = vrot.slane %v71, %v98
    %v100 = vcombine.high %v78, %v78
    %v101 = vcombine.high %v85, %v85
    %v102 = vcombine.high %v92, %v92
    %v103 = vcombine.high %v99, %v99
    %v105 = vunpack.c.l.s4 1966171168
    %v106 = vunpack.c.0.s8 %v105
    %v107 = vlaneseq
    %v108 = vshrl.u32 %v107, 7
    %v109 = vsub.s32 %v106, %v108
    %v110 = vrot.slane %v48, %v109
    %v112 = vunpack.c.l.s4 1966171168
    %v113 = vunpack.c.0.s8 %v112
    %v114 = vlaneseq
    %v115 = vshrl.u32 %v114, 7
    %v116 = vsub.s32 %v113, %v115
    %v117 = vrot.slane %v110, %v116
    %v118 = vcombine.high %v49, %v49
    %v120 = vunpack.c.l.s4 1966171168
    %v121 = vunpack.c.0.s8 %v120
    %v122 = vlaneseq
    %v123 = vshrl.u32 %v122, 7
    %v124 = vsub.s32 %v121, %v123
    %v125 = vrot.slane %v49, %v124
    %v127 = vunpack.c.l.s4 1966171168
    %v128 = vunpack.c.0.s8 %v127
    %v129 = vlaneseq
    %v130 = vshrl.u32 %v129, 7
    %v131 = vsub.s32 %v128, %v130
    %v132 = vrot.slane %v118, %v131
    %v133 = vcombine.high %v125, %v125
    %v134 = vcombine.high %v132, %v132
    %v136 = vunpack.c.l.s4 1966171168
    %v137 = vunpack.c.0.s8 %v136
    %v138 = vlaneseq
    %v139 = vshrl.u32 %v138, 7
    %v140 = vsub.s32 %v137, %v139
    %v141 = vrot.slane %v125, %v140
    %v143 = vunpack.c.l.s4 1966171168
    %v144 = vunpack.c.0.s8 %v143
    %v145 = vlaneseq
    %v146 = vshrl.u32 %v145, 7
    %v147 = vsub.s32 %v144, %v146
    %v148 = vrot.slane %v132, %v147
    %v150 = vunpack.c.l.s4 1966171168
    %v151 = vunpack.c.0.s8 %v150
    %v152 = vlaneseq
    %v153 = vshrl.u32 %v152, 7
    %v154 = vsub.s32 %v151, %v153
    %v155 = vrot.slane %v133, %v154
    %v157 = vunpack.c.l.s4 1966171168
    %v158 = vunpack.c.0.s8 %v157
    %v159 = vlaneseq
    %v160 = vshrl.u32 %v159, 7
    %v161 = vsub.s32 %v158, %v160
    %v162 = vrot.slane %v134, %v161
    %v163 = vcombine.high %v141, %v141
    %v164 = vcombine.high %v148, %v148
    %v165 = vcombine.high %v155, %v155
    %v166 = vcombine.high %v162, %v162
    %v168 = vunpack.c.l.s4 1966171168
    %v169 = vunpack.c.0.s8 %v168
    %v170 = vlaneseq
    %v171 = vshrl.u32 %v170, 7
    %v172 = vsub.s32 %v169, %v171
    %v173 = vrot.slane %v50, %v172
    %v175 = vunpack.c.l.s4 1966171168
    %v176 = vunpack.c.0.s8 %v175
    %v177 = vlaneseq
    %v178 = vshrl.u32 %v177, 7
    %v179 = vsub.s32 %v176, %v178
    %v180 = vrot.slane %v173, %v179
    %v181 = vld [vmem:[%s1] sm:$0xf]
    %v182 = vld [vmem:[%s1 + $0x4] sm:$0xf]
    %v183 = vld [vmem:[%s1 + $0x8] sm:$0xf]
    %v184 = vcombine.low %v78, %v92
    %v185 = vcombine.low %v100, %v102
    %v186 = vcombine.low %v85, %v99
    %v187 = vcombine.low %v101, %v103
    %v189 = vunpack.c.l.s4 1966171168
    %v190 = vunpack.c.0.s8 %v189
    %v191 = vlaneseq
    %v192 = vshrl.u32 %v191, 7
    %v193 = vsub.s32 %v190, %v192
    %v194 = vrot.slane %v184, %v193
    %v196 = vunpack.c.l.s4 1966171168
    %v197 = vunpack.c.0.s8 %v196
    %v198 = vlaneseq
    %v199 = vshrl.u32 %v198, 7
    %v200 = vsub.s32 %v197, %v199
    %v201 = vrot.slane %v185, %v200
    %v203 = vunpack.c.l.s4 1966171168
    %v204 = vunpack.c.0.s8 %v203
    %v205 = vlaneseq
    %v206 = vshrl.u32 %v205, 7
    %v207 = vsub.s32 %v204, %v206
    %v208 = vrot.slane %v186, %v207
    %v210 = vunpack.c.l.s4 1966171168
    %v211 = vunpack.c.0.s8 %v210
    %v212 = vlaneseq
    %v213 = vshrl.u32 %v212, 7
    %v214 = vsub.s32 %v211, %v213
    %v215 = vrot.slane %v187, %v214
    %v216 = vcombine.low %v194, %v201
    %v217 = vcombine.low %v208, %v215
    %v219 = vunpack.c.l.s4 1966171168
    %v220 = vunpack.c.0.s8 %v219
    %v221 = vlaneseq
    %v222 = vshrl.u32 %v221, 7
    %v223 = vsub.s32 %v220, %v222
    %v224 = vrot.slane %v216, %v223
    %v226 = vunpack.c.l.s4 1966171168
    %v227 = vunpack.c.0.s8 %v226
    %v228 = vlaneseq
    %v229 = vshrl.u32 %v228, 7
    %v230 = vsub.s32 %v227, %v229
    %v231 = vrot.slane %v217, %v230
    %v232 = vcombine.low %v224, %v231
    %v233 = vcombine.low %v117, %v141
    %v234 = vcombine.low %v155, %v163
    %v235 = vcombine.low %v165, %v148
    %v236 = vcombine.low %v162, %v164
    %v238 = vunpack.c.l.s4 1966171168
    %v239 = vunpack.c.0.s8 %v238
    %v240 = vlaneseq
    %v241 = vshrl.u32 %v240, 7
    %v242 = vsub.s32 %v239, %v241
    %v243 = vrot.slane %v233, %v242
    %v245 = vunpack.c.l.s4 1966171168
    %v246 = vunpack.c.0.s8 %v245
    %v247 = vlaneseq
    %v248 = vshrl.u32 %v247, 7
    %v249 = vsub.s32 %v246, %v248
    %v250 = vrot.slane %v234, %v249
    %v252 = vunpack.c.l.s4 1966171168
    %v253 = vunpack.c.0.s8 %v252
    %v254 = vlaneseq
    %v255 = vshrl.u32 %v254, 7
    %v256 = vsub.s32 %v253, %v255
    %v257 = vrot.slane %v235, %v256
    %v259 = vunpack.c.l.s4 1966171168
    %v260 = vunpack.c.0.s8 %v259
    %v261 = vlaneseq
    %v262 = vshrl.u32 %v261, 7
    %v263 = vsub.s32 %v260, %v262
    %v264 = vrot.slane %v236, %v263
    %v265 = vcombine.low %v243, %v250
    %v266 = vcombine.low %v257, %v264
    %v268 = vunpack.c.l.s4 1966171168
    %v269 = vunpack.c.0.s8 %v268
    %v270 = vlaneseq
    %v271 = vshrl.u32 %v270, 7
    %v272 = vsub.s32 %v269, %v271
    %v273 = vrot.slane %v265, %v272
    %v275 = vunpack.c.l.s4 1966171168
    %v276 = vunpack.c.0.s8 %v275
    %v277 = vlaneseq
    %v278 = vshrl.u32 %v277, 7
    %v279 = vsub.s32 %v276, %v278
    %v280 = vrot.slane %v266, %v279
    %v281 = vcombine.low %v273, %v280
    %v282 = vcombine.low %v166, %v180
    %v284 = vunpack.c.l.s4 1966171168
    %v285 = vunpack.c.0.s8 %v284
    %v286 = vlaneseq
    %v287 = vshrl.u32 %v286, 7
    %v288 = vsub.s32 %v285, %v287
    %v289 = vrot.slane %v282, %v288
    %v291 = vunpack.c.l.s4 1966171168
    %v292 = vunpack.c.0.s8 %v291
    %v293 = vlaneseq
    %v294 = vshrl.u32 %v293, 7
    %v295 = vsub.s32 %v292, %v294
    %v296 = vrot.slane %v289, %v295
    %v300 = vpack.c.bf16 %v281, %v232
    %v301 = vpack.c.bf16 %v296, %v296
    %v305 = vunpack.c.l.b16 %v181
    %v306 = vunpack.c.l.b16 %v182
    %v307 = vunpack.c.l.b16 %v183
    %v308 = vpack.c.b16 %v306, %v305
    %v309 = vpack.c.b16 %v307, %v307
    %vm311 = vcmask 195584
    %v313 = vsel %vm311, %v300, 0
    %v316 = vsel %vm311, %v301, 0
    %vm318 = vcmask 1043456
    %v320 = vsel %vm318, %v309, 0
    %322 = vmatprep.subr.bf16.mxu0 0
    %323 = vmatpush1.bf16.msra.mxu0 %v308
    %324 = vmatprep.subr.bf16.mxu0 0
    %325 = vmatpush1.bf16.msra.mxu0 %v320
    %326 = vmatprep.subr.bf16.mxu0 0
    %327 = vmatpush1.bf16.msra.mxu0 0
    %328 = vmatprep.subr.bf16.mxu0 0
    %329 = vmatpush1.bf16.msra.mxu0 0
    %330 = vmatprep.subr.bf16.mxu0 0
    %331 = vmatpush1.bf16.msra.mxu0 0
    %332 = vmatprep.subr.bf16.mxu0 0
    %333 = vmatpush1.bf16.msra.mxu0 0
    %334 = vmatprep.subr.bf16.mxu0 0
    %335 = vmatpush1.bf16.msra.mxu0 0
    %336 = vmatprep.subr.bf16.mxu0 0
    %337 = vmatpush1.bf16.msra.mxu0 0
    %338 = vmatprep.subr.bf16.mxu0 0
    %339 = vmatpush1.bf16.msra.mxu0 0
    %340 = vmatprep.subr.bf16.mxu0 0
    %341 = vmatpush1.bf16.msra.mxu0 0
    %342 = vmatprep.subr.bf16.mxu0 0
    %343 = vmatpush1.bf16.msra.mxu0 0
    %344 = vmatprep.subr.bf16.mxu0 0
    %345 = vmatpush1.bf16.msra.mxu0 0
    %346 = vmatprep.subr.bf16.mxu0 0
    %347 = vmatpush1.bf16.msra.mxu0 0
    %348 = vmatprep.subr.bf16.mxu0 0
    %349 = vmatpush1.bf16.msra.mxu0 0
    %350 = vmatprep.subr.bf16.mxu0 0
    %351 = vmatpush1.bf16.msra.mxu0 0
    %352 = vmatprep.subr.bf16.mxu0 0
    %353 = vmatpush1.bf16.msra.mxu0 0
    %354 = vmatprep.mubr.bf16.mxu0 0
    %355 = vmatmul.mubr.bf16.gmra.mrb[0].mxu0 %v313
    %v356 = vpop.f32.mrb[0].mxu0
    %v357 = vadd.f32 0.0, %v356
    %v358 = vpop.f32.mrb[0].mxu0
    %v359 = vpop.f32.mrb[0].mxu0
    %v360 = vadd.f32 0.0, %v359
    %v361 = vpop.f32.mrb[0].mxu0
    %362 = vmatprep.mubr.bf16.mxu0 0
    %363 = vmatmul.mubr.bf16.gmra.mrb[0].mxu0 %v316
    %v364 = vpop.f32.mrb[0].mxu0
    %v365 = vadd.f32 0.0, %v364
    %v366 = vpop.f32.mrb[0].mxu0
    %v367 = vpop.f32.mrb[0].mxu0
    %v368 = vpop.f32.mrb[0].mxu0
    %369 = vdwg.mxu0
    %v370 = vld [vmem:[%s5] sm:$0xff]
    %v371 = vld [vmem:[%s5 + $0x8] sm:$0xff]
    %v372 = vld [vmem:[%s3] sm:$0x3f]
    %v373 = vld [vmem:[%s2] sm:$0xff]
    %v374 = vld [vmem:[%s2 + $0x8] sm:$0xf]
    %v375 = vld [vmem:[%s2 + $0xc] sm:$0xff]
    %v376 = vld [vmem:[%s2 + $0x14] sm:$0xf]
    %v377 = vld [vmem:[%s2 + $0x18] sm:$0xff]
    %v378 = vld [vmem:[%s2 + $0x20] sm:$0xf]
    %v379 = vld [vmem:[%s2 + $0x24] sm:$0xff]
    %v380 = vld [vmem:[%s2 + $0x2c] sm:$0xf]
    %v381 = vpack.c.bf16 %v360, %v357
    %v382 = vpack.c.bf16 %v365, %v365
    %v384 = vlaneseq
    %v385 = vshrl.u32 %v384, 7
    %v386 = vsub.s32 0, %v385
    %v387 = vrot.slane %v372, %v386
    %v388 = vlaneseq
    %v389 = vshrl.u32 %v388, 7
    %v390 = vsub.s32 2, %v389
    %v391 = vrot.slane %v372, %v390
    %v392 = vlaneseq
    %v393 = vshrl.u32 %v392, 7
    %v394 = vsub.s32 4, %v393
    %v395 = vrot.slane %v372, %v394
    %v399 = vlaneseq
    %v400 = vshrl.u32 %v399, 7
    %v401 = vsub.s32 0, %v400
    %v402 = vrot.slane %v387, %v401
    %v403 = vlaneseq
    %v404 = vshrl.u32 %v403, 7
    %v405 = vsub.s32 0, %v404
    %v406 = vrot.slane %v391, %v405
    %v407 = vlaneseq
    %v408 = vshrl.u32 %v407, 7
    %v409 = vsub.s32 0, %v408
    %v410 = vrot.slane %v395, %v409
    %v419 = vunpack.c.l.b16 %v373
    %v420 = vunpack.c.h.b16 %v373
    %v421 = vunpack.c.l.b16 %v374
    %v422 = vunpack.c.l.b16 %v375
    %v423 = vunpack.c.h.b16 %v375
    %v424 = vunpack.c.l.b16 %v376
    %v425 = vunpack.c.l.b16 %v377
    %v426 = vunpack.c.h.b16 %v377
    %v427 = vunpack.c.l.b16 %v378
    %v428 = vunpack.c.l.b16 %v379
    %v429 = vunpack.c.h.b16 %v379
    %v430 = vunpack.c.l.b16 %v380
    %v431 = vpack.c.b16 %v422, %v419
    %v432 = vpack.c.b16 %v423, %v420
    %v433 = vpack.c.b16 %v424, %v421
    %v434 = vpack.c.b16 %v428, %v425
    %v435 = vpack.c.b16 %v429, %v426
    %v436 = vpack.c.b16 %v430, %v427
    %vm443 = vcmask 261120
    %v445 = vsel %vm443, %v381, 0
    %v448 = vsel %vm443, %v382, 0
    %450 = vmatprep.subr.bf16.mxu0 %v432
    %451 = vmatpush1.bf16.msra.mxu0 %v431
    %452 = vmatprep.subr.bf16.mxu0 %v435
    %453 = vmatpush1.bf16.msra.mxu0 %v434
    %454 = vmatprep.subr.bf16.mxu0 0
    %455 = vmatpush1.bf16.msra.mxu0 0
    %456 = vmatprep.subr.bf16.mxu0 0
    %457 = vmatpush1.bf16.msra.mxu0 0
    %458 = vmatprep.subr.bf16.mxu0 0
    %459 = vmatpush1.bf16.msra.mxu0 0
    %460 = vmatprep.subr.bf16.mxu0 0
    %461 = vmatpush1.bf16.msra.mxu0 0
    %462 = vmatprep.subr.bf16.mxu0 0
    %463 = vmatpush1.bf16.msra.mxu0 0
    %464 = vmatprep.subr.bf16.mxu0 0
    %465 = vmatpush1.bf16.msra.mxu0 0
    %466 = vmatprep.subr.bf16.mxu0 0
    %467 = vmatpush1.bf16.msra.mxu0 0
    %468 = vmatprep.subr.bf16.mxu0 0
    %469 = vmatpush1.bf16.msra.mxu0 0
    %470 = vmatprep.subr.bf16.mxu0 0
    %471 = vmatpush1.bf16.msra.mxu0 0
    %472 = vmatprep.subr.bf16.mxu0 0
    %473 = vmatpush1.bf16.msra.mxu0 0
    %474 = vmatprep.subr.bf16.mxu0 0
    %475 = vmatpush1.bf16.msra.mxu0 0
    %476 = vmatprep.subr.bf16.mxu0 0
    %477 = vmatpush1.bf16.msra.mxu0 0
    %478 = vmatprep.subr.bf16.mxu0 0
    %479 = vmatpush1.bf16.msra.mxu0 0
    %480 = vmatprep.subr.bf16.mxu0 0
    %481 = vmatpush1.bf16.msra.mxu0 0
    %482 = vmatprep.mubr.bf16.mxu0 0
    %483 = vmatmul.mubr.bf16.gmra.mrb[0].mxu0 %v445
    %v484 = vpop.f32.mrb[0].mxu0
    %v485 = vadd.f32 %v402, %v484
    %v486 = vpop.f32.mrb[0].mxu0
    %v487 = vadd.f32 %v406, %v486
    %v488 = vpop.f32.mrb[0].mxu0
    %v489 = vadd.f32 %v402, %v488
    %v490 = vpop.f32.mrb[0].mxu0
    %v491 = vadd.f32 %v406, %v490
    %492 = vmatprep.mubr.bf16.mxu0 0
    %493 = vmatmul.mubr.bf16.gmra.mrb[0].mxu0 %v448
    %v494 = vpop.f32.mrb[0].mxu0
    %v495 = vadd.f32 %v402, %v494
    %v496 = vpop.f32.mrb[0].mxu0
    %v497 = vadd.f32 %v406, %v496
    %v498 = vpop.f32.mrb[0].mxu0
    %v499 = vpop.f32.mrb[0].mxu0
    %500 = vdwg.mxu0
    %501 = vmatprep.subr.bf16.mxu0 0
    %502 = vmatpush1.bf16.msra.mxu0 %v433
    %503 = vmatprep.subr.bf16.mxu0 0
    %504 = vmatpush1.bf16.msra.mxu0 %v436
    %505 = vmatprep.subr.bf16.mxu0 0
    %506 = vmatpush1.bf16.msra.mxu0 0
    %507 = vmatprep.subr.bf16.mxu0 0
    %508 = vmatpush1.bf16.msra.mxu0 0
    %509 = vmatprep.subr.bf16.mxu0 0
    %510 = vmatpush1.bf16.msra.mxu0 0
    %511 = vmatprep.subr.bf16.mxu0 0
    %512 = vmatpush1.bf16.msra.mxu0 0
    %513 = vmatprep.subr.bf16.mxu0 0
    %514 = vmatpush1.bf16.msra.mxu0 0
    %515 = vmatprep.subr.bf16.mxu0 0
    %516 = vmatpush1.bf16.msra.mxu0 0
    %517 = vmatprep.subr.bf16.mxu0 0
    %518 = vmatpush1.bf16.msra.mxu0 0
    %519 = vmatprep.subr.bf16.mxu0 0
    %520 = vmatpush1.bf16.msra.mxu0 0
    %521 = vmatprep.subr.bf16.mxu0 0
    %522 = vmatpush1.bf16.msra.mxu0 0
    %523 = vmatprep.subr.bf16.mxu0 0
    %524 = vmatpush1.bf16.msra.mxu0 0
    %525 = vmatprep.subr.bf16.mxu0 0
    %526 = vmatpush1.bf16.msra.mxu0 0
    %527 = vmatprep.subr.bf16.mxu0 0
    %528 = vmatpush1.bf16.msra.mxu0 0
    %529 = vmatprep.subr.bf16.mxu0 0
    %530 = vmatpush1.bf16.msra.mxu0 0
    %531 = vmatprep.subr.bf16.mxu0 0
    %532 = vmatpush1.bf16.msra.mxu0 0
    %533 = vmatprep.mubr.bf16.mxu0 0
    %534 = vmatmul.mubr.bf16.gmra.mrb[0].mxu0 %v445
    %v535 = vpop.f32.mrb[0].mxu0
    %v536 = vadd.f32 %v410, %v535
    %v537 = vpop.f32.mrb[0].mxu0
    %v538 = vpop.f32.mrb[0].mxu0
    %v539 = vadd.f32 %v410, %v538
    %v540 = vpop.f32.mrb[0].mxu0
    %541 = vmatprep.mubr.bf16.mxu0 0
    %542 = vmatmul.mubr.bf16.gmra.mrb[0].mxu0 %v448
    %v543 = vpop.f32.mrb[0].mxu0
    %v544 = vadd.f32 %v410, %v543
    %v545 = vpop.f32.mrb[0].mxu0
    %v546 = vpop.f32.mrb[0].mxu0
    %v547 = vpop.f32.mrb[0].mxu0
    %548 = vdwg.mxu0
    %v549 = vxor.u32 %v536, 2147483648
    %v550 = vxor.u32 %v539, 2147483648
    %v551 = vxor.u32 %v544, 2147483648
    %v552 = vmul.f32 %v549, 1.442695
    %v553 = vpow.pop %v552
    %v554 = vmul.f32 %v550, 1.442695
    %v555 = vpow.pop %v554
    %v556 = vmul.f32 %v551, 1.442695
    %v557 = vpow.pop %v556
    %v558 = vadd.f32 %v553, 1.0
    %v559 = vadd.f32 %v555, 1.0
    %v560 = vadd.f32 %v557, 1.0
    %v561 = vrcp.pop %v558
    %v562 = vmul.f32 1.0, %v561
    %v563 = vrcp.pop %v559
    %v564 = vmul.f32 1.0, %v563
    %v565 = vrcp.pop %v560
    %v566 = vmul.f32 1.0, %v565
    %v567 = vtanh.pop %v536
    %v568 = vtanh.pop %v539
    %v569 = vtanh.pop %v544
    %573 = vrot.lane.b32.xlu0 %v567, 64
    %v574 = vpop.permute.xlu0 %573
    %575 = vrot.lane.b32.xlu0 %v568, 64
    %v576 = vpop.permute.xlu0 %575
    %577 = vrot.lane.b32.xlu0 %v569, 64
    %v578 = vpop.permute.xlu0 %577
    %v582 = vmul.f32 %v562, %v574
    %v583 = vmul.f32 %v564, %v576
    %v584 = vmul.f32 %v566, %v578
    %v591 = vcombine.low %v485, %v487
    %v592 = vcombine.high %v485, %v487
    %v594 = vunpack.c.l.s4 1966171168
    %v595 = vunpack.c.0.s8 %v594
    %v596 = vlaneseq
    %v597 = vshrl.u32 %v596, 7
    %v598 = vsub.s32 %v595, %v597
    %v599 = vrot.slane %v591, %v598
    %v601 = vunpack.c.l.s4 1966171168
    %v602 = vunpack.c.0.s8 %v601
    %v603 = vlaneseq
    %v604 = vshrl.u32 %v603, 7
    %v605 = vsub.s32 %v602, %v604
    %v606 = vrot.slane %v592, %v605
    %v607 = vcombine.high %v599, %v599
    %v608 = vcombine.high %v606, %v606
    %v610 = vunpack.c.l.s4 1966171168
    %v611 = vunpack.c.0.s8 %v610
    %v612 = vlaneseq
    %v613 = vshrl.u32 %v612, 7
    %v614 = vsub.s32 %v611, %v613
    %v615 = vrot.slane %v599, %v614
    %v617 = vunpack.c.l.s4 1966171168
    %v618 = vunpack.c.0.s8 %v617
    %v619 = vlaneseq
    %v620 = vshrl.u32 %v619, 7
    %v621 = vsub.s32 %v618, %v620
    %v622 = vrot.slane %v606, %v621
    %v624 = vunpack.c.l.s4 1966171168
    %v625 = vunpack.c.0.s8 %v624
    %v626 = vlaneseq
    %v627 = vshrl.u32 %v626, 7
    %v628 = vsub.s32 %v625, %v627
    %v629 = vrot.slane %v607, %v628
    %v631 = vunpack.c.l.s4 1966171168
    %v632 = vunpack.c.0.s8 %v631
    %v633 = vlaneseq
    %v634 = vshrl.u32 %v633, 7
    %v635 = vsub.s32 %v632, %v634
    %v636 = vrot.slane %v608, %v635
    %v637 = vcombine.high %v615, %v615
    %v638 = vcombine.high %v622, %v622
    %v639 = vcombine.high %v629, %v629
    %v640 = vcombine.high %v636, %v636
    %v641 = vcombine.low %v489, %v491
    %v642 = vcombine.high %v489, %v491
    %v644 = vunpack.c.l.s4 1966171168
    %v645 = vunpack.c.0.s8 %v644
    %v646 = vlaneseq
    %v647 = vshrl.u32 %v646, 7
    %v648 = vsub.s32 %v645, %v647
    %v649 = vrot.slane %v641, %v648
    %v651 = vunpack.c.l.s4 1966171168
    %v652 = vunpack.c.0.s8 %v651
    %v653 = vlaneseq
    %v654 = vshrl.u32 %v653, 7
    %v655 = vsub.s32 %v652, %v654
    %v656 = vrot.slane %v642, %v655
    %v657 = vcombine.high %v649, %v649
    %v658 = vcombine.high %v656, %v656
    %v660 = vunpack.c.l.s4 1966171168
    %v661 = vunpack.c.0.s8 %v660
    %v662 = vlaneseq
    %v663 = vshrl.u32 %v662, 7
    %v664 = vsub.s32 %v661, %v663
    %v665 = vrot.slane %v649, %v664
    %v667 = vunpack.c.l.s4 1966171168
    %v668 = vunpack.c.0.s8 %v667
    %v669 = vlaneseq
    %v670 = vshrl.u32 %v669, 7
    %v671 = vsub.s32 %v668, %v670
    %v672 = vrot.slane %v656, %v671
    %v674 = vunpack.c.l.s4 1966171168
    %v675 = vunpack.c.0.s8 %v674
    %v676 = vlaneseq
    %v677 = vshrl.u32 %v676, 7
    %v678 = vsub.s32 %v675, %v677
    %v679 = vrot.slane %v657, %v678
    %v681 = vunpack.c.l.s4 1966171168
    %v682 = vunpack.c.0.s8 %v681
    %v683 = vlaneseq
    %v684 = vshrl.u32 %v683, 7
    %v685 = vsub.s32 %v682, %v684
    %v686 = vrot.slane %v658, %v685
    %v687 = vcombine.high %v665, %v665
    %v688 = vcombine.high %v672, %v672
    %v689 = vcombine.high %v679, %v679
    %v690 = vcombine.high %v686, %v686
    %v691 = vcombine.low %v495, %v497
    %v693 = vunpack.c.l.s4 1966171168
    %v694 = vunpack.c.0.s8 %v693
    %v695 = vlaneseq
    %v696 = vshrl.u32 %v695, 7
    %v697 = vsub.s32 %v694, %v696
    %v698 = vrot.slane %v691, %v697
    %v699 = vcombine.high %v698, %v698
    %v701 = vunpack.c.l.s4 1966171168
    %v702 = vunpack.c.0.s8 %v701
    %v703 = vlaneseq
    %v704 = vshrl.u32 %v703, 7
    %v705 = vsub.s32 %v702, %v704
    %v706 = vrot.slane %v698, %v705
    %v708 = vunpack.c.l.s4 1966171168
    %v709 = vunpack.c.0.s8 %v708
    %v710 = vlaneseq
    %v711 = vshrl.u32 %v710, 7
    %v712 = vsub.s32 %v709, %v711
    %v713 = vrot.slane %v699, %v712
    %v714 = vld [vmem:[%s4] sm:$0xff]
    %v715 = vld [vmem:[%s4 + $0x8] sm:$0xff]
    %v716 = vld [vmem:[%s4 + $0x10] sm:$0xff]
    %v717 = vld [vmem:[%s4 + $0x18] sm:$0xff]
    %v718 = vrot.slane %v665, 1
    %v719 = vrot.slane %v713, 1
    %v720 = vpack.c.bf16 %v370, %v370
    %v725 = vunpack.c.l.b16 %v714
    %v726 = vunpack.c.h.b16 %v714
    %v727 = vunpack.c.l.b16 %v715
    %v728 = vunpack.c.h.b16 %v715
    %v729 = vunpack.c.l.b16 %v716
    %v730 = vunpack.c.h.b16 %v716
    %v731 = vunpack.c.l.b16 %v717
    %v732 = vunpack.c.h.b16 %v717
    %v733 = vpack.c.b16 %v727, %v725
    %v734 = vpack.c.b16 %v728, %v726
    %v735 = vpack.c.b16 %v731, %v729
    %v736 = vpack.c.b16 %v732, %v730
    %v742 = vsel %vm443, %v720, 0
    %744 = vmatprep.subr.bf16.mxu0 %v734
    %745 = vmatpush1.bf16.msra.mxu0 %v733
    %746 = vmatprep.subr.bf16.mxu0 %v736
    %747 = vmatpush1.bf16.msra.mxu0 %v735
    %748 = vmatprep.subr.bf16.mxu0 0
    %749 = vmatpush1.bf16.msra.mxu0 0
    %750 = vmatprep.subr.bf16.mxu0 0
    %751 = vmatpush1.bf16.msra.mxu0 0
    %752 = vmatprep.subr.bf16.mxu0 0
    %753 = vmatpush1.bf16.msra.mxu0 0
    %754 = vmatprep.subr.bf16.mxu0 0
    %755 = vmatpush1.bf16.msra.mxu0 0
    %756 = vmatprep.subr.bf16.mxu0 0
    %757 = vmatpush1.bf16.msra.mxu0 0
    %758 = vmatprep.subr.bf16.mxu0 0
    %759 = vmatpush1.bf16.msra.mxu0 0
    %760 = vmatprep.subr.bf16.mxu0 0
    %761 = vmatpush1.bf16.msra.mxu0 0
    %762 = vmatprep.subr.bf16.mxu0 0
    %763 = vmatpush1.bf16.msra.mxu0 0
    %764 = vmatprep.subr.bf16.mxu0 0
    %765 = vmatpush1.bf16.msra.mxu0 0
    %766 = vmatprep.subr.bf16.mxu0 0
    %767 = vmatpush1.bf16.msra.mxu0 0
    %768 = vmatprep.subr.bf16.mxu0 0
    %769 = vmatpush1.bf16.msra.mxu0 0
    %770 = vmatprep.subr.bf16.mxu0 0
    %771 = vmatpush1.bf16.msra.mxu0 0
    %772 = vmatprep.subr.bf16.mxu0 0
    %773 = vmatpush1.bf16.msra.mxu0 0
    %774 = vmatprep.subr.bf16.mxu0 0
    %775 = vmatpush1.bf16.msra.mxu0 0
    %776 = vmatprep.mubr.bf16.mxu0 0
    %777 = vmatmul.mubr.bf16.gmra.mrb[0].mxu0 %v742
    %v778 = vpop.f32.mrb[0].mxu0
    %v779 = vadd.f32 0.0, %v778
    %v780 = vpop.f32.mrb[0].mxu0
    %v781 = vadd.f32 0.0, %v780
    %v782 = vpop.f32.mrb[0].mxu0
    %v783 = vpop.f32.mrb[0].mxu0
    %784 = vdwg.mxu0
    %v785 = vcombine.low %v615, %v679
    %v787 = vunpack.c.l.s4 1966171168
    %v788 = vunpack.c.0.s8 %v787
    %v789 = vlaneseq
    %v790 = vshrl.u32 %v789, 7
    %v791 = vsub.s32 %v788, %v790
    %v792 = vrot.slane %v785, %v791
    %v794 = vunpack.c.l.s4 1966171168
    %v795 = vunpack.c.0.s8 %v794
    %v796 = vlaneseq
    %v797 = vshrl.u32 %v796, 7
    %v798 = vsub.s32 %v795, %v797
    %v799 = vrot.slane %v792, %v798
    %v801 = vadd.f32 %v779, %v799
    %v802 = vcombine.low %v718, %v719
    %v804 = vunpack.c.l.s4 1966171168
    %v805 = vunpack.c.0.s8 %v804
    %v806 = vlaneseq
    %v807 = vshrl.u32 %v806, 7
    %v808 = vsub.s32 %v805, %v807
    %v809 = vrot.slane %v802, %v808
    %v810 = vcombine.low %v809, %v809
    %v812 = vunpack.c.l.s4 1966171168
    %v813 = vunpack.c.0.s8 %v812
    %v814 = vlaneseq
    %v815 = vshrl.u32 %v814, 7
    %v816 = vsub.s32 %v813, %v815
    %v817 = vrot.slane %v810, %v816
    %v819 = vadd.f32 %v781, %v817
    %vm820 = vcmask 1041408
    %v821 = vsel %vm820, %v801, %v819
    %v822 = vxor.u32 %v821, 2147483648
    %v823 = vmul.f32 %v822, 1.442695
    %v824 = vpow.pop %v823
    %v825 = vadd.f32 %v824, 1.0
    %v826 = vrcp.pop %v825
    %v827 = vmul.f32 1.0, %v826
    %v828 = vtanh.pop %v821
    %830 = vrot.lane.b32.xlu0 %v371, 32
    %v831 = vpop.permute.xlu0 %830
    %v833 = vmul.f32 %v827, %v831
    %835 = vrot.lane.b32.xlu0 %v828, 32
    %v836 = vpop.permute.xlu0 %835
    %v838 = vmul.f32 %v827, %v836
    %840 = vrot.lane.b32.xlu0 %v838, 32
    %v841 = vpop.permute.xlu0 %840
    %v843 = vadd.f32 %v833, %v841
    %v844 = vtanh.pop %v843
    %846 = vrot.lane.b32.xlu0 %v844, 32
    %v847 = vpop.permute.xlu0 %846
    %v849 = vmul.f32 %v827, %v847
    %v850 = vrot.slane %v640, 1
    %v851 = vrot.slane %v706, 1
    %v852 = vpack.c.bf16 %v849, %v849
    %854 = vrot.lane.b32.xlu0 %v852, 64
    %v855 = vpop.permute.xlu0 %854
    %v857 = vsel %vm443, %v855, 0
    %859 = vmatprep.subr.bf16.mxu0 %v734
    %860 = vmatpush1.bf16.msra.mxu0 %v733
    %861 = vmatprep.subr.bf16.mxu0 %v736
    %862 = vmatpush1.bf16.msra.mxu0 %v735
    %863 = vmatprep.subr.bf16.mxu0 0
    %864 = vmatpush1.bf16.msra.mxu0 0
    %865 = vmatprep.subr.bf16.mxu0 0
    %866 = vmatpush1.bf16.msra.mxu0 0
    %867 = vmatprep.subr.bf16.mxu0 0
    %868 = vmatpush1.bf16.msra.mxu0 0
    %869 = vmatprep.subr.bf16.mxu0 0
    %870 = vmatpush1.bf16.msra.mxu0 0
    %871 = vmatprep.subr.bf16.mxu0 0
    %872 = vmatpush1.bf16.msra.mxu0 0
    %873 = vmatprep.subr.bf16.mxu0 0
    %874 = vmatpush1.bf16.msra.mxu0 0
    %875 = vmatprep.subr.bf16.mxu0 0
    %876 = vmatpush1.bf16.msra.mxu0 0
    %877 = vmatprep.subr.bf16.mxu0 0
    %878 = vmatpush1.bf16.msra.mxu0 0
    %879 = vmatprep.subr.bf16.mxu0 0
    %880 = vmatpush1.bf16.msra.mxu0 0
    %881 = vmatprep.subr.bf16.mxu0 0
    %882 = vmatpush1.bf16.msra.mxu0 0
    %883 = vmatprep.subr.bf16.mxu0 0
    %884 = vmatpush1.bf16.msra.mxu0 0
    %885 = vmatprep.subr.bf16.mxu0 0
    %886 = vmatpush1.bf16.msra.mxu0 0
    %887 = vmatprep.subr.bf16.mxu0 0
    %888 = vmatpush1.bf16.msra.mxu0 0
    %889 = vmatprep.subr.bf16.mxu0 0
    %890 = vmatpush1.bf16.msra.mxu0 0
    %891 = vmatprep.mubr.bf16.mxu0 0
    %892 = vmatmul.mubr.bf16.gmra.mrb[0].mxu0 %v857
    %v893 = vpop.f32.mrb[0].mxu0
    %v894 = vadd.f32 0.0, %v893
    %v895 = vpop.f32.mrb[0].mxu0
    %v896 = vadd.f32 0.0, %v895
    %v897 = vpop.f32.mrb[0].mxu0
    %v898 = vpop.f32.mrb[0].mxu0
    %899 = vdwg.mxu0
    %v900 = vcombine.low %v629, %v687
    %v902 = vunpack.c.l.s4 1966171168
    %v903 = vunpack.c.0.s8 %v902
    %v904 = vlaneseq
    %v905 = vshrl.u32 %v904, 7
    %v906 = vsub.s32 %v903, %v905
    %v907 = vrot.slane %v900, %v906
    %v909 = vunpack.c.l.s4 1966171168
    %v910 = vunpack.c.0.s8 %v909
    %v911 = vlaneseq
    %v912 = vshrl.u32 %v911, 7
    %v913 = vsub.s32 %v910, %v912
    %v914 = vrot.slane %v907, %v913
    %v916 = vadd.f32 %v894, %v914
    %v917 = vcombine.low %v850, %v851
    %v919 = vunpack.c.l.s4 1966171168
    %v920 = vunpack.c.0.s8 %v919
    %v921 = vlaneseq
    %v922 = vshrl.u32 %v921, 7
    %v923 = vsub.s32 %v920, %v922
    %v924 = vrot.slane %v917, %v923
    %v925 = vcombine.low %v924, %v924
    %v927 = vunpack.c.l.s4 1966171168
    %v928 = vunpack.c.0.s8 %v927
    %v929 = vlaneseq
    %v930 = vshrl.u32 %v929, 7
    %v931 = vsub.s32 %v928, %v930
    %v932 = vrot.slane %v925, %v931
    %v934 = vadd.f32 %v896, %v932
    %v935 = vsel %vm820, %v916, %v934
    %v936 = vxor.u32 %v935, 2147483648
    %v937 = vmul.f32 %v936, 1.442695
    %v938 = vpow.pop %v937
    %v939 = vadd.f32 %v938, 1.0
    %v940 = vrcp.pop %v939
    %v941 = vmul.f32 1.0, %v940
    %v942 = vtanh.pop %v935
    %v943 = vmul.f32 %v941, %v843
    %945 = vrot.lane.b32.xlu0 %v942, 32
    %v946 = vpop.permute.xlu0 %945
    %v948 = vmul.f32 %v941, %v946
    %950 = vrot.lane.b32.xlu0 %v948, 32
    %v951 = vpop.permute.xlu0 %950
    %v953 = vadd.f32 %v943, %v951
    %v954 = vtanh.pop %v953
    %956 = vrot.lane.b32.xlu0 %v954, 32
    %v957 = vpop.permute.xlu0 %956
    %v959 = vmul.f32 %v941, %v957
    %v960 = vrot.slane %v638, 1
    %v961 = vrot.slane %v690, 1
    %v962 = vpack.c.bf16 %v959, %v959
    %964 = vrot.lane.b32.xlu0 %v962, 64
    %v965 = vpop.permute.xlu0 %964
    %v967 = vsel %vm443, %v965, 0
    %969 = vmatprep.subr.bf16.mxu0 %v734
    %970 = vmatpush1.bf16.msra.mxu0 %v733
    %971 = vmatprep.subr.bf16.mxu0 %v736
    %972 = vmatpush1.bf16.msra.mxu0 %v735
    %973 = vmatprep.subr.bf16.mxu0 0
    %974 = vmatpush1.bf16.msra.mxu0 0
    %975 = vmatprep.subr.bf16.mxu0 0
    %976 = vmatpush1.bf16.msra.mxu0 0
    %977 = vmatprep.subr.bf16.mxu0 0
    %978 = vmatpush1.bf16.msra.mxu0 0
    %979 = vmatprep.subr.bf16.mxu0 0
    %980 = vmatpush1.bf16.msra.mxu0 0
    %981 = vmatprep.subr.bf16.mxu0 0
    %982 = vmatpush1.bf16.msra.mxu0 0
    %983 = vmatprep.subr.bf16.mxu0 0
    %984 = vmatpush1.bf16.msra.mxu0 0
    %985 = vmatprep.subr.bf16.mxu0 0
    %986 = vmatpush1.bf16.msra.mxu0 0
    %987 = vmatprep.subr.bf16.mxu0 0
    %988 = vmatpush1.bf16.msra.mxu0 0
    %989 = vmatprep.subr.bf16.mxu0 0
    %990 = vmatpush1.bf16.msra.mxu0 0
    %991 = vmatprep.subr.bf16.mxu0 0
    %992 = vmatpush1.bf16.msra.mxu0 0
    %993 = vmatprep.subr.bf16.mxu0 0
    %994 = vmatpush1.bf16.msra.mxu0 0
    %995 = vmatprep.subr.bf16.mxu0 0
    %996 = vmatpush1.bf16.msra.mxu0 0
    %997 = vmatprep.subr.bf16.mxu0 0
    %998 = vmatpush1.bf16.msra.mxu0 0
    %999 = vmatprep.subr.bf16.mxu0 0
    %1000 = vmatpush1.bf16.msra.mxu0 0
    %1001 = vmatprep.mubr.bf16.mxu0 0
    %1002 = vmatmul.mubr.bf16.gmra.mrb[0].mxu0 %v967
    %v1003 = vpop.f32.mrb[0].mxu0
    %v1004 = vadd.f32 0.0, %v1003
    %v1005 = vpop.f32.mrb[0].mxu0
    %v1006 = vadd.f32 0.0, %v1005
    %v1007 = vpop.f32.mrb[0].mxu0
    %v1008 = vpop.f32.mrb[0].mxu0
    %1009 = vdwg.mxu0
    %v1010 = vcombine.low %v637, %v689
    %v1012 = vunpack.c.l.s4 1966171168
    %v1013 = vunpack.c.0.s8 %v1012
    %v1014 = vlaneseq
    %v1015 = vshrl.u32 %v1014, 7
    %v1016 = vsub.s32 %v1013, %v1015
    %v1017 = vrot.slane %v1010, %v1016
    %v1019 = vunpack.c.l.s4 1966171168
    %v1020 = vunpack.c.0.s8 %v1019
    %v1021 = vlaneseq
    %v1022 = vshrl.u32 %v1021, 7
    %v1023 = vsub.s32 %v1020, %v1022
    %v1024 = vrot.slane %v1017, %v1023
    %v1026 = vadd.f32 %v1004, %v1024
    %v1027 = vcombine.low %v960, %v961
    %v1029 = vunpack.c.l.s4 1966171168
    %v1030 = vunpack.c.0.s8 %v1029
    %v1031 = vlaneseq
    %v1032 = vshrl.u32 %v1031, 7
    %v1033 = vsub.s32 %v1030, %v1032
    %v1034 = vrot.slane %v1027, %v1033
    %v1035 = vcombine.low %v1034, %v1034
    %v1037 = vunpack.c.l.s4 1966171168
    %v1038 = vunpack.c.0.s8 %v1037
    %v1039 = vlaneseq
    %v1040 = vshrl.u32 %v1039, 7
    %v1041 = vsub.s32 %v1038, %v1040
    %v1042 = vrot.slane %v1035, %v1041
    %v1044 = vadd.f32 %v1006, %v1042
    %v1045 = vsel %vm820, %v1026, %v1044
    %v1046 = vxor.u32 %v1045, 2147483648
    %v1047 = vmul.f32 %v1046, 1.442695
    %v1048 = vpow.pop %v1047
    %v1049 = vadd.f32 %v1048, 1.0
    %v1050 = vrcp.pop %v1049
    %v1051 = vmul.f32 1.0, %v1050
    %v1052 = vtanh.pop %v1045
    %v1053 = vmul.f32 %v1051, %v953
    %1055 = vrot.lane.b32.xlu0 %v1052, 32
    %v1056 = vpop.permute.xlu0 %1055
    %v1058 = vmul.f32 %v1051, %v1056
    %1060 = vrot.lane.b32.xlu0 %v1058, 32
    %v1061 = vpop.permute.xlu0 %1060
    %v1063 = vadd.f32 %v1053, %v1061
    %v1064 = vtanh.pop %v1063
    %1066 = vrot.lane.b32.xlu0 %v1064, 32
    %v1067 = vpop.permute.xlu0 %1066
    %v1069 = vmul.f32 %v1051, %v1067
    %v1070 = vrot.slane %v636, 1
    %v1071 = vrot.slane %v688, 1
    %v1072 = vpack.c.bf16 %v1069, %v1069
    %1074 = vrot.lane.b32.xlu0 %v1072, 64
    %v1075 = vpop.permute.xlu0 %1074
    %v1077 = vsel %vm443, %v1075, 0
    %1079 = vmatprep.subr.bf16.mxu0 %v734
    %1080 = vmatpush1.bf16.msra.mxu0 %v733
    %1081 = vmatprep.subr.bf16.mxu0 %v736
    %1082 = vmatpush1.bf16.msra.mxu0 %v735
    %1083 = vmatprep.subr.bf16.mxu0 0
    %1084 = vmatpush1.bf16.msra.mxu0 0
    %1085 = vmatprep.subr.bf16.mxu0 0
    %1086 = vmatpush1.bf16.msra.mxu0 0
    %1087 = vmatprep.subr.bf16.mxu0 0
    %1088 = vmatpush1.bf16.msra.mxu0 0
    %1089 = vmatprep.subr.bf16.mxu0 0
    %1090 = vmatpush1.bf16.msra.mxu0 0
    %1091 = vmatprep.subr.bf16.mxu0 0
    %1092 = vmatpush1.bf16.msra.mxu0 0
    %1093 = vmatprep.subr.bf16.mxu0 0
    %1094 = vmatpush1.bf16.msra.mxu0 0
    %1095 = vmatprep.subr.bf16.mxu0 0
    %1096 = vmatpush1.bf16.msra.mxu0 0
    %1097 = vmatprep.subr.bf16.mxu0 0
    %1098 = vmatpush1.bf16.msra.mxu0 0
    %1099 = vmatprep.subr.bf16.mxu0 0
    %1100 = vmatpush1.bf16.msra.mxu0 0
    %1101 = vmatprep.subr.bf16.mxu0 0
    %1102 = vmatpush1.bf16.msra.mxu0 0
    %1103 = vmatprep.subr.bf16.mxu0 0
    %1104 = vmatpush1.bf16.msra.mxu0 0
    %1105 = vmatprep.subr.bf16.mxu0 0
    %1106 = vmatpush1.bf16.msra.mxu0 0
    %1107 = vmatprep.subr.bf16.mxu0 0
    %1108 = vmatpush1.bf16.msra.mxu0 0
    %1109 = vmatprep.subr.bf16.mxu0 0
    %1110 = vmatpush1.bf16.msra.mxu0 0
    %1111 = vmatprep.mubr.bf16.mxu0 0
    %1112 = vmatmul.mubr.bf16.gmra.mrb[0].mxu0 %v1077
    %v1113 = vpop.f32.mrb[0].mxu0
    %v1114 = vadd.f32 0.0, %v1113
    %v1115 = vpop.f32.mrb[0].mxu0
    %v1116 = vadd.f32 0.0, %v1115
    %v1117 = vpop.f32.mrb[0].mxu0
    %v1118 = vpop.f32.mrb[0].mxu0
    %1119 = vdwg.mxu0
    %v1120 = vcombine.low %v639, %v672
    %v1122 = vunpack.c.l.s4 1966171168
    %v1123 = vunpack.c.0.s8 %v1122
    %v1124 = vlaneseq
    %v1125 = vshrl.u32 %v1124, 7
    %v1126 = vsub.s32 %v1123, %v1125
    %v1127 = vrot.slane %v1120, %v1126
    %v1129 = vunpack.c.l.s4 1966171168
    %v1130 = vunpack.c.0.s8 %v1129
    %v1131 = vlaneseq
    %v1132 = vshrl.u32 %v1131, 7
    %v1133 = vsub.s32 %v1130, %v1132
    %v1134 = vrot.slane %v1127, %v1133
    %v1136 = vadd.f32 %v1114, %v1134
    %v1137 = vcombine.low %v1070, %v1071
    %v1139 = vunpack.c.l.s4 1966171168
    %v1140 = vunpack.c.0.s8 %v1139
    %v1141 = vlaneseq
    %v1142 = vshrl.u32 %v1141, 7
    %v1143 = vsub.s32 %v1140, %v1142
    %v1144 = vrot.slane %v1137, %v1143
    %v1145 = vcombine.low %v1144, %v1144
    %v1147 = vunpack.c.l.s4 1966171168
    %v1148 = vunpack.c.0.s8 %v1147
    %v1149 = vlaneseq
    %v1150 = vshrl.u32 %v1149, 7
    %v1151 = vsub.s32 %v1148, %v1150
    %v1152 = vrot.slane %v1145, %v1151
    %v1154 = vadd.f32 %v1116, %v1152
    %v1155 = vsel %vm820, %v1136, %v1154
    %v1156 = vxor.u32 %v1155, 2147483648
    %v1157 = vmul.f32 %v1156, 1.442695
    %v1158 = vpow.pop %v1157
    %v1159 = vadd.f32 %v1158, 1.0
    %v1160 = vrcp.pop %v1159
    %v1161 = vmul.f32 1.0, %v1160
    %v1162 = vtanh.pop %v1155
    %v1163 = vmul.f32 %v1161, %v1063
    %1165 = vrot.lane.b32.xlu0 %v1162, 32
    %v1166 = vpop.permute.xlu0 %1165
    %v1168 = vmul.f32 %v1161, %v1166
    %1170 = vrot.lane.b32.xlu0 %v1168, 32
    %v1171 = vpop.permute.xlu0 %1170
    %v1173 = vadd.f32 %v1163, %v1171
    %v1174 = vtanh.pop %v1173
    %1176 = vrot.lane.b32.xlu0 %v1174, 32
    %v1177 = vpop.permute.xlu0 %1176
    %v1179 = vmul.f32 %v1161, %v1177
    %v1180 = vrot.slane %v622, 1
    %v1181 = vrot.slane %v686, 1
    %v1182 = vpack.c.bf16 %v1179, %v1179
    %1184 = vrot.lane.b32.xlu0 %v1182, 64
    %v1185 = vpop.permute.xlu0 %1184
    %v1187 = vsel %vm443, %v1185, 0
    %1189 = vmatprep.subr.bf16.mxu0 %v734
    %1190 = vmatpush1.bf16.msra.mxu0 %v733
    %1191 = vmatprep.subr.bf16.mxu0 %v736
    %1192 = vmatpush1.bf16.msra.mxu0 %v735
    %1193 = vmatprep.subr.bf16.mxu0 0
    %1194 = vmatpush1.bf16.msra.mxu0 0
    %1195 = vmatprep.subr.bf16.mxu0 0
    %1196 = vmatpush1.bf16.msra.mxu0 0
    %1197 = vmatprep.subr.bf16.mxu0 0
    %1198 = vmatpush1.bf16.msra.mxu0 0
    %1199 = vmatprep.subr.bf16.mxu0 0
    %1200 = vmatpush1.bf16.msra.mxu0 0
    %1201 = vmatprep.subr.bf16.mxu0 0
    %1202 = vmatpush1.bf16.msra.mxu0 0
    %1203 = vmatprep.subr.bf16.mxu0 0
    %1204 = vmatpush1.bf16.msra.mxu0 0
    %1205 = vmatprep.subr.bf16.mxu0 0
    %1206 = vmatpush1.bf16.msra.mxu0 0
    %1207 = vmatprep.subr.bf16.mxu0 0
    %1208 = vmatpush1.bf16.msra.mxu0 0
    %1209 = vmatprep.subr.bf16.mxu0 0
    %1210 = vmatpush1.bf16.msra.mxu0 0
    %1211 = vmatprep.subr.bf16.mxu0 0
    %1212 = vmatpush1.bf16.msra.mxu0 0
    %1213 = vmatprep.subr.bf16.mxu0 0
    %1214 = vmatpush1.bf16.msra.mxu0 0
    %1215 = vmatprep.subr.bf16.mxu0 0
    %1216 = vmatpush1.bf16.msra.mxu0 0
    %1217 = vmatprep.subr.bf16.mxu0 0
    %1218 = vmatpush1.bf16.msra.mxu0 0
    %1219 = vmatprep.subr.bf16.mxu0 0
    %1220 = vmatpush1.bf16.msra.mxu0 0
    %1221 = vmatprep.mubr.bf16.mxu0 0
    %1222 = vmatmul.mubr.bf16.gmra.mrb[0].mxu0 %v1187
    %v1223 = vpop.f32.mrb[0].mxu0
    %v1224 = vadd.f32 0.0, %v1223
    %v1225 = vpop.f32.mrb[0].mxu0
    %v1226 = vadd.f32 0.0, %v1225
    %v1227 = vpop.f32.mrb[0].mxu0
    %v1228 = vpop.f32.mrb[0].mxu0
    %1229 = vdwg.mxu0
    %v1230 = vcombine.low %v622, %v686
    %v1232 = vunpack.c.l.s4 1966171168
    %v1233 = vunpack.c.0.s8 %v1232
    %v1234 = vlaneseq
    %v1235 = vshrl.u32 %v1234, 7
    %v1236 = vsub.s32 %v1233, %v1235
    %v1237 = vrot.slane %v1230, %v1236
    %v1239 = vunpack.c.l.s4 1966171168
    %v1240 = vunpack.c.0.s8 %v1239
    %v1241 = vlaneseq
    %v1242 = vshrl.u32 %v1241, 7
    %v1243 = vsub.s32 %v1240, %v1242
    %v1244 = vrot.slane %v1237, %v1243
    %v1246 = vadd.f32 %v1224, %v1244
    %v1247 = vcombine.low %v1180, %v1181
    %v1249 = vunpack.c.l.s4 1966171168
    %v1250 = vunpack.c.0.s8 %v1249
    %v1251 = vlaneseq
    %v1252 = vshrl.u32 %v1251, 7
    %v1253 = vsub.s32 %v1250, %v1252
    %v1254 = vrot.slane %v1247, %v1253
    %v1255 = vcombine.low %v1254, %v1254
    %v1257 = vunpack.c.l.s4 1966171168
    %v1258 = vunpack.c.0.s8 %v1257
    %v1259 = vlaneseq
    %v1260 = vshrl.u32 %v1259, 7
    %v1261 = vsub.s32 %v1258, %v1260
    %v1262 = vrot.slane %v1255, %v1261
    %v1264 = vadd.f32 %v1226, %v1262
    %v1265 = vsel %vm820, %v1246, %v1264
    %v1266 = vxor.u32 %v1265, 2147483648
    %v1267 = vmul.f32 %v1266, 1.442695
    %v1268 = vpow.pop %v1267
    %v1269 = vadd.f32 %v1268, 1.0
    %v1270 = vrcp.pop %v1269
    %v1271 = vmul.f32 1.0, %v1270
    %v1272 = vtanh.pop %v1265
    %v1273 = vmul.f32 %v1271, %v1173
    %1275 = vrot.lane.b32.xlu0 %v1272, 32
    %v1276 = vpop.permute.xlu0 %1275
    %v1278 = vmul.f32 %v1271, %v1276
    %1280 = vrot.lane.b32.xlu0 %v1278, 32
    %v1281 = vpop.permute.xlu0 %1280
    %v1283 = vadd.f32 %v1273, %v1281
    %v1284 = vtanh.pop %v1283
    %1286 = vrot.lane.b32.xlu0 %v1284, 32
    %v1287 = vpop.permute.xlu0 %1286
    %v1289 = vmul.f32 %v1271, %v1287
    %v1290 = vrot.slane %v639, 1
    %v1291 = vrot.slane %v672, 1
    %v1292 = vpack.c.bf16 %v1289, %v1289
    %1294 = vrot.lane.b32.xlu0 %v1292, 64
    %v1295 = vpop.permute.xlu0 %1294
    %v1297 = vsel %vm443, %v1295, 0
    %1299 = vmatprep.subr.bf16.mxu0 %v734
    %1300 = vmatpush1.bf16.msra.mxu0 %v733
    %1301 = vmatprep.subr.bf16.mxu0 %v736
    %1302 = vmatpush1.bf16.msra.mxu0 %v735
    %1303 = vmatprep.subr.bf16.mxu0 0
    %1304 = vmatpush1.bf16.msra.mxu0 0
    %1305 = vmatprep.subr.bf16.mxu0 0
    %1306 = vmatpush1.bf16.msra.mxu0 0
    %1307 = vmatprep.subr.bf16.mxu0 0
    %1308 = vmatpush1.bf16.msra.mxu0 0
    %1309 = vmatprep.subr.bf16.mxu0 0
    %1310 = vmatpush1.bf16.msra.mxu0 0
    %1311 = vmatprep.subr.bf16.mxu0 0
    %1312 = vmatpush1.bf16.msra.mxu0 0
    %1313 = vmatprep.subr.bf16.mxu0 0
    %1314 = vmatpush1.bf16.msra.mxu0 0
    %1315 = vmatprep.subr.bf16.mxu0 0
    %1316 = vmatpush1.bf16.msra.mxu0 0
    %1317 = vmatprep.subr.bf16.mxu0 0
    %1318 = vmatpush1.bf16.msra.mxu0 0
    %1319 = vmatprep.subr.bf16.mxu0 0
    %1320 = vmatpush1.bf16.msra.mxu0 0
    %1321 = vmatprep.subr.bf16.mxu0 0
    %1322 = vmatpush1.bf16.msra.mxu0 0
    %1323 = vmatprep.subr.bf16.mxu0 0
    %1324 = vmatpush1.bf16.msra.mxu0 0
    %1325 = vmatprep.subr.bf16.mxu0 0
    %1326 = vmatpush1.bf16.msra.mxu0 0
    %1327 = vmatprep.subr.bf16.mxu0 0
    %1328 = vmatpush1.bf16.msra.mxu0 0
    %1329 = vmatprep.subr.bf16.mxu0 0
    %1330 = vmatpush1.bf16.msra.mxu0 0
    %1331 = vmatprep.mubr.bf16.mxu0 0
    %1332 = vmatmul.mubr.bf16.gmra.mrb[0].mxu0 %v1297
    %v1333 = vpop.f32.mrb[0].mxu0
    %v1334 = vadd.f32 0.0, %v1333
    %v1335 = vpop.f32.mrb[0].mxu0
    %v1336 = vadd.f32 0.0, %v1335
    %v1337 = vpop.f32.mrb[0].mxu0
    %v1338 = vpop.f32.mrb[0].mxu0
    %1339 = vdwg.mxu0
    %v1340 = vcombine.low %v636, %v688
    %v1342 = vunpack.c.l.s4 1966171168
    %v1343 = vunpack.c.0.s8 %v1342
    %v1344 = vlaneseq
    %v1345 = vshrl.u32 %v1344, 7
    %v1346 = vsub.s32 %v1343, %v1345
    %v1347 = vrot.slane %v1340, %v1346
    %v1349 = vunpack.c.l.s4 1966171168
    %v1350 = vunpack.c.0.s8 %v1349
    %v1351 = vlaneseq
    %v1352 = vshrl.u32 %v1351, 7
    %v1353 = vsub.s32 %v1350, %v1352
    %v1354 = vrot.slane %v1347, %v1353
    %v1356 = vadd.f32 %v1334, %v1354
    %v1357 = vcombine.low %v1290, %v1291
    %v1359 = vunpack.c.l.s4 1966171168
    %v1360 = vunpack.c.0.s8 %v1359
    %v1361 = vlaneseq
    %v1362 = vshrl.u32 %v1361, 7
    %v1363 = vsub.s32 %v1360, %v1362
    %v1364 = vrot.slane %v1357, %v1363
    %v1365 = vcombine.low %v1364, %v1364
    %v1367 = vunpack.c.l.s4 1966171168
    %v1368 = vunpack.c.0.s8 %v1367
    %v1369 = vlaneseq
    %v1370 = vshrl.u32 %v1369, 7
    %v1371 = vsub.s32 %v1368, %v1370
    %v1372 = vrot.slane %v1365, %v1371
    %v1374 = vadd.f32 %v1336, %v1372
    %v1375 = vsel %vm820, %v1356, %v1374
    %v1376 = vxor.u32 %v1375, 2147483648
    %v1377 = vmul.f32 %v1376, 1.442695
    %v1378 = vpow.pop %v1377
    %v1379 = vadd.f32 %v1378, 1.0
    %v1380 = vrcp.pop %v1379
    %v1381 = vmul.f32 1.0, %v1380
    %v1382 = vtanh.pop %v1375
    %v1383 = vmul.f32 %v1381, %v1283
    %1385 = vrot.lane.b32.xlu0 %v1382, 32
    %v1386 = vpop.permute.xlu0 %1385
    %v1388 = vmul.f32 %v1381, %v1386
    %1390 = vrot.lane.b32.xlu0 %v1388, 32
    %v1391 = vpop.permute.xlu0 %1390
    %v1393 = vadd.f32 %v1383, %v1391
    %v1394 = vtanh.pop %v1393
    %1396 = vrot.lane.b32.xlu0 %v1394, 32
    %v1397 = vpop.permute.xlu0 %1396
    %v1399 = vmul.f32 %v1381, %v1397
    %v1400 = vrot.slane %v637, 1
    %v1401 = vrot.slane %v689, 1
    %v1402 = vpack.c.bf16 %v1399, %v1399
    %1404 = vrot.lane.b32.xlu0 %v1402, 64
    %v1405 = vpop.permute.xlu0 %1404
    %v1407 = vsel %vm443, %v1405, 0
    %1409 = vmatprep.subr.bf16.mxu0 %v734
    %1410 = vmatpush1.bf16.msra.mxu0 %v733
    %1411 = vmatprep.subr.bf16.mxu0 %v736
    %1412 = vmatpush1.bf16.msra.mxu0 %v735
    %1413 = vmatprep.subr.bf16.mxu0 0
    %1414 = vmatpush1.bf16.msra.mxu0 0
    %1415 = vmatprep.subr.bf16.mxu0 0
    %1416 = vmatpush1.bf16.msra.mxu0 0
    %1417 = vmatprep.subr.bf16.mxu0 0
    %1418 = vmatpush1.bf16.msra.mxu0 0
    %1419 = vmatprep.subr.bf16.mxu0 0
    %1420 = vmatpush1.bf16.msra.mxu0 0
    %1421 = vmatprep.subr.bf16.mxu0 0
    %1422 = vmatpush1.bf16.msra.mxu0 0
    %1423 = vmatprep.subr.bf16.mxu0 0
    %1424 = vmatpush1.bf16.msra.mxu0 0
    %1425 = vmatprep.subr.bf16.mxu0 0
    %1426 = vmatpush1.bf16.msra.mxu0 0
    %1427 = vmatprep.subr.bf16.mxu0 0
    %1428 = vmatpush1.bf16.msra.mxu0 0
    %1429 = vmatprep.subr.bf16.mxu0 0
    %1430 = vmatpush1.bf16.msra.mxu0 0
    %1431 = vmatprep.subr.bf16.mxu0 0
    %1432 = vmatpush1.bf16.msra.mxu0 0
    %1433 = vmatprep.subr.bf16.mxu0 0
    %1434 = vmatpush1.bf16.msra.mxu0 0
    %1435 = vmatprep.subr.bf16.mxu0 0
    %1436 = vmatpush1.bf16.msra.mxu0 0
    %1437 = vmatprep.subr.bf16.mxu0 0
    %1438 = vmatpush1.bf16.msra.mxu0 0
    %1439 = vmatprep.subr.bf16.mxu0 0
    %1440 = vmatpush1.bf16.msra.mxu0 0
    %1441 = vmatprep.mubr.bf16.mxu0 0
    %1442 = vmatmul.mubr.bf16.gmra.mrb[0].mxu0 %v1407
    %v1443 = vpop.f32.mrb[0].mxu0
    %v1444 = vadd.f32 0.0, %v1443
    %v1445 = vpop.f32.mrb[0].mxu0
    %v1446 = vadd.f32 0.0, %v1445
    %v1447 = vpop.f32.mrb[0].mxu0
    %v1448 = vpop.f32.mrb[0].mxu0
    %1449 = vdwg.mxu0
    %v1450 = vcombine.low %v638, %v690
    %v1452 = vunpack.c.l.s4 1966171168
    %v1453 = vunpack.c.0.s8 %v1452
    %v1454 = vlaneseq
    %v1455 = vshrl.u32 %v1454, 7
    %v1456 = vsub.s32 %v1453, %v1455
    %v1457 = vrot.slane %v1450, %v1456
    %v1459 = vunpack.c.l.s4 1966171168
    %v1460 = vunpack.c.0.s8 %v1459
    %v1461 = vlaneseq
    %v1462 = vshrl.u32 %v1461, 7
    %v1463 = vsub.s32 %v1460, %v1462
    %v1464 = vrot.slane %v1457, %v1463
    %v1466 = vadd.f32 %v1444, %v1464
    %v1467 = vcombine.low %v1400, %v1401
    %v1469 = vunpack.c.l.s4 1966171168
    %v1470 = vunpack.c.0.s8 %v1469
    %v1471 = vlaneseq
    %v1472 = vshrl.u32 %v1471, 7
    %v1473 = vsub.s32 %v1470, %v1472
    %v1474 = vrot.slane %v1467, %v1473
    %v1475 = vcombine.low %v1474, %v1474
    %v1477 = vunpack.c.l.s4 1966171168
    %v1478 = vunpack.c.0.s8 %v1477
    %v1479 = vlaneseq
    %v1480 = vshrl.u32 %v1479, 7
    %v1481 = vsub.s32 %v1478, %v1480
    %v1482 = vrot.slane %v1475, %v1481
    %v1484 = vadd.f32 %v1446, %v1482
    %v1485 = vsel %vm820, %v1466, %v1484
    %v1486 = vxor.u32 %v1485, 2147483648
    %v1487 = vmul.f32 %v1486, 1.442695
    %v1488 = vpow.pop %v1487
    %v1489 = vadd.f32 %v1488, 1.0
    %v1490 = vrcp.pop %v1489
    %v1491 = vmul.f32 1.0, %v1490
    %v1492 = vtanh.pop %v1485
    %v1493 = vmul.f32 %v1491, %v1393
    %1495 = vrot.lane.b32.xlu0 %v1492, 32
    %v1496 = vpop.permute.xlu0 %1495
    %v1498 = vmul.f32 %v1491, %v1496
    %1500 = vrot.lane.b32.xlu0 %v1498, 32
    %v1501 = vpop.permute.xlu0 %1500
    %v1503 = vadd.f32 %v1493, %v1501
    %v1504 = vtanh.pop %v1503
    %1506 = vrot.lane.b32.xlu0 %v1504, 32
    %v1507 = vpop.permute.xlu0 %1506
    %v1509 = vmul.f32 %v1491, %v1507
    %v1510 = vrot.slane %v629, 1
    %v1511 = vrot.slane %v687, 1
    %v1512 = vpack.c.bf16 %v1509, %v1509
    %1514 = vrot.lane.b32.xlu0 %v1512, 64
    %v1515 = vpop.permute.xlu0 %1514
    %v1517 = vsel %vm443, %v1515, 0
    %1519 = vmatprep.subr.bf16.mxu0 %v734
    %1520 = vmatpush1.bf16.msra.mxu0 %v733
    %1521 = vmatprep.subr.bf16.mxu0 %v736
    %1522 = vmatpush1.bf16.msra.mxu0 %v735
    %1523 = vmatprep.subr.bf16.mxu0 0
    %1524 = vmatpush1.bf16.msra.mxu0 0
    %1525 = vmatprep.subr.bf16.mxu0 0
    %1526 = vmatpush1.bf16.msra.mxu0 0
    %1527 = vmatprep.subr.bf16.mxu0 0
    %1528 = vmatpush1.bf16.msra.mxu0 0
    %1529 = vmatprep.subr.bf16.mxu0 0
    %1530 = vmatpush1.bf16.msra.mxu0 0
    %1531 = vmatprep.subr.bf16.mxu0 0
    %1532 = vmatpush1.bf16.msra.mxu0 0
    %1533 = vmatprep.subr.bf16.mxu0 0
    %1534 = vmatpush1.bf16.msra.mxu0 0
    %1535 = vmatprep.subr.bf16.mxu0 0
    %1536 = vmatpush1.bf16.msra.mxu0 0
    %1537 = vmatprep.subr.bf16.mxu0 0
    %1538 = vmatpush1.bf16.msra.mxu0 0
    %1539 = vmatprep.subr.bf16.mxu0 0
    %1540 = vmatpush1.bf16.msra.mxu0 0
    %1541 = vmatprep.subr.bf16.mxu0 0
    %1542 = vmatpush1.bf16.msra.mxu0 0
    %1543 = vmatprep.subr.bf16.mxu0 0
    %1544 = vmatpush1.bf16.msra.mxu0 0
    %1545 = vmatprep.subr.bf16.mxu0 0
    %1546 = vmatpush1.bf16.msra.mxu0 0
    %1547 = vmatprep.subr.bf16.mxu0 0
    %1548 = vmatpush1.bf16.msra.mxu0 0
    %1549 = vmatprep.subr.bf16.mxu0 0
    %1550 = vmatpush1.bf16.msra.mxu0 0
    %1551 = vmatprep.mubr.bf16.mxu0 0
    %1552 = vmatmul.mubr.bf16.gmra.mrb[0].mxu0 %v1517
    %v1553 = vpop.f32.mrb[0].mxu0
    %v1554 = vadd.f32 0.0, %v1553
    %v1555 = vpop.f32.mrb[0].mxu0
    %v1556 = vadd.f32 0.0, %v1555
    %v1557 = vpop.f32.mrb[0].mxu0
    %v1558 = vpop.f32.mrb[0].mxu0
    %1559 = vdwg.mxu0
    %v1560 = vcombine.low %v640, %v706
    %v1562 = vunpack.c.l.s4 1966171168
    %v1563 = vunpack.c.0.s8 %v1562
    %v1564 = vlaneseq
    %v1565 = vshrl.u32 %v1564, 7
    %v1566 = vsub.s32 %v1563, %v1565
    %v1567 = vrot.slane %v1560, %v1566
    %v1569 = vunpack.c.l.s4 1966171168
    %v1570 = vunpack.c.0.s8 %v1569
    %v1571 = vlaneseq
    %v1572 = vshrl.u32 %v1571, 7
    %v1573 = vsub.s32 %v1570, %v1572
    %v1574 = vrot.slane %v1567, %v1573
    %v1576 = vadd.f32 %v1554, %v1574
    %v1577 = vcombine.low %v1510, %v1511
    %v1579 = vunpack.c.l.s4 1966171168
    %v1580 = vunpack.c.0.s8 %v1579
    %v1581 = vlaneseq
    %v1582 = vshrl.u32 %v1581, 7
    %v1583 = vsub.s32 %v1580, %v1582
    %v1584 = vrot.slane %v1577, %v1583
    %v1585 = vcombine.low %v1584, %v1584
    %v1587 = vunpack.c.l.s4 1966171168
    %v1588 = vunpack.c.0.s8 %v1587
    %v1589 = vlaneseq
    %v1590 = vshrl.u32 %v1589, 7
    %v1591 = vsub.s32 %v1588, %v1590
    %v1592 = vrot.slane %v1585, %v1591
    %v1594 = vadd.f32 %v1556, %v1592
    %v1595 = vsel %vm820, %v1576, %v1594
    %v1596 = vxor.u32 %v1595, 2147483648
    %v1597 = vmul.f32 %v1596, 1.442695
    %v1598 = vpow.pop %v1597
    %v1599 = vadd.f32 %v1598, 1.0
    %v1600 = vrcp.pop %v1599
    %v1601 = vmul.f32 1.0, %v1600
    %v1602 = vtanh.pop %v1595
    %v1603 = vmul.f32 %v1601, %v1503
    %1605 = vrot.lane.b32.xlu0 %v1602, 32
    %v1606 = vpop.permute.xlu0 %1605
    %v1608 = vmul.f32 %v1601, %v1606
    %1610 = vrot.lane.b32.xlu0 %v1608, 32
    %v1611 = vpop.permute.xlu0 %1610
    %v1613 = vadd.f32 %v1603, %v1611
    %v1614 = vtanh.pop %v1613
    %1616 = vrot.lane.b32.xlu0 %v1614, 32
    %v1617 = vpop.permute.xlu0 %1616
    %v1619 = vmul.f32 %v1601, %v1617
    %v1620 = vrot.slane %v615, 1
    %v1621 = vrot.slane %v679, 1
    %v1622 = vpack.c.bf16 %v1619, %v1619
    %1624 = vrot.lane.b32.xlu0 %v1622, 64
    %v1625 = vpop.permute.xlu0 %1624
    %v1627 = vsel %vm443, %v1625, 0
    %1629 = vmatprep.subr.bf16.mxu0 %v734
    %1630 = vmatpush1.bf16.msra.mxu0 %v733
    %1631 = vmatprep.subr.bf16.mxu0 %v736
    %1632 = vmatpush1.bf16.msra.mxu0 %v735
    %1633 = vmatprep.subr.bf16.mxu0 0
    %1634 = vmatpush1.bf16.msra.mxu0 0
    %1635 = vmatprep.subr.bf16.mxu0 0
    %1636 = vmatpush1.bf16.msra.mxu0 0
    %1637 = vmatprep.subr.bf16.mxu0 0
    %1638 = vmatpush1.bf16.msra.mxu0 0
    %1639 = vmatprep.subr.bf16.mxu0 0
    %1640 = vmatpush1.bf16.msra.mxu0 0
    %1641 = vmatprep.subr.bf16.mxu0 0
    %1642 = vmatpush1.bf16.msra.mxu0 0
    %1643 = vmatprep.subr.bf16.mxu0 0
    %1644 = vmatpush1.bf16.msra.mxu0 0
    %1645 = vmatprep.subr.bf16.mxu0 0
    %1646 = vmatpush1.bf16.msra.mxu0 0
    %1647 = vmatprep.subr.bf16.mxu0 0
    %1648 = vmatpush1.bf16.msra.mxu0 0
    %1649 = vmatprep.subr.bf16.mxu0 0
    %1650 = vmatpush1.bf16.msra.mxu0 0
    %1651 = vmatprep.subr.bf16.mxu0 0
    %1652 = vmatpush1.bf16.msra.mxu0 0
    %1653 = vmatprep.subr.bf16.mxu0 0
    %1654 = vmatpush1.bf16.msra.mxu0 0
    %1655 = vmatprep.subr.bf16.mxu0 0
    %1656 = vmatpush1.bf16.msra.mxu0 0
    %1657 = vmatprep.subr.bf16.mxu0 0
    %1658 = vmatpush1.bf16.msra.mxu0 0
    %1659 = vmatprep.subr.bf16.mxu0 0
    %1660 = vmatpush1.bf16.msra.mxu0 0
    %1661 = vmatprep.mubr.bf16.mxu0 0
    %1662 = vmatmul.mubr.bf16.gmra.mrb[0].mxu0 %v1627
    %v1663 = vpop.f32.mrb[0].mxu0
    %v1664 = vadd.f32 0.0, %v1663
    %v1665 = vpop.f32.mrb[0].mxu0
    %v1666 = vadd.f32 0.0, %v1665
    %v1667 = vpop.f32.mrb[0].mxu0
    %v1668 = vpop.f32.mrb[0].mxu0
    %1669 = vdwg.mxu0
    %v1670 = vcombine.low %v665, %v713
    %v1672 = vunpack.c.l.s4 1966171168
    %v1673 = vunpack.c.0.s8 %v1672
    %v1674 = vlaneseq
    %v1675 = vshrl.u32 %v1674, 7
    %v1676 = vsub.s32 %v1673, %v1675
    %v1677 = vrot.slane %v1670, %v1676
    %v1679 = vunpack.c.l.s4 1966171168
    %v1680 = vunpack.c.0.s8 %v1679
    %v1681 = vlaneseq
    %v1682 = vshrl.u32 %v1681, 7
    %v1683 = vsub.s32 %v1680, %v1682
    %v1684 = vrot.slane %v1677, %v1683
    %v1686 = vadd.f32 %v1664, %v1684
    %v1687 = vcombine.low %v1620, %v1621
    %v1689 = vunpack.c.l.s4 1966171168
    %v1690 = vunpack.c.0.s8 %v1689
    %v1691 = vlaneseq
    %v1692 = vshrl.u32 %v1691, 7
    %v1693 = vsub.s32 %v1690, %v1692
    %v1694 = vrot.slane %v1687, %v1693
    %v1695 = vcombine.low %v1694, %v1694
    %v1697 = vunpack.c.l.s4 1966171168
    %v1698 = vunpack.c.0.s8 %v1697
    %v1699 = vlaneseq
    %v1700 = vshrl.u32 %v1699, 7
    %v1701 = vsub.s32 %v1698, %v1700
    %v1702 = vrot.slane %v1695, %v1701
    %v1704 = vadd.f32 %v1666, %v1702
    %v1705 = vsel %vm820, %v1686, %v1704
    %v1706 = vxor.u32 %v1705, 2147483648
    %v1707 = vmul.f32 %v1706, 1.442695
    %v1708 = vpow.pop %v1707
    %v1709 = vadd.f32 %v1708, 1.0
    %v1710 = vrcp.pop %v1709
    %v1711 = vmul.f32 1.0, %v1710
    %v1712 = vtanh.pop %v1705
    %v1713 = vmul.f32 %v1711, %v1613
    %1715 = vrot.lane.b32.xlu0 %v1712, 32
    %v1716 = vpop.permute.xlu0 %1715
    %v1718 = vmul.f32 %v1711, %v1716
    %1720 = vrot.lane.b32.xlu0 %v1718, 32
    %v1721 = vpop.permute.xlu0 %1720
    %v1723 = vadd.f32 %v1713, %v1721
    %v1724 = vtanh.pop %v1723
    %1726 = vrot.lane.b32.xlu0 %v1724, 32
    %v1727 = vpop.permute.xlu0 %1726
    %v1729 = vmul.f32 %v1711, %v1727
    %v1732 = vunpack.c.l.s4 1966171168
    %v1733 = vunpack.c.0.s8 %v1732
    %v1734 = vlaneseq
    %v1735 = vshrl.u32 %v1734, 7
    %v1736 = vsub.s32 %v1733, %v1735
    %v1737 = vrot.slane %v849, %v1736
    %v1738 = vcombine.high %v1737, %v1737
    %v1740 = vunpack.c.l.s4 1966171168
    %v1741 = vunpack.c.0.s8 %v1740
    %v1742 = vlaneseq
    %v1743 = vshrl.u32 %v1742, 7
    %v1744 = vsub.s32 %v1741, %v1743
    %v1745 = vrot.slane %v1737, %v1744
    %v1747 = vunpack.c.l.s4 1966171168
    %v1748 = vunpack.c.0.s8 %v1747
    %v1749 = vlaneseq
    %v1750 = vshrl.u32 %v1749, 7
    %v1751 = vsub.s32 %v1748, %v1750
    %v1752 = vrot.slane %v1738, %v1751
    %v1757 = vunpack.c.l.s4 1966171168
    %v1758 = vunpack.c.0.s8 %v1757
    %v1759 = vlaneseq
    %v1760 = vshrl.u32 %v1759, 7
    %v1761 = vsub.s32 %v1758, %v1760
    %v1762 = vrot.slane %v959, %v1761
    %v1763 = vcombine.high %v1762, %v1762
    %v1765 = vunpack.c.l.s4 1966171168
    %v1766 = vunpack.c.0.s8 %v1765
    %v1767 = vlaneseq
    %v1768 = vshrl.u32 %v1767, 7
    %v1769 = vsub.s32 %v1766, %v1768
    %v1770 = vrot.slane %v1762, %v1769
    %v1772 = vunpack.c.l.s4 1966171168
    %v1773 = vunpack.c.0.s8 %v1772
    %v1774 = vlaneseq
    %v1775 = vshrl.u32 %v1774, 7
    %v1776 = vsub.s32 %v1773, %v1775
    %v1777 = vrot.slane %v1763, %v1776
    %v1780 = vunpack.c.l.s4 1966171168
    %v1781 = vunpack.c.0.s8 %v1780
    %v1782 = vlaneseq
    %v1783 = vshrl.u32 %v1782, 7
    %v1784 = vsub.s32 %v1781, %v1783
    %v1785 = vrot.slane %v1069, %v1784
    %v1786 = vcombine.high %v1785, %v1785
    %v1788 = vunpack.c.l.s4 1966171168
    %v1789 = vunpack.c.0.s8 %v1788
    %v1790 = vlaneseq
    %v1791 = vshrl.u32 %v1790, 7
    %v1792 = vsub.s32 %v1789, %v1791
    %v1793 = vrot.slane %v1785, %v1792
    %v1795 = vunpack.c.l.s4 1966171168
    %v1796 = vunpack.c.0.s8 %v1795
    %v1797 = vlaneseq
    %v1798 = vshrl.u32 %v1797, 7
    %v1799 = vsub.s32 %v1796, %v1798
    %v1800 = vrot.slane %v1786, %v1799
    %v1803 = vunpack.c.l.s4 1966171168
    %v1804 = vunpack.c.0.s8 %v1803
    %v1805 = vlaneseq
    %v1806 = vshrl.u32 %v1805, 7
    %v1807 = vsub.s32 %v1804, %v1806
    %v1808 = vrot.slane %v1179, %v1807
    %v1809 = vcombine.high %v1808, %v1808
    %v1811 = vunpack.c.l.s4 1966171168
    %v1812 = vunpack.c.0.s8 %v1811
    %v1813 = vlaneseq
    %v1814 = vshrl.u32 %v1813, 7
    %v1815 = vsub.s32 %v1812, %v1814
    %v1816 = vrot.slane %v1808, %v1815
    %v1818 = vunpack.c.l.s4 1966171168
    %v1819 = vunpack.c.0.s8 %v1818
    %v1820 = vlaneseq
    %v1821 = vshrl.u32 %v1820, 7
    %v1822 = vsub.s32 %v1819, %v1821
    %v1823 = vrot.slane %v1809, %v1822
    %v1826 = vunpack.c.l.s4 1966171168
    %v1827 = vunpack.c.0.s8 %v1826
    %v1828 = vlaneseq
    %v1829 = vshrl.u32 %v1828, 7
    %v1830 = vsub.s32 %v1827, %v1829
    %v1831 = vrot.slane %v1289, %v1830
    %v1832 = vcombine.high %v1831, %v1831
    %v1834 = vunpack.c.l.s4 1966171168
    %v1835 = vunpack.c.0.s8 %v1834
    %v1836 = vlaneseq
    %v1837 = vshrl.u32 %v1836, 7
    %v1838 = vsub.s32 %v1835, %v1837
    %v1839 = vrot.slane %v1831, %v1838
    %v1841 = vunpack.c.l.s4 1966171168
    %v1842 = vunpack.c.0.s8 %v1841
    %v1843 = vlaneseq
    %v1844 = vshrl.u32 %v1843, 7
    %v1845 = vsub.s32 %v1842, %v1844
    %v1846 = vrot.slane %v1832, %v1845
    %v1849 = vunpack.c.l.s4 1966171168
    %v1850 = vunpack.c.0.s8 %v1849
    %v1851 = vlaneseq
    %v1852 = vshrl.u32 %v1851, 7
    %v1853 = vsub.s32 %v1850, %v1852
    %v1854 = vrot.slane %v1399, %v1853
    %v1855 = vcombine.high %v1854, %v1854
    %v1857 = vunpack.c.l.s4 1966171168
    %v1858 = vunpack.c.0.s8 %v1857
    %v1859 = vlaneseq
    %v1860 = vshrl.u32 %v1859, 7
    %v1861 = vsub.s32 %v1858, %v1860
    %v1862 = vrot.slane %v1854, %v1861
    %v1864 = vunpack.c.l.s4 1966171168
    %v1865 = vunpack.c.0.s8 %v1864
    %v1866 = vlaneseq
    %v1867 = vshrl.u32 %v1866, 7
    %v1868 = vsub.s32 %v1865, %v1867
    %v1869 = vrot.slane %v1855, %v1868
    %v1872 = vunpack.c.l.s4 1966171168
    %v1873 = vunpack.c.0.s8 %v1872
    %v1874 = vlaneseq
    %v1875 = vshrl.u32 %v1874, 7
    %v1876 = vsub.s32 %v1873, %v1875
    %v1877 = vrot.slane %v1509, %v1876
    %v1878 = vcombine.high %v1877, %v1877
    %v1880 = vunpack.c.l.s4 1966171168
    %v1881 = vunpack.c.0.s8 %v1880
    %v1882 = vlaneseq
    %v1883 = vshrl.u32 %v1882, 7
    %v1884 = vsub.s32 %v1881, %v1883
    %v1885 = vrot.slane %v1877, %v1884
    %v1887 = vunpack.c.l.s4 1966171168
    %v1888 = vunpack.c.0.s8 %v1887
    %v1889 = vlaneseq
    %v1890 = vshrl.u32 %v1889, 7
    %v1891 = vsub.s32 %v1888, %v1890
    %v1892 = vrot.slane %v1878, %v1891
    %v1895 = vunpack.c.l.s4 1966171168
    %v1896 = vunpack.c.0.s8 %v1895
    %v1897 = vlaneseq
    %v1898 = vshrl.u32 %v1897, 7
    %v1899 = vsub.s32 %v1896, %v1898
    %v1900 = vrot.slane %v1619, %v1899
    %v1901 = vcombine.high %v1900, %v1900
    %v1903 = vunpack.c.l.s4 1966171168
    %v1904 = vunpack.c.0.s8 %v1903
    %v1905 = vlaneseq
    %v1906 = vshrl.u32 %v1905, 7
    %v1907 = vsub.s32 %v1904, %v1906
    %v1908 = vrot.slane %v1900, %v1907
    %v1910 = vunpack.c.l.s4 1966171168
    %v1911 = vunpack.c.0.s8 %v1910
    %v1912 = vlaneseq
    %v1913 = vshrl.u32 %v1912, 7
    %v1914 = vsub.s32 %v1911, %v1913
    %v1915 = vrot.slane %v1901, %v1914
    %v1918 = vunpack.c.l.s4 1966171168
    %v1919 = vunpack.c.0.s8 %v1918
    %v1920 = vlaneseq
    %v1921 = vshrl.u32 %v1920, 7
    %v1922 = vsub.s32 %v1919, %v1921
    %v1923 = vrot.slane %v1729, %v1922
    %v1924 = vcombine.high %v1923, %v1923
    %v1926 = vunpack.c.l.s4 1966171168
    %v1927 = vunpack.c.0.s8 %v1926
    %v1928 = vlaneseq
    %v1929 = vshrl.u32 %v1928, 7
    %v1930 = vsub.s32 %v1927, %v1929
    %v1931 = vrot.slane %v1923, %v1930
    %v1933 = vunpack.c.l.s4 1966171168
    %v1934 = vunpack.c.0.s8 %v1933
    %v1935 = vlaneseq
    %v1936 = vshrl.u32 %v1935, 7
    %v1937 = vsub.s32 %v1934, %v1936
    %v1938 = vrot.slane %v1924, %v1937
    %v1939 = vlaneseq
    %v1940 = vshrl.u32 %v1939, 7
    %v1941 = vsub.s32 0, %v1940
    %v1942 = vrot.slane %v1770, %v1941
    %v1943 = vlaneseq
    %v1944 = vshrl.u32 %v1943, 7
    %v1945 = vsub.s32 0, %v1944
    %v1946 = vrot.slane %v1777, %v1945
    %v1949 = vlaneseq
    %v1950 = vshrl.u32 %v1949, 7
    %v1951 = vsub.s32 0, %v1950
    %v1952 = vrot.slane %v1793, %v1951
    %v1953 = vlaneseq
    %v1954 = vshrl.u32 %v1953, 7
    %v1955 = vsub.s32 0, %v1954
    %v1956 = vrot.slane %v1800, %v1955
    %v1959 = vlaneseq
    %v1960 = vshrl.u32 %v1959, 7
    %v1961 = vsub.s32 0, %v1960
    %v1962 = vrot.slane %v1816, %v1961
    %v1963 = vlaneseq
    %v1964 = vshrl.u32 %v1963, 7
    %v1965 = vsub.s32 0, %v1964
    %v1966 = vrot.slane %v1823, %v1965
    %v1969 = vlaneseq
    %v1970 = vshrl.u32 %v1969, 7
    %v1971 = vsub.s32 0, %v1970
    %v1972 = vrot.slane %v1839, %v1971
    %v1973 = vlaneseq
    %v1974 = vshrl.u32 %v1973, 7
    %v1975 = vsub.s32 0, %v1974
    %v1976 = vrot.slane %v1846, %v1975
    %v1979 = vlaneseq
    %v1980 = vshrl.u32 %v1979, 7
    %v1981 = vsub.s32 0, %v1980
    %v1982 = vrot.slane %v1862, %v1981
    %v1983 = vlaneseq
    %v1984 = vshrl.u32 %v1983, 7
    %v1985 = vsub.s32 0, %v1984
    %v1986 = vrot.slane %v1869, %v1985
    %v1989 = vlaneseq
    %v1990 = vshrl.u32 %v1989, 7
    %v1991 = vsub.s32 0, %v1990
    %v1992 = vrot.slane %v1885, %v1991
    %v1993 = vlaneseq
    %v1994 = vshrl.u32 %v1993, 7
    %v1995 = vsub.s32 0, %v1994
    %v1996 = vrot.slane %v1892, %v1995
    %v1999 = vlaneseq
    %v2000 = vshrl.u32 %v1999, 7
    %v2001 = vsub.s32 0, %v2000
    %v2002 = vrot.slane %v1908, %v2001
    %v2003 = vlaneseq
    %v2004 = vshrl.u32 %v2003, 7
    %v2005 = vsub.s32 0, %v2004
    %v2006 = vrot.slane %v1915, %v2005
    %vm2009 = vcmask 1040384
    %v2010 = vsel %vm2009, %v1745, %v1942
    %v2011 = vsel %vm2009, %v1752, %v1946
    %v2012 = vsel %vm820, %v2010, %v1952
    %v2013 = vsel %vm820, %v2011, %v1956
    %vm2014 = vcmask 1042432
    %v2015 = vsel %vm2014, %v2012, %v1962
    %v2016 = vsel %vm2014, %v2013, %v1966
    %v2017 = vsel %vm318, %v2015, %v1972
    %v2018 = vsel %vm318, %v2016, %v1976
    %vm2019 = vcmask 1044480
    %v2020 = vsel %vm2019, %v2017, %v1982
    %v2021 = vsel %vm2019, %v2018, %v1986
    %vm2022 = vcmask 1045504
    %v2023 = vsel %vm2022, %v2020, %v1992
    %v2024 = vsel %vm2022, %v2021, %v1996
    %vm2025 = vcmask 1046528
    %v2026 = vsel %vm2025, %v2023, %v2002
    %v2027 = vsel %vm2025, %v2024, %v2006
    %v2028 = vcombine.high %v1931, %v1931
    %v2029 = vcombine.high %v1938, %v1938
    %v2032 = vcombine.high %v1908, %v1908
    %v2033 = vcombine.high %v1915, %v1915
    %v2034 = vcombine.high %v1885, %v1885
    %v2035 = vcombine.high %v1892, %v1892
    %v2036 = vcombine.high %v1862, %v1862
    %v2037 = vcombine.high %v1869, %v1869
    %v2038 = vcombine.high %v1839, %v1839
    %v2039 = vcombine.high %v1846, %v1846
    %v2040 = vcombine.high %v1816, %v1816
    %v2041 = vcombine.high %v1823, %v1823
    %v2042 = vcombine.high %v1793, %v1793
    %v2043 = vcombine.high %v1800, %v1800
    %v2044 = vcombine.high %v1770, %v1770
    %v2045 = vcombine.high %v1777, %v1777
    %v2046 = vcombine.high %v1745, %v1745
    %v2047 = vcombine.high %v1752, %v1752
    %v2048 = vlaneseq
    %v2049 = vshrl.u32 %v2048, 7
    %v2050 = vsub.s32 0, %v2049
    %v2051 = vrot.slane %v2032, %v2050
    %v2052 = vlaneseq
    %v2053 = vshrl.u32 %v2052, 7
    %v2054 = vsub.s32 0, %v2053
    %v2055 = vrot.slane %v2033, %v2054
    %v2058 = vlaneseq
    %v2059 = vshrl.u32 %v2058, 7
    %v2060 = vsub.s32 0, %v2059
    %v2061 = vrot.slane %v2034, %v2060
    %v2062 = vlaneseq
    %v2063 = vshrl.u32 %v2062, 7
    %v2064 = vsub.s32 0, %v2063
    %v2065 = vrot.slane %v2035, %v2064
    %v2068 = vlaneseq
    %v2069 = vshrl.u32 %v2068, 7
    %v2070 = vsub.s32 0, %v2069
    %v2071 = vrot.slane %v2036, %v2070
    %v2072 = vlaneseq
    %v2073 = vshrl.u32 %v2072, 7
    %v2074 = vsub.s32 0, %v2073
    %v2075 = vrot.slane %v2037, %v2074
    %v2078 = vlaneseq
    %v2079 = vshrl.u32 %v2078, 7
    %v2080 = vsub.s32 0, %v2079
    %v2081 = vrot.slane %v2038, %v2080
    %v2082 = vlaneseq
    %v2083 = vshrl.u32 %v2082, 7
    %v2084 = vsub.s32 0, %v2083
    %v2085 = vrot.slane %v2039, %v2084
    %v2088 = vlaneseq
    %v2089 = vshrl.u32 %v2088, 7
    %v2090 = vsub.s32 0, %v2089
    %v2091 = vrot.slane %v2040, %v2090
    %v2092 = vlaneseq
    %v2093 = vshrl.u32 %v2092, 7
    %v2094 = vsub.s32 0, %v2093
    %v2095 = vrot.slane %v2041, %v2094
    %v2098 = vlaneseq
    %v2099 = vshrl.u32 %v2098, 7
    %v2100 = vsub.s32 0, %v2099
    %v2101 = vrot.slane %v2042, %v2100
    %v2102 = vlaneseq
    %v2103 = vshrl.u32 %v2102, 7
    %v2104 = vsub.s32 0, %v2103
    %v2105 = vrot.slane %v2043, %v2104
    %v2108 = vlaneseq
    %v2109 = vshrl.u32 %v2108, 7
    %v2110 = vsub.s32 0, %v2109
    %v2111 = vrot.slane %v2044, %v2110
    %v2112 = vlaneseq
    %v2113 = vshrl.u32 %v2112, 7
    %v2114 = vsub.s32 0, %v2113
    %v2115 = vrot.slane %v2045, %v2114
    %v2118 = vsel %vm2009, %v2028, %v2051
    %v2119 = vsel %vm2009, %v2029, %v2055
    %v2120 = vsel %vm820, %v2118, %v2061
    %v2121 = vsel %vm820, %v2119, %v2065
    %v2122 = vsel %vm2014, %v2120, %v2071
    %v2123 = vsel %vm2014, %v2121, %v2075
    %v2124 = vsel %vm318, %v2122, %v2081
    %v2125 = vsel %vm318, %v2123, %v2085
    %v2126 = vsel %vm2019, %v2124, %v2091
    %v2127 = vsel %vm2019, %v2125, %v2095
    %v2128 = vsel %vm2022, %v2126, %v2101
    %v2129 = vsel %vm2022, %v2127, %v2105
    %v2130 = vsel %vm2025, %v2128, %v2111
    %v2131 = vsel %vm2025, %v2129, %v2115
    %2134 = vrot.lane.b32.xlu0 %v2026, 64
    %v2135 = vpop.permute.xlu0 %2134
    %2136 = vrot.lane.b32.xlu0 %v1931, 64
    %v2137 = vpop.permute.xlu0 %2136
    %2138 = vrot.lane.b32.xlu0 %v2027, 64
    %v2139 = vpop.permute.xlu0 %2138
    %2140 = vrot.lane.b32.xlu0 %v1938, 64
    %v2141 = vpop.permute.xlu0 %2140
    %2148 = vrot.lane.b32.xlu0 %v2130, 96
    %v2149 = vpop.permute.xlu0 %2148
    %2150 = vrot.lane.b32.xlu0 %v2046, 96
    %v2151 = vpop.permute.xlu0 %2150
    %2152 = vrot.lane.b32.xlu0 %v2131, 96
    %v2153 = vpop.permute.xlu0 %2152
    %2154 = vrot.lane.b32.xlu0 %v2047, 96
    %v2155 = vpop.permute.xlu0 %2154
    %v2160 = vsel %vm443, %v2135, %v2149
    %v2161 = vsel %vm443, %v2137, %v2151
    %v2162 = vsel %vm443, %v2139, %v2153
    %v2163 = vsel %vm443, %v2141, %v2155
    %v2168 = vcombine.high %v2160, %v2160
    %v2170 = vunpack.c.l.s4 1966171168
    %v2171 = vunpack.c.0.s8 %v2170
    %v2172 = vlaneseq
    %v2173 = vshrl.u32 %v2172, 7
    %v2174 = vsub.s32 %v2171, %v2173
    %v2175 = vrot.slane %v2160, %v2174
    %v2177 = vunpack.c.l.s4 1966171168
    %v2178 = vunpack.c.0.s8 %v2177
    %v2179 = vlaneseq
    %v2180 = vshrl.u32 %v2179, 7
    %v2181 = vsub.s32 %v2178, %v2180
    %v2182 = vrot.slane %v2168, %v2181
    %v2183 = vcombine.high %v2175, %v2175
    %v2184 = vcombine.high %v2182, %v2182
    %v2186 = vunpack.c.l.s4 1966171168
    %v2187 = vunpack.c.0.s8 %v2186
    %v2188 = vlaneseq
    %v2189 = vshrl.u32 %v2188, 7
    %v2190 = vsub.s32 %v2187, %v2189
    %v2191 = vrot.slane %v2175, %v2190
    %v2193 = vunpack.c.l.s4 1966171168
    %v2194 = vunpack.c.0.s8 %v2193
    %v2195 = vlaneseq
    %v2196 = vshrl.u32 %v2195, 7
    %v2197 = vsub.s32 %v2194, %v2196
    %v2198 = vrot.slane %v2182, %v2197
    %v2200 = vunpack.c.l.s4 1966171168
    %v2201 = vunpack.c.0.s8 %v2200
    %v2202 = vlaneseq
    %v2203 = vshrl.u32 %v2202, 7
    %v2204 = vsub.s32 %v2201, %v2203
    %v2205 = vrot.slane %v2183, %v2204
    %v2207 = vunpack.c.l.s4 1966171168
    %v2208 = vunpack.c.0.s8 %v2207
    %v2209 = vlaneseq
    %v2210 = vshrl.u32 %v2209, 7
    %v2211 = vsub.s32 %v2208, %v2210
    %v2212 = vrot.slane %v2184, %v2211
    %v2213 = vcombine.high %v2191, %v2191
    %v2214 = vcombine.high %v2198, %v2198
    %v2215 = vcombine.high %v2205, %v2205
    %v2216 = vcombine.high %v2212, %v2212
    %v2218 = vunpack.c.l.s4 1966171168
    %v2219 = vunpack.c.0.s8 %v2218
    %v2220 = vlaneseq
    %v2221 = vshrl.u32 %v2220, 7
    %v2222 = vsub.s32 %v2219, %v2221
    %v2223 = vrot.slane %v2161, %v2222
    %v2225 = vunpack.c.l.s4 1966171168
    %v2226 = vunpack.c.0.s8 %v2225
    %v2227 = vlaneseq
    %v2228 = vshrl.u32 %v2227, 7
    %v2229 = vsub.s32 %v2226, %v2228
    %v2230 = vrot.slane %v2223, %v2229
    %v2231 = vcombine.high %v2162, %v2162
    %v2233 = vunpack.c.l.s4 1966171168
    %v2234 = vunpack.c.0.s8 %v2233
    %v2235 = vlaneseq
    %v2236 = vshrl.u32 %v2235, 7
    %v2237 = vsub.s32 %v2234, %v2236
    %v2238 = vrot.slane %v2162, %v2237
    %v2240 = vunpack.c.l.s4 1966171168
    %v2241 = vunpack.c.0.s8 %v2240
    %v2242 = vlaneseq
    %v2243 = vshrl.u32 %v2242, 7
    %v2244 = vsub.s32 %v2241, %v2243
    %v2245 = vrot.slane %v2231, %v2244
    %v2246 = vcombine.high %v2238, %v2238
    %v2247 = vcombine.high %v2245, %v2245
    %v2249 = vunpack.c.l.s4 1966171168
    %v2250 = vunpack.c.0.s8 %v2249
    %v2251 = vlaneseq
    %v2252 = vshrl.u32 %v2251, 7
    %v2253 = vsub.s32 %v2250, %v2252
    %v2254 = vrot.slane %v2238, %v2253
    %v2256 = vunpack.c.l.s4 1966171168
    %v2257 = vunpack.c.0.s8 %v2256
    %v2258 = vlaneseq
    %v2259 = vshrl.u32 %v2258, 7
    %v2260 = vsub.s32 %v2257, %v2259
    %v2261 = vrot.slane %v2245, %v2260
    %v2263 = vunpack.c.l.s4 1966171168
    %v2264 = vunpack.c.0.s8 %v2263
    %v2265 = vlaneseq
    %v2266 = vshrl.u32 %v2265, 7
    %v2267 = vsub.s32 %v2264, %v2266
    %v2268 = vrot.slane %v2246, %v2267
    %v2270 = vunpack.c.l.s4 1966171168
    %v2271 = vunpack.c.0.s8 %v2270
    %v2272 = vlaneseq
    %v2273 = vshrl.u32 %v2272, 7
    %v2274 = vsub.s32 %v2271, %v2273
    %v2275 = vrot.slane %v2247, %v2274
    %v2276 = vcombine.high %v2254, %v2254
    %v2277 = vcombine.high %v2261, %v2261
    %v2278 = vcombine.high %v2268, %v2268
    %v2279 = vcombine.high %v2275, %v2275
    %v2281 = vunpack.c.l.s4 1966171168
    %v2282 = vunpack.c.0.s8 %v2281
    %v2283 = vlaneseq
    %v2284 = vshrl.u32 %v2283, 7
    %v2285 = vsub.s32 %v2282, %v2284
    %v2286 = vrot.slane %v2163, %v2285
    %v2288 = vunpack.c.l.s4 1966171168
    %v2289 = vunpack.c.0.s8 %v2288
    %v2290 = vlaneseq
    %v2291 = vshrl.u32 %v2290, 7
    %v2292 = vsub.s32 %v2289, %v2291
    %v2293 = vrot.slane %v2286, %v2292
    %v2315 = vcombine.high %v582, %v582
    %v2317 = vunpack.c.l.s4 1966171168
    %v2318 = vunpack.c.0.s8 %v2317
    %v2319 = vlaneseq
    %v2320 = vshrl.u32 %v2319, 7
    %v2321 = vsub.s32 %v2318, %v2320
    %v2322 = vrot.slane %v582, %v2321
    %v2324 = vunpack.c.l.s4 1966171168
    %v2325 = vunpack.c.0.s8 %v2324
    %v2326 = vlaneseq
    %v2327 = vshrl.u32 %v2326, 7
    %v2328 = vsub.s32 %v2325, %v2327
    %v2329 = vrot.slane %v2315, %v2328
    %v2330 = vcombine.high %v2322, %v2322
    %v2331 = vcombine.high %v2329, %v2329
    %v2333 = vunpack.c.l.s4 1966171168
    %v2334 = vunpack.c.0.s8 %v2333
    %v2335 = vlaneseq
    %v2336 = vshrl.u32 %v2335, 7
    %v2337 = vsub.s32 %v2334, %v2336
    %v2338 = vrot.slane %v2322, %v2337
    %v2340 = vunpack.c.l.s4 1966171168
    %v2341 = vunpack.c.0.s8 %v2340
    %v2342 = vlaneseq
    %v2343 = vshrl.u32 %v2342, 7
    %v2344 = vsub.s32 %v2341, %v2343
    %v2345 = vrot.slane %v2329, %v2344
    %v2347 = vunpack.c.l.s4 1966171168
    %v2348 = vunpack.c.0.s8 %v2347
    %v2349 = vlaneseq
    %v2350 = vshrl.u32 %v2349, 7
    %v2351 = vsub.s32 %v2348, %v2350
    %v2352 = vrot.slane %v2330, %v2351
    %v2354 = vunpack.c.l.s4 1966171168
    %v2355 = vunpack.c.0.s8 %v2354
    %v2356 = vlaneseq
    %v2357 = vshrl.u32 %v2356, 7
    %v2358 = vsub.s32 %v2355, %v2357
    %v2359 = vrot.slane %v2331, %v2358
    %v2360 = vcombine.high %v2338, %v2338
    %v2361 = vcombine.high %v2345, %v2345
    %v2362 = vcombine.high %v2352, %v2352
    %v2363 = vcombine.high %v2359, %v2359
    %v2364 = vcombine.high %v583, %v583
    %v2366 = vunpack.c.l.s4 1966171168
    %v2367 = vunpack.c.0.s8 %v2366
    %v2368 = vlaneseq
    %v2369 = vshrl.u32 %v2368, 7
    %v2370 = vsub.s32 %v2367, %v2369
    %v2371 = vrot.slane %v583, %v2370
    %v2373 = vunpack.c.l.s4 1966171168
    %v2374 = vunpack.c.0.s8 %v2373
    %v2375 = vlaneseq
    %v2376 = vshrl.u32 %v2375, 7
    %v2377 = vsub.s32 %v2374, %v2376
    %v2378 = vrot.slane %v2364, %v2377
    %v2379 = vcombine.high %v2371, %v2371
    %v2380 = vcombine.high %v2378, %v2378
    %v2382 = vunpack.c.l.s4 1966171168
    %v2383 = vunpack.c.0.s8 %v2382
    %v2384 = vlaneseq
    %v2385 = vshrl.u32 %v2384, 7
    %v2386 = vsub.s32 %v2383, %v2385
    %v2387 = vrot.slane %v2371, %v2386
    %v2389 = vunpack.c.l.s4 1966171168
    %v2390 = vunpack.c.0.s8 %v2389
    %v2391 = vlaneseq
    %v2392 = vshrl.u32 %v2391, 7
    %v2393 = vsub.s32 %v2390, %v2392
    %v2394 = vrot.slane %v2378, %v2393
    %v2396 = vunpack.c.l.s4 1966171168
    %v2397 = vunpack.c.0.s8 %v2396
    %v2398 = vlaneseq
    %v2399 = vshrl.u32 %v2398, 7
    %v2400 = vsub.s32 %v2397, %v2399
    %v2401 = vrot.slane %v2379, %v2400
    %v2403 = vunpack.c.l.s4 1966171168
    %v2404 = vunpack.c.0.s8 %v2403
    %v2405 = vlaneseq
    %v2406 = vshrl.u32 %v2405, 7
    %v2407 = vsub.s32 %v2404, %v2406
    %v2408 = vrot.slane %v2380, %v2407
    %v2409 = vcombine.high %v2387, %v2387
    %v2410 = vcombine.high %v2394, %v2394
    %v2411 = vcombine.high %v2401, %v2401
    %v2412 = vcombine.high %v2408, %v2408
    %v2414 = vunpack.c.l.s4 1966171168
    %v2415 = vunpack.c.0.s8 %v2414
    %v2416 = vlaneseq
    %v2417 = vshrl.u32 %v2416, 7
    %v2418 = vsub.s32 %v2415, %v2417
    %v2419 = vrot.slane %v584, %v2418
    %v2420 = vcombine.high %v2419, %v2419
    %v2422 = vunpack.c.l.s4 1966171168
    %v2423 = vunpack.c.0.s8 %v2422
    %v2424 = vlaneseq
    %v2425 = vshrl.u32 %v2424, 7
    %v2426 = vsub.s32 %v2423, %v2425
    %v2427 = vrot.slane %v2419, %v2426
    %v2429 = vunpack.c.l.s4 1966171168
    %v2430 = vunpack.c.0.s8 %v2429
    %v2431 = vlaneseq
    %v2432 = vshrl.u32 %v2431, 7
    %v2433 = vsub.s32 %v2430, %v2432
    %v2434 = vrot.slane %v2420, %v2433
    %v2453 = vadd.f32 %v2191, %v2338
    %v2454 = vadd.f32 %v2205, %v2352
    %v2455 = vadd.f32 %v2213, %v2360
    %v2456 = vadd.f32 %v2215, %v2362
    %v2457 = vadd.f32 %v2198, %v2345
    %v2458 = vadd.f32 %v2212, %v2359
    %v2459 = vadd.f32 %v2214, %v2361
    %v2460 = vadd.f32 %v2216, %v2363
    %v2461 = vadd.f32 %v2230, %v2387
    %v2462 = vadd.f32 %v2254, %v2401
    %v2463 = vadd.f32 %v2268, %v2409
    %v2464 = vadd.f32 %v2276, %v2411
    %v2465 = vadd.f32 %v2278, %v2394
    %v2466 = vadd.f32 %v2261, %v2408
    %v2467 = vadd.f32 %v2275, %v2410
    %v2468 = vadd.f32 %v2277, %v2412
    %v2469 = vadd.f32 %v2279, %v2427
    %v2470 = vadd.f32 %v2293, %v2434
    %v2471 = vld [vmem:[%s2 + $0x30] sm:$0xff]
    %v2472 = vld [vmem:[%s2 + $0x38] sm:$0xf]
    %v2473 = vld [vmem:[%s2 + $0x3c] sm:$0xff]
    %v2474 = vld [vmem:[%s2 + $0x44] sm:$0xf]
    %v2475 = vld [vmem:[%s2 + $0x48] sm:$0xff]
    %v2476 = vld [vmem:[%s2 + $0x50] sm:$0xf]
    %v2477 = vld [vmem:[%s2 + $0x54] sm:$0xff]
    %v2478 = vld [vmem:[%s2 + $0x5c] sm:$0xf]
    %v2479 = vld [vmem:[%s2 + $0x60] sm:$0xff]
    %v2480 = vld [vmem:[%s2 + $0x68] sm:$0xf]
    %v2481 = vld [vmem:[%s2 + $0x6c] sm:$0xff]
    %v2482 = vld [vmem:[%s2 + $0x74] sm:$0xf]
    %v2483 = vld [vmem:[%s2 + $0x78] sm:$0xff]
    %v2484 = vld [vmem:[%s2 + $0x80] sm:$0xf]
    %v2485 = vld [vmem:[%s2 + $0x84] sm:$0xff]
    %v2486 = vld [vmem:[%s2 + $0x8c] sm:$0xf]
    %v2505 = vcombine.low %v2453, %v2454
    %v2506 = vcombine.low %v2455, %v2456
    %v2507 = vcombine.low %v2457, %v2458
    %v2508 = vcombine.low %v2459, %v2460
    %v2510 = vunpack.c.l.s4 1966171168
    %v2511 = vunpack.c.0.s8 %v2510
    %v2512 = vlaneseq
    %v2513 = vshrl.u32 %v2512, 7
    %v2514 = vsub.s32 %v2511, %v2513
    %v2515 = vrot.slane %v2505, %v2514
    %v2517 = vunpack.c.l.s4 1966171168
    %v2518 = vunpack.c.0.s8 %v2517
    %v2519 = vlaneseq
    %v2520 = vshrl.u32 %v2519, 7
    %v2521 = vsub.s32 %v2518, %v2520
    %v2522 = vrot.slane %v2506, %v2521
    %v2524 = vunpack.c.l.s4 1966171168
    %v2525 = vunpack.c.0.s8 %v2524
    %v2526 = vlaneseq
    %v2527 = vshrl.u32 %v2526, 7
    %v2528 = vsub.s32 %v2525, %v2527
    %v2529 = vrot.slane %v2507, %v2528
    %v2531 = vunpack.c.l.s4 1966171168
    %v2532 = vunpack.c.0.s8 %v2531
    %v2533 = vlaneseq
    %v2534 = vshrl.u32 %v2533, 7
    %v2535 = vsub.s32 %v2532, %v2534
    %v2536 = vrot.slane %v2508, %v2535
    %v2537 = vcombine.low %v2515, %v2522
    %v2538 = vcombine.low %v2529, %v2536
    %v2540 = vunpack.c.l.s4 1966171168
    %v2541 = vunpack.c.0.s8 %v2540
    %v2542 = vlaneseq
    %v2543 = vshrl.u32 %v2542, 7
    %v2544 = vsub.s32 %v2541, %v2543
    %v2545 = vrot.slane %v2537, %v2544
    %v2547 = vunpack.c.l.s4 1966171168
    %v2548 = vunpack.c.0.s8 %v2547
    %v2549 = vlaneseq
    %v2550 = vshrl.u32 %v2549, 7
    %v2551 = vsub.s32 %v2548, %v2550
    %v2552 = vrot.slane %v2538, %v2551
    %v2553 = vcombine.low %v2545, %v2552
    %v2554 = vcombine.low %v2461, %v2462
    %v2555 = vcombine.low %v2463, %v2464
    %v2556 = vcombine.low %v2465, %v2466
    %v2557 = vcombine.low %v2467, %v2468
    %v2559 = vunpack.c.l.s4 1966171168
    %v2560 = vunpack.c.0.s8 %v2559
    %v2561 = vlaneseq
    %v2562 = vshrl.u32 %v2561, 7
    %v2563 = vsub.s32 %v2560, %v2562
    %v2564 = vrot.slane %v2554, %v2563
    %v2566 = vunpack.c.l.s4 1966171168
    %v2567 = vunpack.c.0.s8 %v2566
    %v2568 = vlaneseq
    %v2569 = vshrl.u32 %v2568, 7
    %v2570 = vsub.s32 %v2567, %v2569
    %v2571 = vrot.slane %v2555, %v2570
    %v2573 = vunpack.c.l.s4 1966171168
    %v2574 = vunpack.c.0.s8 %v2573
    %v2575 = vlaneseq
    %v2576 = vshrl.u32 %v2575, 7
    %v2577 = vsub.s32 %v2574, %v2576
    %v2578 = vrot.slane %v2556, %v2577
    %v2580 = vunpack.c.l.s4 1966171168
    %v2581 = vunpack.c.0.s8 %v2580
    %v2582 = vlaneseq
    %v2583 = vshrl.u32 %v2582, 7
    %v2584 = vsub.s32 %v2581, %v2583
    %v2585 = vrot.slane %v2557, %v2584
    %v2586 = vcombine.low %v2564, %v2571
    %v2587 = vcombine.low %v2578, %v2585
    %v2589 = vunpack.c.l.s4 1966171168
    %v2590 = vunpack.c.0.s8 %v2589
    %v2591 = vlaneseq
    %v2592 = vshrl.u32 %v2591, 7
    %v2593 = vsub.s32 %v2590, %v2592
    %v2594 = vrot.slane %v2586, %v2593
    %v2596 = vunpack.c.l.s4 1966171168
    %v2597 = vunpack.c.0.s8 %v2596
    %v2598 = vlaneseq
    %v2599 = vshrl.u32 %v2598, 7
    %v2600 = vsub.s32 %v2597, %v2599
    %v2601 = vrot.slane %v2587, %v2600
    %v2602 = vcombine.low %v2594, %v2601
    %v2603 = vcombine.low %v2469, %v2470
    %v2605 = vunpack.c.l.s4 1966171168
    %v2606 = vunpack.c.0.s8 %v2605
    %v2607 = vlaneseq
    %v2608 = vshrl.u32 %v2607, 7
    %v2609 = vsub.s32 %v2606, %v2608
    %v2610 = vrot.slane %v2603, %v2609
    %v2612 = vunpack.c.l.s4 1966171168
    %v2613 = vunpack.c.0.s8 %v2612
    %v2614 = vlaneseq
    %v2615 = vshrl.u32 %v2614, 7
    %v2616 = vsub.s32 %v2613, %v2615
    %v2617 = vrot.slane %v2610, %v2616
    %v2621 = vpack.c.bf16 %v2602, %v2553
    %v2622 = vpack.c.bf16 %v2617, %v2617
    %v2623 = vlaneseq
    %v2624 = vshrl.u32 %v2623, 7
    %v2625 = vsub.s32 1, %v2624
    %v2626 = vrot.slane %v372, %v2625
    %v2627 = vlaneseq
    %v2628 = vshrl.u32 %v2627, 7
    %v2629 = vsub.s32 3, %v2628
    %v2630 = vrot.slane %v372, %v2629
    %v2631 = vlaneseq
    %v2632 = vshrl.u32 %v2631, 7
    %v2633 = vsub.s32 5, %v2632
    %v2634 = vrot.slane %v372, %v2633
    %v2638 = vlaneseq
    %v2639 = vshrl.u32 %v2638, 7
    %v2640 = vsub.s32 1, %v2639
    %v2641 = vrot.slane %v2626, %v2640
    %v2642 = vlaneseq
    %v2643 = vshrl.u32 %v2642, 7
    %v2644 = vsub.s32 1, %v2643
    %v2645 = vrot.slane %v2630, %v2644
    %v2646 = vlaneseq
    %v2647 = vshrl.u32 %v2646, 7
    %v2648 = vsub.s32 1, %v2647
    %v2649 = vrot.slane %v2634, %v2648
    %v2666 = vunpack.c.l.b16 %v2471
    %v2667 = vunpack.c.h.b16 %v2471
    %v2668 = vunpack.c.l.b16 %v2472
    %v2669 = vunpack.c.l.b16 %v2473
    %v2670 = vunpack.c.h.b16 %v2473
    %v2671 = vunpack.c.l.b16 %v2474
    %v2672 = vunpack.c.l.b16 %v2475
    %v2673 = vunpack.c.h.b16 %v2475
    %v2674 = vunpack.c.l.b16 %v2476
    %v2675 = vunpack.c.l.b16 %v2477
    %v2676 = vunpack.c.h.b16 %v2477
    %v2677 = vunpack.c.l.b16 %v2478
    %v2678 = vunpack.c.l.b16 %v2479
    %v2679 = vunpack.c.h.b16 %v2479
    %v2680 = vunpack.c.l.b16 %v2480
    %v2681 = vunpack.c.l.b16 %v2481
    %v2682 = vunpack.c.h.b16 %v2481
    %v2683 = vunpack.c.l.b16 %v2482
    %v2684 = vunpack.c.l.b16 %v2483
    %v2685 = vunpack.c.h.b16 %v2483
    %v2686 = vunpack.c.l.b16 %v2484
    %v2687 = vunpack.c.l.b16 %v2485
    %v2688 = vunpack.c.h.b16 %v2485
    %v2689 = vunpack.c.l.b16 %v2486
    %v2690 = vpack.c.b16 %v2669, %v2666
    %v2691 = vpack.c.b16 %v2670, %v2667
    %v2692 = vpack.c.b16 %v2671, %v2668
    %v2693 = vpack.c.b16 %v2675, %v2672
    %v2694 = vpack.c.b16 %v2676, %v2673
    %v2695 = vpack.c.b16 %v2677, %v2674
    %v2696 = vpack.c.b16 %v2681, %v2678
    %v2697 = vpack.c.b16 %v2682, %v2679
    %v2698 = vpack.c.b16 %v2683, %v2680
    %v2699 = vpack.c.b16 %v2687, %v2684
    %v2700 = vpack.c.b16 %v2688, %v2685
    %v2701 = vpack.c.b16 %v2689, %v2686
    %vm2714 = vcmask 523264
    %v2716 = vsel %vm2714, %v2621, 0
    %v2719 = vsel %vm2714, %v2622, 0
    %2721 = vmatprep.subr.bf16.mxu0 %v2691
    %2722 = vmatpush1.bf16.msra.mxu0 %v2690
    %2723 = vmatprep.subr.bf16.mxu0 %v2694
    %2724 = vmatpush1.bf16.msra.mxu0 %v2693
    %2725 = vmatprep.subr.bf16.mxu0 %v2697
    %2726 = vmatpush1.bf16.msra.mxu0 %v2696
    %2727 = vmatprep.subr.bf16.mxu0 %v2700
    %2728 = vmatpush1.bf16.msra.mxu0 %v2699
    %2729 = vmatprep.subr.bf16.mxu0 0
    %2730 = vmatpush1.bf16.msra.mxu0 0
    %2731 = vmatprep.subr.bf16.mxu0 0
    %2732 = vmatpush1.bf16.msra.mxu0 0
    %2733 = vmatprep.subr.bf16.mxu0 0
    %2734 = vmatpush1.bf16.msra.mxu0 0
    %2735 = vmatprep.subr.bf16.mxu0 0
    %2736 = vmatpush1.bf16.msra.mxu0 0
    %2737 = vmatprep.subr.bf16.mxu0 0
    %2738 = vmatpush1.bf16.msra.mxu0 0
    %2739 = vmatprep.subr.bf16.mxu0 0
    %2740 = vmatpush1.bf16.msra.mxu0 0
    %2741 = vmatprep.subr.bf16.mxu0 0
    %2742 = vmatpush1.bf16.msra.mxu0 0
    %2743 = vmatprep.subr.bf16.mxu0 0
    %2744 = vmatpush1.bf16.msra.mxu0 0
    %2745 = vmatprep.subr.bf16.mxu0 0
    %2746 = vmatpush1.bf16.msra.mxu0 0
    %2747 = vmatprep.subr.bf16.mxu0 0
    %2748 = vmatpush1.bf16.msra.mxu0 0
    %2749 = vmatprep.subr.bf16.mxu0 0
    %2750 = vmatpush1.bf16.msra.mxu0 0
    %2751 = vmatprep.subr.bf16.mxu0 0
    %2752 = vmatpush1.bf16.msra.mxu0 0
    %2753 = vmatprep.mubr.bf16.mxu0 0
    %2754 = vmatmul.mubr.bf16.gmra.mrb[0].mxu0 %v2716
    %v2755 = vpop.f32.mrb[0].mxu0
    %v2756 = vadd.f32 %v2641, %v2755
    %v2757 = vpop.f32.mrb[0].mxu0
    %v2758 = vadd.f32 %v2645, %v2757
    %v2759 = vpop.f32.mrb[0].mxu0
    %v2760 = vadd.f32 %v2641, %v2759
    %v2761 = vpop.f32.mrb[0].mxu0
    %v2762 = vadd.f32 %v2645, %v2761
    %2763 = vmatprep.mubr.bf16.mxu0 0
    %2764 = vmatmul.mubr.bf16.gmra.mrb[0].mxu0 %v2719
    %v2765 = vpop.f32.mrb[0].mxu0
    %v2766 = vadd.f32 %v2641, %v2765
    %v2767 = vpop.f32.mrb[0].mxu0
    %v2768 = vadd.f32 %v2645, %v2767
    %v2769 = vpop.f32.mrb[0].mxu0
    %v2770 = vpop.f32.mrb[0].mxu0
    %2771 = vdwg.mxu0
    %2772 = vmatprep.subr.bf16.mxu0 0
    %2773 = vmatpush1.bf16.msra.mxu0 %v2692
    %2774 = vmatprep.subr.bf16.mxu0 0
    %2775 = vmatpush1.bf16.msra.mxu0 %v2695
    %2776 = vmatprep.subr.bf16.mxu0 0
    %2777 = vmatpush1.bf16.msra.mxu0 %v2698
    %2778 = vmatprep.subr.bf16.mxu0 0
    %2779 = vmatpush1.bf16.msra.mxu0 %v2701
    %2780 = vmatprep.subr.bf16.mxu0 0
    %2781 = vmatpush1.bf16.msra.mxu0 0
    %2782 = vmatprep.subr.bf16.mxu0 0
    %2783 = vmatpush1.bf16.msra.mxu0 0
    %2784 = vmatprep.subr.bf16.mxu0 0
    %2785 = vmatpush1.bf16.msra.mxu0 0
    %2786 = vmatprep.subr.bf16.mxu0 0
    %2787 = vmatpush1.bf16.msra.mxu0 0
    %2788 = vmatprep.subr.bf16.mxu0 0
    %2789 = vmatpush1.bf16.msra.mxu0 0
    %2790 = vmatprep.subr.bf16.mxu0 0
    %2791 = vmatpush1.bf16.msra.mxu0 0
    %2792 = vmatprep.subr.bf16.mxu0 0
    %2793 = vmatpush1.bf16.msra.mxu0 0
    %2794 = vmatprep.subr.bf16.mxu0 0
    %2795 = vmatpush1.bf16.msra.mxu0 0
    %2796 = vmatprep.subr.bf16.mxu0 0
    %2797 = vmatpush1.bf16.msra.mxu0 0
    %2798 = vmatprep.subr.bf16.mxu0 0
    %2799 = vmatpush1.bf16.msra.mxu0 0
    %2800 = vmatprep.subr.bf16.mxu0 0
    %2801 = vmatpush1.bf16.msra.mxu0 0
    %2802 = vmatprep.subr.bf16.mxu0 0
    %2803 = vmatpush1.bf16.msra.mxu0 0
    %2804 = vmatprep.mubr.bf16.mxu0 0
    %2805 = vmatmul.mubr.bf16.gmra.mrb[0].mxu0 %v2716
    %v2806 = vpop.f32.mrb[0].mxu0
    %v2807 = vadd.f32 %v2649, %v2806
    %v2808 = vpop.f32.mrb[0].mxu0
    %v2809 = vpop.f32.mrb[0].mxu0
    %v2810 = vadd.f32 %v2649, %v2809
    %v2811 = vpop.f32.mrb[0].mxu0
    %2812 = vmatprep.mubr.bf16.mxu0 0
    %2813 = vmatmul.mubr.bf16.gmra.mrb[0].mxu0 %v2719
    %v2814 = vpop.f32.mrb[0].mxu0
    %v2815 = vadd.f32 %v2649, %v2814
    %v2816 = vpop.f32.mrb[0].mxu0
    %v2817 = vpop.f32.mrb[0].mxu0
    %v2818 = vpop.f32.mrb[0].mxu0
    %2819 = vdwg.mxu0
    %v2820 = vxor.u32 %v2807, 2147483648
    %v2821 = vxor.u32 %v2810, 2147483648
    %v2822 = vxor.u32 %v2815, 2147483648
    %v2823 = vmul.f32 %v2820, 1.442695
    %v2824 = vpow.pop %v2823
    %v2825 = vmul.f32 %v2821, 1.442695
    %v2826 = vpow.pop %v2825
    %v2827 = vmul.f32 %v2822, 1.442695
    %v2828 = vpow.pop %v2827
    %v2829 = vadd.f32 %v2824, 1.0
    %v2830 = vadd.f32 %v2826, 1.0
    %v2831 = vadd.f32 %v2828, 1.0
    %v2832 = vrcp.pop %v2829
    %v2833 = vmul.f32 1.0, %v2832
    %v2834 = vrcp.pop %v2830
    %v2835 = vmul.f32 1.0, %v2834
    %v2836 = vrcp.pop %v2831
    %v2837 = vmul.f32 1.0, %v2836
    %v2838 = vtanh.pop %v2807
    %v2839 = vtanh.pop %v2810
    %v2840 = vtanh.pop %v2815
    %2844 = vrot.lane.b32.xlu0 %v2838, 64
    %v2845 = vpop.permute.xlu0 %2844
    %2846 = vrot.lane.b32.xlu0 %v2839, 64
    %v2847 = vpop.permute.xlu0 %2846
    %2848 = vrot.lane.b32.xlu0 %v2840, 64
    %v2849 = vpop.permute.xlu0 %2848
    %v2853 = vmul.f32 %v2833, %v2845
    %v2854 = vmul.f32 %v2835, %v2847
    %v2855 = vmul.f32 %v2837, %v2849
    %v2862 = vcombine.low %v2756, %v2758
    %v2863 = vcombine.high %v2756, %v2758
    %v2865 = vunpack.c.l.s4 1966171168
    %v2866 = vunpack.c.0.s8 %v2865
    %v2867 = vlaneseq
    %v2868 = vshrl.u32 %v2867, 7
    %v2869 = vsub.s32 %v2866, %v2868
    %v2870 = vrot.slane %v2862, %v2869
    %v2872 = vunpack.c.l.s4 1966171168
    %v2873 = vunpack.c.0.s8 %v2872
    %v2874 = vlaneseq
    %v2875 = vshrl.u32 %v2874, 7
    %v2876 = vsub.s32 %v2873, %v2875
    %v2877 = vrot.slane %v2863, %v2876
    %v2878 = vcombine.high %v2870, %v2870
    %v2879 = vcombine.high %v2877, %v2877
    %v2881 = vunpack.c.l.s4 1966171168
    %v2882 = vunpack.c.0.s8 %v2881
    %v2883 = vlaneseq
    %v2884 = vshrl.u32 %v2883, 7
    %v2885 = vsub.s32 %v2882, %v2884
    %v2886 = vrot.slane %v2870, %v2885
    %v2888 = vunpack.c.l.s4 1966171168
    %v2889 = vunpack.c.0.s8 %v2888
    %v2890 = vlaneseq
    %v2891 = vshrl.u32 %v2890, 7
    %v2892 = vsub.s32 %v2889, %v2891
    %v2893 = vrot.slane %v2877, %v2892
    %v2895 = vunpack.c.l.s4 1966171168
    %v2896 = vunpack.c.0.s8 %v2895
    %v2897 = vlaneseq
    %v2898 = vshrl.u32 %v2897, 7
    %v2899 = vsub.s32 %v2896, %v2898
    %v2900 = vrot.slane %v2878, %v2899
    %v2902 = vunpack.c.l.s4 1966171168
    %v2903 = vunpack.c.0.s8 %v2902
    %v2904 = vlaneseq
    %v2905 = vshrl.u32 %v2904, 7
    %v2906 = vsub.s32 %v2903, %v2905
    %v2907 = vrot.slane %v2879, %v2906
    %v2908 = vcombine.high %v2886, %v2886
    %v2909 = vcombine.high %v2893, %v2893
    %v2910 = vcombine.high %v2900, %v2900
    %v2911 = vcombine.high %v2907, %v2907
    %v2912 = vcombine.low %v2760, %v2762
    %v2913 = vcombine.high %v2760, %v2762
    %v2915 = vunpack.c.l.s4 1966171168
    %v2916 = vunpack.c.0.s8 %v2915
    %v2917 = vlaneseq
    %v2918 = vshrl.u32 %v2917, 7
    %v2919 = vsub.s32 %v2916, %v2918
    %v2920 = vrot.slane %v2912, %v2919
    %v2922 = vunpack.c.l.s4 1966171168
    %v2923 = vunpack.c.0.s8 %v2922
    %v2924 = vlaneseq
    %v2925 = vshrl.u32 %v2924, 7
    %v2926 = vsub.s32 %v2923, %v2925
    %v2927 = vrot.slane %v2913, %v2926
    %v2928 = vcombine.high %v2920, %v2920
    %v2929 = vcombine.high %v2927, %v2927
    %v2931 = vunpack.c.l.s4 1966171168
    %v2932 = vunpack.c.0.s8 %v2931
    %v2933 = vlaneseq
    %v2934 = vshrl.u32 %v2933, 7
    %v2935 = vsub.s32 %v2932, %v2934
    %v2936 = vrot.slane %v2920, %v2935
    %v2938 = vunpack.c.l.s4 1966171168
    %v2939 = vunpack.c.0.s8 %v2938
    %v2940 = vlaneseq
    %v2941 = vshrl.u32 %v2940, 7
    %v2942 = vsub.s32 %v2939, %v2941
    %v2943 = vrot.slane %v2927, %v2942
    %v2945 = vunpack.c.l.s4 1966171168
    %v2946 = vunpack.c.0.s8 %v2945
    %v2947 = vlaneseq
    %v2948 = vshrl.u32 %v2947, 7
    %v2949 = vsub.s32 %v2946, %v2948
    %v2950 = vrot.slane %v2928, %v2949
    %v2952 = vunpack.c.l.s4 1966171168
    %v2953 = vunpack.c.0.s8 %v2952
    %v2954 = vlaneseq
    %v2955 = vshrl.u32 %v2954, 7
    %v2956 = vsub.s32 %v2953, %v2955
    %v2957 = vrot.slane %v2929, %v2956
    %v2958 = vcombine.high %v2936, %v2936
    %v2959 = vcombine.high %v2943, %v2943
    %v2960 = vcombine.high %v2950, %v2950
    %v2961 = vcombine.high %v2957, %v2957
    %v2962 = vcombine.low %v2766, %v2768
    %v2964 = vunpack.c.l.s4 1966171168
    %v2965 = vunpack.c.0.s8 %v2964
    %v2966 = vlaneseq
    %v2967 = vshrl.u32 %v2966, 7
    %v2968 = vsub.s32 %v2965, %v2967
    %v2969 = vrot.slane %v2962, %v2968
    %v2970 = vcombine.high %v2969, %v2969
    %v2972 = vunpack.c.l.s4 1966171168
    %v2973 = vunpack.c.0.s8 %v2972
    %v2974 = vlaneseq
    %v2975 = vshrl.u32 %v2974, 7
    %v2976 = vsub.s32 %v2973, %v2975
    %v2977 = vrot.slane %v2969, %v2976
    %v2979 = vunpack.c.l.s4 1966171168
    %v2980 = vunpack.c.0.s8 %v2979
    %v2981 = vlaneseq
    %v2982 = vshrl.u32 %v2981, 7
    %v2983 = vsub.s32 %v2980, %v2982
    %v2984 = vrot.slane %v2970, %v2983
    %v2985 = vld [vmem:[%s4 + $0x20] sm:$0xff]
    %v2986 = vld [vmem:[%s4 + $0x28] sm:$0xff]
    %v2987 = vld [vmem:[%s4 + $0x30] sm:$0xff]
    %v2988 = vld [vmem:[%s4 + $0x38] sm:$0xff]
    %v2989 = vrot.slane %v2936, 1
    %v2990 = vrot.slane %v2984, 1
    %v2992 = vrot.slane %v720, 2
    %v2997 = vunpack.c.l.b16 %v2985
    %v2998 = vunpack.c.h.b16 %v2985
    %v2999 = vunpack.c.l.b16 %v2986
    %v3000 = vunpack.c.h.b16 %v2986
    %v3001 = vunpack.c.l.b16 %v2987
    %v3002 = vunpack.c.h.b16 %v2987
    %v3003 = vunpack.c.l.b16 %v2988
    %v3004 = vunpack.c.h.b16 %v2988
    %v3005 = vpack.c.b16 %v2999, %v2997
    %v3006 = vpack.c.b16 %v3000, %v2998
    %v3007 = vpack.c.b16 %v3003, %v3001
    %v3008 = vpack.c.b16 %v3004, %v3002
    %v3014 = vsel %vm443, %v2992, 0
    %3016 = vmatprep.subr.bf16.mxu0 %v3006
    %3017 = vmatpush1.bf16.msra.mxu0 %v3005
    %3018 = vmatprep.subr.bf16.mxu0 %v3008
    %3019 = vmatpush1.bf16.msra.mxu0 %v3007
    %3020 = vmatprep.subr.bf16.mxu0 0
    %3021 = vmatpush1.bf16.msra.mxu0 0
    %3022 = vmatprep.subr.bf16.mxu0 0
    %3023 = vmatpush1.bf16.msra.mxu0 0
    %3024 = vmatprep.subr.bf16.mxu0 0
    %3025 = vmatpush1.bf16.msra.mxu0 0
    %3026 = vmatprep.subr.bf16.mxu0 0
    %3027 = vmatpush1.bf16.msra.mxu0 0
    %3028 = vmatprep.subr.bf16.mxu0 0
    %3029 = vmatpush1.bf16.msra.mxu0 0
    %3030 = vmatprep.subr.bf16.mxu0 0
    %3031 = vmatpush1.bf16.msra.mxu0 0
    %3032 = vmatprep.subr.bf16.mxu0 0
    %3033 = vmatpush1.bf16.msra.mxu0 0
    %3034 = vmatprep.subr.bf16.mxu0 0
    %3035 = vmatpush1.bf16.msra.mxu0 0
    %3036 = vmatprep.subr.bf16.mxu0 0
    %3037 = vmatpush1.bf16.msra.mxu0 0
    %3038 = vmatprep.subr.bf16.mxu0 0
    %3039 = vmatpush1.bf16.msra.mxu0 0
    %3040 = vmatprep.subr.bf16.mxu0 0
    %3041 = vmatpush1.bf16.msra.mxu0 0
    %3042 = vmatprep.subr.bf16.mxu0 0
    %3043 = vmatpush1.bf16.msra.mxu0 0
    %3044 = vmatprep.subr.bf16.mxu0 0
    %3045 = vmatpush1.bf16.msra.mxu0 0
    %3046 = vmatprep.subr.bf16.mxu0 0
    %3047 = vmatpush1.bf16.msra.mxu0 0
    %3048 = vmatprep.mubr.bf16.mxu0 0
    %3049 = vmatmul.mubr.bf16.gmra.mrb[0].mxu0 %v3014
    %v3050 = vpop.f32.mrb[0].mxu0
    %v3051 = vadd.f32 0.0, %v3050
    %v3052 = vpop.f32.mrb[0].mxu0
    %v3053 = vadd.f32 0.0, %v3052
    %v3054 = vpop.f32.mrb[0].mxu0
    %v3055 = vpop.f32.mrb[0].mxu0
    %3056 = vdwg.mxu0
    %v3057 = vcombine.low %v2886, %v2950
    %v3059 = vunpack.c.l.s4 1966171168
    %v3060 = vunpack.c.0.s8 %v3059
    %v3061 = vlaneseq
    %v3062 = vshrl.u32 %v3061, 7
    %v3063 = vsub.s32 %v3060, %v3062
    %v3064 = vrot.slane %v3057, %v3063
    %v3066 = vunpack.c.l.s4 1966171168
    %v3067 = vunpack.c.0.s8 %v3066
    %v3068 = vlaneseq
    %v3069 = vshrl.u32 %v3068, 7
    %v3070 = vsub.s32 %v3067, %v3069
    %v3071 = vrot.slane %v3064, %v3070
    %v3073 = vadd.f32 %v3051, %v3071
    %v3074 = vcombine.low %v2989, %v2990
    %v3076 = vunpack.c.l.s4 1966171168
    %v3077 = vunpack.c.0.s8 %v3076
    %v3078 = vlaneseq
    %v3079 = vshrl.u32 %v3078, 7
    %v3080 = vsub.s32 %v3077, %v3079
    %v3081 = vrot.slane %v3074, %v3080
    %v3082 = vcombine.low %v3081, %v3081
    %v3084 = vunpack.c.l.s4 1966171168
    %v3085 = vunpack.c.0.s8 %v3084
    %v3086 = vlaneseq
    %v3087 = vshrl.u32 %v3086, 7
    %v3088 = vsub.s32 %v3085, %v3087
    %v3089 = vrot.slane %v3082, %v3088
    %v3091 = vadd.f32 %v3053, %v3089
    %v3092 = vsel %vm820, %v3073, %v3091
    %v3093 = vxor.u32 %v3092, 2147483648
    %v3094 = vmul.f32 %v3093, 1.442695
    %v3095 = vpow.pop %v3094
    %v3096 = vadd.f32 %v3095, 1.0
    %v3097 = vrcp.pop %v3096
    %v3098 = vmul.f32 1.0, %v3097
    %v3099 = vtanh.pop %v3092
    %v3100 = vrot.slane %v371, 4
    %3101 = vrot.lane.b32.xlu0 %v3100, 32
    %v3102 = vpop.permute.xlu0 %3101
    %v3104 = vmul.f32 %v3098, %v3102
    %3106 = vrot.lane.b32.xlu0 %v3099, 32
    %v3107 = vpop.permute.xlu0 %3106
    %v3109 = vmul.f32 %v3098, %v3107
    %3111 = vrot.lane.b32.xlu0 %v3109, 32
    %v3112 = vpop.permute.xlu0 %3111
    %v3114 = vadd.f32 %v3104, %v3112
    %v3115 = vtanh.pop %v3114
    %3117 = vrot.lane.b32.xlu0 %v3115, 32
    %v3118 = vpop.permute.xlu0 %3117
    %v3120 = vmul.f32 %v3098, %v3118
    %v3121 = vrot.slane %v2911, 1
    %v3122 = vrot.slane %v2977, 1
    %v3123 = vpack.c.bf16 %v3120, %v3120
    %3125 = vrot.lane.b32.xlu0 %v3123, 64
    %v3126 = vpop.permute.xlu0 %3125
    %v3128 = vsel %vm443, %v3126, 0
    %3130 = vmatprep.subr.bf16.mxu0 %v3006
    %3131 = vmatpush1.bf16.msra.mxu0 %v3005
    %3132 = vmatprep.subr.bf16.mxu0 %v3008
    %3133 = vmatpush1.bf16.msra.mxu0 %v3007
    %3134 = vmatprep.subr.bf16.mxu0 0
    %3135 = vmatpush1.bf16.msra.mxu0 0
    %3136 = vmatprep.subr.bf16.mxu0 0
    %3137 = vmatpush1.bf16.msra.mxu0 0
    %3138 = vmatprep.subr.bf16.mxu0 0
    %3139 = vmatpush1.bf16.msra.mxu0 0
    %3140 = vmatprep.subr.bf16.mxu0 0
    %3141 = vmatpush1.bf16.msra.mxu0 0
    %3142 = vmatprep.subr.bf16.mxu0 0
    %3143 = vmatpush1.bf16.msra.mxu0 0
    %3144 = vmatprep.subr.bf16.mxu0 0
    %3145 = vmatpush1.bf16.msra.mxu0 0
    %3146 = vmatprep.subr.bf16.mxu0 0
    %3147 = vmatpush1.bf16.msra.mxu0 0
    %3148 = vmatprep.subr.bf16.mxu0 0
    %3149 = vmatpush1.bf16.msra.mxu0 0
    %3150 = vmatprep.subr.bf16.mxu0 0
    %3151 = vmatpush1.bf16.msra.mxu0 0
    %3152 = vmatprep.subr.bf16.mxu0 0
    %3153 = vmatpush1.bf16.msra.mxu0 0
    %3154 = vmatprep.subr.bf16.mxu0 0
    %3155 = vmatpush1.bf16.msra.mxu0 0
    %3156 = vmatprep.subr.bf16.mxu0 0
    %3157 = vmatpush1.bf16.msra.mxu0 0
    %3158 = vmatprep.subr.bf16.mxu0 0
    %3159 = vmatpush1.bf16.msra.mxu0 0
    %3160 = vmatprep.subr.bf16.mxu0 0
    %3161 = vmatpush1.bf16.msra.mxu0 0
    %3162 = vmatprep.mubr.bf16.mxu0 0
    %3163 = vmatmul.mubr.bf16.gmra.mrb[0].mxu0 %v3128
    %v3164 = vpop.f32.mrb[0].mxu0
    %v3165 = vadd.f32 0.0, %v3164
    %v3166 = vpop.f32.mrb[0].mxu0
    %v3167 = vadd.f32 0.0, %v3166
    %v3168 = vpop.f32.mrb[0].mxu0
    %v3169 = vpop.f32.mrb[0].mxu0
    %3170 = vdwg.mxu0
    %v3171 = vcombine.low %v2900, %v2958
    %v3173 = vunpack.c.l.s4 1966171168
    %v3174 = vunpack.c.0.s8 %v3173
    %v3175 = vlaneseq
    %v3176 = vshrl.u32 %v3175, 7
    %v3177 = vsub.s32 %v3174, %v3176
    %v3178 = vrot.slane %v3171, %v3177
    %v3180 = vunpack.c.l.s4 1966171168
    %v3181 = vunpack.c.0.s8 %v3180
    %v3182 = vlaneseq
    %v3183 = vshrl.u32 %v3182, 7
    %v3184 = vsub.s32 %v3181, %v3183
    %v3185 = vrot.slane %v3178, %v3184
    %v3187 = vadd.f32 %v3165, %v3185
    %v3188 = vcombine.low %v3121, %v3122
    %v3190 = vunpack.c.l.s4 1966171168
    %v3191 = vunpack.c.0.s8 %v3190
    %v3192 = vlaneseq
    %v3193 = vshrl.u32 %v3192, 7
    %v3194 = vsub.s32 %v3191, %v3193
    %v3195 = vrot.slane %v3188, %v3194
    %v3196 = vcombine.low %v3195, %v3195
    %v3198 = vunpack.c.l.s4 1966171168
    %v3199 = vunpack.c.0.s8 %v3198
    %v3200 = vlaneseq
    %v3201 = vshrl.u32 %v3200, 7
    %v3202 = vsub.s32 %v3199, %v3201
    %v3203 = vrot.slane %v3196, %v3202
    %v3205 = vadd.f32 %v3167, %v3203
    %v3206 = vsel %vm820, %v3187, %v3205
    %v3207 = vxor.u32 %v3206, 2147483648
    %v3208 = vmul.f32 %v3207, 1.442695
    %v3209 = vpow.pop %v3208
    %v3210 = vadd.f32 %v3209, 1.0
    %v3211 = vrcp.pop %v3210
    %v3212 = vmul.f32 1.0, %v3211
    %v3213 = vtanh.pop %v3206
    %v3214 = vmul.f32 %v3212, %v3114
    %3216 = vrot.lane.b32.xlu0 %v3213, 32
    %v3217 = vpop.permute.xlu0 %3216
    %v3219 = vmul.f32 %v3212, %v3217
    %3221 = vrot.lane.b32.xlu0 %v3219, 32
    %v3222 = vpop.permute.xlu0 %3221
    %v3224 = vadd.f32 %v3214, %v3222
    %v3225 = vtanh.pop %v3224
    %3227 = vrot.lane.b32.xlu0 %v3225, 32
    %v3228 = vpop.permute.xlu0 %3227
    %v3230 = vmul.f32 %v3212, %v3228
    %v3231 = vrot.slane %v2909, 1
    %v3232 = vrot.slane %v2961, 1
    %v3233 = vpack.c.bf16 %v3230, %v3230
    %3235 = vrot.lane.b32.xlu0 %v3233, 64
    %v3236 = vpop.permute.xlu0 %3235
    %v3238 = vsel %vm443, %v3236, 0
    %3240 = vmatprep.subr.bf16.mxu0 %v3006
    %3241 = vmatpush1.bf16.msra.mxu0 %v3005
    %3242 = vmatprep.subr.bf16.mxu0 %v3008
    %3243 = vmatpush1.bf16.msra.mxu0 %v3007
    %3244 = vmatprep.subr.bf16.mxu0 0
    %3245 = vmatpush1.bf16.msra.mxu0 0
    %3246 = vmatprep.subr.bf16.mxu0 0
    %3247 = vmatpush1.bf16.msra.mxu0 0
    %3248 = vmatprep.subr.bf16.mxu0 0
    %3249 = vmatpush1.bf16.msra.mxu0 0
    %3250 = vmatprep.subr.bf16.mxu0 0
    %3251 = vmatpush1.bf16.msra.mxu0 0
    %3252 = vmatprep.subr.bf16.mxu0 0
    %3253 = vmatpush1.bf16.msra.mxu0 0
    %3254 = vmatprep.subr.bf16.mxu0 0
    %3255 = vmatpush1.bf16.msra.mxu0 0
    %3256 = vmatprep.subr.bf16.mxu0 0
    %3257 = vmatpush1.bf16.msra.mxu0 0
    %3258 = vmatprep.subr.bf16.mxu0 0
    %3259 = vmatpush1.bf16.msra.mxu0 0
    %3260 = vmatprep.subr.bf16.mxu0 0
    %3261 = vmatpush1.bf16.msra.mxu0 0
    %3262 = vmatprep.subr.bf16.mxu0 0
    %3263 = vmatpush1.bf16.msra.mxu0 0
    %3264 = vmatprep.subr.bf16.mxu0 0
    %3265 = vmatpush1.bf16.msra.mxu0 0
    %3266 = vmatprep.subr.bf16.mxu0 0
    %3267 = vmatpush1.bf16.msra.mxu0 0
    %3268 = vmatprep.subr.bf16.mxu0 0
    %3269 = vmatpush1.bf16.msra.mxu0 0
    %3270 = vmatprep.subr.bf16.mxu0 0
    %3271 = vmatpush1.bf16.msra.mxu0 0
    %3272 = vmatprep.mubr.bf16.mxu0 0
    %3273 = vmatmul.mubr.bf16.gmra.mrb[0].mxu0 %v3238
    %v3274 = vpop.f32.mrb[0].mxu0
    %v3275 = vadd.f32 0.0, %v3274
    %v3276 = vpop.f32.mrb[0].mxu0
    %v3277 = vadd.f32 0.0, %v3276
    %v3278 = vpop.f32.mrb[0].mxu0
    %v3279 = vpop.f32.mrb[0].mxu0
    %3280 = vdwg.mxu0
    %v3281 = vcombine.low %v2908, %v2960
    %v3283 = vunpack.c.l.s4 1966171168
    %v3284 = vunpack.c.0.s8 %v3283
    %v3285 = vlaneseq
    %v3286 = vshrl.u32 %v3285, 7
    %v3287 = vsub.s32 %v3284, %v3286
    %v3288 = vrot.slane %v3281, %v3287
    %v3290 = vunpack.c.l.s4 1966171168
    %v3291 = vunpack.c.0.s8 %v3290
    %v3292 = vlaneseq
    %v3293 = vshrl.u32 %v3292, 7
    %v3294 = vsub.s32 %v3291, %v3293
    %v3295 = vrot.slane %v3288, %v3294
    %v3297 = vadd.f32 %v3275, %v3295
    %v3298 = vcombine.low %v3231, %v3232
    %v3300 = vunpack.c.l.s4 1966171168
    %v3301 = vunpack.c.0.s8 %v3300
    %v3302 = vlaneseq
    %v3303 = vshrl.u32 %v3302, 7
    %v3304 = vsub.s32 %v3301, %v3303
    %v3305 = vrot.slane %v3298, %v3304
    %v3306 = vcombine.low %v3305, %v3305
    %v3308 = vunpack.c.l.s4 1966171168
    %v3309 = vunpack.c.0.s8 %v3308
    %v3310 = vlaneseq
    %v3311 = vshrl.u32 %v3310, 7
    %v3312 = vsub.s32 %v3309, %v3311
    %v3313 = vrot.slane %v3306, %v3312
    %v3315 = vadd.f32 %v3277, %v3313
    %v3316 = vsel %vm820, %v3297, %v3315
    %v3317 = vxor.u32 %v3316, 2147483648
    %v3318 = vmul.f32 %v3317, 1.442695
    %v3319 = vpow.pop %v3318
    %v3320 = vadd.f32 %v3319, 1.0
    %v3321 = vrcp.pop %v3320
    %v3322 = vmul.f32 1.0, %v3321
    %v3323 = vtanh.pop %v3316
    %v3324 = vmul.f32 %v3322, %v3224
    %3326 = vrot.lane.b32.xlu0 %v3323, 32
    %v3327 = vpop.permute.xlu0 %3326
    %v3329 = vmul.f32 %v3322, %v3327
    %3331 = vrot.lane.b32.xlu0 %v3329, 32
    %v3332 = vpop.permute.xlu0 %3331
    %v3334 = vadd.f32 %v3324, %v3332
    %v3335 = vtanh.pop %v3334
    %3337 = vrot.lane.b32.xlu0 %v3335, 32
    %v3338 = vpop.permute.xlu0 %3337
    %v3340 = vmul.f32 %v3322, %v3338
    %v3341 = vrot.slane %v2907, 1
    %v3342 = vrot.slane %v2959, 1
    %v3343 = vpack.c.bf16 %v3340, %v3340
    %3345 = vrot.lane.b32.xlu0 %v3343, 64
    %v3346 = vpop.permute.xlu0 %3345
    %v3348 = vsel %vm443, %v3346, 0
    %3350 = vmatprep.subr.bf16.mxu0 %v3006
    %3351 = vmatpush1.bf16.msra.mxu0 %v3005
    %3352 = vmatprep.subr.bf16.mxu0 %v3008
    %3353 = vmatpush1.bf16.msra.mxu0 %v3007
    %3354 = vmatprep.subr.bf16.mxu0 0
    %3355 = vmatpush1.bf16.msra.mxu0 0
    %3356 = vmatprep.subr.bf16.mxu0 0
    %3357 = vmatpush1.bf16.msra.mxu0 0
    %3358 = vmatprep.subr.bf16.mxu0 0
    %3359 = vmatpush1.bf16.msra.mxu0 0
    %3360 = vmatprep.subr.bf16.mxu0 0
    %3361 = vmatpush1.bf16.msra.mxu0 0
    %3362 = vmatprep.subr.bf16.mxu0 0
    %3363 = vmatpush1.bf16.msra.mxu0 0
    %3364 = vmatprep.subr.bf16.mxu0 0
    %3365 = vmatpush1.bf16.msra.mxu0 0
    %3366 = vmatprep.subr.bf16.mxu0 0
    %3367 = vmatpush1.bf16.msra.mxu0 0
    %3368 = vmatprep.subr.bf16.mxu0 0
    %3369 = vmatpush1.bf16.msra.mxu0 0
    %3370 = vmatprep.subr.bf16.mxu0 0
    %3371 = vmatpush1.bf16.msra.mxu0 0
    %3372 = vmatprep.subr.bf16.mxu0 0
    %3373 = vmatpush1.bf16.msra.mxu0 0
    %3374 = vmatprep.subr.bf16.mxu0 0
    %3375 = vmatpush1.bf16.msra.mxu0 0
    %3376 = vmatprep.subr.bf16.mxu0 0
    %3377 = vmatpush1.bf16.msra.mxu0 0
    %3378 = vmatprep.subr.bf16.mxu0 0
    %3379 = vmatpush1.bf16.msra.mxu0 0
    %3380 = vmatprep.subr.bf16.mxu0 0
    %3381 = vmatpush1.bf16.msra.mxu0 0
    %3382 = vmatprep.mubr.bf16.mxu0 0
    %3383 = vmatmul.mubr.bf16.gmra.mrb[0].mxu0 %v3348
    %v3384 = vpop.f32.mrb[0].mxu0
    %v3385 = vadd.f32 0.0, %v3384
    %v3386 = vpop.f32.mrb[0].mxu0
    %v3387 = vadd.f32 0.0, %v3386
    %v3388 = vpop.f32.mrb[0].mxu0
    %v3389 = vpop.f32.mrb[0].mxu0
    %3390 = vdwg.mxu0
    %v3391 = vcombine.low %v2910, %v2943
    %v3393 = vunpack.c.l.s4 1966171168
    %v3394 = vunpack.c.0.s8 %v3393
    %v3395 = vlaneseq
    %v3396 = vshrl.u32 %v3395, 7
    %v3397 = vsub.s32 %v3394, %v3396
    %v3398 = vrot.slane %v3391, %v3397
    %v3400 = vunpack.c.l.s4 1966171168
    %v3401 = vunpack.c.0.s8 %v3400
    %v3402 = vlaneseq
    %v3403 = vshrl.u32 %v3402, 7
    %v3404 = vsub.s32 %v3401, %v3403
    %v3405 = vrot.slane %v3398, %v3404
    %v3407 = vadd.f32 %v3385, %v3405
    %v3408 = vcombine.low %v3341, %v3342
    %v3410 = vunpack.c.l.s4 1966171168
    %v3411 = vunpack.c.0.s8 %v3410
    %v3412 = vlaneseq
    %v3413 = vshrl.u32 %v3412, 7
    %v3414 = vsub.s32 %v3411, %v3413
    %v3415 = vrot.slane %v3408, %v3414
    %v3416 = vcombine.low %v3415, %v3415
    %v3418 = vunpack.c.l.s4 1966171168
    %v3419 = vunpack.c.0.s8 %v3418
    %v3420 = vlaneseq
    %v3421 = vshrl.u32 %v3420, 7
    %v3422 = vsub.s32 %v3419, %v3421
    %v3423 = vrot.slane %v3416, %v3422
    %v3425 = vadd.f32 %v3387, %v3423
    %v3426 = vsel %vm820, %v3407, %v3425
    %v3427 = vxor.u32 %v3426, 2147483648
    %v3428 = vmul.f32 %v3427, 1.442695
    %v3429 = vpow.pop %v3428
    %v3430 = vadd.f32 %v3429, 1.0
    %v3431 = vrcp.pop %v3430
    %v3432 = vmul.f32 1.0, %v3431
    %v3433 = vtanh.pop %v3426
    %v3434 = vmul.f32 %v3432, %v3334
    %3436 = vrot.lane.b32.xlu0 %v3433, 32
    %v3437 = vpop.permute.xlu0 %3436
    %v3439 = vmul.f32 %v3432, %v3437
    %3441 = vrot.lane.b32.xlu0 %v3439, 32
    %v3442 = vpop.permute.xlu0 %3441
    %v3444 = vadd.f32 %v3434, %v3442
    %v3445 = vtanh.pop %v3444
    %3447 = vrot.lane.b32.xlu0 %v3445, 32
    %v3448 = vpop.permute.xlu0 %3447
    %v3450 = vmul.f32 %v3432, %v3448
    %v3451 = vrot.slane %v2893, 1
    %v3452 = vrot.slane %v2957, 1
    %v3453 = vpack.c.bf16 %v3450, %v3450
    %3455 = vrot.lane.b32.xlu0 %v3453, 64
    %v3456 = vpop.permute.xlu0 %3455
    %v3458 = vsel %vm443, %v3456, 0
    %3460 = vmatprep.subr.bf16.mxu0 %v3006
    %3461 = vmatpush1.bf16.msra.mxu0 %v3005
    %3462 = vmatprep.subr.bf16.mxu0 %v3008
    %3463 = vmatpush1.bf16.msra.mxu0 %v3007
    %3464 = vmatprep.subr.bf16.mxu0 0
    %3465 = vmatpush1.bf16.msra.mxu0 0
    %3466 = vmatprep.subr.bf16.mxu0 0
    %3467 = vmatpush1.bf16.msra.mxu0 0
    %3468 = vmatprep.subr.bf16.mxu0 0
    %3469 = vmatpush1.bf16.msra.mxu0 0
    %3470 = vmatprep.subr.bf16.mxu0 0
    %3471 = vmatpush1.bf16.msra.mxu0 0
    %3472 = vmatprep.subr.bf16.mxu0 0
    %3473 = vmatpush1.bf16.msra.mxu0 0
    %3474 = vmatprep.subr.bf16.mxu0 0
    %3475 = vmatpush1.bf16.msra.mxu0 0
    %3476 = vmatprep.subr.bf16.mxu0 0
    %3477 = vmatpush1.bf16.msra.mxu0 0
    %3478 = vmatprep.subr.bf16.mxu0 0
    %3479 = vmatpush1.bf16.msra.mxu0 0
    %3480 = vmatprep.subr.bf16.mxu0 0
    %3481 = vmatpush1.bf16.msra.mxu0 0
    %3482 = vmatprep.subr.bf16.mxu0 0
    %3483 = vmatpush1.bf16.msra.mxu0 0
    %3484 = vmatprep.subr.bf16.mxu0 0
    %3485 = vmatpush1.bf16.msra.mxu0 0
    %3486 = vmatprep.subr.bf16.mxu0 0
    %3487 = vmatpush1.bf16.msra.mxu0 0
    %3488 = vmatprep.subr.bf16.mxu0 0
    %3489 = vmatpush1.bf16.msra.mxu0 0
    %3490 = vmatprep.subr.bf16.mxu0 0
    %3491 = vmatpush1.bf16.msra.mxu0 0
    %3492 = vmatprep.mubr.bf16.mxu0 0
    %3493 = vmatmul.mubr.bf16.gmra.mrb[0].mxu0 %v3458
    %v3494 = vpop.f32.mrb[0].mxu0
    %v3495 = vadd.f32 0.0, %v3494
    %v3496 = vpop.f32.mrb[0].mxu0
    %v3497 = vadd.f32 0.0, %v3496
    %v3498 = vpop.f32.mrb[0].mxu0
    %v3499 = vpop.f32.mrb[0].mxu0
    %3500 = vdwg.mxu0
    %v3501 = vcombine.low %v2893, %v2957
    %v3503 = vunpack.c.l.s4 1966171168
    %v3504 = vunpack.c.0.s8 %v3503
    %v3505 = vlaneseq
    %v3506 = vshrl.u32 %v3505, 7
    %v3507 = vsub.s32 %v3504, %v3506
    %v3508 = vrot.slane %v3501, %v3507
    %v3510 = vunpack.c.l.s4 1966171168
    %v3511 = vunpack.c.0.s8 %v3510
    %v3512 = vlaneseq
    %v3513 = vshrl.u32 %v3512, 7
    %v3514 = vsub.s32 %v3511, %v3513
    %v3515 = vrot.slane %v3508, %v3514
    %v3517 = vadd.f32 %v3495, %v3515
    %v3518 = vcombine.low %v3451, %v3452
    %v3520 = vunpack.c.l.s4 1966171168
    %v3521 = vunpack.c.0.s8 %v3520
    %v3522 = vlaneseq
    %v3523 = vshrl.u32 %v3522, 7
    %v3524 = vsub.s32 %v3521, %v3523
    %v3525 = vrot.slane %v3518, %v3524
    %v3526 = vcombine.low %v3525, %v3525
    %v3528 = vunpack.c.l.s4 1966171168
    %v3529 = vunpack.c.0.s8 %v3528
    %v3530 = vlaneseq
    %v3531 = vshrl.u32 %v3530, 7
    %v3532 = vsub.s32 %v3529, %v3531
    %v3533 = vrot.slane %v3526, %v3532
    %v3535 = vadd.f32 %v3497, %v3533
    %v3536 = vsel %vm820, %v3517, %v3535
    %v3537 = vxor.u32 %v3536, 2147483648
    %v3538 = vmul.f32 %v3537, 1.442695
    %v3539 = vpow.pop %v3538
    %v3540 = vadd.f32 %v3539, 1.0
    %v3541 = vrcp.pop %v3540
    %v3542 = vmul.f32 1.0, %v3541
    %v3543 = vtanh.pop %v3536
    %v3544 = vmul.f32 %v3542, %v3444
    %3546 = vrot.lane.b32.xlu0 %v3543, 32
    %v3547 = vpop.permute.xlu0 %3546
    %v3549 = vmul.f32 %v3542, %v3547
    %3551 = vrot.lane.b32.xlu0 %v3549, 32
    %v3552 = vpop.permute.xlu0 %3551
    %v3554 = vadd.f32 %v3544, %v3552
    %v3555 = vtanh.pop %v3554
    %3557 = vrot.lane.b32.xlu0 %v3555, 32
    %v3558 = vpop.permute.xlu0 %3557
    %v3560 = vmul.f32 %v3542, %v3558
    %v3561 = vrot.slane %v2910, 1
    %v3562 = vrot.slane %v2943, 1
    %v3563 = vpack.c.bf16 %v3560, %v3560
    %3565 = vrot.lane.b32.xlu0 %v3563, 64
    %v3566 = vpop.permute.xlu0 %3565
    %v3568 = vsel %vm443, %v3566, 0
    %3570 = vmatprep.subr.bf16.mxu0 %v3006
    %3571 = vmatpush1.bf16.msra.mxu0 %v3005
    %3572 = vmatprep.subr.bf16.mxu0 %v3008
    %3573 = vmatpush1.bf16.msra.mxu0 %v3007
    %3574 = vmatprep.subr.bf16.mxu0 0
    %3575 = vmatpush1.bf16.msra.mxu0 0
    %3576 = vmatprep.subr.bf16.mxu0 0
    %3577 = vmatpush1.bf16.msra.mxu0 0
    %3578 = vmatprep.subr.bf16.mxu0 0
    %3579 = vmatpush1.bf16.msra.mxu0 0
    %3580 = vmatprep.subr.bf16.mxu0 0
    %3581 = vmatpush1.bf16.msra.mxu0 0
    %3582 = vmatprep.subr.bf16.mxu0 0
    %3583 = vmatpush1.bf16.msra.mxu0 0
    %3584 = vmatprep.subr.bf16.mxu0 0
    %3585 = vmatpush1.bf16.msra.mxu0 0
    %3586 = vmatprep.subr.bf16.mxu0 0
    %3587 = vmatpush1.bf16.msra.mxu0 0
    %3588 = vmatprep.subr.bf16.mxu0 0
    %3589 = vmatpush1.bf16.msra.mxu0 0
    %3590 = vmatprep.subr.bf16.mxu0 0
    %3591 = vmatpush1.bf16.msra.mxu0 0
    %3592 = vmatprep.subr.bf16.mxu0 0
    %3593 = vmatpush1.bf16.msra.mxu0 0
    %3594 = vmatprep.subr.bf16.mxu0 0
    %3595 = vmatpush1.bf16.msra.mxu0 0
    %3596 = vmatprep.subr.bf16.mxu0 0
    %3597 = vmatpush1.bf16.msra.mxu0 0
    %3598 = vmatprep.subr.bf16.mxu0 0
    %3599 = vmatpush1.bf16.msra.mxu0 0
    %3600 = vmatprep.subr.bf16.mxu0 0
    %3601 = vmatpush1.bf16.msra.mxu0 0
    %3602 = vmatprep.mubr.bf16.mxu0 0
    %3603 = vmatmul.mubr.bf16.gmra.mrb[0].mxu0 %v3568
    %v3604 = vpop.f32.mrb[0].mxu0
    %v3605 = vadd.f32 0.0, %v3604
    %v3606 = vpop.f32.mrb[0].mxu0
    %v3607 = vadd.f32 0.0, %v3606
    %v3608 = vpop.f32.mrb[0].mxu0
    %v3609 = vpop.f32.mrb[0].mxu0
    %3610 = vdwg.mxu0
    %v3611 = vcombine.low %v2907, %v2959
    %v3613 = vunpack.c.l.s4 1966171168
    %v3614 = vunpack.c.0.s8 %v3613
    %v3615 = vlaneseq
    %v3616 = vshrl.u32 %v3615, 7
    %v3617 = vsub.s32 %v3614, %v3616
    %v3618 = vrot.slane %v3611, %v3617
    %v3620 = vunpack.c.l.s4 1966171168
    %v3621 = vunpack.c.0.s8 %v3620
    %v3622 = vlaneseq
    %v3623 = vshrl.u32 %v3622, 7
    %v3624 = vsub.s32 %v3621, %v3623
    %v3625 = vrot.slane %v3618, %v3624
    %v3627 = vadd.f32 %v3605, %v3625
    %v3628 = vcombine.low %v3561, %v3562
    %v3630 = vunpack.c.l.s4 1966171168
    %v3631 = vunpack.c.0.s8 %v3630
    %v3632 = vlaneseq
    %v3633 = vshrl.u32 %v3632, 7
    %v3634 = vsub.s32 %v3631, %v3633
    %v3635 = vrot.slane %v3628, %v3634
    %v3636 = vcombine.low %v3635, %v3635
    %v3638 = vunpack.c.l.s4 1966171168
    %v3639 = vunpack.c.0.s8 %v3638
    %v3640 = vlaneseq
    %v3641 = vshrl.u32 %v3640, 7
    %v3642 = vsub.s32 %v3639, %v3641
    %v3643 = vrot.slane %v3636, %v3642
    %v3645 = vadd.f32 %v3607, %v3643
    %v3646 = vsel %vm820, %v3627, %v3645
    %v3647 = vxor.u32 %v3646, 2147483648
    %v3648 = vmul.f32 %v3647, 1.442695
    %v3649 = vpow.pop %v3648
    %v3650 = vadd.f32 %v3649, 1.0
    %v3651 = vrcp.pop %v3650
    %v3652 = vmul.f32 1.0, %v3651
    %v3653 = vtanh.pop %v3646
    %v3654 = vmul.f32 %v3652, %v3554
    %3656 = vrot.lane.b32.xlu0 %v3653, 32
    %v3657 = vpop.permute.xlu0 %3656
    %v3659 = vmul.f32 %v3652, %v3657
    %3661 = vrot.lane.b32.xlu0 %v3659, 32
    %v3662 = vpop.permute.xlu0 %3661
    %v3664 = vadd.f32 %v3654, %v3662
    %v3665 = vtanh.pop %v3664
    %3667 = vrot.lane.b32.xlu0 %v3665, 32
    %v3668 = vpop.permute.xlu0 %3667
    %v3670 = vmul.f32 %v3652, %v3668
    %v3671 = vrot.slane %v2908, 1
    %v3672 = vrot.slane %v2960, 1
    %v3673 = vpack.c.bf16 %v3670, %v3670
    %3675 = vrot.lane.b32.xlu0 %v3673, 64
    %v3676 = vpop.permute.xlu0 %3675
    %v3678 = vsel %vm443, %v3676, 0
    %3680 = vmatprep.subr.bf16.mxu0 %v3006
    %3681 = vmatpush1.bf16.msra.mxu0 %v3005
    %3682 = vmatprep.subr.bf16.mxu0 %v3008
    %3683 = vmatpush1.bf16.msra.mxu0 %v3007
    %3684 = vmatprep.subr.bf16.mxu0 0
    %3685 = vmatpush1.bf16.msra.mxu0 0
    %3686 = vmatprep.subr.bf16.mxu0 0
    %3687 = vmatpush1.bf16.msra.mxu0 0
    %3688 = vmatprep.subr.bf16.mxu0 0
    %3689 = vmatpush1.bf16.msra.mxu0 0
    %3690 = vmatprep.subr.bf16.mxu0 0
    %3691 = vmatpush1.bf16.msra.mxu0 0
    %3692 = vmatprep.subr.bf16.mxu0 0
    %3693 = vmatpush1.bf16.msra.mxu0 0
    %3694 = vmatprep.subr.bf16.mxu0 0
    %3695 = vmatpush1.bf16.msra.mxu0 0
    %3696 = vmatprep.subr.bf16.mxu0 0
    %3697 = vmatpush1.bf16.msra.mxu0 0
    %3698 = vmatprep.subr.bf16.mxu0 0
    %3699 = vmatpush1.bf16.msra.mxu0 0
    %3700 = vmatprep.subr.bf16.mxu0 0
    %3701 = vmatpush1.bf16.msra.mxu0 0
    %3702 = vmatprep.subr.bf16.mxu0 0
    %3703 = vmatpush1.bf16.msra.mxu0 0
    %3704 = vmatprep.subr.bf16.mxu0 0
    %3705 = vmatpush1.bf16.msra.mxu0 0
    %3706 = vmatprep.subr.bf16.mxu0 0
    %3707 = vmatpush1.bf16.msra.mxu0 0
    %3708 = vmatprep.subr.bf16.mxu0 0
    %3709 = vmatpush1.bf16.msra.mxu0 0
    %3710 = vmatprep.subr.bf16.mxu0 0
    %3711 = vmatpush1.bf16.msra.mxu0 0
    %3712 = vmatprep.mubr.bf16.mxu0 0
    %3713 = vmatmul.mubr.bf16.gmra.mrb[0].mxu0 %v3678
    %v3714 = vpop.f32.mrb[0].mxu0
    %v3715 = vadd.f32 0.0, %v3714
    %v3716 = vpop.f32.mrb[0].mxu0
    %v3717 = vadd.f32 0.0, %v3716
    %v3718 = vpop.f32.mrb[0].mxu0
    %v3719 = vpop.f32.mrb[0].mxu0
    %3720 = vdwg.mxu0
    %v3721 = vcombine.low %v2909, %v2961
    %v3723 = vunpack.c.l.s4 1966171168
    %v3724 = vunpack.c.0.s8 %v3723
    %v3725 = vlaneseq
    %v3726 = vshrl.u32 %v3725, 7
    %v3727 = vsub.s32 %v3724, %v3726
    %v3728 = vrot.slane %v3721, %v3727
    %v3730 = vunpack.c.l.s4 1966171168
    %v3731 = vunpack.c.0.s8 %v3730
    %v3732 = vlaneseq
    %v3733 = vshrl.u32 %v3732, 7
    %v3734 = vsub.s32 %v3731, %v3733
    %v3735 = vrot.slane %v3728, %v3734
    %v3737 = vadd.f32 %v3715, %v3735
    %v3738 = vcombine.low %v3671, %v3672
    %v3740 = vunpack.c.l.s4 1966171168
    %v3741 = vunpack.c.0.s8 %v3740
    %v3742 = vlaneseq
    %v3743 = vshrl.u32 %v3742, 7
    %v3744 = vsub.s32 %v3741, %v3743
    %v3745 = vrot.slane %v3738, %v3744
    %v3746 = vcombine.low %v3745, %v3745
    %v3748 = vunpack.c.l.s4 1966171168
    %v3749 = vunpack.c.0.s8 %v3748
    %v3750 = vlaneseq
    %v3751 = vshrl.u32 %v3750, 7
    %v3752 = vsub.s32 %v3749, %v3751
    %v3753 = vrot.slane %v3746, %v3752
    %v3755 = vadd.f32 %v3717, %v3753
    %v3756 = vsel %vm820, %v3737, %v3755
    %v3757 = vxor.u32 %v3756, 2147483648
    %v3758 = vmul.f32 %v3757, 1.442695
    %v3759 = vpow.pop %v3758
    %v3760 = vadd.f32 %v3759, 1.0
    %v3761 = vrcp.pop %v3760
    %v3762 = vmul.f32 1.0, %v3761
    %v3763 = vtanh.pop %v3756
    %v3764 = vmul.f32 %v3762, %v3664
    %3766 = vrot.lane.b32.xlu0 %v3763, 32
    %v3767 = vpop.permute.xlu0 %3766
    %v3769 = vmul.f32 %v3762, %v3767
    %3771 = vrot.lane.b32.xlu0 %v3769, 32
    %v3772 = vpop.permute.xlu0 %3771
    %v3774 = vadd.f32 %v3764, %v3772
    %v3775 = vtanh.pop %v3774
    %3777 = vrot.lane.b32.xlu0 %v3775, 32
    %v3778 = vpop.permute.xlu0 %3777
    %v3780 = vmul.f32 %v3762, %v3778
    %v3781 = vrot.slane %v2900, 1
    %v3782 = vrot.slane %v2958, 1
    %v3783 = vpack.c.bf16 %v3780, %v3780
    %3785 = vrot.lane.b32.xlu0 %v3783, 64
    %v3786 = vpop.permute.xlu0 %3785
    %v3788 = vsel %vm443, %v3786, 0
    %3790 = vmatprep.subr.bf16.mxu0 %v3006
    %3791 = vmatpush1.bf16.msra.mxu0 %v3005
    %3792 = vmatprep.subr.bf16.mxu0 %v3008
    %3793 = vmatpush1.bf16.msra.mxu0 %v3007
    %3794 = vmatprep.subr.bf16.mxu0 0
    %3795 = vmatpush1.bf16.msra.mxu0 0
    %3796 = vmatprep.subr.bf16.mxu0 0
    %3797 = vmatpush1.bf16.msra.mxu0 0
    %3798 = vmatprep.subr.bf16.mxu0 0
    %3799 = vmatpush1.bf16.msra.mxu0 0
    %3800 = vmatprep.subr.bf16.mxu0 0
    %3801 = vmatpush1.bf16.msra.mxu0 0
    %3802 = vmatprep.subr.bf16.mxu0 0
    %3803 = vmatpush1.bf16.msra.mxu0 0
    %3804 = vmatprep.subr.bf16.mxu0 0
    %3805 = vmatpush1.bf16.msra.mxu0 0
    %3806 = vmatprep.subr.bf16.mxu0 0
    %3807 = vmatpush1.bf16.msra.mxu0 0
    %3808 = vmatprep.subr.bf16.mxu0 0
    %3809 = vmatpush1.bf16.msra.mxu0 0
    %3810 = vmatprep.subr.bf16.mxu0 0
    %3811 = vmatpush1.bf16.msra.mxu0 0
    %3812 = vmatprep.subr.bf16.mxu0 0
    %3813 = vmatpush1.bf16.msra.mxu0 0
    %3814 = vmatprep.subr.bf16.mxu0 0
    %3815 = vmatpush1.bf16.msra.mxu0 0
    %3816 = vmatprep.subr.bf16.mxu0 0
    %3817 = vmatpush1.bf16.msra.mxu0 0
    %3818 = vmatprep.subr.bf16.mxu0 0
    %3819 = vmatpush1.bf16.msra.mxu0 0
    %3820 = vmatprep.subr.bf16.mxu0 0
    %3821 = vmatpush1.bf16.msra.mxu0 0
    %3822 = vmatprep.mubr.bf16.mxu0 0
    %3823 = vmatmul.mubr.bf16.gmra.mrb[0].mxu0 %v3788
    %v3824 = vpop.f32.mrb[0].mxu0
    %v3825 = vadd.f32 0.0, %v3824
    %v3826 = vpop.f32.mrb[0].mxu0
    %v3827 = vadd.f32 0.0, %v3826
    %v3828 = vpop.f32.mrb[0].mxu0
    %v3829 = vpop.f32.mrb[0].mxu0
    %3830 = vdwg.mxu0
    %v3831 = vcombine.low %v2911, %v2977
    %v3833 = vunpack.c.l.s4 1966171168
    %v3834 = vunpack.c.0.s8 %v3833
    %v3835 = vlaneseq
    %v3836 = vshrl.u32 %v3835, 7
    %v3837 = vsub.s32 %v3834, %v3836
    %v3838 = vrot.slane %v3831, %v3837
    %v3840 = vunpack.c.l.s4 1966171168
    %v3841 = vunpack.c.0.s8 %v3840
    %v3842 = vlaneseq
    %v3843 = vshrl.u32 %v3842, 7
    %v3844 = vsub.s32 %v3841, %v3843
    %v3845 = vrot.slane %v3838, %v3844
    %v3847 = vadd.f32 %v3825, %v3845
    %v3848 = vcombine.low %v3781, %v3782
    %v3850 = vunpack.c.l.s4 1966171168
    %v3851 = vunpack.c.0.s8 %v3850
    %v3852 = vlaneseq
    %v3853 = vshrl.u32 %v3852, 7
    %v3854 = vsub.s32 %v3851, %v3853
    %v3855 = vrot.slane %v3848, %v3854
    %v3856 = vcombine.low %v3855, %v3855
    %v3858 = vunpack.c.l.s4 1966171168
    %v3859 = vunpack.c.0.s8 %v3858
    %v3860 = vlaneseq
    %v3861 = vshrl.u32 %v3860, 7
    %v3862 = vsub.s32 %v3859, %v3861
    %v3863 = vrot.slane %v3856, %v3862
    %v3865 = vadd.f32 %v3827, %v3863
    %v3866 = vsel %vm820, %v3847, %v3865
    %v3867 = vxor.u32 %v3866, 2147483648
    %v3868 = vmul.f32 %v3867, 1.442695
    %v3869 = vpow.pop %v3868
    %v3870 = vadd.f32 %v3869, 1.0
    %v3871 = vrcp.pop %v3870
    %v3872 = vmul.f32 1.0, %v3871
    %v3873 = vtanh.pop %v3866
    %v3874 = vmul.f32 %v3872, %v3774
    %3876 = vrot.lane.b32.xlu0 %v3873, 32
    %v3877 = vpop.permute.xlu0 %3876
    %v3879 = vmul.f32 %v3872, %v3877
    %3881 = vrot.lane.b32.xlu0 %v3879, 32
    %v3882 = vpop.permute.xlu0 %3881
    %v3884 = vadd.f32 %v3874, %v3882
    %v3885 = vtanh.pop %v3884
    %3887 = vrot.lane.b32.xlu0 %v3885, 32
    %v3888 = vpop.permute.xlu0 %3887
    %v3890 = vmul.f32 %v3872, %v3888
    %v3891 = vrot.slane %v2886, 1
    %v3892 = vrot.slane %v2950, 1
    %v3893 = vpack.c.bf16 %v3890, %v3890
    %3895 = vrot.lane.b32.xlu0 %v3893, 64
    %v3896 = vpop.permute.xlu0 %3895
    %v3898 = vsel %vm443, %v3896, 0
    %3900 = vmatprep.subr.bf16.mxu0 %v3006
    %3901 = vmatpush1.bf16.msra.mxu0 %v3005
    %3902 = vmatprep.subr.bf16.mxu0 %v3008
    %3903 = vmatpush1.bf16.msra.mxu0 %v3007
    %3904 = vmatprep.subr.bf16.mxu0 0
    %3905 = vmatpush1.bf16.msra.mxu0 0
    %3906 = vmatprep.subr.bf16.mxu0 0
    %3907 = vmatpush1.bf16.msra.mxu0 0
    %3908 = vmatprep.subr.bf16.mxu0 0
    %3909 = vmatpush1.bf16.msra.mxu0 0
    %3910 = vmatprep.subr.bf16.mxu0 0
    %3911 = vmatpush1.bf16.msra.mxu0 0
    %3912 = vmatprep.subr.bf16.mxu0 0
    %3913 = vmatpush1.bf16.msra.mxu0 0
    %3914 = vmatprep.subr.bf16.mxu0 0
    %3915 = vmatpush1.bf16.msra.mxu0 0
    %3916 = vmatprep.subr.bf16.mxu0 0
    %3917 = vmatpush1.bf16.msra.mxu0 0
    %3918 = vmatprep.subr.bf16.mxu0 0
    %3919 = vmatpush1.bf16.msra.mxu0 0
    %3920 = vmatprep.subr.bf16.mxu0 0
    %3921 = vmatpush1.bf16.msra.mxu0 0
    %3922 = vmatprep.subr.bf16.mxu0 0
    %3923 = vmatpush1.bf16.msra.mxu0 0
    %3924 = vmatprep.subr.bf16.mxu0 0
    %3925 = vmatpush1.bf16.msra.mxu0 0
    %3926 = vmatprep.subr.bf16.mxu0 0
    %3927 = vmatpush1.bf16.msra.mxu0 0
    %3928 = vmatprep.subr.bf16.mxu0 0
    %3929 = vmatpush1.bf16.msra.mxu0 0
    %3930 = vmatprep.subr.bf16.mxu0 0
    %3931 = vmatpush1.bf16.msra.mxu0 0
    %3932 = vmatprep.mubr.bf16.mxu0 0
    %3933 = vmatmul.mubr.bf16.gmra.mrb[0].mxu0 %v3898
    %v3934 = vpop.f32.mrb[0].mxu0
    %v3935 = vadd.f32 0.0, %v3934
    %v3936 = vpop.f32.mrb[0].mxu0
    %v3937 = vadd.f32 0.0, %v3936
    %v3938 = vpop.f32.mrb[0].mxu0
    %v3939 = vpop.f32.mrb[0].mxu0
    %3940 = vdwg.mxu0
    %v3941 = vcombine.low %v2936, %v2984
    %v3943 = vunpack.c.l.s4 1966171168
    %v3944 = vunpack.c.0.s8 %v3943
    %v3945 = vlaneseq
    %v3946 = vshrl.u32 %v3945, 7
    %v3947 = vsub.s32 %v3944, %v3946
    %v3948 = vrot.slane %v3941, %v3947
    %v3950 = vunpack.c.l.s4 1966171168
    %v3951 = vunpack.c.0.s8 %v3950
    %v3952 = vlaneseq
    %v3953 = vshrl.u32 %v3952, 7
    %v3954 = vsub.s32 %v3951, %v3953
    %v3955 = vrot.slane %v3948, %v3954
    %v3957 = vadd.f32 %v3935, %v3955
    %v3958 = vcombine.low %v3891, %v3892
    %v3960 = vunpack.c.l.s4 1966171168
    %v3961 = vunpack.c.0.s8 %v3960
    %v3962 = vlaneseq
    %v3963 = vshrl.u32 %v3962, 7
    %v3964 = vsub.s32 %v3961, %v3963
    %v3965 = vrot.slane %v3958, %v3964
    %v3966 = vcombine.low %v3965, %v3965
    %v3968 = vunpack.c.l.s4 1966171168
    %v3969 = vunpack.c.0.s8 %v3968
    %v3970 = vlaneseq
    %v3971 = vshrl.u32 %v3970, 7
    %v3972 = vsub.s32 %v3969, %v3971
    %v3973 = vrot.slane %v3966, %v3972
    %v3975 = vadd.f32 %v3937, %v3973
    %v3976 = vsel %vm820, %v3957, %v3975
    %v3977 = vxor.u32 %v3976, 2147483648
    %v3978 = vmul.f32 %v3977, 1.442695
    %v3979 = vpow.pop %v3978
    %v3980 = vadd.f32 %v3979, 1.0
    %v3981 = vrcp.pop %v3980
    %v3982 = vmul.f32 1.0, %v3981
    %v3983 = vtanh.pop %v3976
    %v3984 = vmul.f32 %v3982, %v3884
    %3986 = vrot.lane.b32.xlu0 %v3983, 32
    %v3987 = vpop.permute.xlu0 %3986
    %v3989 = vmul.f32 %v3982, %v3987
    %3991 = vrot.lane.b32.xlu0 %v3989, 32
    %v3992 = vpop.permute.xlu0 %3991
    %v3994 = vadd.f32 %v3984, %v3992
    %v3995 = vtanh.pop %v3994
    %3997 = vrot.lane.b32.xlu0 %v3995, 32
    %v3998 = vpop.permute.xlu0 %3997
    %v4000 = vmul.f32 %v3982, %v3998
    %v4003 = vunpack.c.l.s4 1966171168
    %v4004 = vunpack.c.0.s8 %v4003
    %v4005 = vlaneseq
    %v4006 = vshrl.u32 %v4005, 7
    %v4007 = vsub.s32 %v4004, %v4006
    %v4008 = vrot.slane %v3120, %v4007
    %v4009 = vcombine.high %v4008, %v4008
    %v4011 = vunpack.c.l.s4 1966171168
    %v4012 = vunpack.c.0.s8 %v4011
    %v4013 = vlaneseq
    %v4014 = vshrl.u32 %v4013, 7
    %v4015 = vsub.s32 %v4012, %v4014
    %v4016 = vrot.slane %v4008, %v4015
    %v4018 = vunpack.c.l.s4 1966171168
    %v4019 = vunpack.c.0.s8 %v4018
    %v4020 = vlaneseq
    %v4021 = vshrl.u32 %v4020, 7
    %v4022 = vsub.s32 %v4019, %v4021
    %v4023 = vrot.slane %v4009, %v4022
    %v4028 = vunpack.c.l.s4 1966171168
    %v4029 = vunpack.c.0.s8 %v4028
    %v4030 = vlaneseq
    %v4031 = vshrl.u32 %v4030, 7
    %v4032 = vsub.s32 %v4029, %v4031
    %v4033 = vrot.slane %v3230, %v4032
    %v4034 = vcombine.high %v4033, %v4033
    %v4036 = vunpack.c.l.s4 1966171168
    %v4037 = vunpack.c.0.s8 %v4036
    %v4038 = vlaneseq
    %v4039 = vshrl.u32 %v4038, 7
    %v4040 = vsub.s32 %v4037, %v4039
    %v4041 = vrot.slane %v4033, %v4040
    %v4043 = vunpack.c.l.s4 1966171168
    %v4044 = vunpack.c.0.s8 %v4043
    %v4045 = vlaneseq
    %v4046 = vshrl.u32 %v4045, 7
    %v4047 = vsub.s32 %v4044, %v4046
    %v4048 = vrot.slane %v4034, %v4047
    %v4051 = vunpack.c.l.s4 1966171168
    %v4052 = vunpack.c.0.s8 %v4051
    %v4053 = vlaneseq
    %v4054 = vshrl.u32 %v4053, 7
    %v4055 = vsub.s32 %v4052, %v4054
    %v4056 = vrot.slane %v3340, %v4055
    %v4057 = vcombine.high %v4056, %v4056
    %v4059 = vunpack.c.l.s4 1966171168
    %v4060 = vunpack.c.0.s8 %v4059
    %v4061 = vlaneseq
    %v4062 = vshrl.u32 %v4061, 7
    %v4063 = vsub.s32 %v4060, %v4062
    %v4064 = vrot.slane %v4056, %v4063
    %v4066 = vunpack.c.l.s4 1966171168
    %v4067 = vunpack.c.0.s8 %v4066
    %v4068 = vlaneseq
    %v4069 = vshrl.u32 %v4068, 7
    %v4070 = vsub.s32 %v4067, %v4069
    %v4071 = vrot.slane %v4057, %v4070
    %v4074 = vunpack.c.l.s4 1966171168
    %v4075 = vunpack.c.0.s8 %v4074
    %v4076 = vlaneseq
    %v4077 = vshrl.u32 %v4076, 7
    %v4078 = vsub.s32 %v4075, %v4077
    %v4079 = vrot.slane %v3450, %v4078
    %v4080 = vcombine.high %v4079, %v4079
    %v4082 = vunpack.c.l.s4 1966171168
    %v4083 = vunpack.c.0.s8 %v4082
    %v4084 = vlaneseq
    %v4085 = vshrl.u32 %v4084, 7
    %v4086 = vsub.s32 %v4083, %v4085
    %v4087 = vrot.slane %v4079, %v4086
    %v4089 = vunpack.c.l.s4 1966171168
    %v4090 = vunpack.c.0.s8 %v4089
    %v4091 = vlaneseq
    %v4092 = vshrl.u32 %v4091, 7
    %v4093 = vsub.s32 %v4090, %v4092
    %v4094 = vrot.slane %v4080, %v4093
    %v4097 = vunpack.c.l.s4 1966171168
    %v4098 = vunpack.c.0.s8 %v4097
    %v4099 = vlaneseq
    %v4100 = vshrl.u32 %v4099, 7
    %v4101 = vsub.s32 %v4098, %v4100
    %v4102 = vrot.slane %v3560, %v4101
    %v4103 = vcombine.high %v4102, %v4102
    %v4105 = vunpack.c.l.s4 1966171168
    %v4106 = vunpack.c.0.s8 %v4105
    %v4107 = vlaneseq
    %v4108 = vshrl.u32 %v4107, 7
    %v4109 = vsub.s32 %v4106, %v4108
    %v4110 = vrot.slane %v4102, %v4109
    %v4112 = vunpack.c.l.s4 1966171168
    %v4113 = vunpack.c.0.s8 %v4112
    %v4114 = vlaneseq
    %v4115 = vshrl.u32 %v4114, 7
    %v4116 = vsub.s32 %v4113, %v4115
    %v4117 = vrot.slane %v4103, %v4116
    %v4120 = vunpack.c.l.s4 1966171168
    %v4121 = vunpack.c.0.s8 %v4120
    %v4122 = vlaneseq
    %v4123 = vshrl.u32 %v4122, 7
    %v4124 = vsub.s32 %v4121, %v4123
    %v4125 = vrot.slane %v3670, %v4124
    %v4126 = vcombine.high %v4125, %v4125
    %v4128 = vunpack.c.l.s4 1966171168
    %v4129 = vunpack.c.0.s8 %v4128
    %v4130 = vlaneseq
    %v4131 = vshrl.u32 %v4130, 7
    %v4132 = vsub.s32 %v4129, %v4131
    %v4133 = vrot.slane %v4125, %v4132
    %v4135 = vunpack.c.l.s4 1966171168
    %v4136 = vunpack.c.0.s8 %v4135
    %v4137 = vlaneseq
    %v4138 = vshrl.u32 %v4137, 7
    %v4139 = vsub.s32 %v4136, %v4138
    %v4140 = vrot.slane %v4126, %v4139
    %v4143 = vunpack.c.l.s4 1966171168
    %v4144 = vunpack.c.0.s8 %v4143
    %v4145 = vlaneseq
    %v4146 = vshrl.u32 %v4145, 7
    %v4147 = vsub.s32 %v4144, %v4146
    %v4148 = vrot.slane %v3780, %v4147
    %v4149 = vcombine.high %v4148, %v4148
    %v4151 = vunpack.c.l.s4 1966171168
    %v4152 = vunpack.c.0.s8 %v4151
    %v4153 = vlaneseq
    %v4154 = vshrl.u32 %v4153, 7
    %v4155 = vsub.s32 %v4152, %v4154
    %v4156 = vrot.slane %v4148, %v4155
    %v4158 = vunpack.c.l.s4 1966171168
    %v4159 = vunpack.c.0.s8 %v4158
    %v4160 = vlaneseq
    %v4161 = vshrl.u32 %v4160, 7
    %v4162 = vsub.s32 %v4159, %v4161
    %v4163 = vrot.slane %v4149, %v4162
    %v4166 = vunpack.c.l.s4 1966171168
    %v4167 = vunpack.c.0.s8 %v4166
    %v4168 = vlaneseq
    %v4169 = vshrl.u32 %v4168, 7
    %v4170 = vsub.s32 %v4167, %v4169
    %v4171 = vrot.slane %v3890, %v4170
    %v4172 = vcombine.high %v4171, %v4171
    %v4174 = vunpack.c.l.s4 1966171168
    %v4175 = vunpack.c.0.s8 %v4174
    %v4176 = vlaneseq
    %v4177 = vshrl.u32 %v4176, 7
    %v4178 = vsub.s32 %v4175, %v4177
    %v4179 = vrot.slane %v4171, %v4178
    %v4181 = vunpack.c.l.s4 1966171168
    %v4182 = vunpack.c.0.s8 %v4181
    %v4183 = vlaneseq
    %v4184 = vshrl.u32 %v4183, 7
    %v4185 = vsub.s32 %v4182, %v4184
    %v4186 = vrot.slane %v4172, %v4185
    %v4189 = vunpack.c.l.s4 1966171168
    %v4190 = vunpack.c.0.s8 %v4189
    %v4191 = vlaneseq
    %v4192 = vshrl.u32 %v4191, 7
    %v4193 = vsub.s32 %v4190, %v4192
    %v4194 = vrot.slane %v4000, %v4193
    %v4195 = vcombine.high %v4194, %v4194
    %v4197 = vunpack.c.l.s4 1966171168
    %v4198 = vunpack.c.0.s8 %v4197
    %v4199 = vlaneseq
    %v4200 = vshrl.u32 %v4199, 7
    %v4201 = vsub.s32 %v4198, %v4200
    %v4202 = vrot.slane %v4194, %v4201
    %v4204 = vunpack.c.l.s4 1966171168
    %v4205 = vunpack.c.0.s8 %v4204
    %v4206 = vlaneseq
    %v4207 = vshrl.u32 %v4206, 7
    %v4208 = vsub.s32 %v4205, %v4207
    %v4209 = vrot.slane %v4195, %v4208
    %v4210 = vlaneseq
    %v4211 = vshrl.u32 %v4210, 7
    %v4212 = vsub.s32 0, %v4211
    %v4213 = vrot.slane %v4041, %v4212
    %v4214 = vlaneseq
    %v4215 = vshrl.u32 %v4214, 7
    %v4216 = vsub.s32 0, %v4215
    %v4217 = vrot.slane %v4048, %v4216
    %v4220 = vlaneseq
    %v4221 = vshrl.u32 %v4220, 7
    %v4222 = vsub.s32 0, %v4221
    %v4223 = vrot.slane %v4064, %v4222
    %v4224 = vlaneseq
    %v4225 = vshrl.u32 %v4224, 7
    %v4226 = vsub.s32 0, %v4225
    %v4227 = vrot.slane %v4071, %v4226
    %v4230 = vlaneseq
    %v4231 = vshrl.u32 %v4230, 7
    %v4232 = vsub.s32 0, %v4231
    %v4233 = vrot.slane %v4087, %v4232
    %v4234 = vlaneseq
    %v4235 = vshrl.u32 %v4234, 7
    %v4236 = vsub.s32 0, %v4235
    %v4237 = vrot.slane %v4094, %v4236
    %v4240 = vlaneseq
    %v4241 = vshrl.u32 %v4240, 7
    %v4242 = vsub.s32 0, %v4241
    %v4243 = vrot.slane %v4110, %v4242
    %v4244 = vlaneseq
    %v4245 = vshrl.u32 %v4244, 7
    %v4246 = vsub.s32 0, %v4245
    %v4247 = vrot.slane %v4117, %v4246
    %v4250 = vlaneseq
    %v4251 = vshrl.u32 %v4250, 7
    %v4252 = vsub.s32 0, %v4251
    %v4253 = vrot.slane %v4133, %v4252
    %v4254 = vlaneseq
    %v4255 = vshrl.u32 %v4254, 7
    %v4256 = vsub.s32 0, %v4255
    %v4257 = vrot.slane %v4140, %v4256
    %v4260 = vlaneseq
    %v4261 = vshrl.u32 %v4260, 7
    %v4262 = vsub.s32 0, %v4261
    %v4263 = vrot.slane %v4156, %v4262
    %v4264 = vlaneseq
    %v4265 = vshrl.u32 %v4264, 7
    %v4266 = vsub.s32 0, %v4265
    %v4267 = vrot.slane %v4163, %v4266
    %v4270 = vlaneseq
    %v4271 = vshrl.u32 %v4270, 7
    %v4272 = vsub.s32 0, %v4271
    %v4273 = vrot.slane %v4179, %v4272
    %v4274 = vlaneseq
    %v4275 = vshrl.u32 %v4274, 7
    %v4276 = vsub.s32 0, %v4275
    %v4277 = vrot.slane %v4186, %v4276
    %v4280 = vsel %vm2009, %v4016, %v4213
    %v4281 = vsel %vm2009, %v4023, %v4217
    %v4282 = vsel %vm820, %v4280, %v4223
    %v4283 = vsel %vm820, %v4281, %v4227
    %v4284 = vsel %vm2014, %v4282, %v4233
    %v4285 = vsel %vm2014, %v4283, %v4237
    %v4286 = vsel %vm318, %v4284, %v4243
    %v4287 = vsel %vm318, %v4285, %v4247
    %v4288 = vsel %vm2019, %v4286, %v4253
    %v4289 = vsel %vm2019, %v4287, %v4257
    %v4290 = vsel %vm2022, %v4288, %v4263
    %v4291 = vsel %vm2022, %v4289, %v4267
    %v4292 = vsel %vm2025, %v4290, %v4273
    %v4293 = vsel %vm2025, %v4291, %v4277
    %v4294 = vcombine.high %v4202, %v4202
    %v4295 = vcombine.high %v4209, %v4209
    %v4298 = vcombine.high %v4179, %v4179
    %v4299 = vcombine.high %v4186, %v4186
    %v4300 = vcombine.high %v4156, %v4156
    %v4301 = vcombine.high %v4163, %v4163
    %v4302 = vcombine.high %v4133, %v4133
    %v4303 = vcombine.high %v4140, %v4140
    %v4304 = vcombine.high %v4110, %v4110
    %v4305 = vcombine.high %v4117, %v4117
    %v4306 = vcombine.high %v4087, %v4087
    %v4307 = vcombine.high %v4094, %v4094
    %v4308 = vcombine.high %v4064, %v4064
    %v4309 = vcombine.high %v4071, %v4071
    %v4310 = vcombine.high %v4041, %v4041
    %v4311 = vcombine.high %v4048, %v4048
    %v4312 = vcombine.high %v4016, %v4016
    %v4313 = vcombine.high %v4023, %v4023
    %v4314 = vlaneseq
    %v4315 = vshrl.u32 %v4314, 7
    %v4316 = vsub.s32 0, %v4315
    %v4317 = vrot.slane %v4298, %v4316
    %v4318 = vlaneseq
    %v4319 = vshrl.u32 %v4318, 7
    %v4320 = vsub.s32 0, %v4319
    %v4321 = vrot.slane %v4299, %v4320
    %v4324 = vlaneseq
    %v4325 = vshrl.u32 %v4324, 7
    %v4326 = vsub.s32 0, %v4325
    %v4327 = vrot.slane %v4300, %v4326
    %v4328 = vlaneseq
    %v4329 = vshrl.u32 %v4328, 7
    %v4330 = vsub.s32 0, %v4329
    %v4331 = vrot.slane %v4301, %v4330
    %v4334 = vlaneseq
    %v4335 = vshrl.u32 %v4334, 7
    %v4336 = vsub.s32 0, %v4335
    %v4337 = vrot.slane %v4302, %v4336
    %v4338 = vlaneseq
    %v4339 = vshrl.u32 %v4338, 7
    %v4340 = vsub.s32 0, %v4339
    %v4341 = vrot.slane %v4303, %v4340
    %v4344 = vlaneseq
    %v4345 = vshrl.u32 %v4344, 7
    %v4346 = vsub.s32 0, %v4345
    %v4347 = vrot.slane %v4304, %v4346
    %v4348 = vlaneseq
    %v4349 = vshrl.u32 %v4348, 7
    %v4350 = vsub.s32 0, %v4349
    %v4351 = vrot.slane %v4305, %v4350
    %v4354 = vlaneseq
    %v4355 = vshrl.u32 %v4354, 7
    %v4356 = vsub.s32 0, %v4355
    %v4357 = vrot.slane %v4306, %v4356
    %v4358 = vlaneseq
    %v4359 = vshrl.u32 %v4358, 7
    %v4360 = vsub.s32 0, %v4359
    %v4361 = vrot.slane %v4307, %v4360
    %v4364 = vlaneseq
    %v4365 = vshrl.u32 %v4364, 7
    %v4366 = vsub.s32 0, %v4365
    %v4367 = vrot.slane %v4308, %v4366
    %v4368 = vlaneseq
    %v4369 = vshrl.u32 %v4368, 7
    %v4370 = vsub.s32 0, %v4369
    %v4371 = vrot.slane %v4309, %v4370
    %v4374 = vlaneseq
    %v4375 = vshrl.u32 %v4374, 7
    %v4376 = vsub.s32 0, %v4375
    %v4377 = vrot.slane %v4310, %v4376
    %v4378 = vlaneseq
    %v4379 = vshrl.u32 %v4378, 7
    %v4380 = vsub.s32 0, %v4379
    %v4381 = vrot.slane %v4311, %v4380
    %v4384 = vsel %vm2009, %v4294, %v4317
    %v4385 = vsel %vm2009, %v4295, %v4321
    %v4386 = vsel %vm820, %v4384, %v4327
    %v4387 = vsel %vm820, %v4385, %v4331
    %v4388 = vsel %vm2014, %v4386, %v4337
    %v4389 = vsel %vm2014, %v4387, %v4341
    %v4390 = vsel %vm318, %v4388, %v4347
    %v4391 = vsel %vm318, %v4389, %v4351
    %v4392 = vsel %vm2019, %v4390, %v4357
    %v4393 = vsel %vm2019, %v4391, %v4361
    %v4394 = vsel %vm2022, %v4392, %v4367
    %v4395 = vsel %vm2022, %v4393, %v4371
    %v4396 = vsel %vm2025, %v4394, %v4377
    %v4397 = vsel %vm2025, %v4395, %v4381
    %4400 = vrot.lane.b32.xlu0 %v4292, 64
    %v4401 = vpop.permute.xlu0 %4400
    %4402 = vrot.lane.b32.xlu0 %v4202, 64
    %v4403 = vpop.permute.xlu0 %4402
    %4404 = vrot.lane.b32.xlu0 %v4293, 64
    %v4405 = vpop.permute.xlu0 %4404
    %4406 = vrot.lane.b32.xlu0 %v4209, 64
    %v4407 = vpop.permute.xlu0 %4406
    %4414 = vrot.lane.b32.xlu0 %v4396, 96
    %v4415 = vpop.permute.xlu0 %4414
    %4416 = vrot.lane.b32.xlu0 %v4312, 96
    %v4417 = vpop.permute.xlu0 %4416
    %4418 = vrot.lane.b32.xlu0 %v4397, 96
    %v4419 = vpop.permute.xlu0 %4418
    %4420 = vrot.lane.b32.xlu0 %v4313, 96
    %v4421 = vpop.permute.xlu0 %4420
    %v4426 = vsel %vm443, %v4401, %v4415
    %v4427 = vsel %vm443, %v4403, %v4417
    %v4428 = vsel %vm443, %v4405, %v4419
    %v4429 = vsel %vm443, %v4407, %v4421
    %v4434 = vcombine.high %v4426, %v4426
    %v4436 = vunpack.c.l.s4 1966171168
    %v4437 = vunpack.c.0.s8 %v4436
    %v4438 = vlaneseq
    %v4439 = vshrl.u32 %v4438, 7
    %v4440 = vsub.s32 %v4437, %v4439
    %v4441 = vrot.slane %v4426, %v4440
    %v4443 = vunpack.c.l.s4 1966171168
    %v4444 = vunpack.c.0.s8 %v4443
    %v4445 = vlaneseq
    %v4446 = vshrl.u32 %v4445, 7
    %v4447 = vsub.s32 %v4444, %v4446
    %v4448 = vrot.slane %v4434, %v4447
    %v4449 = vcombine.high %v4441, %v4441
    %v4450 = vcombine.high %v4448, %v4448
    %v4452 = vunpack.c.l.s4 1966171168
    %v4453 = vunpack.c.0.s8 %v4452
    %v4454 = vlaneseq
    %v4455 = vshrl.u32 %v4454, 7
    %v4456 = vsub.s32 %v4453, %v4455
    %v4457 = vrot.slane %v4441, %v4456
    %v4459 = vunpack.c.l.s4 1966171168
    %v4460 = vunpack.c.0.s8 %v4459
    %v4461 = vlaneseq
    %v4462 = vshrl.u32 %v4461, 7
    %v4463 = vsub.s32 %v4460, %v4462
    %v4464 = vrot.slane %v4448, %v4463
    %v4466 = vunpack.c.l.s4 1966171168
    %v4467 = vunpack.c.0.s8 %v4466
    %v4468 = vlaneseq
    %v4469 = vshrl.u32 %v4468, 7
    %v4470 = vsub.s32 %v4467, %v4469
    %v4471 = vrot.slane %v4449, %v4470
    %v4473 = vunpack.c.l.s4 1966171168
    %v4474 = vunpack.c.0.s8 %v4473
    %v4475 = vlaneseq
    %v4476 = vshrl.u32 %v4475, 7
    %v4477 = vsub.s32 %v4474, %v4476
    %v4478 = vrot.slane %v4450, %v4477
    %v4479 = vcombine.high %v4457, %v4457
    %v4480 = vcombine.high %v4464, %v4464
    %v4481 = vcombine.high %v4471, %v4471
    %v4482 = vcombine.high %v4478, %v4478
    %v4484 = vunpack.c.l.s4 1966171168
    %v4485 = vunpack.c.0.s8 %v4484
    %v4486 = vlaneseq
    %v4487 = vshrl.u32 %v4486, 7
    %v4488 = vsub.s32 %v4485, %v4487
    %v4489 = vrot.slane %v4427, %v4488
    %v4491 = vunpack.c.l.s4 1966171168
    %v4492 = vunpack.c.0.s8 %v4491
    %v4493 = vlaneseq
    %v4494 = vshrl.u32 %v4493, 7
    %v4495 = vsub.s32 %v4492, %v4494
    %v4496 = vrot.slane %v4489, %v4495
    %v4497 = vcombine.high %v4428, %v4428
    %v4499 = vunpack.c.l.s4 1966171168
    %v4500 = vunpack.c.0.s8 %v4499
    %v4501 = vlaneseq
    %v4502 = vshrl.u32 %v4501, 7
    %v4503 = vsub.s32 %v4500, %v4502
    %v4504 = vrot.slane %v4428, %v4503
    %v4506 = vunpack.c.l.s4 1966171168
    %v4507 = vunpack.c.0.s8 %v4506
    %v4508 = vlaneseq
    %v4509 = vshrl.u32 %v4508, 7
    %v4510 = vsub.s32 %v4507, %v4509
    %v4511 = vrot.slane %v4497, %v4510
    %v4512 = vcombine.high %v4504, %v4504
    %v4513 = vcombine.high %v4511, %v4511
    %v4515 = vunpack.c.l.s4 1966171168
    %v4516 = vunpack.c.0.s8 %v4515
    %v4517 = vlaneseq
    %v4518 = vshrl.u32 %v4517, 7
    %v4519 = vsub.s32 %v4516, %v4518
    %v4520 = vrot.slane %v4504, %v4519
    %v4522 = vunpack.c.l.s4 1966171168
    %v4523 = vunpack.c.0.s8 %v4522
    %v4524 = vlaneseq
    %v4525 = vshrl.u32 %v4524, 7
    %v4526 = vsub.s32 %v4523, %v4525
    %v4527 = vrot.slane %v4511, %v4526
    %v4529 = vunpack.c.l.s4 1966171168
    %v4530 = vunpack.c.0.s8 %v4529
    %v4531 = vlaneseq
    %v4532 = vshrl.u32 %v4531, 7
    %v4533 = vsub.s32 %v4530, %v4532
    %v4534 = vrot.slane %v4512, %v4533
    %v4536 = vunpack.c.l.s4 1966171168
    %v4537 = vunpack.c.0.s8 %v4536
    %v4538 = vlaneseq
    %v4539 = vshrl.u32 %v4538, 7
    %v4540 = vsub.s32 %v4537, %v4539
    %v4541 = vrot.slane %v4513, %v4540
    %v4542 = vcombine.high %v4520, %v4520
    %v4543 = vcombine.high %v4527, %v4527
    %v4544 = vcombine.high %v4534, %v4534
    %v4545 = vcombine.high %v4541, %v4541
    %v4547 = vunpack.c.l.s4 1966171168
    %v4548 = vunpack.c.0.s8 %v4547
    %v4549 = vlaneseq
    %v4550 = vshrl.u32 %v4549, 7
    %v4551 = vsub.s32 %v4548, %v4550
    %v4552 = vrot.slane %v4429, %v4551
    %v4554 = vunpack.c.l.s4 1966171168
    %v4555 = vunpack.c.0.s8 %v4554
    %v4556 = vlaneseq
    %v4557 = vshrl.u32 %v4556, 7
    %v4558 = vsub.s32 %v4555, %v4557
    %v4559 = vrot.slane %v4552, %v4558
    %v4581 = vcombine.high %v2853, %v2853
    %v4583 = vunpack.c.l.s4 1966171168
    %v4584 = vunpack.c.0.s8 %v4583
    %v4585 = vlaneseq
    %v4586 = vshrl.u32 %v4585, 7
    %v4587 = vsub.s32 %v4584, %v4586
    %v4588 = vrot.slane %v2853, %v4587
    %v4590 = vunpack.c.l.s4 1966171168
    %v4591 = vunpack.c.0.s8 %v4590
    %v4592 = vlaneseq
    %v4593 = vshrl.u32 %v4592, 7
    %v4594 = vsub.s32 %v4591, %v4593
    %v4595 = vrot.slane %v4581, %v4594
    %v4596 = vcombine.high %v4588, %v4588
    %v4597 = vcombine.high %v4595, %v4595
    %v4599 = vunpack.c.l.s4 1966171168
    %v4600 = vunpack.c.0.s8 %v4599
    %v4601 = vlaneseq
    %v4602 = vshrl.u32 %v4601, 7
    %v4603 = vsub.s32 %v4600, %v4602
    %v4604 = vrot.slane %v4588, %v4603
    %v4606 = vunpack.c.l.s4 1966171168
    %v4607 = vunpack.c.0.s8 %v4606
    %v4608 = vlaneseq
    %v4609 = vshrl.u32 %v4608, 7
    %v4610 = vsub.s32 %v4607, %v4609
    %v4611 = vrot.slane %v4595, %v4610
    %v4613 = vunpack.c.l.s4 1966171168
    %v4614 = vunpack.c.0.s8 %v4613
    %v4615 = vlaneseq
    %v4616 = vshrl.u32 %v4615, 7
    %v4617 = vsub.s32 %v4614, %v4616
    %v4618 = vrot.slane %v4596, %v4617
    %v4620 = vunpack.c.l.s4 1966171168
    %v4621 = vunpack.c.0.s8 %v4620
    %v4622 = vlaneseq
    %v4623 = vshrl.u32 %v4622, 7
    %v4624 = vsub.s32 %v4621, %v4623
    %v4625 = vrot.slane %v4597, %v4624
    %v4626 = vcombine.high %v4604, %v4604
    %v4627 = vcombine.high %v4611, %v4611
    %v4628 = vcombine.high %v4618, %v4618
    %v4629 = vcombine.high %v4625, %v4625
    %v4630 = vcombine.high %v2854, %v2854
    %v4632 = vunpack.c.l.s4 1966171168
    %v4633 = vunpack.c.0.s8 %v4632
    %v4634 = vlaneseq
    %v4635 = vshrl.u32 %v4634, 7
    %v4636 = vsub.s32 %v4633, %v4635
    %v4637 = vrot.slane %v2854, %v4636
    %v4639 = vunpack.c.l.s4 1966171168
    %v4640 = vunpack.c.0.s8 %v4639
    %v4641 = vlaneseq
    %v4642 = vshrl.u32 %v4641, 7
    %v4643 = vsub.s32 %v4640, %v4642
    %v4644 = vrot.slane %v4630, %v4643
    %v4645 = vcombine.high %v4637, %v4637
    %v4646 = vcombine.high %v4644, %v4644
    %v4648 = vunpack.c.l.s4 1966171168
    %v4649 = vunpack.c.0.s8 %v4648
    %v4650 = vlaneseq
    %v4651 = vshrl.u32 %v4650, 7
    %v4652 = vsub.s32 %v4649, %v4651
    %v4653 = vrot.slane %v4637, %v4652
    %v4655 = vunpack.c.l.s4 1966171168
    %v4656 = vunpack.c.0.s8 %v4655
    %v4657 = vlaneseq
    %v4658 = vshrl.u32 %v4657, 7
    %v4659 = vsub.s32 %v4656, %v4658
    %v4660 = vrot.slane %v4644, %v4659
    %v4662 = vunpack.c.l.s4 1966171168
    %v4663 = vunpack.c.0.s8 %v4662
    %v4664 = vlaneseq
    %v4665 = vshrl.u32 %v4664, 7
    %v4666 = vsub.s32 %v4663, %v4665
    %v4667 = vrot.slane %v4645, %v4666
    %v4669 = vunpack.c.l.s4 1966171168
    %v4670 = vunpack.c.0.s8 %v4669
    %v4671 = vlaneseq
    %v4672 = vshrl.u32 %v4671, 7
    %v4673 = vsub.s32 %v4670, %v4672
    %v4674 = vrot.slane %v4646, %v4673
    %v4675 = vcombine.high %v4653, %v4653
    %v4676 = vcombine.high %v4660, %v4660
    %v4677 = vcombine.high %v4667, %v4667
    %v4678 = vcombine.high %v4674, %v4674
    %v4680 = vunpack.c.l.s4 1966171168
    %v4681 = vunpack.c.0.s8 %v4680
    %v4682 = vlaneseq
    %v4683 = vshrl.u32 %v4682, 7
    %v4684 = vsub.s32 %v4681, %v4683
    %v4685 = vrot.slane %v2855, %v4684
    %v4686 = vcombine.high %v4685, %v4685
    %v4688 = vunpack.c.l.s4 1966171168
    %v4689 = vunpack.c.0.s8 %v4688
    %v4690 = vlaneseq
    %v4691 = vshrl.u32 %v4690, 7
    %v4692 = vsub.s32 %v4689, %v4691
    %v4693 = vrot.slane %v4685, %v4692
    %v4695 = vunpack.c.l.s4 1966171168
    %v4696 = vunpack.c.0.s8 %v4695
    %v4697 = vlaneseq
    %v4698 = vshrl.u32 %v4697, 7
    %v4699 = vsub.s32 %v4696, %v4698
    %v4700 = vrot.slane %v4686, %v4699
    %v4719 = vadd.f32 %v4457, %v4604
    %v4720 = vadd.f32 %v4471, %v4618
    %v4721 = vadd.f32 %v4479, %v4626
    %v4722 = vadd.f32 %v4481, %v4628
    %v4723 = vadd.f32 %v4464, %v4611
    %v4724 = vadd.f32 %v4478, %v4625
    %v4725 = vadd.f32 %v4480, %v4627
    %v4726 = vadd.f32 %v4482, %v4629
    %v4727 = vadd.f32 %v4496, %v4653
    %v4728 = vadd.f32 %v4520, %v4667
    %v4729 = vadd.f32 %v4534, %v4675
    %v4730 = vadd.f32 %v4542, %v4677
    %v4731 = vadd.f32 %v4544, %v4660
    %v4732 = vadd.f32 %v4527, %v4674
    %v4733 = vadd.f32 %v4541, %v4676
    %v4734 = vadd.f32 %v4543, %v4678
    %v4735 = vadd.f32 %v4545, %v4693
    %v4736 = vadd.f32 %v4559, %v4700
    %v4737 = vld [vmem:[%s6] sm:$0xff]
    %v4738 = vld [vmem:[%s6 + $0x8] sm:$0xff]
    %v4739 = vld [vmem:[%s6 + $0x10] sm:$0xf]
    %v4740 = vld [vmem:[%s6 + $0x14] sm:$0xff]
    %v4741 = vld [vmem:[%s6 + $0x1c] sm:$0xff]
    %v4742 = vld [vmem:[%s6 + $0x24] sm:$0xf]
    %v4743 = vld [vmem:[%s6 + $0x28] sm:$0xff]
    %v4744 = vld [vmem:[%s6 + $0x30] sm:$0xff]
    %v4745 = vld [vmem:[%s6 + $0x38] sm:$0xf]
    %v4746 = vld [vmem:[%s6 + $0x3c] sm:$0xff]
    %v4747 = vld [vmem:[%s6 + $0x44] sm:$0xff]
    %v4748 = vld [vmem:[%s6 + $0x4c] sm:$0xf]
    %v4749 = vld [vmem:[%s6 + $0x50] sm:$0xff]
    %v4750 = vld [vmem:[%s6 + $0x58] sm:$0xff]
    %v4751 = vld [vmem:[%s6 + $0x60] sm:$0xf]
    %v4752 = vld [vmem:[%s6 + $0x64] sm:$0xff]
    %v4753 = vld [vmem:[%s6 + $0x6c] sm:$0xff]
    %v4754 = vld [vmem:[%s6 + $0x74] sm:$0xf]
    %v4755 = vld [vmem:[%s6 + $0x78] sm:$0xff]
    %v4756 = vld [vmem:[%s6 + $0x80] sm:$0xff]
    %v4757 = vld [vmem:[%s6 + $0x88] sm:$0xf]
    %v4758 = vld [vmem:[%s6 + $0x8c] sm:$0xff]
    %v4759 = vld [vmem:[%s6 + $0x94] sm:$0xff]
    %v4760 = vld [vmem:[%s6 + $0x9c] sm:$0xf]
    %v4779 = vcombine.low %v4719, %v4720
    %v4780 = vcombine.low %v4721, %v4722
    %v4781 = vcombine.low %v4723, %v4724
    %v4782 = vcombine.low %v4725, %v4726
    %v4784 = vunpack.c.l.s4 1966171168
    %v4785 = vunpack.c.0.s8 %v4784
    %v4786 = vlaneseq
    %v4787 = vshrl.u32 %v4786, 7
    %v4788 = vsub.s32 %v4785, %v4787
    %v4789 = vrot.slane %v4779, %v4788
    %v4791 = vunpack.c.l.s4 1966171168
    %v4792 = vunpack.c.0.s8 %v4791
    %v4793 = vlaneseq
    %v4794 = vshrl.u32 %v4793, 7
    %v4795 = vsub.s32 %v4792, %v4794
    %v4796 = vrot.slane %v4780, %v4795
    %v4798 = vunpack.c.l.s4 1966171168
    %v4799 = vunpack.c.0.s8 %v4798
    %v4800 = vlaneseq
    %v4801 = vshrl.u32 %v4800, 7
    %v4802 = vsub.s32 %v4799, %v4801
    %v4803 = vrot.slane %v4781, %v4802
    %v4805 = vunpack.c.l.s4 1966171168
    %v4806 = vunpack.c.0.s8 %v4805
    %v4807 = vlaneseq
    %v4808 = vshrl.u32 %v4807, 7
    %v4809 = vsub.s32 %v4806, %v4808
    %v4810 = vrot.slane %v4782, %v4809
    %v4811 = vcombine.low %v4789, %v4796
    %v4812 = vcombine.low %v4803, %v4810
    %v4814 = vunpack.c.l.s4 1966171168
    %v4815 = vunpack.c.0.s8 %v4814
    %v4816 = vlaneseq
    %v4817 = vshrl.u32 %v4816, 7
    %v4818 = vsub.s32 %v4815, %v4817
    %v4819 = vrot.slane %v4811, %v4818
    %v4821 = vunpack.c.l.s4 1966171168
    %v4822 = vunpack.c.0.s8 %v4821
    %v4823 = vlaneseq
    %v4824 = vshrl.u32 %v4823, 7
    %v4825 = vsub.s32 %v4822, %v4824
    %v4826 = vrot.slane %v4812, %v4825
    %v4827 = vcombine.low %v4819, %v4826
    %v4828 = vcombine.low %v4727, %v4728
    %v4829 = vcombine.low %v4729, %v4730
    %v4830 = vcombine.low %v4731, %v4732
    %v4831 = vcombine.low %v4733, %v4734
    %v4833 = vunpack.c.l.s4 1966171168
    %v4834 = vunpack.c.0.s8 %v4833
    %v4835 = vlaneseq
    %v4836 = vshrl.u32 %v4835, 7
    %v4837 = vsub.s32 %v4834, %v4836
    %v4838 = vrot.slane %v4828, %v4837
    %v4840 = vunpack.c.l.s4 1966171168
    %v4841 = vunpack.c.0.s8 %v4840
    %v4842 = vlaneseq
    %v4843 = vshrl.u32 %v4842, 7
    %v4844 = vsub.s32 %v4841, %v4843
    %v4845 = vrot.slane %v4829, %v4844
    %v4847 = vunpack.c.l.s4 1966171168
    %v4848 = vunpack.c.0.s8 %v4847
    %v4849 = vlaneseq
    %v4850 = vshrl.u32 %v4849, 7
    %v4851 = vsub.s32 %v4848, %v4850
    %v4852 = vrot.slane %v4830, %v4851
    %v4854 = vunpack.c.l.s4 1966171168
    %v4855 = vunpack.c.0.s8 %v4854
    %v4856 = vlaneseq
    %v4857 = vshrl.u32 %v4856, 7
    %v4858 = vsub.s32 %v4855, %v4857
    %v4859 = vrot.slane %v4831, %v4858
    %v4860 = vcombine.low %v4838, %v4845
    %v4861 = vcombine.low %v4852, %v4859
    %v4863 = vunpack.c.l.s4 1966171168
    %v4864 = vunpack.c.0.s8 %v4863
    %v4865 = vlaneseq
    %v4866 = vshrl.u32 %v4865, 7
    %v4867 = vsub.s32 %v4864, %v4866
    %v4868 = vrot.slane %v4860, %v4867
    %v4870 = vunpack.c.l.s4 1966171168
    %v4871 = vunpack.c.0.s8 %v4870
    %v4872 = vlaneseq
    %v4873 = vshrl.u32 %v4872, 7
    %v4874 = vsub.s32 %v4871, %v4873
    %v4875 = vrot.slane %v4861, %v4874
    %v4876 = vcombine.low %v4868, %v4875
    %v4877 = vcombine.low %v4735, %v4736
    %v4879 = vunpack.c.l.s4 1966171168
    %v4880 = vunpack.c.0.s8 %v4879
    %v4881 = vlaneseq
    %v4882 = vshrl.u32 %v4881, 7
    %v4883 = vsub.s32 %v4880, %v4882
    %v4884 = vrot.slane %v4877, %v4883
    %v4886 = vunpack.c.l.s4 1966171168
    %v4887 = vunpack.c.0.s8 %v4886
    %v4888 = vlaneseq
    %v4889 = vshrl.u32 %v4888, 7
    %v4890 = vsub.s32 %v4887, %v4889
    %v4891 = vrot.slane %v4884, %v4890
    %v4895 = vpack.c.bf16 %v4876, %v4827
    %v4896 = vpack.c.bf16 %v4891, %v4891
    %v4897 = vld [vmem:[%s7] sm:$0x1f]
    %v4899 = vlaneseq
    %v4900 = vshrl.u32 %v4899, 7
    %v4901 = vsub.s32 0, %v4900
    %v4902 = vrot.slane %v4897, %v4901
    %v4903 = vlaneseq
    %v4904 = vshrl.u32 %v4903, 7
    %v4905 = vsub.s32 1, %v4904
    %v4906 = vrot.slane %v4897, %v4905
    %v4907 = vlaneseq
    %v4908 = vshrl.u32 %v4907, 7
    %v4909 = vsub.s32 2, %v4908
    %v4910 = vrot.slane %v4897, %v4909
    %v4911 = vlaneseq
    %v4912 = vshrl.u32 %v4911, 7
    %v4913 = vsub.s32 3, %v4912
    %v4914 = vrot.slane %v4897, %v4913
    %v4915 = vlaneseq
    %v4916 = vshrl.u32 %v4915, 7
    %v4917 = vsub.s32 4, %v4916
    %v4918 = vrot.slane %v4897, %v4917
    %v4948 = vunpack.c.l.b16 %v4737
    %v4949 = vunpack.c.h.b16 %v4737
    %v4950 = vunpack.c.l.b16 %v4738
    %v4951 = vunpack.c.h.b16 %v4738
    %v4952 = vunpack.c.l.b16 %v4739
    %v4953 = vunpack.c.l.b16 %v4740
    %v4954 = vunpack.c.h.b16 %v4740
    %v4955 = vunpack.c.l.b16 %v4741
    %v4956 = vunpack.c.h.b16 %v4741
    %v4957 = vunpack.c.l.b16 %v4742
    %v4958 = vunpack.c.l.b16 %v4743
    %v4959 = vunpack.c.h.b16 %v4743
    %v4960 = vunpack.c.l.b16 %v4744
    %v4961 = vunpack.c.h.b16 %v4744
    %v4962 = vunpack.c.l.b16 %v4745
    %v4963 = vunpack.c.l.b16 %v4746
    %v4964 = vunpack.c.h.b16 %v4746
    %v4965 = vunpack.c.l.b16 %v4747
    %v4966 = vunpack.c.h.b16 %v4747
    %v4967 = vunpack.c.l.b16 %v4748
    %v4968 = vunpack.c.l.b16 %v4749
    %v4969 = vunpack.c.h.b16 %v4749
    %v4970 = vunpack.c.l.b16 %v4750
    %v4971 = vunpack.c.h.b16 %v4750
    %v4972 = vunpack.c.l.b16 %v4751
    %v4973 = vunpack.c.l.b16 %v4752
    %v4974 = vunpack.c.h.b16 %v4752
    %v4975 = vunpack.c.l.b16 %v4753
    %v4976 = vunpack.c.h.b16 %v4753
    %v4977 = vunpack.c.l.b16 %v4754
    %v4978 = vunpack.c.l.b16 %v4755
    %v4979 = vunpack.c.h.b16 %v4755
    %v4980 = vunpack.c.l.b16 %v4756
    %v4981 = vunpack.c.h.b16 %v4756
    %v4982 = vunpack.c.l.b16 %v4757
    %v4983 = vunpack.c.l.b16 %v4758
    %v4984 = vunpack.c.h.b16 %v4758
    %v4985 = vunpack.c.l.b16 %v4759
    %v4986 = vunpack.c.h.b16 %v4759
    %v4987 = vunpack.c.l.b16 %v4760
    %v4988 = vpack.c.b16 %v4953, %v4948
    %v4989 = vpack.c.b16 %v4954, %v4949
    %v4990 = vpack.c.b16 %v4955, %v4950
    %v4991 = vpack.c.b16 %v4956, %v4951
    %v4992 = vpack.c.b16 %v4957, %v4952
    %v4993 = vpack.c.b16 %v4963, %v4958
    %v4994 = vpack.c.b16 %v4964, %v4959
    %v4995 = vpack.c.b16 %v4965, %v4960
    %v4996 = vpack.c.b16 %v4966, %v4961
    %v4997 = vpack.c.b16 %v4967, %v4962
    %v4998 = vpack.c.b16 %v4973, %v4968
    %v4999 = vpack.c.b16 %v4974, %v4969
    %v5000 = vpack.c.b16 %v4975, %v4970
    %v5001 = vpack.c.b16 %v4976, %v4971
    %v5002 = vpack.c.b16 %v4977, %v4972
    %v5003 = vpack.c.b16 %v4983, %v4978
    %v5004 = vpack.c.b16 %v4984, %v4979
    %v5005 = vpack.c.b16 %v4985, %v4980
    %v5006 = vpack.c.b16 %v4986, %v4981
    %v5007 = vpack.c.b16 %v4987, %v4982
    %v5029 = vsel %vm2714, %v4895, 0
    %v5032 = vsel %vm2714, %v4896, 0
    %5034 = vmatprep.subr.bf16.mxu0 %v4989
    %5035 = vmatpush1.bf16.msra.mxu0 %v4988
    %5036 = vmatprep.subr.bf16.mxu0 %v4994
    %5037 = vmatpush1.bf16.msra.mxu0 %v4993
    %5038 = vmatprep.subr.bf16.mxu0 %v4999
    %5039 = vmatpush1.bf16.msra.mxu0 %v4998
    %5040 = vmatprep.subr.bf16.mxu0 %v5004
    %5041 = vmatpush1.bf16.msra.mxu0 %v5003
    %5042 = vmatprep.subr.bf16.mxu0 0
    %5043 = vmatpush1.bf16.msra.mxu0 0
    %5044 = vmatprep.subr.bf16.mxu0 0
    %5045 = vmatpush1.bf16.msra.mxu0 0
    %5046 = vmatprep.subr.bf16.mxu0 0
    %5047 = vmatpush1.bf16.msra.mxu0 0
    %5048 = vmatprep.subr.bf16.mxu0 0
    %5049 = vmatpush1.bf16.msra.mxu0 0
    %5050 = vmatprep.subr.bf16.mxu0 0
    %5051 = vmatpush1.bf16.msra.mxu0 0
    %5052 = vmatprep.subr.bf16.mxu0 0
    %5053 = vmatpush1.bf16.msra.mxu0 0
    %5054 = vmatprep.subr.bf16.mxu0 0
    %5055 = vmatpush1.bf16.msra.mxu0 0
    %5056 = vmatprep.subr.bf16.mxu0 0
    %5057 = vmatpush1.bf16.msra.mxu0 0
    %5058 = vmatprep.subr.bf16.mxu0 0
    %5059 = vmatpush1.bf16.msra.mxu0 0
    %5060 = vmatprep.subr.bf16.mxu0 0
    %5061 = vmatpush1.bf16.msra.mxu0 0
    %5062 = vmatprep.subr.bf16.mxu0 0
    %5063 = vmatpush1.bf16.msra.mxu0 0
    %5064 = vmatprep.subr.bf16.mxu0 0
    %5065 = vmatpush1.bf16.msra.mxu0 0
    %5066 = vmatprep.mubr.bf16.mxu0 0
    %5067 = vmatmul.mubr.bf16.gmra.mrb[0].mxu0 %v5029
    %v5068 = vpop.f32.mrb[0].mxu0
    %v5069 = vadd.f32 %v4902, %v5068
    %v5070 = vpop.f32.mrb[0].mxu0
    %v5071 = vadd.f32 %v4906, %v5070
    %v5072 = vpop.f32.mrb[0].mxu0
    %v5073 = vadd.f32 %v4902, %v5072
    %v5074 = vpop.f32.mrb[0].mxu0
    %v5075 = vadd.f32 %v4906, %v5074
    %5076 = vmatprep.mubr.bf16.mxu0 0
    %5077 = vmatmul.mubr.bf16.gmra.mrb[0].mxu0 %v5032
    %v5078 = vpop.f32.mrb[0].mxu0
    %v5079 = vadd.f32 %v4902, %v5078
    %v5080 = vpop.f32.mrb[0].mxu0
    %v5081 = vadd.f32 %v4906, %v5080
    %v5082 = vpop.f32.mrb[0].mxu0
    %v5083 = vpop.f32.mrb[0].mxu0
    %5084 = vdwg.mxu0
    %5085 = vmatprep.subr.bf16.mxu0 %v4991
    %5086 = vmatpush1.bf16.msra.mxu0 %v4990
    %5087 = vmatprep.subr.bf16.mxu0 %v4996
    %5088 = vmatpush1.bf16.msra.mxu0 %v4995
    %5089 = vmatprep.subr.bf16.mxu0 %v5001
    %5090 = vmatpush1.bf16.msra.mxu0 %v5000
    %5091 = vmatprep.subr.bf16.mxu0 %v5006
    %5092 = vmatpush1.bf16.msra.mxu0 %v5005
    %5093 = vmatprep.subr.bf16.mxu0 0
    %5094 = vmatpush1.bf16.msra.mxu0 0
    %5095 = vmatprep.subr.bf16.mxu0 0
    %5096 = vmatpush1.bf16.msra.mxu0 0
    %5097 = vmatprep.subr.bf16.mxu0 0
    %5098 = vmatpush1.bf16.msra.mxu0 0
    %5099 = vmatprep.subr.bf16.mxu0 0
    %5100 = vmatpush1.bf16.msra.mxu0 0
    %5101 = vmatprep.subr.bf16.mxu0 0
    %5102 = vmatpush1.bf16.msra.mxu0 0
    %5103 = vmatprep.subr.bf16.mxu0 0
    %5104 = vmatpush1.bf16.msra.mxu0 0
    %5105 = vmatprep.subr.bf16.mxu0 0
    %5106 = vmatpush1.bf16.msra.mxu0 0
    %5107 = vmatprep.subr.bf16.mxu0 0
    %5108 = vmatpush1.bf16.msra.mxu0 0
    %5109 = vmatprep.subr.bf16.mxu0 0
    %5110 = vmatpush1.bf16.msra.mxu0 0
    %5111 = vmatprep.subr.bf16.mxu0 0
    %5112 = vmatpush1.bf16.msra.mxu0 0
    %5113 = vmatprep.subr.bf16.mxu0 0
    %5114 = vmatpush1.bf16.msra.mxu0 0
    %5115 = vmatprep.subr.bf16.mxu0 0
    %5116 = vmatpush1.bf16.msra.mxu0 0
    %5117 = vmatprep.mubr.bf16.mxu0 0
    %5118 = vmatmul.mubr.bf16.gmra.mrb[0].mxu0 %v5029
    %v5119 = vpop.f32.mrb[0].mxu0
    %v5120 = vadd.f32 %v4910, %v5119
    %v5121 = vpop.f32.mrb[0].mxu0
    %v5122 = vadd.f32 %v4914, %v5121
    %v5123 = vpop.f32.mrb[0].mxu0
    %v5124 = vadd.f32 %v4910, %v5123
    %v5125 = vpop.f32.mrb[0].mxu0
    %v5126 = vadd.f32 %v4914, %v5125
    %5127 = vmatprep.mubr.bf16.mxu0 0
    %5128 = vmatmul.mubr.bf16.gmra.mrb[0].mxu0 %v5032
    %v5129 = vpop.f32.mrb[0].mxu0
    %v5130 = vadd.f32 %v4910, %v5129
    %v5131 = vpop.f32.mrb[0].mxu0
    %v5132 = vadd.f32 %v4914, %v5131
    %v5133 = vpop.f32.mrb[0].mxu0
    %v5134 = vpop.f32.mrb[0].mxu0
    %5135 = vdwg.mxu0
    %5136 = vmatprep.subr.bf16.mxu0 0
    %5137 = vmatpush1.bf16.msra.mxu0 %v4992
    %5138 = vmatprep.subr.bf16.mxu0 0
    %5139 = vmatpush1.bf16.msra.mxu0 %v4997
    %5140 = vmatprep.subr.bf16.mxu0 0
    %5141 = vmatpush1.bf16.msra.mxu0 %v5002
    %5142 = vmatprep.subr.bf16.mxu0 0
    %5143 = vmatpush1.bf16.msra.mxu0 %v5007
    %5144 = vmatprep.subr.bf16.mxu0 0
    %5145 = vmatpush1.bf16.msra.mxu0 0
    %5146 = vmatprep.subr.bf16.mxu0 0
    %5147 = vmatpush1.bf16.msra.mxu0 0
    %5148 = vmatprep.subr.bf16.mxu0 0
    %5149 = vmatpush1.bf16.msra.mxu0 0
    %5150 = vmatprep.subr.bf16.mxu0 0
    %5151 = vmatpush1.bf16.msra.mxu0 0
    %5152 = vmatprep.subr.bf16.mxu0 0
    %5153 = vmatpush1.bf16.msra.mxu0 0
    %5154 = vmatprep.subr.bf16.mxu0 0
    %5155 = vmatpush1.bf16.msra.mxu0 0
    %5156 = vmatprep.subr.bf16.mxu0 0
    %5157 = vmatpush1.bf16.msra.mxu0 0
    %5158 = vmatprep.subr.bf16.mxu0 0
    %5159 = vmatpush1.bf16.msra.mxu0 0
    %5160 = vmatprep.subr.bf16.mxu0 0
    %5161 = vmatpush1.bf16.msra.mxu0 0
    %5162 = vmatprep.subr.bf16.mxu0 0
    %5163 = vmatpush1.bf16.msra.mxu0 0
    %5164 = vmatprep.subr.bf16.mxu0 0
    %5165 = vmatpush1.bf16.msra.mxu0 0
    %5166 = vmatprep.subr.bf16.mxu0 0
    %5167 = vmatpush1.bf16.msra.mxu0 0
    %5168 = vmatprep.mubr.bf16.mxu0 0
    %5169 = vmatmul.mubr.bf16.gmra.mrb[0].mxu0 %v5029
    %v5170 = vpop.f32.mrb[0].mxu0
    %v5171 = vadd.f32 %v4918, %v5170
    %v5172 = vpop.f32.mrb[0].mxu0
    %v5173 = vpop.f32.mrb[0].mxu0
    %v5174 = vadd.f32 %v4918, %v5173
    %v5175 = vpop.f32.mrb[0].mxu0
    %5176 = vmatprep.mubr.bf16.mxu0 0
    %5177 = vmatmul.mubr.bf16.gmra.mrb[0].mxu0 %v5032
    %v5178 = vpop.f32.mrb[0].mxu0
    %v5179 = vadd.f32 %v4918, %v5178
    %v5180 = vpop.f32.mrb[0].mxu0
    %v5181 = vpop.f32.mrb[0].mxu0
    %v5182 = vpop.f32.mrb[0].mxu0
    %5183 = vdwg.mxu0
    %v5184 = vmax.f32 %v5069, 0.0
    %v5185 = vmax.f32 %v5071, 0.0
    %v5186 = vmax.f32 %v5120, 0.0
    %v5187 = vmax.f32 %v5122, 0.0
    %v5188 = vmax.f32 %v5171, 0.0
    %v5189 = vmax.f32 %v5073, 0.0
    %v5190 = vmax.f32 %v5075, 0.0
    %v5191 = vmax.f32 %v5124, 0.0
    %v5192 = vmax.f32 %v5126, 0.0
    %v5193 = vmax.f32 %v5174, 0.0
    %v5194 = vmax.f32 %v5079, 0.0
    %v5195 = vmax.f32 %v5081, 0.0
    %v5196 = vmax.f32 %v5130, 0.0
    %v5197 = vmax.f32 %v5132, 0.0
    %v5198 = vmax.f32 %v5179, 0.0
    %v5199 = vld [vmem:[#allocation2] sm:$0xf]
    %v5200 = vld [vmem:[#allocation2 + $0x28] sm:$0xf]
    %v5201 = vld [vmem:[#allocation2 + $0x50] sm:$0xf]
    %v5202 = vld [vmem:[#allocation2 + $0x78] sm:$0xf]
    %v5203 = vld [vmem:[#allocation2 + $0xa0] sm:$0xf]
    %v5204 = vld [vmem:[#allocation2 + $0xc8] sm:$0xf]
    %v5205 = vld [vmem:[#allocation2 + $0xf0] sm:$0xf]
    %v5206 = vld [vmem:[#allocation2 + $0x118] sm:$0xf]
    %v5207 = vld [vmem:[#allocation2 + $0x140] sm:$0xf]
    %v5208 = vld [vmem:[#allocation2 + $0x168] sm:$0xf]
    %v5209 = vld [vmem:[#allocation2 + $0x190] sm:$0xf]
    %v5210 = vld [vmem:[#allocation2 + $0x1b8] sm:$0xf]
    %v5211 = vld [vmem:[#allocation2 + $0x1e0] sm:$0xf]
    %v5212 = vld [vmem:[#allocation2 + $0x208] sm:$0xf]
    %v5213 = vld [vmem:[#allocation2 + $0x230] sm:$0xf]
    %v5214 = vld [vmem:[#allocation2 + $0x258] sm:$0xf]
    %v5215 = vpack.c.bf16 %v5189, %v5184
    %v5216 = vpack.c.bf16 %v5194, %v5194
    %v5233 = vunpack.c.l.b16 %v5199
    %v5234 = vunpack.c.l.b16 %v5200
    %v5235 = vunpack.c.l.b16 %v5201
    %v5236 = vunpack.c.l.b16 %v5202
    %v5237 = vunpack.c.l.b16 %v5203
    %v5238 = vunpack.c.l.b16 %v5204
    %v5239 = vunpack.c.l.b16 %v5205
    %v5240 = vunpack.c.l.b16 %v5206
    %v5241 = vunpack.c.l.b16 %v5207
    %v5242 = vunpack.c.l.b16 %v5208
    %v5243 = vunpack.c.l.b16 %v5209
    %v5244 = vunpack.c.l.b16 %v5210
    %v5245 = vunpack.c.l.b16 %v5211
    %v5246 = vunpack.c.l.b16 %v5212
    %v5247 = vunpack.c.l.b16 %v5213
    %v5248 = vunpack.c.l.b16 %v5214
    %v5249 = vpack.c.b16 %v5234, %v5233
    %v5250 = vpack.c.b16 %v5236, %v5235
    %v5251 = vpack.c.b16 %v5238, %v5237
    %v5252 = vpack.c.b16 %v5240, %v5239
    %v5253 = vpack.c.b16 %v5242, %v5241
    %v5254 = vpack.c.b16 %v5244, %v5243
    %v5255 = vpack.c.b16 %v5246, %v5245
    %v5256 = vpack.c.b16 %v5248, %v5247
    %5265 = vmatprep.subr.bf16.mxu0 0
    %5266 = vmatpush1.bf16.msra.mxu0 %v5249
    %5267 = vmatprep.subr.bf16.mxu0 0
    %5268 = vmatpush1.bf16.msra.mxu0 %v5250
    %5269 = vmatprep.subr.bf16.mxu0 0
    %5270 = vmatpush1.bf16.msra.mxu0 %v5251
    %5271 = vmatprep.subr.bf16.mxu0 0
    %5272 = vmatpush1.bf16.msra.mxu0 %v5252
    %5273 = vmatprep.subr.bf16.mxu0 0
    %5274 = vmatpush1.bf16.msra.mxu0 %v5253
    %5275 = vmatprep.subr.bf16.mxu0 0
    %5276 = vmatpush1.bf16.msra.mxu0 %v5254
    %5277 = vmatprep.subr.bf16.mxu0 0
    %5278 = vmatpush1.bf16.msra.mxu0 %v5255
    %5279 = vmatprep.subr.bf16.mxu0 0
    %5280 = vmatpush1.bf16.msra.mxu0 %v5256
    %5281 = vmatprep.subr.bf16.mxu0 0
    %5282 = vmatpush1.bf16.msra.mxu0 0
    %5283 = vmatprep.subr.bf16.mxu0 0
    %5284 = vmatpush1.bf16.msra.mxu0 0
    %5285 = vmatprep.subr.bf16.mxu0 0
    %5286 = vmatpush1.bf16.msra.mxu0 0
    %5287 = vmatprep.subr.bf16.mxu0 0
    %5288 = vmatpush1.bf16.msra.mxu0 0
    %5289 = vmatprep.subr.bf16.mxu0 0
    %5290 = vmatpush1.bf16.msra.mxu0 0
    %5291 = vmatprep.subr.bf16.mxu0 0
    %5292 = vmatpush1.bf16.msra.mxu0 0
    %5293 = vmatprep.subr.bf16.mxu0 0
    %5294 = vmatpush1.bf16.msra.mxu0 0
    %5295 = vmatprep.subr.bf16.mxu0 0
    %5296 = vmatpush1.bf16.msra.mxu0 0
    %5297 = vmatprep.mubr.bf16.mxu0 0
    %5298 = vmatmul.mubr.bf16.gmra.mrb[0].mxu0 %v5215
    %v5299 = vpop.f32.mrb[0].mxu0
    %v5300 = vadd.f32 0.0, %v5299
    %v5301 = vpop.f32.mrb[0].mxu0
    %v5302 = vpop.f32.mrb[0].mxu0
    %v5303 = vadd.f32 0.0, %v5302
    %v5304 = vpop.f32.mrb[0].mxu0
    %5305 = vmatprep.mubr.bf16.mxu0 0
    %5306 = vmatmul.mubr.bf16.gmra.mrb[0].mxu0 %v5216
    %v5307 = vpop.f32.mrb[0].mxu0
    %v5308 = vadd.f32 0.0, %v5307
    %v5309 = vpop.f32.mrb[0].mxu0
    %v5310 = vpop.f32.mrb[0].mxu0
    %v5311 = vpop.f32.mrb[0].mxu0
    %5312 = vdwg.mxu0
    %v5313 = vlaneseq
    %v5314 = vand.u32 %v5313, 127
    %vm5315 = vcmp.lt.s32.totalorder %v5314, 16
    %v5316 = vsel %vm5315, %v5300, -inf
    %v5317 = vsel %vm5315, %v5303, -inf
    %v5318 = vsel %vm5315, %v5308, -inf
    %5319 = vmax.xlane.f32.xlu0 %v5316
    %v5320 = vpop.xlane.xlu0 %5319
    %5321 = vmax.xlane.f32.xlu0 %v5317
    %v5322 = vpop.xlane.xlu0 %5321
    %v5323 = vsel %vm820, %v5318, -inf
    %5324 = vmax.xlane.f32.xlu0 %v5323
    %v5325 = vpop.xlane.xlu0 %5324
    %vm5326 = vcmp.eq.f32.partialorder %v5316, %v5320
    %vm5327 = vcmp.eq.f32.partialorder %v5317, %v5322
    %vm5328 = vcmp.eq.f32.partialorder %v5318, %v5325
    %v5329 = vsel %vm5326, %v5314, 128
    %v5330 = vsel %vm5327, %v5314, 128
    %v5331 = vsel %vm5328, %v5314, 128
    %v5332 = vand.u32 %v5329, 65535
    %v5333 = vshra.s32 %v5329, 16
    %v5334 = vcvt.s32.f32 %v5332
    %v5335 = vcvt.s32.f32 %v5333
    %5336 = vmin.xlane.f32.xlu0 %v5335
    %v5337 = vpop.xlane.xlu0 %5336
    %vm5338 = vcmp.eq.f32.partialorder %v5335, %v5337
    %v5339 = vsel %vm5338, %v5334, inf
    %5340 = vmin.xlane.f32.xlu0 %v5339
    %v5341 = vpop.xlane.xlu0 %5340
    %v5342 = vcvt.f32.s32 %v5341
    %v5343 = vcvt.f32.s32 %v5337
    %v5344 = vshll.u32 %v5343, 16
    %v5345 = vadd.s32 %v5344, %v5342
    %v5346 = vand.u32 %v5330, 65535
    %v5347 = vshra.s32 %v5330, 16
    %v5348 = vcvt.s32.f32 %v5346
    %v5349 = vcvt.s32.f32 %v5347
    %5350 = vmin.xlane.f32.xlu0 %v5349
    %v5351 = vpop.xlane.xlu0 %5350
    %vm5352 = vcmp.eq.f32.partialorder %v5349, %v5351
    %v5353 = vsel %vm5352, %v5348, inf
    %5354 = vmin.xlane.f32.xlu0 %v5353
    %v5355 = vpop.xlane.xlu0 %5354
    %v5356 = vcvt.f32.s32 %v5355
    %v5357 = vcvt.f32.s32 %v5351
    %v5358 = vshll.u32 %v5357, 16
    %v5359 = vadd.s32 %v5358, %v5356
    %v5360 = vsel %vm820, %v5331, 2147483647
    %v5361 = vand.u32 %v5360, 65535
    %v5362 = vshra.s32 %v5360, 16
    %v5363 = vcvt.s32.f32 %v5361
    %v5364 = vcvt.s32.f32 %v5362
    %5365 = vmin.xlane.f32.xlu0 %v5364
    %v5366 = vpop.xlane.xlu0 %5365
    %vm5367 = vcmp.eq.f32.partialorder %v5364, %v5366
    %v5368 = vsel %vm5367, %v5363, inf
    %5369 = vmin.xlane.f32.xlu0 %v5368
    %v5370 = vpop.xlane.xlu0 %5369
    %v5371 = vcvt.f32.s32 %v5370
    %v5372 = vcvt.f32.s32 %v5366
    %v5373 = vshll.u32 %v5372, 16
    %v5374 = vadd.s32 %v5373, %v5371
    %v5375 = vcvt.s32.f32 %v5345
    %v5376 = vcvt.s32.f32 %v5359
    %v5377 = vcvt.s32.f32 %v5374
    %v5378 = vld [vmem:[#allocation2 + $0x4] sm:$0xf]
    %v5379 = vld [vmem:[#allocation2 + $0x2c] sm:$0xf]
    %v5380 = vld [vmem:[#allocation2 + $0x54] sm:$0xf]
    %v5381 = vld [vmem:[#allocation2 + $0x7c] sm:$0xf]
    %v5382 = vld [vmem:[#allocation2 + $0xa4] sm:$0xf]
    %v5383 = vld [vmem:[#allocation2 + $0xcc] sm:$0xf]
    %v5384 = vld [vmem:[#allocation2 + $0xf4] sm:$0xf]
    %v5385 = vld [vmem:[#allocation2 + $0x11c] sm:$0xf]
    %v5386 = vld [vmem:[#allocation2 + $0x144] sm:$0xf]
    %v5387 = vld [vmem:[#allocation2 + $0x16c] sm:$0xf]
    %v5388 = vld [vmem:[#allocation2 + $0x194] sm:$0xf]
    %v5389 = vld [vmem:[#allocation2 + $0x1bc] sm:$0xf]
    %v5390 = vld [vmem:[#allocation2 + $0x1e4] sm:$0xf]
    %v5391 = vld [vmem:[#allocation2 + $0x20c] sm:$0xf]
    %v5392 = vld [vmem:[#allocation2 + $0x234] sm:$0xf]
    %v5393 = vld [vmem:[#allocation2 + $0x25c] sm:$0xf]
    %v5394 = vpack.c.bf16 %v5190, %v5185
    %v5395 = vpack.c.bf16 %v5195, %v5195
    %v5412 = vunpack.c.l.b16 %v5378
    %v5413 = vunpack.c.l.b16 %v5379
    %v5414 = vunpack.c.l.b16 %v5380
    %v5415 = vunpack.c.l.b16 %v5381
    %v5416 = vunpack.c.l.b16 %v5382
    %v5417 = vunpack.c.l.b16 %v5383
    %v5418 = vunpack.c.l.b16 %v5384
    %v5419 = vunpack.c.l.b16 %v5385
    %v5420 = vunpack.c.l.b16 %v5386
    %v5421 = vunpack.c.l.b16 %v5387
    %v5422 = vunpack.c.l.b16 %v5388
    %v5423 = vunpack.c.l.b16 %v5389
    %v5424 = vunpack.c.l.b16 %v5390
    %v5425 = vunpack.c.l.b16 %v5391
    %v5426 = vunpack.c.l.b16 %v5392
    %v5427 = vunpack.c.l.b16 %v5393
    %v5428 = vpack.c.b16 %v5413, %v5412
    %v5429 = vpack.c.b16 %v5415, %v5414
    %v5430 = vpack.c.b16 %v5417, %v5416
    %v5431 = vpack.c.b16 %v5419, %v5418
    %v5432 = vpack.c.b16 %v5421, %v5420
    %v5433 = vpack.c.b16 %v5423, %v5422
    %v5434 = vpack.c.b16 %v5425, %v5424
    %v5435 = vpack.c.b16 %v5427, %v5426
    %5444 = vmatprep.subr.bf16.mxu0 0
    %5445 = vmatpush1.bf16.msra.mxu0 %v5428
    %5446 = vmatprep.subr.bf16.mxu0 0
    %5447 = vmatpush1.bf16.msra.mxu0 %v5429
    %5448 = vmatprep.subr.bf16.mxu0 0
    %5449 = vmatpush1.bf16.msra.mxu0 %v5430
    %5450 = vmatprep.subr.bf16.mxu0 0
    %5451 = vmatpush1.bf16.msra.mxu0 %v5431
    %5452 = vmatprep.subr.bf16.mxu0 0
    %5453 = vmatpush1.bf16.msra.mxu0 %v5432
    %5454 = vmatprep.subr.bf16.mxu0 0
    %5455 = vmatpush1.bf16.msra.mxu0 %v5433
    %5456 = vmatprep.subr.bf16.mxu0 0
    %5457 = vmatpush1.bf16.msra.mxu0 %v5434
    %5458 = vmatprep.subr.bf16.mxu0 0
    %5459 = vmatpush1.bf16.msra.mxu0 %v5435
    %5460 = vmatprep.subr.bf16.mxu0 0
    %5461 = vmatpush1.bf16.msra.mxu0 0
    %5462 = vmatprep.subr.bf16.mxu0 0
    %5463 = vmatpush1.bf16.msra.mxu0 0
    %5464 = vmatprep.subr.bf16.mxu0 0
    %5465 = vmatpush1.bf16.msra.mxu0 0
    %5466 = vmatprep.subr.bf16.mxu0 0
    %5467 = vmatpush1.bf16.msra.mxu0 0
    %5468 = vmatprep.subr.bf16.mxu0 0
    %5469 = vmatpush1.bf16.msra.mxu0 0
    %5470 = vmatprep.subr.bf16.mxu0 0
    %5471 = vmatpush1.bf16.msra.mxu0 0
    %5472 = vmatprep.subr.bf16.mxu0 0
    %5473 = vmatpush1.bf16.msra.mxu0 0
    %5474 = vmatprep.subr.bf16.mxu0 0
    %5475 = vmatpush1.bf16.msra.mxu0 0
    %5476 = vmatprep.mubr.bf16.mxu0 0
    %5477 = vmatmul.mubr.bf16.gmra.mrb[0].mxu0 %v5394
    %v5478 = vpop.f32.mrb[0].mxu0
    %v5479 = vadd.f32 0.0, %v5478
    %v5480 = vpop.f32.mrb[0].mxu0
    %v5481 = vpop.f32.mrb[0].mxu0
    %v5482 = vadd.f32 0.0, %v5481
    %v5483 = vpop.f32.mrb[0].mxu0
    %5484 = vmatprep.mubr.bf16.mxu0 0
    %5485 = vmatmul.mubr.bf16.gmra.mrb[0].mxu0 %v5395
    %v5486 = vpop.f32.mrb[0].mxu0
    %v5487 = vadd.f32 0.0, %v5486
    %v5488 = vpop.f32.mrb[0].mxu0
    %v5489 = vpop.f32.mrb[0].mxu0
    %v5490 = vpop.f32.mrb[0].mxu0
    %5491 = vdwg.mxu0
    %v5492 = vld [vmem:[#allocation2 + $0x8] sm:$0xff]
    %v5493 = vld [vmem:[#allocation2 + $0x10] sm:$0xff]
    %v5494 = vld [vmem:[#allocation2 + $0x18] sm:$0xff]
    %v5495 = vld [vmem:[#allocation2 + $0x20] sm:$0xff]
    %v5496 = vld [vmem:[#allocation2 + $0x30] sm:$0xff]
    %v5497 = vld [vmem:[#allocation2 + $0x38] sm:$0xff]
    %v5498 = vld [vmem:[#allocation2 + $0x40] sm:$0xff]
    %v5499 = vld [vmem:[#allocation2 + $0x48] sm:$0xff]
    %v5500 = vld [vmem:[#allocation2 + $0x58] sm:$0xff]
    %v5501 = vld [vmem:[#allocation2 + $0x60] sm:$0xff]
    %v5502 = vld [vmem:[#allocation2 + $0x68] sm:$0xff]
    %v5503 = vld [vmem:[#allocation2 + $0x70] sm:$0xff]
    %v5504 = vld [vmem:[#allocation2 + $0x80] sm:$0xff]
    %v5505 = vld [vmem:[#allocation2 + $0x88] sm:$0xff]
    %v5506 = vld [vmem:[#allocation2 + $0x90] sm:$0xff]
    %v5507 = vld [vmem:[#allocation2 + $0x98] sm:$0xff]
    %v5508 = vld [vmem:[#allocation2 + $0xa8] sm:$0xff]
    %v5509 = vld [vmem:[#allocation2 + $0xb0] sm:$0xff]
    %v5510 = vld [vmem:[#allocation2 + $0xb8] sm:$0xff]
    %v5511 = vld [vmem:[#allocation2 + $0xc0] sm:$0xff]
    %v5512 = vld [vmem:[#allocation2 + $0xd0] sm:$0xff]
    %v5513 = vld [vmem:[#allocation2 + $0xd8] sm:$0xff]
    %v5514 = vld [vmem:[#allocation2 + $0xe0] sm:$0xff]
    %v5515 = vld [vmem:[#allocation2 + $0xe8] sm:$0xff]
    %v5516 = vld [vmem:[#allocation2 + $0xf8] sm:$0xff]
    %v5517 = vld [vmem:[#allocation2 + $0x100] sm:$0xff]
    %v5518 = vld [vmem:[#allocation2 + $0x108] sm:$0xff]
    %v5519 = vld [vmem:[#allocation2 + $0x110] sm:$0xff]
    %v5520 = vld [vmem:[#allocation2 + $0x120] sm:$0xff]
    %v5521 = vld [vmem:[#allocation2 + $0x128] sm:$0xff]
    %v5522 = vld [vmem:[#allocation2 + $0x130] sm:$0xff]
    %v5523 = vld [vmem:[#allocation2 + $0x138] sm:$0xff]
    %v5524 = vld [vmem:[#allocation2 + $0x148] sm:$0xff]
    %v5525 = vld [vmem:[#allocation2 + $0x150] sm:$0xff]
    %v5526 = vld [vmem:[#allocation2 + $0x158] sm:$0xff]
    %v5527 = vld [vmem:[#allocation2 + $0x160] sm:$0xff]
    %v5528 = vld [vmem:[#allocation2 + $0x170] sm:$0xff]
    %v5529 = vld [vmem:[#allocation2 + $0x178] sm:$0xff]
    %v5530 = vld [vmem:[#allocation2 + $0x180] sm:$0xff]
    %v5531 = vld [vmem:[#allocation2 + $0x188] sm:$0xff]
    %v5532 = vld [vmem:[#allocation2 + $0x198] sm:$0xff]
    %v5533 = vld [vmem:[#allocation2 + $0x1a0] sm:$0xff]
    %v5534 = vld [vmem:[#allocation2 + $0x1a8] sm:$0xff]
    %v5535 = vld [vmem:[#allocation2 + $0x1b0] sm:$0xff]
    %v5536 = vld [vmem:[#allocation2 + $0x1c0] sm:$0xff]
    %v5537 = vld [vmem:[#allocation2 + $0x1c8] sm:$0xff]
    %v5538 = vld [vmem:[#allocation2 + $0x1d0] sm:$0xff]
    %v5539 = vld [vmem:[#allocation2 + $0x1d8] sm:$0xff]
    %v5540 = vld [vmem:[#allocation2 + $0x1e8] sm:$0xff]
    %v5541 = vld [vmem:[#allocation2 + $0x1f0] sm:$0xff]
    %v5542 = vld [vmem:[#allocation2 + $0x1f8] sm:$0xff]
    %v5543 = vld [vmem:[#allocation2 + $0x200] sm:$0xff]
    %v5544 = vld [vmem:[#allocation2 + $0x210] sm:$0xff]
    %v5545 = vld [vmem:[#allocation2 + $0x218] sm:$0xff]
    %v5546 = vld [vmem:[#allocation2 + $0x220] sm:$0xff]
    %v5547 = vld [vmem:[#allocation2 + $0x228] sm:$0xff]
    %v5548 = vld [vmem:[#allocation2 + $0x238] sm:$0xff]
    %v5549 = vld [vmem:[#allocation2 + $0x240] sm:$0xff]
    %v5550 = vld [vmem:[#allocation2 + $0x248] sm:$0xff]
    %v5551 = vld [vmem:[#allocation2 + $0x250] sm:$0xff]
    %v5552 = vld [vmem:[#allocation2 + $0x260] sm:$0xff]
    %v5553 = vld [vmem:[#allocation2 + $0x268] sm:$0xff]
    %v5554 = vld [vmem:[#allocation2 + $0x270] sm:$0xff]
    %v5555 = vld [vmem:[#allocation2 + $0x278] sm:$0xff]
    %v5556 = vpack.c.bf16 %v5192, %v5187
    %v5557 = vpack.c.bf16 %v5197, %v5197
    %v5622 = vunpack.c.l.b16 %v5492
    %v5623 = vunpack.c.h.b16 %v5492
    %v5624 = vunpack.c.l.b16 %v5493
    %v5625 = vunpack.c.h.b16 %v5493
    %v5626 = vunpack.c.l.b16 %v5494
    %v5627 = vunpack.c.h.b16 %v5494
    %v5628 = vunpack.c.l.b16 %v5495
    %v5629 = vunpack.c.h.b16 %v5495
    %v5630 = vunpack.c.l.b16 %v5496
    %v5631 = vunpack.c.h.b16 %v5496
    %v5632 = vunpack.c.l.b16 %v5497
    %v5633 = vunpack.c.h.b16 %v5497
    %v5634 = vunpack.c.l.b16 %v5498
    %v5635 = vunpack.c.h.b16 %v5498
    %v5636 = vunpack.c.l.b16 %v5499
    %v5637 = vunpack.c.h.b16 %v5499
    %v5638 = vunpack.c.l.b16 %v5500
    %v5639 = vunpack.c.h.b16 %v5500
    %v5640 = vunpack.c.l.b16 %v5501
    %v5641 = vunpack.c.h.b16 %v5501
    %v5642 = vunpack.c.l.b16 %v5502
    %v5643 = vunpack.c.h.b16 %v5502
    %v5644 = vunpack.c.l.b16 %v5503
    %v5645 = vunpack.c.h.b16 %v5503
    %v5646 = vunpack.c.l.b16 %v5504
    %v5647 = vunpack.c.h.b16 %v5504
    %v5648 = vunpack.c.l.b16 %v5505
    %v5649 = vunpack.c.h.b16 %v5505
    %v5650 = vunpack.c.l.b16 %v5506
    %v5651 = vunpack.c.h.b16 %v5506
    %v5652 = vunpack.c.l.b16 %v5507
    %v5653 = vunpack.c.h.b16 %v5507
    %v5654 = vunpack.c.l.b16 %v5508
    %v5655 = vunpack.c.h.b16 %v5508
    %v5656 = vunpack.c.l.b16 %v5509
    %v5657 = vunpack.c.h.b16 %v5509
    %v5658 = vunpack.c.l.b16 %v5510
    %v5659 = vunpack.c.h.b16 %v5510
    %v5660 = vunpack.c.l.b16 %v5511
    %v5661 = vunpack.c.h.b16 %v5511
    %v5662 = vunpack.c.l.b16 %v5512
    %v5663 = vunpack.c.h.b16 %v5512
    %v5664 = vunpack.c.l.b16 %v5513
    %v5665 = vunpack.c.h.b16 %v5513
    %v5666 = vunpack.c.l.b16 %v5514
    %v5667 = vunpack.c.h.b16 %v5514
    %v5668 = vunpack.c.l.b16 %v5515
    %v5669 = vunpack.c.h.b16 %v5515
    %v5670 = vunpack.c.l.b16 %v5516
    %v5671 = vunpack.c.h.b16 %v5516
    %v5672 = vunpack.c.l.b16 %v5517
    %v5673 = vunpack.c.h.b16 %v5517
    %v5674 = vunpack.c.l.b16 %v5518
    %v5675 = vunpack.c.h.b16 %v5518
    %v5676 = vunpack.c.l.b16 %v5519
    %v5677 = vunpack.c.h.b16 %v5519
    %v5678 = vunpack.c.l.b16 %v5520
    %v5679 = vunpack.c.h.b16 %v5520
    %v5680 = vunpack.c.l.b16 %v5521
    %v5681 = vunpack.c.h.b16 %v5521
    %v5682 = vunpack.c.l.b16 %v5522
    %v5683 = vunpack.c.h.b16 %v5522
    %v5684 = vunpack.c.l.b16 %v5523
    %v5685 = vunpack.c.h.b16 %v5523
    %v5686 = vunpack.c.l.b16 %v5524
    %v5687 = vunpack.c.h.b16 %v5524
    %v5688 = vunpack.c.l.b16 %v5525
    %v5689 = vunpack.c.h.b16 %v5525
    %v5690 = vunpack.c.l.b16 %v5526
    %v5691 = vunpack.c.h.b16 %v5526
    %v5692 = vunpack.c.l.b16 %v5527
    %v5693 = vunpack.c.h.b16 %v5527
    %v5694 = vunpack.c.l.b16 %v5528
    %v5695 = vunpack.c.h.b16 %v5528
    %v5696 = vunpack.c.l.b16 %v5529
    %v5697 = vunpack.c.h.b16 %v5529
    %v5698 = vunpack.c.l.b16 %v5530
    %v5699 = vunpack.c.h.b16 %v5530
    %v5700 = vunpack.c.l.b16 %v5531
    %v5701 = vunpack.c.h.b16 %v5531
    %v5702 = vunpack.c.l.b16 %v5532
    %v5703 = vunpack.c.h.b16 %v5532
    %v5704 = vunpack.c.l.b16 %v5533
    %v5705 = vunpack.c.h.b16 %v5533
    %v5706 = vunpack.c.l.b16 %v5534
    %v5707 = vunpack.c.h.b16 %v5534
    %v5708 = vunpack.c.l.b16 %v5535
    %v5709 = vunpack.c.h.b16 %v5535
    %v5710 = vunpack.c.l.b16 %v5536
    %v5711 = vunpack.c.h.b16 %v5536
    %v5712 = vunpack.c.l.b16 %v5537
    %v5713 = vunpack.c.h.b16 %v5537
    %v5714 = vunpack.c.l.b16 %v5538
    %v5715 = vunpack.c.h.b16 %v5538
    %v5716 = vunpack.c.l.b16 %v5539
    %v5717 = vunpack.c.h.b16 %v5539
    %v5718 = vunpack.c.l.b16 %v5540
    %v5719 = vunpack.c.h.b16 %v5540
    %v5720 = vunpack.c.l.b16 %v5541
    %v5721 = vunpack.c.h.b16 %v5541
    %v5722 = vunpack.c.l.b16 %v5542
    %v5723 = vunpack.c.h.b16 %v5542
    %v5724 = vunpack.c.l.b16 %v5543
    %v5725 = vunpack.c.h.b16 %v5543
    %v5726 = vunpack.c.l.b16 %v5544
    %v5727 = vunpack.c.h.b16 %v5544
    %v5728 = vunpack.c.l.b16 %v5545
    %v5729 = vunpack.c.h.b16 %v5545
    %v5730 = vunpack.c.l.b16 %v5546
    %v5731 = vunpack.c.h.b16 %v5546
    %v5732 = vunpack.c.l.b16 %v5547
    %v5733 = vunpack.c.h.b16 %v5547
    %v5734 = vunpack.c.l.b16 %v5548
    %v5735 = vunpack.c.h.b16 %v5548
    %v5736 = vunpack.c.l.b16 %v5549
    %v5737 = vunpack.c.h.b16 %v5549
    %v5738 = vunpack.c.l.b16 %v5550
    %v5739 = vunpack.c.h.b16 %v5550
    %v5740 = vunpack.c.l.b16 %v5551
    %v5741 = vunpack.c.h.b16 %v5551
    %v5742 = vunpack.c.l.b16 %v5552
    %v5743 = vunpack.c.h.b16 %v5552
    %v5744 = vunpack.c.l.b16 %v5553
    %v5745 = vunpack.c.h.b16 %v5553
    %v5746 = vunpack.c.l.b16 %v5554
    %v5747 = vunpack.c.h.b16 %v5554
    %v5748 = vunpack.c.l.b16 %v5555
    %v5749 = vunpack.c.h.b16 %v5555
    %v5750 = vpack.c.b16 %v5630, %v5622
    %v5751 = vpack.c.b16 %v5631, %v5623
    %v5752 = vpack.c.b16 %v5632, %v5624
    %v5753 = vpack.c.b16 %v5633, %v5625
    %v5754 = vpack.c.b16 %v5634, %v5626
    %v5755 = vpack.c.b16 %v5635, %v5627
    %v5756 = vpack.c.b16 %v5636, %v5628
    %v5757 = vpack.c.b16 %v5637, %v5629
    %v5758 = vpack.c.b16 %v5646, %v5638
    %v5759 = vpack.c.b16 %v5647, %v5639
    %v5760 = vpack.c.b16 %v5648, %v5640
    %v5761 = vpack.c.b16 %v5649, %v5641
    %v5762 = vpack.c.b16 %v5650, %v5642
    %v5763 = vpack.c.b16 %v5651, %v5643
    %v5764 = vpack.c.b16 %v5652, %v5644
    %v5765 = vpack.c.b16 %v5653, %v5645
    %v5766 = vpack.c.b16 %v5662, %v5654
    %v5767 = vpack.c.b16 %v5663, %v5655
    %v5768 = vpack.c.b16 %v5664, %v5656
    %v5769 = vpack.c.b16 %v5665, %v5657
    %v5770 = vpack.c.b16 %v5666, %v5658
    %v5771 = vpack.c.b16 %v5667, %v5659
    %v5772 = vpack.c.b16 %v5668, %v5660
    %v5773 = vpack.c.b16 %v5669, %v5661
    %v5774 = vpack.c.b16 %v5678, %v5670
    %v5775 = vpack.c.b16 %v5679, %v5671
    %v5776 = vpack.c.b16 %v5680, %v5672
    %v5777 = vpack.c.b16 %v5681, %v5673
    %v5778 = vpack.c.b16 %v5682, %v5674
    %v5779 = vpack.c.b16 %v5683, %v5675
    %v5780 = vpack.c.b16 %v5684, %v5676
    %v5781 = vpack.c.b16 %v5685, %v5677
    %v5782 = vpack.c.b16 %v5694, %v5686
    %v5783 = vpack.c.b16 %v5695, %v5687
    %v5784 = vpack.c.b16 %v5696, %v5688
    %v5785 = vpack.c.b16 %v5697, %v5689
    %v5786 = vpack.c.b16 %v5698, %v5690
    %v5787 = vpack.c.b16 %v5699, %v5691
    %v5788 = vpack.c.b16 %v5700, %v5692
    %v5789 = vpack.c.b16 %v5701, %v5693
    %v5790 = vpack.c.b16 %v5710, %v5702
    %v5791 = vpack.c.b16 %v5711, %v5703
    %v5792 = vpack.c.b16 %v5712, %v5704
    %v5793 = vpack.c.b16 %v5713, %v5705
    %v5794 = vpack.c.b16 %v5714, %v5706
    %v5795 = vpack.c.b16 %v5715, %v5707
    %v5796 = vpack.c.b16 %v5716, %v5708
    %v5797 = vpack.c.b16 %v5717, %v5709
    %v5798 = vpack.c.b16 %v5726, %v5718
    %v5799 = vpack.c.b16 %v5727, %v5719
    %v5800 = vpack.c.b16 %v5728, %v5720
    %v5801 = vpack.c.b16 %v5729, %v5721
    %v5802 = vpack.c.b16 %v5730, %v5722
    %v5803 = vpack.c.b16 %v5731, %v5723
    %v5804 = vpack.c.b16 %v5732, %v5724
    %v5805 = vpack.c.b16 %v5733, %v5725
    %v5806 = vpack.c.b16 %v5742, %v5734
    %v5807 = vpack.c.b16 %v5743, %v5735
    %v5808 = vpack.c.b16 %v5744, %v5736
    %v5809 = vpack.c.b16 %v5745, %v5737
    %v5810 = vpack.c.b16 %v5746, %v5738
    %v5811 = vpack.c.b16 %v5747, %v5739
    %v5812 = vpack.c.b16 %v5748, %v5740
    %v5813 = vpack.c.b16 %v5749, %v5741
    %5878 = vmatprep.subr.bf16.mxu0 %v5751
    %5879 = vmatpush1.bf16.msra.mxu0 %v5750
    %5880 = vmatprep.subr.bf16.mxu0 %v5759
    %5881 = vmatpush1.bf16.msra.mxu0 %v5758
    %5882 = vmatprep.subr.bf16.mxu0 %v5767
    %5883 = vmatpush1.bf16.msra.mxu0 %v5766
    %5884 = vmatprep.subr.bf16.mxu0 %v5775
    %5885 = vmatpush1.bf16.msra.mxu0 %v5774
    %5886 = vmatprep.subr.bf16.mxu0 %v5783
    %5887 = vmatpush1.bf16.msra.mxu0 %v5782
    %5888 = vmatprep.subr.bf16.mxu0 %v5791
    %5889 = vmatpush1.bf16.msra.mxu0 %v5790
    %5890 = vmatprep.subr.bf16.mxu0 %v5799
    %5891 = vmatpush1.bf16.msra.mxu0 %v5798
    %5892 = vmatprep.subr.bf16.mxu0 %v5807
    %5893 = vmatpush1.bf16.msra.mxu0 %v5806
    %5894 = vmatprep.subr.bf16.mxu0 0
    %5895 = vmatpush1.bf16.msra.mxu0 0
    %5896 = vmatprep.subr.bf16.mxu0 0
    %5897 = vmatpush1.bf16.msra.mxu0 0
    %5898 = vmatprep.subr.bf16.mxu0 0
    %5899 = vmatpush1.bf16.msra.mxu0 0
    %5900 = vmatprep.subr.bf16.mxu0 0
    %5901 = vmatpush1.bf16.msra.mxu0 0
    %5902 = vmatprep.subr.bf16.mxu0 0
    %5903 = vmatpush1.bf16.msra.mxu0 0
    %5904 = vmatprep.subr.bf16.mxu0 0
    %5905 = vmatpush1.bf16.msra.mxu0 0
    %5906 = vmatprep.subr.bf16.mxu0 0
    %5907 = vmatpush1.bf16.msra.mxu0 0
    %5908 = vmatprep.subr.bf16.mxu0 0
    %5909 = vmatpush1.bf16.msra.mxu0 0
    %5910 = vmatprep.mubr.bf16.mxu0 0
    %5911 = vmatmul.mubr.bf16.gmra.mrb[0].mxu0 %v5556
    %v5912 = vpop.f32.mrb[0].mxu0
    %v5913 = vadd.f32 0.0, %v5912
    %v5914 = vpop.f32.mrb[0].mxu0
    %v5915 = vadd.f32 0.0, %v5914
    %v5916 = vpop.f32.mrb[0].mxu0
    %v5917 = vadd.f32 0.0, %v5916
    %v5918 = vpop.f32.mrb[0].mxu0
    %v5919 = vadd.f32 0.0, %v5918
    %5920 = vmatprep.mubr.bf16.mxu0 0
    %5921 = vmatmul.mubr.bf16.gmra.mrb[0].mxu0 %v5557
    %v5922 = vpop.f32.mrb[0].mxu0
    %v5923 = vadd.f32 0.0, %v5922
    %v5924 = vpop.f32.mrb[0].mxu0
    %v5925 = vadd.f32 0.0, %v5924
    %v5926 = vpop.f32.mrb[0].mxu0
    %v5927 = vpop.f32.mrb[0].mxu0
    %5928 = vdwg.mxu0
    %5929 = vmatprep.subr.bf16.mxu0 %v5753
    %5930 = vmatpush1.bf16.msra.mxu0 %v5752
    %5931 = vmatprep.subr.bf16.mxu0 %v5761
    %5932 = vmatpush1.bf16.msra.mxu0 %v5760
    %5933 = vmatprep.subr.bf16.mxu0 %v5769
    %5934 = vmatpush1.bf16.msra.mxu0 %v5768
    %5935 = vmatprep.subr.bf16.mxu0 %v5777
    %5936 = vmatpush1.bf16.msra.mxu0 %v5776
    %5937 = vmatprep.subr.bf16.mxu0 %v5785
    %5938 = vmatpush1.bf16.msra.mxu0 %v5784
    %5939 = vmatprep.subr.bf16.mxu0 %v5793
    %5940 = vmatpush1.bf16.msra.mxu0 %v5792
    %5941 = vmatprep.subr.bf16.mxu0 %v5801
    %5942 = vmatpush1.bf16.msra.mxu0 %v5800
    %5943 = vmatprep.subr.bf16.mxu0 %v5809
    %5944 = vmatpush1.bf16.msra.mxu0 %v5808
    %5945 = vmatprep.subr.bf16.mxu0 0
    %5946 = vmatpush1.bf16.msra.mxu0 0
    %5947 = vmatprep.subr.bf16.mxu0 0
    %5948 = vmatpush1.bf16.msra.mxu0 0
    %5949 = vmatprep.subr.bf16.mxu0 0
    %5950 = vmatpush1.bf16.msra.mxu0 0
    %5951 = vmatprep.subr.bf16.mxu0 0
    %5952 = vmatpush1.bf16.msra.mxu0 0
    %5953 = vmatprep.subr.bf16.mxu0 0
    %5954 = vmatpush1.bf16.msra.mxu0 0
    %5955 = vmatprep.subr.bf16.mxu0 0
    %5956 = vmatpush1.bf16.msra.mxu0 0
    %5957 = vmatprep.subr.bf16.mxu0 0
    %5958 = vmatpush1.bf16.msra.mxu0 0
    %5959 = vmatprep.subr.bf16.mxu0 0
    %5960 = vmatpush1.bf16.msra.mxu0 0
    %5961 = vmatprep.mubr.bf16.mxu0 0
    %5962 = vmatmul.mubr.bf16.gmra.mrb[0].mxu0 %v5556
    %v5963 = vpop.f32.mrb[0].mxu0
    %v5964 = vadd.f32 0.0, %v5963
    %v5965 = vpop.f32.mrb[0].mxu0
    %v5966 = vadd.f32 0.0, %v5965
    %v5967 = vpop.f32.mrb[0].mxu0
    %v5968 = vadd.f32 0.0, %v5967
    %v5969 = vpop.f32.mrb[0].mxu0
    %v5970 = vadd.f32 0.0, %v5969
    %5971 = vmatprep.mubr.bf16.mxu0 0
    %5972 = vmatmul.mubr.bf16.gmra.mrb[0].mxu0 %v5557
    %v5973 = vpop.f32.mrb[0].mxu0
    %v5974 = vadd.f32 0.0, %v5973
    %v5975 = vpop.f32.mrb[0].mxu0
    %v5976 = vadd.f32 0.0, %v5975
    %v5977 = vpop.f32.mrb[0].mxu0
    %v5978 = vpop.f32.mrb[0].mxu0
    %5979 = vdwg.mxu0
    %5980 = vmatprep.subr.bf16.mxu0 %v5755
    %5981 = vmatpush1.bf16.msra.mxu0 %v5754
    %5982 = vmatprep.subr.bf16.mxu0 %v5763
    %5983 = vmatpush1.bf16.msra.mxu0 %v5762
    %5984 = vmatprep.subr.bf16.mxu0 %v5771
    %5985 = vmatpush1.bf16.msra.mxu0 %v5770
    %5986 = vmatprep.subr.bf16.mxu0 %v5779
    %5987 = vmatpush1.bf16.msra.mxu0 %v5778
    %5988 = vmatprep.subr.bf16.mxu0 %v5787
    %5989 = vmatpush1.bf16.msra.mxu0 %v5786
    %5990 = vmatprep.subr.bf16.mxu0 %v5795
    %5991 = vmatpush1.bf16.msra.mxu0 %v5794
    %5992 = vmatprep.subr.bf16.mxu0 %v5803
    %5993 = vmatpush1.bf16.msra.mxu0 %v5802
    %5994 = vmatprep.subr.bf16.mxu0 %v5811
    %5995 = vmatpush1.bf16.msra.mxu0 %v5810
    %5996 = vmatprep.subr.bf16.mxu0 0
    %5997 = vmatpush1.bf16.msra.mxu0 0
    %5998 = vmatprep.subr.bf16.mxu0 0
    %5999 = vmatpush1.bf16.msra.mxu0 0
    %6000 = vmatprep.subr.bf16.mxu0 0
    %6001 = vmatpush1.bf16.msra.mxu0 0
    %6002 = vmatprep.subr.bf16.mxu0 0
    %6003 = vmatpush1.bf16.msra.mxu0 0
    %6004 = vmatprep.subr.bf16.mxu0 0
    %6005 = vmatpush1.bf16.msra.mxu0 0
    %6006 = vmatprep.subr.bf16.mxu0 0
    %6007 = vmatpush1.bf16.msra.mxu0 0
    %6008 = vmatprep.subr.bf16.mxu0 0
    %6009 = vmatpush1.bf16.msra.mxu0 0
    %6010 = vmatprep.subr.bf16.mxu0 0
    %6011 = vmatpush1.bf16.msra.mxu0 0
    %6012 = vmatprep.mubr.bf16.mxu0 0
    %6013 = vmatmul.mubr.bf16.gmra.mrb[0].mxu0 %v5556
    %v6014 = vpop.f32.mrb[0].mxu0
    %v6015 = vadd.f32 0.0, %v6014
    %v6016 = vpop.f32.mrb[0].mxu0
    %v6017 = vadd.f32 0.0, %v6016
    %v6018 = vpop.f32.mrb[0].mxu0
    %v6019 = vadd.f32 0.0, %v6018
    %v6020 = vpop.f32.mrb[0].mxu0
    %v6021 = vadd.f32 0.0, %v6020
    %6022 = vmatprep.mubr.bf16.mxu0 0
    %6023 = vmatmul.mubr.bf16.gmra.mrb[0].mxu0 %v5557
    %v6024 = vpop.f32.mrb[0].mxu0
    %v6025 = vadd.f32 0.0, %v6024
    %v6026 = vpop.f32.mrb[0].mxu0
    %v6027 = vadd.f32 0.0, %v6026
    %v6028 = vpop.f32.mrb[0].mxu0
    %v6029 = vpop.f32.mrb[0].mxu0
    %6030 = vdwg.mxu0
    %6031 = vmatprep.subr.bf16.mxu0 %v5757
    %6032 = vmatpush1.bf16.msra.mxu0 %v5756
    %6033 = vmatprep.subr.bf16.mxu0 %v5765
    %6034 = vmatpush1.bf16.msra.mxu0 %v5764
    %6035 = vmatprep.subr.bf16.mxu0 %v5773
    %6036 = vmatpush1.bf16.msra.mxu0 %v5772
    %6037 = vmatprep.subr.bf16.mxu0 %v5781
    %6038 = vmatpush1.bf16.msra.mxu0 %v5780
    %6039 = vmatprep.subr.bf16.mxu0 %v5789
    %6040 = vmatpush1.bf16.msra.mxu0 %v5788
    %6041 = vmatprep.subr.bf16.mxu0 %v5797
    %6042 = vmatpush1.bf16.msra.mxu0 %v5796
    %6043 = vmatprep.subr.bf16.mxu0 %v5805
    %6044 = vmatpush1.bf16.msra.mxu0 %v5804
    %6045 = vmatprep.subr.bf16.mxu0 %v5813
    %6046 = vmatpush1.bf16.msra.mxu0 %v5812
    %6047 = vmatprep.subr.bf16.mxu0 0
    %6048 = vmatpush1.bf16.msra.mxu0 0
    %6049 = vmatprep.subr.bf16.mxu0 0
    %6050 = vmatpush1.bf16.msra.mxu0 0
    %6051 = vmatprep.subr.bf16.mxu0 0
    %6052 = vmatpush1.bf16.msra.mxu0 0
    %6053 = vmatprep.subr.bf16.mxu0 0
    %6054 = vmatpush1.bf16.msra.mxu0 0
    %6055 = vmatprep.subr.bf16.mxu0 0
    %6056 = vmatpush1.bf16.msra.mxu0 0
    %6057 = vmatprep.subr.bf16.mxu0 0
    %6058 = vmatpush1.bf16.msra.mxu0 0
    %6059 = vmatprep.subr.bf16.mxu0 0
    %6060 = vmatpush1.bf16.msra.mxu0 0
    %6061 = vmatprep.subr.bf16.mxu0 0
    %6062 = vmatpush1.bf16.msra.mxu0 0
    %6063 = vmatprep.mubr.bf16.mxu0 0
    %6064 = vmatmul.mubr.bf16.gmra.mrb[0].mxu0 %v5556
    %v6065 = vpop.f32.mrb[0].mxu0
    %v6066 = vadd.f32 0.0, %v6065
    %v6067 = vpop.f32.mrb[0].mxu0
    %v6068 = vadd.f32 0.0, %v6067
    %v6069 = vpop.f32.mrb[0].mxu0
    %v6070 = vadd.f32 0.0, %v6069
    %v6071 = vpop.f32.mrb[0].mxu0
    %v6072 = vadd.f32 0.0, %v6071
    %6073 = vmatprep.mubr.bf16.mxu0 0
    %6074 = vmatmul.mubr.bf16.gmra.mrb[0].mxu0 %v5557
    %v6075 = vpop.f32.mrb[0].mxu0
    %v6076 = vadd.f32 0.0, %v6075
    %v6077 = vpop.f32.mrb[0].mxu0
    %v6078 = vadd.f32 0.0, %v6077
    %v6079 = vpop.f32.mrb[0].mxu0
    %v6080 = vpop.f32.mrb[0].mxu0
    %6081 = vdwg.mxu0
    %v6082 = vlaneseq
    %v6083 = vshrl.u32 %v6082, 7
    %v6084 = vadd.s32 %v6083, 8
    %vm6085 = vcmp.eq.s32.totalorder %v6083, %v5314
    %vm6086 = vcmp.eq.s32.totalorder %v6084, %v5314
    %6087 = vxpose.xlu0.b32.start [1/16] %v5186, 128
    %6088 = vxpose.xlu0.b32.cont [2/16] %v5191, 128
    %6089 = vxpose.xlu0.b32.cont [3/16] 0.0, 128
    %6090 = vxpose.xlu0.b32.cont [4/16] 0.0, 128
    %6091 = vxpose.xlu0.b32.cont [5/16] 0.0, 128
    %6092 = vxpose.xlu0.b32.cont [6/16] 0.0, 128
    %6093 = vxpose.xlu0.b32.cont [7/16] 0.0, 128
    %6094 = vxpose.xlu0.b32.cont [8/16] 0.0, 128
    %6095 = vxpose.xlu0.b32.cont [9/16] 0.0, 128
    %6096 = vxpose.xlu0.b32.cont [10/16] 0.0, 128
    %6097 = vxpose.xlu0.b32.cont [11/16] 0.0, 128
    %6098 = vxpose.xlu0.b32.cont [12/16] 0.0, 128
    %6099 = vxpose.xlu0.b32.cont [13/16] 0.0, 128
    %6100 = vxpose.xlu0.b32.cont [14/16] 0.0, 128
    %6101 = vxpose.xlu0.b32.cont [15/16] 0.0, 128
    %6102 = vxpose.xlu0.b32.end [16/16] 0.0, 128
    %v6103 = vpop.trf.xlu0
    %v6104 = vpop.trf.xlu0
    %v6105 = vpop.trf.xlu0
    %v6106 = vpop.trf.xlu0
    %v6107 = vpop.trf.xlu0
    %v6108 = vpop.trf.xlu0
    %v6109 = vpop.trf.xlu0
    %v6110 = vpop.trf.xlu0
    %v6111 = vpop.trf.xlu0
    %v6112 = vpop.trf.xlu0
    %v6113 = vpop.trf.xlu0
    %v6114 = vpop.trf.xlu0
    %v6115 = vpop.trf.xlu0
    %v6116 = vpop.trf.xlu0
    %v6117 = vpop.trf.xlu0
    %v6118 = vpop.trf.xlu0
    %v6119 = vpack.c.bf16 %v6104, %v6103
    %v6120 = vpack.c.bf16 %v6106, %v6105
    %v6121 = vpack.c.bf16 %v6108, %v6107
    %v6122 = vpack.c.bf16 %v6110, %v6109
    %v6123 = vpack.c.bf16 %v6112, %v6111
    %v6124 = vpack.c.bf16 %v6114, %v6113
    %v6125 = vpack.c.bf16 %v6116, %v6115
    %v6126 = vpack.c.bf16 %v6118, %v6117
    %6127 = vxpose.xlu0.b32.start [1/16] %v5188, 128
    %6128 = vxpose.xlu0.b32.cont [2/16] %v5193, 128
    %6129 = vxpose.xlu0.b32.cont [3/16] 0.0, 128
    %6130 = vxpose.xlu0.b32.cont [4/16] 0.0, 128
    %6131 = vxpose.xlu0.b32.cont [5/16] 0.0, 128
    %6132 = vxpose.xlu0.b32.cont [6/16] 0.0, 128
    %6133 = vxpose.xlu0.b32.cont [7/16] 0.0, 128
    %6134 = vxpose.xlu0.b32.cont [8/16] 0.0, 128
    %6135 = vxpose.xlu0.b32.cont [9/16] 0.0, 128
    %6136 = vxpose.xlu0.b32.cont [10/16] 0.0, 128
    %6137 = vxpose.xlu0.b32.cont [11/16] 0.0, 128
    %6138 = vxpose.xlu0.b32.cont [12/16] 0.0, 128
    %6139 = vxpose.xlu0.b32.cont [13/16] 0.0, 128
    %6140 = vxpose.xlu0.b32.cont [14/16] 0.0, 128
    %6141 = vxpose.xlu0.b32.cont [15/16] 0.0, 128
    %6142 = vxpose.xlu0.b32.end [16/16] 0.0, 128
    %v6143 = vpop.trf.xlu0
    %v6144 = vpop.trf.xlu0
    %v6145 = vpop.trf.xlu0
    %v6146 = vpop.trf.xlu0
    %v6147 = vpop.trf.xlu0
    %v6148 = vpop.trf.xlu0
    %v6149 = vpop.trf.xlu0
    %v6150 = vpop.trf.xlu0
    %v6151 = vpop.trf.xlu0
    %v6152 = vpop.trf.xlu0
    %v6153 = vpop.trf.xlu0
    %v6154 = vpop.trf.xlu0
    %v6155 = vpop.trf.xlu0
    %v6156 = vpop.trf.xlu0
    %v6157 = vpop.trf.xlu0
    %v6158 = vpop.trf.xlu0
    %v6159 = vpack.c.bf16 %v6144, %v6143
    %v6160 = vpack.c.bf16 %v6146, %v6145
    %v6161 = vpack.c.bf16 %v6148, %v6147
    %v6162 = vpack.c.bf16 %v6150, %v6149
    %v6163 = vpack.c.bf16 %v6152, %v6151
    %v6164 = vpack.c.bf16 %v6154, %v6153
    %v6165 = vpack.c.bf16 %v6156, %v6155
    %v6166 = vpack.c.bf16 %v6158, %v6157
    %v6167 = vpack.c.bf16 %v5482, %v5479
    %6168 = vmatprep.subr.bf16.mxu0 0
    %6169 = vmatpush1.bf16.msra.mxu0 %v6119
    %6170 = vmatprep.subr.bf16.mxu0 0
    %6171 = vmatpush1.bf16.msra.mxu0 %v6120
    %6172 = vmatprep.subr.bf16.mxu0 0
    %6173 = vmatpush1.bf16.msra.mxu0 %v6121
    %6174 = vmatprep.subr.bf16.mxu0 0
    %6175 = vmatpush1.bf16.msra.mxu0 %v6122
    %6176 = vmatprep.subr.bf16.mxu0 0
    %6177 = vmatpush1.bf16.msra.mxu0 %v6123
    %6178 = vmatprep.subr.bf16.mxu0 0
    %6179 = vmatpush1.bf16.msra.mxu0 %v6124
    %6180 = vmatprep.subr.bf16.mxu0 0
    %6181 = vmatpush1.bf16.msra.mxu0 %v6125
    %6182 = vmatprep.subr.bf16.mxu0 0
    %6183 = vmatpush1.bf16.msra.mxu0 %v6126
    %6184 = vmatprep.subr.bf16.mxu0 0
    %6185 = vmatpush1.bf16.msra.mxu0 0
    %6186 = vmatprep.subr.bf16.mxu0 0
    %6187 = vmatpush1.bf16.msra.mxu0 0
    %6188 = vmatprep.subr.bf16.mxu0 0
    %6189 = vmatpush1.bf16.msra.mxu0 0
    %6190 = vmatprep.subr.bf16.mxu0 0
    %6191 = vmatpush1.bf16.msra.mxu0 0
    %6192 = vmatprep.subr.bf16.mxu0 0
    %6193 = vmatpush1.bf16.msra.mxu0 0
    %6194 = vmatprep.subr.bf16.mxu0 0
    %6195 = vmatpush1.bf16.msra.mxu0 0
    %6196 = vmatprep.subr.bf16.mxu0 0
    %6197 = vmatpush1.bf16.msra.mxu0 0
    %6198 = vmatprep.subr.bf16.mxu0 0
    %6199 = vmatpush1.bf16.msra.mxu0 0
    %6200 = vmatprep.mubr.bf16.mxu0 0
    %6201 = vmatmul.mubr.bf16.gmra.mrb[0].mxu0 %v6167
    %v6202 = vpop.f32.mrb[0].mxu0
    %v6203 = vadd.f32 0.0, %v6202
    %v6204 = vpop.f32.mrb[0].mxu0
    %v6205 = vpop.f32.mrb[0].mxu0
    %v6206 = vadd.f32 0.0, %v6205
    %v6207 = vpop.f32.mrb[0].mxu0
    %6208 = vdwg.mxu0
    %v6209 = vsel %vm6085, -inf, %v6203
    %v6210 = vsel %vm6086, -inf, %v6206
    %vm6211 = vcmask 72704
    %v6212 = vsel %vm6211, %v6209, -inf
    %6213 = vmax.xlane.f32.xlu0 %v6212
    %v6214 = vpop.xlane.xlu0 %6213
    %vm6215 = vcmask 65536
    %v6216 = vsel %vm6215, %v6210, -inf
    %6217 = vmax.xlane.f32.xlu0 %v6216
    %v6218 = vpop.xlane.xlu0 %6217
    %v6219 = vsub.f32 %v6209, %v6214
    %v6220 = vsub.f32 %v6210, %v6218
    %v6221 = vmul.f32 %v6219, 1.442695
    %v6222 = vpow.pop %v6221
    %v6223 = vmul.f32 %v6220, 1.442695
    %v6224 = vpow.pop %v6223
    %v6225 = vsel %vm6211, %v6222, 0.0
    %6226 = vadd.xlane.f32.xlu0 %v6225
    %v6227 = vpop.xlane.xlu0 %6226
    %v6228 = vsel %vm6215, %v6224, 0.0
    %6229 = vadd.xlane.f32.xlu0 %v6228
    %v6230 = vpop.xlane.xlu0 %6229
    %v6231 = vlog2.pop %v6227
    %v6232 = vmul.f32 %v6231, 0.6931472
    %v6233 = vlog2.pop %v6230
    %v6234 = vmul.f32 %v6233, 0.6931472
    %v6235 = vadd.f32 %v6232, %v6214
    %v6236 = vadd.f32 %v6234, %v6218
    %v6237 = vsub.f32 %v6209, %v6235
    %v6238 = vsub.f32 %v6210, %v6236
    %v6239 = vpack.c.bf16 %v5917, %v5913
    %6240 = vmatprep.subr.bf16.mxu0 0
    %6241 = vmatpush1.bf16.msra.mxu0 %v6159
    %6242 = vmatprep.subr.bf16.mxu0 0
    %6243 = vmatpush1.bf16.msra.mxu0 %v6160
    %6244 = vmatprep.subr.bf16.mxu0 0
    %6245 = vmatpush1.bf16.msra.mxu0 %v6161
    %6246 = vmatprep.subr.bf16.mxu0 0
    %6247 = vmatpush1.bf16.msra.mxu0 %v6162
    %6248 = vmatprep.subr.bf16.mxu0 0
    %6249 = vmatpush1.bf16.msra.mxu0 %v6163
    %6250 = vmatprep.subr.bf16.mxu0 0
    %6251 = vmatpush1.bf16.msra.mxu0 %v6164
    %6252 = vmatprep.subr.bf16.mxu0 0
    %6253 = vmatpush1.bf16.msra.mxu0 %v6165
    %6254 = vmatprep.subr.bf16.mxu0 0
    %6255 = vmatpush1.bf16.msra.mxu0 %v6166
    %6256 = vmatprep.subr.bf16.mxu0 0
    %6257 = vmatpush1.bf16.msra.mxu0 0
    %6258 = vmatprep.subr.bf16.mxu0 0
    %6259 = vmatpush1.bf16.msra.mxu0 0
    %6260 = vmatprep.subr.bf16.mxu0 0
    %6261 = vmatpush1.bf16.msra.mxu0 0
    %6262 = vmatprep.subr.bf16.mxu0 0
    %6263 = vmatpush1.bf16.msra.mxu0 0
    %6264 = vmatprep.subr.bf16.mxu0 0
    %6265 = vmatpush1.bf16.msra.mxu0 0
    %6266 = vmatprep.subr.bf16.mxu0 0
    %6267 = vmatpush1.bf16.msra.mxu0 0
    %6268 = vmatprep.subr.bf16.mxu0 0
    %6269 = vmatpush1.bf16.msra.mxu0 0
    %6270 = vmatprep.subr.bf16.mxu0 0
    %6271 = vmatpush1.bf16.msra.mxu0 0
    %6272 = vmatprep.mubr.bf16.mxu0 0
    %6273 = vmatmul.mubr.bf16.gmra.mrb[0].mxu0 %v6239
    %v6274 = vpop.f32.mrb[0].mxu0
    %v6275 = vadd.f32 0.0, %v6274
    %v6276 = vpop.f32.mrb[0].mxu0
    %v6277 = vpop.f32.mrb[0].mxu0
    %v6278 = vadd.f32 0.0, %v6277
    %v6279 = vpop.f32.mrb[0].mxu0
    %6280 = vdwg.mxu0
    %v6281 = vpack.c.bf16 %v5919, %v5915
    %6282 = vmatprep.subr.bf16.mxu0 0
    %6283 = vmatpush1.bf16.msra.mxu0 %v6159
    %6284 = vmatprep.subr.bf16.mxu0 0
    %6285 = vmatpush1.bf16.msra.mxu0 %v6160
    %6286 = vmatprep.subr.bf16.mxu0 0
    %6287 = vmatpush1.bf16.msra.mxu0 %v6161
    %6288 = vmatprep.subr.bf16.mxu0 0
    %6289 = vmatpush1.bf16.msra.mxu0 %v6162
    %6290 = vmatprep.subr.bf16.mxu0 0
    %6291 = vmatpush1.bf16.msra.mxu0 %v6163
    %6292 = vmatprep.subr.bf16.mxu0 0
    %6293 = vmatpush1.bf16.msra.mxu0 %v6164
    %6294 = vmatprep.subr.bf16.mxu0 0
    %6295 = vmatpush1.bf16.msra.mxu0 %v6165
    %6296 = vmatprep.subr.bf16.mxu0 0
    %6297 = vmatpush1.bf16.msra.mxu0 %v6166
    %6298 = vmatprep.subr.bf16.mxu0 0
    %6299 = vmatpush1.bf16.msra.mxu0 0
    %6300 = vmatprep.subr.bf16.mxu0 0
    %6301 = vmatpush1.bf16.msra.mxu0 0
    %6302 = vmatprep.subr.bf16.mxu0 0
    %6303 = vmatpush1.bf16.msra.mxu0 0
    %6304 = vmatprep.subr.bf16.mxu0 0
    %6305 = vmatpush1.bf16.msra.mxu0 0
    %6306 = vmatprep.subr.bf16.mxu0 0
    %6307 = vmatpush1.bf16.msra.mxu0 0
    %6308 = vmatprep.subr.bf16.mxu0 0
    %6309 = vmatpush1.bf16.msra.mxu0 0
    %6310 = vmatprep.subr.bf16.mxu0 0
    %6311 = vmatpush1.bf16.msra.mxu0 0
    %6312 = vmatprep.subr.bf16.mxu0 0
    %6313 = vmatpush1.bf16.msra.mxu0 0
    %6314 = vmatprep.mubr.bf16.mxu0 0
    %6315 = vmatmul.mubr.bf16.gmra.mrb[0].mxu0 %v6281
    %v6316 = vpop.f32.mrb[0].mxu0
    %v6317 = vadd.f32 0.0, %v6316
    %v6318 = vpop.f32.mrb[0].mxu0
    %v6319 = vpop.f32.mrb[0].mxu0
    %v6320 = vadd.f32 0.0, %v6319
    %v6321 = vpop.f32.mrb[0].mxu0
    %6322 = vdwg.mxu0
    %vm6323 = vcmp.gt.f32.partialorder %v6317, %v6275
    %vm6324 = vcmp.gt.f32.partialorder %v6320, %v6278
    %v6325 = vsel %vm6323, 1.0, 0.0
    %v6326 = vsel %vm6324, 1.0, 0.0
    %v6327 = vsel %vm6323, %v6317, %v6275
    %v6328 = vsel %vm6324, %v6320, %v6278
    %v6329 = vpack.c.bf16 %v5968, %v5964
    %6330 = vmatprep.subr.bf16.mxu0 0
    %6331 = vmatpush1.bf16.msra.mxu0 %v6159
    %6332 = vmatprep.subr.bf16.mxu0 0
    %6333 = vmatpush1.bf16.msra.mxu0 %v6160
    %6334 = vmatprep.subr.bf16.mxu0 0
    %6335 = vmatpush1.bf16.msra.mxu0 %v6161
    %6336 = vmatprep.subr.bf16.mxu0 0
    %6337 = vmatpush1.bf16.msra.mxu0 %v6162
    %6338 = vmatprep.subr.bf16.mxu0 0
    %6339 = vmatpush1.bf16.msra.mxu0 %v6163
    %6340 = vmatprep.subr.bf16.mxu0 0
    %6341 = vmatpush1.bf16.msra.mxu0 %v6164
    %6342 = vmatprep.subr.bf16.mxu0 0
    %6343 = vmatpush1.bf16.msra.mxu0 %v6165
    %6344 = vmatprep.subr.bf16.mxu0 0
    %6345 = vmatpush1.bf16.msra.mxu0 %v6166
    %6346 = vmatprep.subr.bf16.mxu0 0
    %6347 = vmatpush1.bf16.msra.mxu0 0
    %6348 = vmatprep.subr.bf16.mxu0 0
    %6349 = vmatpush1.bf16.msra.mxu0 0
    %6350 = vmatprep.subr.bf16.mxu0 0
    %6351 = vmatpush1.bf16.msra.mxu0 0
    %6352 = vmatprep.subr.bf16.mxu0 0
    %6353 = vmatpush1.bf16.msra.mxu0 0
    %6354 = vmatprep.subr.bf16.mxu0 0
    %6355 = vmatpush1.bf16.msra.mxu0 0
    %6356 = vmatprep.subr.bf16.mxu0 0
    %6357 = vmatpush1.bf16.msra.mxu0 0
    %6358 = vmatprep.subr.bf16.mxu0 0
    %6359 = vmatpush1.bf16.msra.mxu0 0
    %6360 = vmatprep.subr.bf16.mxu0 0
    %6361 = vmatpush1.bf16.msra.mxu0 0
    %6362 = vmatprep.mubr.bf16.mxu0 0
    %6363 = vmatmul.mubr.bf16.gmra.mrb[0].mxu0 %v6329
    %v6364 = vpop.f32.mrb[0].mxu0
    %v6365 = vadd.f32 0.0, %v6364
    %v6366 = vpop.f32.mrb[0].mxu0
    %v6367 = vpop.f32.mrb[0].mxu0
    %v6368 = vadd.f32 0.0, %v6367
    %v6369 = vpop.f32.mrb[0].mxu0
    %6370 = vdwg.mxu0
    %vm6371 = vcmp.gt.f32.partialorder %v6365, %v6327
    %vm6372 = vcmp.gt.f32.partialorder %v6368, %v6328
    %v6373 = vsel %vm6371, 2.0, %v6325
    %v6374 = vsel %vm6372, 2.0, %v6326
    %v6375 = vsel %vm6371, %v6365, %v6327
    %v6376 = vsel %vm6372, %v6368, %v6328
    %v6377 = vpack.c.bf16 %v5970, %v5966
    %6378 = vmatprep.subr.bf16.mxu0 0
    %6379 = vmatpush1.bf16.msra.mxu0 %v6159
    %6380 = vmatprep.subr.bf16.mxu0 0
    %6381 = vmatpush1.bf16.msra.mxu0 %v6160
    %6382 = vmatprep.subr.bf16.mxu0 0
    %6383 = vmatpush1.bf16.msra.mxu0 %v6161
    %6384 = vmatprep.subr.bf16.mxu0 0
    %6385 = vmatpush1.bf16.msra.mxu0 %v6162
    %6386 = vmatprep.subr.bf16.mxu0 0
    %6387 = vmatpush1.bf16.msra.mxu0 %v6163
    %6388 = vmatprep.subr.bf16.mxu0 0
    %6389 = vmatpush1.bf16.msra.mxu0 %v6164
    %6390 = vmatprep.subr.bf16.mxu0 0
    %6391 = vmatpush1.bf16.msra.mxu0 %v6165
    %6392 = vmatprep.subr.bf16.mxu0 0
    %6393 = vmatpush1.bf16.msra.mxu0 %v6166
    %6394 = vmatprep.subr.bf16.mxu0 0
    %6395 = vmatpush1.bf16.msra.mxu0 0
    %6396 = vmatprep.subr.bf16.mxu0 0
    %6397 = vmatpush1.bf16.msra.mxu0 0
    %6398 = vmatprep.subr.bf16.mxu0 0
    %6399 = vmatpush1.bf16.msra.mxu0 0
    %6400 = vmatprep.subr.bf16.mxu0 0
    %6401 = vmatpush1.bf16.msra.mxu0 0
    %6402 = vmatprep.subr.bf16.mxu0 0
    %6403 = vmatpush1.bf16.msra.mxu0 0
    %6404 = vmatprep.subr.bf16.mxu0 0
    %6405 = vmatpush1.bf16.msra.mxu0 0
    %6406 = vmatprep.subr.bf16.mxu0 0
    %6407 = vmatpush1.bf16.msra.mxu0 0
    %6408 = vmatprep.subr.bf16.mxu0 0
    %6409 = vmatpush1.bf16.msra.mxu0 0
    %6410 = vmatprep.mubr.bf16.mxu0 0
    %6411 = vmatmul.mubr.bf16.gmra.mrb[0].mxu0 %v6377
    %v6412 = vpop.f32.mrb[0].mxu0
    %v6413 = vadd.f32 0.0, %v6412
    %v6414 = vpop.f32.mrb[0].mxu0
    %v6415 = vpop.f32.mrb[0].mxu0
    %v6416 = vadd.f32 0.0, %v6415
    %v6417 = vpop.f32.mrb[0].mxu0
    %6418 = vdwg.mxu0
    %vm6419 = vcmp.gt.f32.partialorder %v6413, %v6375
    %vm6420 = vcmp.gt.f32.partialorder %v6416, %v6376
    %v6421 = vsel %vm6419, 3.0, %v6373
    %v6422 = vsel %vm6420, 3.0, %v6374
    %v6423 = vsel %vm6419, %v6413, %v6375
    %v6424 = vsel %vm6420, %v6416, %v6376
    %v6425 = vpack.c.bf16 %v6019, %v6015
    %6426 = vmatprep.subr.bf16.mxu0 0
    %6427 = vmatpush1.bf16.msra.mxu0 %v6159
    %6428 = vmatprep.subr.bf16.mxu0 0
    %6429 = vmatpush1.bf16.msra.mxu0 %v6160
    %6430 = vmatprep.subr.bf16.mxu0 0
    %6431 = vmatpush1.bf16.msra.mxu0 %v6161
    %6432 = vmatprep.subr.bf16.mxu0 0
    %6433 = vmatpush1.bf16.msra.mxu0 %v6162
    %6434 = vmatprep.subr.bf16.mxu0 0
    %6435 = vmatpush1.bf16.msra.mxu0 %v6163
    %6436 = vmatprep.subr.bf16.mxu0 0
    %6437 = vmatpush1.bf16.msra.mxu0 %v6164
    %6438 = vmatprep.subr.bf16.mxu0 0
    %6439 = vmatpush1.bf16.msra.mxu0 %v6165
    %6440 = vmatprep.subr.bf16.mxu0 0
    %6441 = vmatpush1.bf16.msra.mxu0 %v6166
    %6442 = vmatprep.subr.bf16.mxu0 0
    %6443 = vmatpush1.bf16.msra.mxu0 0
    %6444 = vmatprep.subr.bf16.mxu0 0
    %6445 = vmatpush1.bf16.msra.mxu0 0
    %6446 = vmatprep.subr.bf16.mxu0 0
    %6447 = vmatpush1.bf16.msra.mxu0 0
    %6448 = vmatprep.subr.bf16.mxu0 0
    %6449 = vmatpush1.bf16.msra.mxu0 0
    %6450 = vmatprep.subr.bf16.mxu0 0
    %6451 = vmatpush1.bf16.msra.mxu0 0
    %6452 = vmatprep.subr.bf16.mxu0 0
    %6453 = vmatpush1.bf16.msra.mxu0 0
    %6454 = vmatprep.subr.bf16.mxu0 0
    %6455 = vmatpush1.bf16.msra.mxu0 0
    %6456 = vmatprep.subr.bf16.mxu0 0
    %6457 = vmatpush1.bf16.msra.mxu0 0
    %6458 = vmatprep.mubr.bf16.mxu0 0
    %6459 = vmatmul.mubr.bf16.gmra.mrb[0].mxu0 %v6425
    %v6460 = vpop.f32.mrb[0].mxu0
    %v6461 = vadd.f32 0.0, %v6460
    %v6462 = vpop.f32.mrb[0].mxu0
    %v6463 = vpop.f32.mrb[0].mxu0
    %v6464 = vadd.f32 0.0, %v6463
    %v6465 = vpop.f32.mrb[0].mxu0
    %6466 = vdwg.mxu0
    %vm6467 = vcmp.gt.f32.partialorder %v6461, %v6423
    %vm6468 = vcmp.gt.f32.partialorder %v6464, %v6424
    %v6469 = vsel %vm6467, 4.0, %v6421
    %v6470 = vsel %vm6468, 4.0, %v6422
    %v6471 = vsel %vm6467, %v6461, %v6423
    %v6472 = vsel %vm6468, %v6464, %v6424
    %v6473 = vpack.c.bf16 %v6021, %v6017
    %6474 = vmatprep.subr.bf16.mxu0 0
    %6475 = vmatpush1.bf16.msra.mxu0 %v6159
    %6476 = vmatprep.subr.bf16.mxu0 0
    %6477 = vmatpush1.bf16.msra.mxu0 %v6160
    %6478 = vmatprep.subr.bf16.mxu0 0
    %6479 = vmatpush1.bf16.msra.mxu0 %v6161
    %6480 = vmatprep.subr.bf16.mxu0 0
    %6481 = vmatpush1.bf16.msra.mxu0 %v6162
    %6482 = vmatprep.subr.bf16.mxu0 0
    %6483 = vmatpush1.bf16.msra.mxu0 %v6163
    %6484 = vmatprep.subr.bf16.mxu0 0
    %6485 = vmatpush1.bf16.msra.mxu0 %v6164
    %6486 = vmatprep.subr.bf16.mxu0 0
    %6487 = vmatpush1.bf16.msra.mxu0 %v6165
    %6488 = vmatprep.subr.bf16.mxu0 0
    %6489 = vmatpush1.bf16.msra.mxu0 %v6166
    %6490 = vmatprep.subr.bf16.mxu0 0
    %6491 = vmatpush1.bf16.msra.mxu0 0
    %6492 = vmatprep.subr.bf16.mxu0 0
    %6493 = vmatpush1.bf16.msra.mxu0 0
    %6494 = vmatprep.subr.bf16.mxu0 0
    %6495 = vmatpush1.bf16.msra.mxu0 0
    %6496 = vmatprep.subr.bf16.mxu0 0
    %6497 = vmatpush1.bf16.msra.mxu0 0
    %6498 = vmatprep.subr.bf16.mxu0 0
    %6499 = vmatpush1.bf16.msra.mxu0 0
    %6500 = vmatprep.subr.bf16.mxu0 0
    %6501 = vmatpush1.bf16.msra.mxu0 0
    %6502 = vmatprep.subr.bf16.mxu0 0
    %6503 = vmatpush1.bf16.msra.mxu0 0
    %6504 = vmatprep.subr.bf16.mxu0 0
    %6505 = vmatpush1.bf16.msra.mxu0 0
    %6506 = vmatprep.mubr.bf16.mxu0 0
    %6507 = vmatmul.mubr.bf16.gmra.mrb[0].mxu0 %v6473
    %v6508 = vpop.f32.mrb[0].mxu0
    %v6509 = vadd.f32 0.0, %v6508
    %v6510 = vpop.f32.mrb[0].mxu0
    %v6511 = vpop.f32.mrb[0].mxu0
    %v6512 = vadd.f32 0.0, %v6511
    %v6513 = vpop.f32.mrb[0].mxu0
    %6514 = vdwg.mxu0
    %vm6515 = vcmp.gt.f32.partialorder %v6509, %v6471
    %vm6516 = vcmp.gt.f32.partialorder %v6512, %v6472
    %v6517 = vsel %vm6515, 5.0, %v6469
    %v6518 = vsel %vm6516, 5.0, %v6470
    %v6519 = vsel %vm6515, %v6509, %v6471
    %v6520 = vsel %vm6516, %v6512, %v6472
    %v6521 = vpack.c.bf16 %v6070, %v6066
    %6522 = vmatprep.subr.bf16.mxu0 0
    %6523 = vmatpush1.bf16.msra.mxu0 %v6159
    %6524 = vmatprep.subr.bf16.mxu0 0
    %6525 = vmatpush1.bf16.msra.mxu0 %v6160
    %6526 = vmatprep.subr.bf16.mxu0 0
    %6527 = vmatpush1.bf16.msra.mxu0 %v6161
    %6528 = vmatprep.subr.bf16.mxu0 0
    %6529 = vmatpush1.bf16.msra.mxu0 %v6162
    %6530 = vmatprep.subr.bf16.mxu0 0
    %6531 = vmatpush1.bf16.msra.mxu0 %v6163
    %6532 = vmatprep.subr.bf16.mxu0 0
    %6533 = vmatpush1.bf16.msra.mxu0 %v6164
    %6534 = vmatprep.subr.bf16.mxu0 0
    %6535 = vmatpush1.bf16.msra.mxu0 %v6165
    %6536 = vmatprep.subr.bf16.mxu0 0
    %6537 = vmatpush1.bf16.msra.mxu0 %v6166
    %6538 = vmatprep.subr.bf16.mxu0 0
    %6539 = vmatpush1.bf16.msra.mxu0 0
    %6540 = vmatprep.subr.bf16.mxu0 0
    %6541 = vmatpush1.bf16.msra.mxu0 0
    %6542 = vmatprep.subr.bf16.mxu0 0
    %6543 = vmatpush1.bf16.msra.mxu0 0
    %6544 = vmatprep.subr.bf16.mxu0 0
    %6545 = vmatpush1.bf16.msra.mxu0 0
    %6546 = vmatprep.subr.bf16.mxu0 0
    %6547 = vmatpush1.bf16.msra.mxu0 0
    %6548 = vmatprep.subr.bf16.mxu0 0
    %6549 = vmatpush1.bf16.msra.mxu0 0
    %6550 = vmatprep.subr.bf16.mxu0 0
    %6551 = vmatpush1.bf16.msra.mxu0 0
    %6552 = vmatprep.subr.bf16.mxu0 0
    %6553 = vmatpush1.bf16.msra.mxu0 0
    %6554 = vmatprep.mubr.bf16.mxu0 0
    %6555 = vmatmul.mubr.bf16.gmra.mrb[0].mxu0 %v6521
    %v6556 = vpop.f32.mrb[0].mxu0
    %v6557 = vadd.f32 0.0, %v6556
    %v6558 = vpop.f32.mrb[0].mxu0
    %v6559 = vpop.f32.mrb[0].mxu0
    %v6560 = vadd.f32 0.0, %v6559
    %v6561 = vpop.f32.mrb[0].mxu0
    %6562 = vdwg.mxu0
    %vm6563 = vcmp.gt.f32.partialorder %v6557, %v6519
    %vm6564 = vcmp.gt.f32.partialorder %v6560, %v6520
    %v6565 = vsel %vm6563, 6.0, %v6517
    %v6566 = vsel %vm6564, 6.0, %v6518
    %v6567 = vsel %vm6563, %v6557, %v6519
    %v6568 = vsel %vm6564, %v6560, %v6520
    %v6569 = vpack.c.bf16 %v6072, %v6068
    %6570 = vmatprep.subr.bf16.mxu0 0
    %6571 = vmatpush1.bf16.msra.mxu0 %v6159
    %6572 = vmatprep.subr.bf16.mxu0 0
    %6573 = vmatpush1.bf16.msra.mxu0 %v6160
    %6574 = vmatprep.subr.bf16.mxu0 0
    %6575 = vmatpush1.bf16.msra.mxu0 %v6161
    %6576 = vmatprep.subr.bf16.mxu0 0
    %6577 = vmatpush1.bf16.msra.mxu0 %v6162
    %6578 = vmatprep.subr.bf16.mxu0 0
    %6579 = vmatpush1.bf16.msra.mxu0 %v6163
    %6580 = vmatprep.subr.bf16.mxu0 0
    %6581 = vmatpush1.bf16.msra.mxu0 %v6164
    %6582 = vmatprep.subr.bf16.mxu0 0
    %6583 = vmatpush1.bf16.msra.mxu0 %v6165
    %6584 = vmatprep.subr.bf16.mxu0 0
    %6585 = vmatpush1.bf16.msra.mxu0 %v6166
    %6586 = vmatprep.subr.bf16.mxu0 0
    %6587 = vmatpush1.bf16.msra.mxu0 0
    %6588 = vmatprep.subr.bf16.mxu0 0
    %6589 = vmatpush1.bf16.msra.mxu0 0
    %6590 = vmatprep.subr.bf16.mxu0 0
    %6591 = vmatpush1.bf16.msra.mxu0 0
    %6592 = vmatprep.subr.bf16.mxu0 0
    %6593 = vmatpush1.bf16.msra.mxu0 0
    %6594 = vmatprep.subr.bf16.mxu0 0
    %6595 = vmatpush1.bf16.msra.mxu0 0
    %6596 = vmatprep.subr.bf16.mxu0 0
    %6597 = vmatpush1.bf16.msra.mxu0 0
    %6598 = vmatprep.subr.bf16.mxu0 0
    %6599 = vmatpush1.bf16.msra.mxu0 0
    %6600 = vmatprep.subr.bf16.mxu0 0
    %6601 = vmatpush1.bf16.msra.mxu0 0
    %6602 = vmatprep.mubr.bf16.mxu0 0
    %6603 = vmatmul.mubr.bf16.gmra.mrb[0].mxu0 %v6569
    %v6604 = vpop.f32.mrb[0].mxu0
    %v6605 = vadd.f32 0.0, %v6604
    %v6606 = vpop.f32.mrb[0].mxu0
    %v6607 = vpop.f32.mrb[0].mxu0
    %v6608 = vadd.f32 0.0, %v6607
    %v6609 = vpop.f32.mrb[0].mxu0
    %6610 = vdwg.mxu0
    %vm6611 = vcmp.gt.f32.partialorder %v6605, %v6567
    %vm6612 = vcmp.gt.f32.partialorder %v6608, %v6568
    %v6613 = vsel %vm6611, 7.0, %v6565
    %v6614 = vsel %vm6612, 7.0, %v6566
    %6617 = vrot.lane.b32.xlu0 %v6613, 9
    %v6618 = vpop.permute.xlu0 %6617
    %6619 = vrot.lane.b32.xlu0 %v6614, 9
    %v6620 = vpop.permute.xlu0 %6619
    %v6623 = vsel %vm6211, %v6237, %v6618
    %v6624 = vsel %vm6211, %v6238, %v6620
    %vm6625 = vcmask 146432
    %v6626 = vsel %vm6625, %v6623, %v5375
    %v6627 = vsel %vm6625, %v6624, %v5376
    %vm6628 = vcmask 154624
    %v6629 = vsel %vm6628, %v6626, 0.0
    %v6630 = vsel %vm6628, %v6627, 0.0
    %v6633 = vrot.slane %v5191, 1
    %v6634 = vrot.slane %v5196, 1
    %v6635 = vsel %vm2025, %v6633, %v6634
    %6638 = vxpose.xlu0.b32.start [1/16] %v6635, 128
    %6639 = vxpose.xlu0.b32.cont [2/16] %v6634, 128
    %6640 = vxpose.xlu0.b32.cont [3/16] 0.0, 128
    %6641 = vxpose.xlu0.b32.cont [4/16] 0.0, 128
    %6642 = vxpose.xlu0.b32.cont [5/16] 0.0, 128
    %6643 = vxpose.xlu0.b32.cont [6/16] 0.0, 128
    %6644 = vxpose.xlu0.b32.cont [7/16] 0.0, 128
    %6645 = vxpose.xlu0.b32.cont [8/16] 0.0, 128
    %6646 = vxpose.xlu0.b32.cont [9/16] 0.0, 128
    %6647 = vxpose.xlu0.b32.cont [10/16] 0.0, 128
    %6648 = vxpose.xlu0.b32.cont [11/16] 0.0, 128
    %6649 = vxpose.xlu0.b32.cont [12/16] 0.0, 128
    %6650 = vxpose.xlu0.b32.cont [13/16] 0.0, 128
    %6651 = vxpose.xlu0.b32.cont [14/16] 0.0, 128
    %6652 = vxpose.xlu0.b32.cont [15/16] 0.0, 128
    %6653 = vxpose.xlu0.b32.end [16/16] 0.0, 128
    %v6654 = vpop.trf.xlu0
    %v6655 = vpop.trf.xlu0
    %v6656 = vpop.trf.xlu0
    %v6657 = vpop.trf.xlu0
    %v6658 = vpop.trf.xlu0
    %v6659 = vpop.trf.xlu0
    %v6660 = vpop.trf.xlu0
    %v6661 = vpop.trf.xlu0
    %v6662 = vpop.trf.xlu0
    %v6663 = vpop.trf.xlu0
    %v6664 = vpop.trf.xlu0
    %v6665 = vpop.trf.xlu0
    %v6666 = vpop.trf.xlu0
    %v6667 = vpop.trf.xlu0
    %v6668 = vpop.trf.xlu0
    %v6669 = vpop.trf.xlu0
    %v6670 = vpack.c.bf16 %v6655, %v6654
    %v6671 = vpack.c.bf16 %v6657, %v6656
    %v6672 = vpack.c.bf16 %v6659, %v6658
    %v6673 = vpack.c.bf16 %v6661, %v6660
    %v6674 = vpack.c.bf16 %v6663, %v6662
    %v6675 = vpack.c.bf16 %v6665, %v6664
    %v6676 = vpack.c.bf16 %v6667, %v6666
    %v6677 = vpack.c.bf16 %v6669, %v6668
    %v6680 = vrot.slane %v5193, 1
    %v6681 = vrot.slane %v5198, 1
    %v6682 = vsel %vm2025, %v6680, %v6681
    %6685 = vxpose.xlu0.b32.start [1/16] %v6682, 128
    %6686 = vxpose.xlu0.b32.cont [2/16] %v6681, 128
    %6687 = vxpose.xlu0.b32.cont [3/16] 0.0, 128
    %6688 = vxpose.xlu0.b32.cont [4/16] 0.0, 128
    %6689 = vxpose.xlu0.b32.cont [5/16] 0.0, 128
    %6690 = vxpose.xlu0.b32.cont [6/16] 0.0, 128
    %6691 = vxpose.xlu0.b32.cont [7/16] 0.0, 128
    %6692 = vxpose.xlu0.b32.cont [8/16] 0.0, 128
    %6693 = vxpose.xlu0.b32.cont [9/16] 0.0, 128
    %6694 = vxpose.xlu0.b32.cont [10/16] 0.0, 128
    %6695 = vxpose.xlu0.b32.cont [11/16] 0.0, 128
    %6696 = vxpose.xlu0.b32.cont [12/16] 0.0, 128
    %6697 = vxpose.xlu0.b32.cont [13/16] 0.0, 128
    %6698 = vxpose.xlu0.b32.cont [14/16] 0.0, 128
    %6699 = vxpose.xlu0.b32.cont [15/16] 0.0, 128
    %6700 = vxpose.xlu0.b32.end [16/16] 0.0, 128
    %v6701 = vpop.trf.xlu0
    %v6702 = vpop.trf.xlu0
    %v6703 = vpop.trf.xlu0
    %v6704 = vpop.trf.xlu0
    %v6705 = vpop.trf.xlu0
    %v6706 = vpop.trf.xlu0
    %v6707 = vpop.trf.xlu0
    %v6708 = vpop.trf.xlu0
    %v6709 = vpop.trf.xlu0
    %v6710 = vpop.trf.xlu0
    %v6711 = vpop.trf.xlu0
    %v6712 = vpop.trf.xlu0
    %v6713 = vpop.trf.xlu0
    %v6714 = vpop.trf.xlu0
    %v6715 = vpop.trf.xlu0
    %v6716 = vpop.trf.xlu0
    %v6717 = vpack.c.bf16 %v6702, %v6701
    %v6718 = vpack.c.bf16 %v6704, %v6703
    %v6719 = vpack.c.bf16 %v6706, %v6705
    %v6720 = vpack.c.bf16 %v6708, %v6707
    %v6721 = vpack.c.bf16 %v6710, %v6709
    %v6722 = vpack.c.bf16 %v6712, %v6711
    %v6723 = vpack.c.bf16 %v6714, %v6713
    %v6724 = vpack.c.bf16 %v6716, %v6715
    %v6725 = vpack.c.bf16 %v5487, %v5482
    %v6727 = vshrl.u32 %v6725, 16
    %v6729 = vshll.u32 %v6725, 16
    %v6731 = vrot.slane %v6729, 1
    %v6732 = vor.u32 %v6727, %v6731
    %6734 = vmatprep.subr.bf16.mxu0 0
    %6735 = vmatpush1.bf16.msra.mxu0 %v6670
    %6736 = vmatprep.subr.bf16.mxu0 0
    %6737 = vmatpush1.bf16.msra.mxu0 %v6671
    %6738 = vmatprep.subr.bf16.mxu0 0
    %6739 = vmatpush1.bf16.msra.mxu0 %v6672
    %6740 = vmatprep.subr.bf16.mxu0 0
    %6741 = vmatpush1.bf16.msra.mxu0 %v6673
    %6742 = vmatprep.subr.bf16.mxu0 0
    %6743 = vmatpush1.bf16.msra.mxu0 %v6674
    %6744 = vmatprep.subr.bf16.mxu0 0
    %6745 = vmatpush1.bf16.msra.mxu0 %v6675
    %6746 = vmatprep.subr.bf16.mxu0 0
    %6747 = vmatpush1.bf16.msra.mxu0 %v6676
    %6748 = vmatprep.subr.bf16.mxu0 0
    %6749 = vmatpush1.bf16.msra.mxu0 %v6677
    %6750 = vmatprep.subr.bf16.mxu0 0
    %6751 = vmatpush1.bf16.msra.mxu0 0
    %6752 = vmatprep.subr.bf16.mxu0 0
    %6753 = vmatpush1.bf16.msra.mxu0 0
    %6754 = vmatprep.subr.bf16.mxu0 0
    %6755 = vmatpush1.bf16.msra.mxu0 0
    %6756 = vmatprep.subr.bf16.mxu0 0
    %6757 = vmatpush1.bf16.msra.mxu0 0
    %6758 = vmatprep.subr.bf16.mxu0 0
    %6759 = vmatpush1.bf16.msra.mxu0 0
    %6760 = vmatprep.subr.bf16.mxu0 0
    %6761 = vmatpush1.bf16.msra.mxu0 0
    %6762 = vmatprep.subr.bf16.mxu0 0
    %6763 = vmatpush1.bf16.msra.mxu0 0
    %6764 = vmatprep.subr.bf16.mxu0 0
    %6765 = vmatpush1.bf16.msra.mxu0 0
    %6766 = vmatprep.mubr.bf16.mxu0 0
    %6767 = vmatmul.mubr.bf16.gmra.mrb[0].mxu0 %v6732
    %v6768 = vpop.f32.mrb[0].mxu0
    %v6769 = vadd.f32 0.0, %v6768
    %v6770 = vpop.f32.mrb[0].mxu0
    %v6771 = vpop.f32.mrb[0].mxu0
    %v6772 = vadd.f32 0.0, %v6771
    %v6773 = vpop.f32.mrb[0].mxu0
    %6774 = vdwg.mxu0
    %v6775 = vsel %vm6085, -inf, %v6769
    %v6776 = vsel %vm6086, -inf, %v6772
    %v6777 = vsel %vm6211, %v6775, -inf
    %6778 = vmax.xlane.f32.xlu0 %v6777
    %v6779 = vpop.xlane.xlu0 %6778
    %v6780 = vsel %vm6215, %v6776, -inf
    %6781 = vmax.xlane.f32.xlu0 %v6780
    %v6782 = vpop.xlane.xlu0 %6781
    %v6783 = vsub.f32 %v6775, %v6779
    %v6784 = vsub.f32 %v6776, %v6782
    %v6785 = vmul.f32 %v6783, 1.442695
    %v6786 = vpow.pop %v6785
    %v6787 = vmul.f32 %v6784, 1.442695
    %v6788 = vpow.pop %v6787
    %v6789 = vsel %vm6211, %v6786, 0.0
    %6790 = vadd.xlane.f32.xlu0 %v6789
    %v6791 = vpop.xlane.xlu0 %6790
    %v6792 = vsel %vm6215, %v6788, 0.0
    %6793 = vadd.xlane.f32.xlu0 %v6792
    %v6794 = vpop.xlane.xlu0 %6793
    %v6795 = vlog2.pop %v6791
    %v6796 = vmul.f32 %v6795, 0.6931472
    %v6797 = vlog2.pop %v6794
    %v6798 = vmul.f32 %v6797, 0.6931472
    %v6799 = vadd.f32 %v6796, %v6779
    %v6800 = vadd.f32 %v6798, %v6782
    %v6801 = vsub.f32 %v6775, %v6799
    %v6802 = vsub.f32 %v6776, %v6800
    %v6803 = vpack.c.bf16 %v5923, %v5917
    %v6805 = vshrl.u32 %v6803, 16
    %v6807 = vshll.u32 %v6803, 16
    %v6809 = vrot.slane %v6807, 1
    %v6810 = vor.u32 %v6805, %v6809
    %6812 = vmatprep.subr.bf16.mxu0 0
    %6813 = vmatpush1.bf16.msra.mxu0 %v6717
    %6814 = vmatprep.subr.bf16.mxu0 0
    %6815 = vmatpush1.bf16.msra.mxu0 %v6718
    %6816 = vmatprep.subr.bf16.mxu0 0
    %6817 = vmatpush1.bf16.msra.mxu0 %v6719
    %6818 = vmatprep.subr.bf16.mxu0 0
    %6819 = vmatpush1.bf16.msra.mxu0 %v6720
    %6820 = vmatprep.subr.bf16.mxu0 0
    %6821 = vmatpush1.bf16.msra.mxu0 %v6721
    %6822 = vmatprep.subr.bf16.mxu0 0
    %6823 = vmatpush1.bf16.msra.mxu0 %v6722
    %6824 = vmatprep.subr.bf16.mxu0 0
    %6825 = vmatpush1.bf16.msra.mxu0 %v6723
    %6826 = vmatprep.subr.bf16.mxu0 0
    %6827 = vmatpush1.bf16.msra.mxu0 %v6724
    %6828 = vmatprep.subr.bf16.mxu0 0
    %6829 = vmatpush1.bf16.msra.mxu0 0
    %6830 = vmatprep.subr.bf16.mxu0 0
    %6831 = vmatpush1.bf16.msra.mxu0 0
    %6832 = vmatprep.subr.bf16.mxu0 0
    %6833 = vmatpush1.bf16.msra.mxu0 0
    %6834 = vmatprep.subr.bf16.mxu0 0
    %6835 = vmatpush1.bf16.msra.mxu0 0
    %6836 = vmatprep.subr.bf16.mxu0 0
    %6837 = vmatpush1.bf16.msra.mxu0 0
    %6838 = vmatprep.subr.bf16.mxu0 0
    %6839 = vmatpush1.bf16.msra.mxu0 0
    %6840 = vmatprep.subr.bf16.mxu0 0
    %6841 = vmatpush1.bf16.msra.mxu0 0
    %6842 = vmatprep.subr.bf16.mxu0 0
    %6843 = vmatpush1.bf16.msra.mxu0 0
    %6844 = vmatprep.mubr.bf16.mxu0 0
    %6845 = vmatmul.mubr.bf16.gmra.mrb[0].mxu0 %v6810
    %v6846 = vpop.f32.mrb[0].mxu0
    %v6847 = vadd.f32 0.0, %v6846
    %v6848 = vpop.f32.mrb[0].mxu0
    %v6849 = vpop.f32.mrb[0].mxu0
    %v6850 = vadd.f32 0.0, %v6849
    %v6851 = vpop.f32.mrb[0].mxu0
    %6852 = vdwg.mxu0
    %v6853 = vpack.c.bf16 %v5925, %v5919
    %v6855 = vshrl.u32 %v6853, 16
    %v6857 = vshll.u32 %v6853, 16
    %v6859 = vrot.slane %v6857, 1
    %v6860 = vor.u32 %v6855, %v6859
    %6862 = vmatprep.subr.bf16.mxu0 0
    %6863 = vmatpush1.bf16.msra.mxu0 %v6717
    %6864 = vmatprep.subr.bf16.mxu0 0
    %6865 = vmatpush1.bf16.msra.mxu0 %v6718
    %6866 = vmatprep.subr.bf16.mxu0 0
    %6867 = vmatpush1.bf16.msra.mxu0 %v6719
    %6868 = vmatprep.subr.bf16.mxu0 0
    %6869 = vmatpush1.bf16.msra.mxu0 %v6720
    %6870 = vmatprep.subr.bf16.mxu0 0
    %6871 = vmatpush1.bf16.msra.mxu0 %v6721
    %6872 = vmatprep.subr.bf16.mxu0 0
    %6873 = vmatpush1.bf16.msra.mxu0 %v6722
    %6874 = vmatprep.subr.bf16.mxu0 0
    %6875 = vmatpush1.bf16.msra.mxu0 %v6723
    %6876 = vmatprep.subr.bf16.mxu0 0
    %6877 = vmatpush1.bf16.msra.mxu0 %v6724
    %6878 = vmatprep.subr.bf16.mxu0 0
    %6879 = vmatpush1.bf16.msra.mxu0 0
    %6880 = vmatprep.subr.bf16.mxu0 0
    %6881 = vmatpush1.bf16.msra.mxu0 0
    %6882 = vmatprep.subr.bf16.mxu0 0
    %6883 = vmatpush1.bf16.msra.mxu0 0
    %6884 = vmatprep.subr.bf16.mxu0 0
    %6885 = vmatpush1.bf16.msra.mxu0 0
    %6886 = vmatprep.subr.bf16.mxu0 0
    %6887 = vmatpush1.bf16.msra.mxu0 0
    %6888 = vmatprep.subr.bf16.mxu0 0
    %6889 = vmatpush1.bf16.msra.mxu0 0
    %6890 = vmatprep.subr.bf16.mxu0 0
    %6891 = vmatpush1.bf16.msra.mxu0 0
    %6892 = vmatprep.subr.bf16.mxu0 0
    %6893 = vmatpush1.bf16.msra.mxu0 0
    %6894 = vmatprep.mubr.bf16.mxu0 0
    %6895 = vmatmul.mubr.bf16.gmra.mrb[0].mxu0 %v6860
    %v6896 = vpop.f32.mrb[0].mxu0
    %v6897 = vadd.f32 0.0, %v6896
    %v6898 = vpop.f32.mrb[0].mxu0
    %v6899 = vpop.f32.mrb[0].mxu0
    %v6900 = vadd.f32 0.0, %v6899
    %v6901 = vpop.f32.mrb[0].mxu0
    %6902 = vdwg.mxu0
    %vm6903 = vcmp.gt.f32.partialorder %v6897, %v6847
    %vm6904 = vcmp.gt.f32.partialorder %v6900, %v6850
    %v6905 = vsel %vm6903, 1.0, 0.0
    %v6906 = vsel %vm6904, 1.0, 0.0
    %v6907 = vsel %vm6903, %v6897, %v6847
    %v6908 = vsel %vm6904, %v6900, %v6850
    %v6909 = vpack.c.bf16 %v5974, %v5968
    %v6911 = vshrl.u32 %v6909, 16
    %v6913 = vshll.u32 %v6909, 16
    %v6915 = vrot.slane %v6913, 1
    %v6916 = vor.u32 %v6911, %v6915
    %6918 = vmatprep.subr.bf16.mxu0 0
    %6919 = vmatpush1.bf16.msra.mxu0 %v6717
    %6920 = vmatprep.subr.bf16.mxu0 0
    %6921 = vmatpush1.bf16.msra.mxu0 %v6718
    %6922 = vmatprep.subr.bf16.mxu0 0
    %6923 = vmatpush1.bf16.msra.mxu0 %v6719
    %6924 = vmatprep.subr.bf16.mxu0 0
    %6925 = vmatpush1.bf16.msra.mxu0 %v6720
    %6926 = vmatprep.subr.bf16.mxu0 0
    %6927 = vmatpush1.bf16.msra.mxu0 %v6721
    %6928 = vmatprep.subr.bf16.mxu0 0
    %6929 = vmatpush1.bf16.msra.mxu0 %v6722
    %6930 = vmatprep.subr.bf16.mxu0 0
    %6931 = vmatpush1.bf16.msra.mxu0 %v6723
    %6932 = vmatprep.subr.bf16.mxu0 0
    %6933 = vmatpush1.bf16.msra.mxu0 %v6724
    %6934 = vmatprep.subr.bf16.mxu0 0
    %6935 = vmatpush1.bf16.msra.mxu0 0
    %6936 = vmatprep.subr.bf16.mxu0 0
    %6937 = vmatpush1.bf16.msra.mxu0 0
    %6938 = vmatprep.subr.bf16.mxu0 0
    %6939 = vmatpush1.bf16.msra.mxu0 0
    %6940 = vmatprep.subr.bf16.mxu0 0
    %6941 = vmatpush1.bf16.msra.mxu0 0
    %6942 = vmatprep.subr.bf16.mxu0 0
    %6943 = vmatpush1.bf16.msra.mxu0 0
    %6944 = vmatprep.subr.bf16.mxu0 0
    %6945 = vmatpush1.bf16.msra.mxu0 0
    %6946 = vmatprep.subr.bf16.mxu0 0
    %6947 = vmatpush1.bf16.msra.mxu0 0
    %6948 = vmatprep.subr.bf16.mxu0 0
    %6949 = vmatpush1.bf16.msra.mxu0 0
    %6950 = vmatprep.mubr.bf16.mxu0 0
    %6951 = vmatmul.mubr.bf16.gmra.mrb[0].mxu0 %v6916
    %v6952 = vpop.f32.mrb[0].mxu0
    %v6953 = vadd.f32 0.0, %v6952
    %v6954 = vpop.f32.mrb[0].mxu0
    %v6955 = vpop.f32.mrb[0].mxu0
    %v6956 = vadd.f32 0.0, %v6955
    %v6957 = vpop.f32.mrb[0].mxu0
    %6958 = vdwg.mxu0
    %vm6959 = vcmp.gt.f32.partialorder %v6953, %v6907
    %vm6960 = vcmp.gt.f32.partialorder %v6956, %v6908
    %v6961 = vsel %vm6959, 2.0, %v6905
    %v6962 = vsel %vm6960, 2.0, %v6906
    %v6963 = vsel %vm6959, %v6953, %v6907
    %v6964 = vsel %vm6960, %v6956, %v6908
    %v6965 = vpack.c.bf16 %v5976, %v5970
    %v6967 = vshrl.u32 %v6965, 16
    %v6969 = vshll.u32 %v6965, 16
    %v6971 = vrot.slane %v6969, 1
    %v6972 = vor.u32 %v6967, %v6971
    %6974 = vmatprep.subr.bf16.mxu0 0
    %6975 = vmatpush1.bf16.msra.mxu0 %v6717
    %6976 = vmatprep.subr.bf16.mxu0 0
    %6977 = vmatpush1.bf16.msra.mxu0 %v6718
    %6978 = vmatprep.subr.bf16.mxu0 0
    %6979 = vmatpush1.bf16.msra.mxu0 %v6719
    %6980 = vmatprep.subr.bf16.mxu0 0
    %6981 = vmatpush1.bf16.msra.mxu0 %v6720
    %6982 = vmatprep.subr.bf16.mxu0 0
    %6983 = vmatpush1.bf16.msra.mxu0 %v6721
    %6984 = vmatprep.subr.bf16.mxu0 0
    %6985 = vmatpush1.bf16.msra.mxu0 %v6722
    %6986 = vmatprep.subr.bf16.mxu0 0
    %6987 = vmatpush1.bf16.msra.mxu0 %v6723
    %6988 = vmatprep.subr.bf16.mxu0 0
    %6989 = vmatpush1.bf16.msra.mxu0 %v6724
    %6990 = vmatprep.subr.bf16.mxu0 0
    %6991 = vmatpush1.bf16.msra.mxu0 0
    %6992 = vmatprep.subr.bf16.mxu0 0
    %6993 = vmatpush1.bf16.msra.mxu0 0
    %6994 = vmatprep.subr.bf16.mxu0 0
    %6995 = vmatpush1.bf16.msra.mxu0 0
    %6996 = vmatprep.subr.bf16.mxu0 0
    %6997 = vmatpush1.bf16.msra.mxu0 0
    %6998 = vmatprep.subr.bf16.mxu0 0
    %6999 = vmatpush1.bf16.msra.mxu0 0
    %7000 = vmatprep.subr.bf16.mxu0 0
    %7001 = vmatpush1.bf16.msra.mxu0 0
    %7002 = vmatprep.subr.bf16.mxu0 0
    %7003 = vmatpush1.bf16.msra.mxu0 0
    %7004 = vmatprep.subr.bf16.mxu0 0
    %7005 = vmatpush1.bf16.msra.mxu0 0
    %7006 = vmatprep.mubr.bf16.mxu0 0
    %7007 = vmatmul.mubr.bf16.gmra.mrb[0].mxu0 %v6972
    %v7008 = vpop.f32.mrb[0].mxu0
    %v7009 = vadd.f32 0.0, %v7008
    %v7010 = vpop.f32.mrb[0].mxu0
    %v7011 = vpop.f32.mrb[0].mxu0
    %v7012 = vadd.f32 0.0, %v7011
    %v7013 = vpop.f32.mrb[0].mxu0
    %7014 = vdwg.mxu0
    %vm7015 = vcmp.gt.f32.partialorder %v7009, %v6963
    %vm7016 = vcmp.gt.f32.partialorder %v7012, %v6964
    %v7017 = vsel %vm7015, 3.0, %v6961
    %v7018 = vsel %vm7016, 3.0, %v6962
    %v7019 = vsel %vm7015, %v7009, %v6963
    %v7020 = vsel %vm7016, %v7012, %v6964
    %v7021 = vpack.c.bf16 %v6025, %v6019
    %v7023 = vshrl.u32 %v7021, 16
    %v7025 = vshll.u32 %v7021, 16
    %v7027 = vrot.slane %v7025, 1
    %v7028 = vor.u32 %v7023, %v7027
    %7030 = vmatprep.subr.bf16.mxu0 0
    %7031 = vmatpush1.bf16.msra.mxu0 %v6717
    %7032 = vmatprep.subr.bf16.mxu0 0
    %7033 = vmatpush1.bf16.msra.mxu0 %v6718
    %7034 = vmatprep.subr.bf16.mxu0 0
    %7035 = vmatpush1.bf16.msra.mxu0 %v6719
    %7036 = vmatprep.subr.bf16.mxu0 0
    %7037 = vmatpush1.bf16.msra.mxu0 %v6720
    %7038 = vmatprep.subr.bf16.mxu0 0
    %7039 = vmatpush1.bf16.msra.mxu0 %v6721
    %7040 = vmatprep.subr.bf16.mxu0 0
    %7041 = vmatpush1.bf16.msra.mxu0 %v6722
    %7042 = vmatprep.subr.bf16.mxu0 0
    %7043 = vmatpush1.bf16.msra.mxu0 %v6723
    %7044 = vmatprep.subr.bf16.mxu0 0
    %7045 = vmatpush1.bf16.msra.mxu0 %v6724
    %7046 = vmatprep.subr.bf16.mxu0 0
    %7047 = vmatpush1.bf16.msra.mxu0 0
    %7048 = vmatprep.subr.bf16.mxu0 0
    %7049 = vmatpush1.bf16.msra.mxu0 0
    %7050 = vmatprep.subr.bf16.mxu0 0
    %7051 = vmatpush1.bf16.msra.mxu0 0
    %7052 = vmatprep.subr.bf16.mxu0 0
    %7053 = vmatpush1.bf16.msra.mxu0 0
    %7054 = vmatprep.subr.bf16.mxu0 0
    %7055 = vmatpush1.bf16.msra.mxu0 0
    %7056 = vmatprep.subr.bf16.mxu0 0
    %7057 = vmatpush1.bf16.msra.mxu0 0
    %7058 = vmatprep.subr.bf16.mxu0 0
    %7059 = vmatpush1.bf16.msra.mxu0 0
    %7060 = vmatprep.subr.bf16.mxu0 0
    %7061 = vmatpush1.bf16.msra.mxu0 0
    %7062 = vmatprep.mubr.bf16.mxu0 0
    %7063 = vmatmul.mubr.bf16.gmra.mrb[0].mxu0 %v7028
    %v7064 = vpop.f32.mrb[0].mxu0
    %v7065 = vadd.f32 0.0, %v7064
    %v7066 = vpop.f32.mrb[0].mxu0
    %v7067 = vpop.f32.mrb[0].mxu0
    %v7068 = vadd.f32 0.0, %v7067
    %v7069 = vpop.f32.mrb[0].mxu0
    %7070 = vdwg.mxu0
    %vm7071 = vcmp.gt.f32.partialorder %v7065, %v7019
    %vm7072 = vcmp.gt.f32.partialorder %v7068, %v7020
    %v7073 = vsel %vm7071, 4.0, %v7017
    %v7074 = vsel %vm7072, 4.0, %v7018
    %v7075 = vsel %vm7071, %v7065, %v7019
    %v7076 = vsel %vm7072, %v7068, %v7020
    %v7077 = vpack.c.bf16 %v6027, %v6021
    %v7079 = vshrl.u32 %v7077, 16
    %v7081 = vshll.u32 %v7077, 16
    %v7083 = vrot.slane %v7081, 1
    %v7084 = vor.u32 %v7079, %v7083
    %7086 = vmatprep.subr.bf16.mxu0 0
    %7087 = vmatpush1.bf16.msra.mxu0 %v6717
    %7088 = vmatprep.subr.bf16.mxu0 0
    %7089 = vmatpush1.bf16.msra.mxu0 %v6718
    %7090 = vmatprep.subr.bf16.mxu0 0
    %7091 = vmatpush1.bf16.msra.mxu0 %v6719
    %7092 = vmatprep.subr.bf16.mxu0 0
    %7093 = vmatpush1.bf16.msra.mxu0 %v6720
    %7094 = vmatprep.subr.bf16.mxu0 0
    %7095 = vmatpush1.bf16.msra.mxu0 %v6721
    %7096 = vmatprep.subr.bf16.mxu0 0
    %7097 = vmatpush1.bf16.msra.mxu0 %v6722
    %7098 = vmatprep.subr.bf16.mxu0 0
    %7099 = vmatpush1.bf16.msra.mxu0 %v6723
    %7100 = vmatprep.subr.bf16.mxu0 0
    %7101 = vmatpush1.bf16.msra.mxu0 %v6724
    %7102 = vmatprep.subr.bf16.mxu0 0
    %7103 = vmatpush1.bf16.msra.mxu0 0
    %7104 = vmatprep.subr.bf16.mxu0 0
    %7105 = vmatpush1.bf16.msra.mxu0 0
    %7106 = vmatprep.subr.bf16.mxu0 0
    %7107 = vmatpush1.bf16.msra.mxu0 0
    %7108 = vmatprep.subr.bf16.mxu0 0
    %7109 = vmatpush1.bf16.msra.mxu0 0
    %7110 = vmatprep.subr.bf16.mxu0 0
    %7111 = vmatpush1.bf16.msra.mxu0 0
    %7112 = vmatprep.subr.bf16.mxu0 0
    %7113 = vmatpush1.bf16.msra.mxu0 0
    %7114 = vmatprep.subr.bf16.mxu0 0
    %7115 = vmatpush1.bf16.msra.mxu0 0
    %7116 = vmatprep.subr.bf16.mxu0 0
    %7117 = vmatpush1.bf16.msra.mxu0 0
    %7118 = vmatprep.mubr.bf16.mxu0 0
    %7119 = vmatmul.mubr.bf16.gmra.mrb[0].mxu0 %v7084
    %v7120 = vpop.f32.mrb[0].mxu0
    %v7121 = vadd.f32 0.0, %v7120
    %v7122 = vpop.f32.mrb[0].mxu0
    %v7123 = vpop.f32.mrb[0].mxu0
    %v7124 = vadd.f32 0.0, %v7123
    %v7125 = vpop.f32.mrb[0].mxu0
    %7126 = vdwg.mxu0
    %vm7127 = vcmp.gt.f32.partialorder %v7121, %v7075
    %vm7128 = vcmp.gt.f32.partialorder %v7124, %v7076
    %v7129 = vsel %vm7127, 5.0, %v7073
    %v7130 = vsel %vm7128, 5.0, %v7074
    %v7131 = vsel %vm7127, %v7121, %v7075
    %v7132 = vsel %vm7128, %v7124, %v7076
    %v7133 = vpack.c.bf16 %v6076, %v6070
    %v7135 = vshrl.u32 %v7133, 16
    %v7137 = vshll.u32 %v7133, 16
    %v7139 = vrot.slane %v7137, 1
    %v7140 = vor.u32 %v7135, %v7139
    %7142 = vmatprep.subr.bf16.mxu0 0
    %7143 = vmatpush1.bf16.msra.mxu0 %v6717
    %7144 = vmatprep.subr.bf16.mxu0 0
    %7145 = vmatpush1.bf16.msra.mxu0 %v6718
    %7146 = vmatprep.subr.bf16.mxu0 0
    %7147 = vmatpush1.bf16.msra.mxu0 %v6719
    %7148 = vmatprep.subr.bf16.mxu0 0
    %7149 = vmatpush1.bf16.msra.mxu0 %v6720
    %7150 = vmatprep.subr.bf16.mxu0 0
    %7151 = vmatpush1.bf16.msra.mxu0 %v6721
    %7152 = vmatprep.subr.bf16.mxu0 0
    %7153 = vmatpush1.bf16.msra.mxu0 %v6722
    %7154 = vmatprep.subr.bf16.mxu0 0
    %7155 = vmatpush1.bf16.msra.mxu0 %v6723
    %7156 = vmatprep.subr.bf16.mxu0 0
    %7157 = vmatpush1.bf16.msra.mxu0 %v6724
    %7158 = vmatprep.subr.bf16.mxu0 0
    %7159 = vmatpush1.bf16.msra.mxu0 0
    %7160 = vmatprep.subr.bf16.mxu0 0
    %7161 = vmatpush1.bf16.msra.mxu0 0
    %7162 = vmatprep.subr.bf16.mxu0 0
    %7163 = vmatpush1.bf16.msra.mxu0 0
    %7164 = vmatprep.subr.bf16.mxu0 0
    %7165 = vmatpush1.bf16.msra.mxu0 0
    %7166 = vmatprep.subr.bf16.mxu0 0
    %7167 = vmatpush1.bf16.msra.mxu0 0
    %7168 = vmatprep.subr.bf16.mxu0 0
    %7169 = vmatpush1.bf16.msra.mxu0 0
    %7170 = vmatprep.subr.bf16.mxu0 0
    %7171 = vmatpush1.bf16.msra.mxu0 0
    %7172 = vmatprep.subr.bf16.mxu0 0
    %7173 = vmatpush1.bf16.msra.mxu0 0
    %7174 = vmatprep.mubr.bf16.mxu0 0
    %7175 = vmatmul.mubr.bf16.gmra.mrb[0].mxu0 %v7140
    %v7176 = vpop.f32.mrb[0].mxu0
    %v7177 = vadd.f32 0.0, %v7176
    %v7178 = vpop.f32.mrb[0].mxu0
    %v7179 = vpop.f32.mrb[0].mxu0
    %v7180 = vadd.f32 0.0, %v7179
    %v7181 = vpop.f32.mrb[0].mxu0
    %7182 = vdwg.mxu0
    %vm7183 = vcmp.gt.f32.partialorder %v7177, %v7131
    %vm7184 = vcmp.gt.f32.partialorder %v7180, %v7132
    %v7185 = vsel %vm7183, 6.0, %v7129
    %v7186 = vsel %vm7184, 6.0, %v7130
    %v7187 = vsel %vm7183, %v7177, %v7131
    %v7188 = vsel %vm7184, %v7180, %v7132
    %v7189 = vpack.c.bf16 %v6078, %v6072
    %v7191 = vshrl.u32 %v7189, 16
    %v7193 = vshll.u32 %v7189, 16
    %v7195 = vrot.slane %v7193, 1
    %v7196 = vor.u32 %v7191, %v7195
    %7198 = vmatprep.subr.bf16.mxu0 0
    %7199 = vmatpush1.bf16.msra.mxu0 %v6717
    %7200 = vmatprep.subr.bf16.mxu0 0
    %7201 = vmatpush1.bf16.msra.mxu0 %v6718
    %7202 = vmatprep.subr.bf16.mxu0 0
    %7203 = vmatpush1.bf16.msra.mxu0 %v6719
    %7204 = vmatprep.subr.bf16.mxu0 0
    %7205 = vmatpush1.bf16.msra.mxu0 %v6720
    %7206 = vmatprep.subr.bf16.mxu0 0
    %7207 = vmatpush1.bf16.msra.mxu0 %v6721
    %7208 = vmatprep.subr.bf16.mxu0 0
    %7209 = vmatpush1.bf16.msra.mxu0 %v6722
    %7210 = vmatprep.subr.bf16.mxu0 0
    %7211 = vmatpush1.bf16.msra.mxu0 %v6723
    %7212 = vmatprep.subr.bf16.mxu0 0
    %7213 = vmatpush1.bf16.msra.mxu0 %v6724
    %7214 = vmatprep.subr.bf16.mxu0 0
    %7215 = vmatpush1.bf16.msra.mxu0 0
    %7216 = vmatprep.subr.bf16.mxu0 0
    %7217 = vmatpush1.bf16.msra.mxu0 0
    %7218 = vmatprep.subr.bf16.mxu0 0
    %7219 = vmatpush1.bf16.msra.mxu0 0
    %7220 = vmatprep.subr.bf16.mxu0 0
    %7221 = vmatpush1.bf16.msra.mxu0 0
    %7222 = vmatprep.subr.bf16.mxu0 0
    %7223 = vmatpush1.bf16.msra.mxu0 0
    %7224 = vmatprep.subr.bf16.mxu0 0
    %7225 = vmatpush1.bf16.msra.mxu0 0
    %7226 = vmatprep.subr.bf16.mxu0 0
    %7227 = vmatpush1.bf16.msra.mxu0 0
    %7228 = vmatprep.subr.bf16.mxu0 0
    %7229 = vmatpush1.bf16.msra.mxu0 0
    %7230 = vmatprep.mubr.bf16.mxu0 0
    %7231 = vmatmul.mubr.bf16.gmra.mrb[0].mxu0 %v7196
    %v7232 = vpop.f32.mrb[0].mxu0
    %v7233 = vadd.f32 0.0, %v7232
    %v7234 = vpop.f32.mrb[0].mxu0
    %v7235 = vpop.f32.mrb[0].mxu0
    %v7236 = vadd.f32 0.0, %v7235
    %v7237 = vpop.f32.mrb[0].mxu0
    %7238 = vdwg.mxu0
    %vm7239 = vcmp.gt.f32.partialorder %v7233, %v7187
    %vm7240 = vcmp.gt.f32.partialorder %v7236, %v7188
    %v7241 = vsel %vm7239, 7.0, %v7185
    %v7242 = vsel %vm7240, 7.0, %v7186
    %7245 = vrot.lane.b32.xlu0 %v7241, 9
    %v7246 = vpop.permute.xlu0 %7245
    %7247 = vrot.lane.b32.xlu0 %v7242, 9
    %v7248 = vpop.permute.xlu0 %7247
    %v7253 = vrot.slane %v5376, 1
    %v7254 = vrot.slane %v5377, 1
    %v7255 = vsel %vm2025, %v7253, %v7254
    %v7258 = vsel %vm6211, %v6801, %v7246
    %v7259 = vsel %vm6211, %v6802, %v7248
    %v7260 = vsel %vm6625, %v7258, %v7255
    %v7261 = vsel %vm6625, %v7259, %v7254
    %v7262 = vsel %vm6628, %v7260, 0.0
    %v7263 = vsel %vm6628, %v7261, 0.0
    %v7266 = vrot.slane %v7262, 7
    %v7267 = vrot.slane %v7263, 7
    %v7268 = vsel %vm2009, %v7266, %v7267
    %v7270 = vsel %vm2009, %v6630, %v7266
    %v7273 = vcombine.high %v6629, %v6629
    %v7275 = vunpack.c.l.s4 1966171168
    %v7276 = vunpack.c.0.s8 %v7275
    %v7277 = vlaneseq
    %v7278 = vshrl.u32 %v7277, 7
    %v7279 = vsub.s32 %v7276, %v7278
    %v7280 = vrot.slane %v6629, %v7279
    %v7282 = vunpack.c.l.s4 1966171168
    %v7283 = vunpack.c.0.s8 %v7282
    %v7284 = vlaneseq
    %v7285 = vshrl.u32 %v7284, 7
    %v7286 = vsub.s32 %v7283, %v7285
    %v7287 = vrot.slane %v7273, %v7286
    %v7288 = vcombine.high %v7280, %v7280
    %v7289 = vcombine.high %v7287, %v7287
    %v7291 = vunpack.c.l.s4 1966171168
    %v7292 = vunpack.c.0.s8 %v7291
    %v7293 = vlaneseq
    %v7294 = vshrl.u32 %v7293, 7
    %v7295 = vsub.s32 %v7292, %v7294
    %v7296 = vrot.slane %v7280, %v7295
    %v7298 = vunpack.c.l.s4 1966171168
    %v7299 = vunpack.c.0.s8 %v7298
    %v7300 = vlaneseq
    %v7301 = vshrl.u32 %v7300, 7
    %v7302 = vsub.s32 %v7299, %v7301
    %v7303 = vrot.slane %v7287, %v7302
    %v7305 = vunpack.c.l.s4 1966171168
    %v7306 = vunpack.c.0.s8 %v7305
    %v7307 = vlaneseq
    %v7308 = vshrl.u32 %v7307, 7
    %v7309 = vsub.s32 %v7306, %v7308
    %v7310 = vrot.slane %v7288, %v7309
    %v7312 = vunpack.c.l.s4 1966171168
    %v7313 = vunpack.c.0.s8 %v7312
    %v7314 = vlaneseq
    %v7315 = vshrl.u32 %v7314, 7
    %v7316 = vsub.s32 %v7313, %v7315
    %v7317 = vrot.slane %v7289, %v7316
    %v7318 = vcombine.high %v7296, %v7296
    %v7319 = vcombine.high %v7303, %v7303
    %v7320 = vcombine.high %v7310, %v7310
    %v7321 = vcombine.high %v7317, %v7317
    %v7322 = vcombine.high %v7270, %v7270
    %v7324 = vunpack.c.l.s4 1966171168
    %v7325 = vunpack.c.0.s8 %v7324
    %v7326 = vlaneseq
    %v7327 = vshrl.u32 %v7326, 7
    %v7328 = vsub.s32 %v7325, %v7327
    %v7329 = vrot.slane %v7270, %v7328
    %v7331 = vunpack.c.l.s4 1966171168
    %v7332 = vunpack.c.0.s8 %v7331
    %v7333 = vlaneseq
    %v7334 = vshrl.u32 %v7333, 7
    %v7335 = vsub.s32 %v7332, %v7334
    %v7336 = vrot.slane %v7322, %v7335
    %v7337 = vcombine.high %v7329, %v7329
    %v7338 = vcombine.high %v7336, %v7336
    %v7340 = vunpack.c.l.s4 1966171168
    %v7341 = vunpack.c.0.s8 %v7340
    %v7342 = vlaneseq
    %v7343 = vshrl.u32 %v7342, 7
    %v7344 = vsub.s32 %v7341, %v7343
    %v7345 = vrot.slane %v7329, %v7344
    %v7347 = vunpack.c.l.s4 1966171168
    %v7348 = vunpack.c.0.s8 %v7347
    %v7349 = vlaneseq
    %v7350 = vshrl.u32 %v7349, 7
    %v7351 = vsub.s32 %v7348, %v7350
    %v7352 = vrot.slane %v7336, %v7351
    %v7354 = vunpack.c.l.s4 1966171168
    %v7355 = vunpack.c.0.s8 %v7354
    %v7356 = vlaneseq
    %v7357 = vshrl.u32 %v7356, 7
    %v7358 = vsub.s32 %v7355, %v7357
    %v7359 = vrot.slane %v7337, %v7358
    %v7361 = vunpack.c.l.s4 1966171168
    %v7362 = vunpack.c.0.s8 %v7361
    %v7363 = vlaneseq
    %v7364 = vshrl.u32 %v7363, 7
    %v7365 = vsub.s32 %v7362, %v7364
    %v7366 = vrot.slane %v7338, %v7365
    %v7367 = vcombine.high %v7345, %v7345
    %v7368 = vcombine.high %v7352, %v7352
    %v7369 = vcombine.high %v7359, %v7359
    %v7370 = vcombine.high %v7366, %v7366
    %v7372 = vunpack.c.l.s4 1966171168
    %v7373 = vunpack.c.0.s8 %v7372
    %v7374 = vlaneseq
    %v7375 = vshrl.u32 %v7374, 7
    %v7376 = vsub.s32 %v7373, %v7375
    %v7377 = vrot.slane %v7268, %v7376
    %v7378 = vcombine.high %v7377, %v7377
    %v7380 = vunpack.c.l.s4 1966171168
    %v7381 = vunpack.c.0.s8 %v7380
    %v7382 = vlaneseq
    %v7383 = vshrl.u32 %v7382, 7
    %v7384 = vsub.s32 %v7381, %v7383
    %v7385 = vrot.slane %v7377, %v7384
    %v7387 = vunpack.c.l.s4 1966171168
    %v7388 = vunpack.c.0.s8 %v7387
    %v7389 = vlaneseq
    %v7390 = vshrl.u32 %v7389, 7
    %v7391 = vsub.s32 %v7388, %v7390
    %v7392 = vrot.slane %v7378, %v7391
    %v7393 = vcombine.low %v7296, %v7310
    %v7394 = vcombine.low %v7318, %v7320
    %v7395 = vcombine.low %v7303, %v7317
    %v7396 = vcombine.low %v7319, %v7321
    %v7398 = vunpack.c.l.s4 1966171168
    %v7399 = vunpack.c.0.s8 %v7398
    %v7400 = vlaneseq
    %v7401 = vshrl.u32 %v7400, 7
    %v7402 = vsub.s32 %v7399, %v7401
    %v7403 = vrot.slane %v7393, %v7402
    %v7405 = vunpack.c.l.s4 1966171168
    %v7406 = vunpack.c.0.s8 %v7405
    %v7407 = vlaneseq
    %v7408 = vshrl.u32 %v7407, 7
    %v7409 = vsub.s32 %v7406, %v7408
    %v7410 = vrot.slane %v7394, %v7409
    %v7412 = vunpack.c.l.s4 1966171168
    %v7413 = vunpack.c.0.s8 %v7412
    %v7414 = vlaneseq
    %v7415 = vshrl.u32 %v7414, 7
    %v7416 = vsub.s32 %v7413, %v7415
    %v7417 = vrot.slane %v7395, %v7416
    %v7419 = vunpack.c.l.s4 1966171168
    %v7420 = vunpack.c.0.s8 %v7419
    %v7421 = vlaneseq
    %v7422 = vshrl.u32 %v7421, 7
    %v7423 = vsub.s32 %v7420, %v7422
    %v7424 = vrot.slane %v7396, %v7423
    %v7425 = vcombine.low %v7403, %v7410
    %v7426 = vcombine.low %v7417, %v7424
    %v7428 = vunpack.c.l.s4 1966171168
    %v7429 = vunpack.c.0.s8 %v7428
    %v7430 = vlaneseq
    %v7431 = vshrl.u32 %v7430, 7
    %v7432 = vsub.s32 %v7429, %v7431
    %v7433 = vrot.slane %v7425, %v7432
    %v7435 = vunpack.c.l.s4 1966171168
    %v7436 = vunpack.c.0.s8 %v7435
    %v7437 = vlaneseq
    %v7438 = vshrl.u32 %v7437, 7
    %v7439 = vsub.s32 %v7436, %v7438
    %v7440 = vrot.slane %v7426, %v7439
    %v7441 = vcombine.low %v7433, %v7440
    %v7443 = vunpack.c.l.s4 1966171168
    %v7444 = vunpack.c.0.s8 %v7443
    %v7445 = vlaneseq
    %v7446 = vshrl.u32 %v7445, 7
    %v7447 = vsub.s32 %v7444, %v7446
    %v7448 = vrot.slane %v7345, %v7447
    %v7450 = vunpack.c.l.s4 1966171168
    %v7451 = vunpack.c.0.s8 %v7450
    %v7452 = vlaneseq
    %v7453 = vshrl.u32 %v7452, 7
    %v7454 = vsub.s32 %v7451, %v7453
    %v7455 = vrot.slane %v7448, %v7454
    %v7456 = vcombine.low %v7359, %v7367
    %v7457 = vcombine.low %v7369, %v7352
    %v7458 = vcombine.low %v7366, %v7368
    %v7459 = vcombine.low %v7370, %v7385
    %v7461 = vunpack.c.l.s4 1966171168
    %v7462 = vunpack.c.0.s8 %v7461
    %v7463 = vlaneseq
    %v7464 = vshrl.u32 %v7463, 7
    %v7465 = vsub.s32 %v7462, %v7464
    %v7466 = vrot.slane %v7456, %v7465
    %v7468 = vunpack.c.l.s4 1966171168
    %v7469 = vunpack.c.0.s8 %v7468
    %v7470 = vlaneseq
    %v7471 = vshrl.u32 %v7470, 7
    %v7472 = vsub.s32 %v7469, %v7471
    %v7473 = vrot.slane %v7457, %v7472
    %v7475 = vunpack.c.l.s4 1966171168
    %v7476 = vunpack.c.0.s8 %v7475
    %v7477 = vlaneseq
    %v7478 = vshrl.u32 %v7477, 7
    %v7479 = vsub.s32 %v7476, %v7478
    %v7480 = vrot.slane %v7458, %v7479
    %v7482 = vunpack.c.l.s4 1966171168
    %v7483 = vunpack.c.0.s8 %v7482
    %v7484 = vlaneseq
    %v7485 = vshrl.u32 %v7484, 7
    %v7486 = vsub.s32 %v7483, %v7485
    %v7487 = vrot.slane %v7459, %v7486
    %v7488 = vcombine.low %v7466, %v7473
    %v7489 = vcombine.low %v7480, %v7487
    %v7491 = vunpack.c.l.s4 1966171168
    %v7492 = vunpack.c.0.s8 %v7491
    %v7493 = vlaneseq
    %v7494 = vshrl.u32 %v7493, 7
    %v7495 = vsub.s32 %v7492, %v7494
    %v7496 = vrot.slane %v7488, %v7495
    %v7498 = vunpack.c.l.s4 1966171168
    %v7499 = vunpack.c.0.s8 %v7498
    %v7500 = vlaneseq
    %v7501 = vshrl.u32 %v7500, 7
    %v7502 = vsub.s32 %v7499, %v7501
    %v7503 = vrot.slane %v7489, %v7502
    %v7504 = vcombine.low %v7496, %v7503
    %v7506 = vunpack.c.l.s4 1966171168
    %v7507 = vunpack.c.0.s8 %v7506
    %v7508 = vlaneseq
    %v7509 = vshrl.u32 %v7508, 7
    %v7510 = vsub.s32 %v7507, %v7509
    %v7511 = vrot.slane %v7392, %v7510
    %v7513 = vunpack.c.l.s4 1966171168
    %v7514 = vunpack.c.0.s8 %v7513
    %v7515 = vlaneseq
    %v7516 = vshrl.u32 %v7515, 7
    %v7517 = vsub.s32 %v7514, %v7516
    %v7518 = vrot.slane %v7511, %v7517
    %7523 = vst [vmem:[%s9] sm:$0xff] %v7441
    %7524 = vst [vmem:[%s9 + $0x8] sm:$0x1] %v7455
    %7525 = vst [vmem:[%s9 + $0x10] sm:$0xff] %v7504
    %7526 = vst [vmem:[%s9 + $0x18] sm:$0x1] %v7518
    // Predicated region
    $region42: #{mt_tagger_parser_forward.1} parent=1 // pred_check
      _
    $region43: #{mt_tagger_parser_forward.1} parent=1 // pred_check_branch
      %7528 = sbr.rel (0) target = $region45
    $region44: #{mt_tagger_parser_forward.1} parent=1 // pred_region
      _
    $region45: #{mt_tagger_parser_forward.1} parent=1 // pred_fallthru
      _
    // Predicated region
    $region46: #{mt_tagger_parser_forward.1} parent=1 // pred_check
      _
    $region47: #{mt_tagger_parser_forward.1} parent=1 // pred_check_branch
      %7530 = sbr.rel (0) target = $region49
    $region48: #{mt_tagger_parser_forward.1} parent=1 // pred_region
      _
    $region49: #{mt_tagger_parser_forward.1} parent=1 // pred_fallthru
      _
    %7531 = vsyncpa [#allocation3], 1

</llo_original>
